<compile_context>
chip_gen: v7x
topology: tpu7x:2x2x1
jax: 0.10.0
libtpu: 0.0.40
codegen_flags: <defaults>
</compile_context>

<pallas_src>
import functools
import math

import jax
import jax.numpy as jnp
from jax.experimental import pallas as pl
from jax.experimental.pallas import tpu as pltpu

# ---- Block_NeRF architecture constants (PyTorch module defaults) ----
D_LAYERS = 8             # depth of the xyz MLP
W_HIDDEN = 256           # hidden width
W_HALF = W_HIDDEN // 2   # dir-encoding width
SKIPS = (4,)             # re-inject input_xyz before this layer index
IN_XYZ = 60
IN_DIR = 24
IN_EXP = 8
IN_APP = 32
IN_DEA = IN_DIR + IN_EXP + IN_APP          # 64 (contiguous lanes 60..124 of x)
IN_TOTAL = IN_XYZ + IN_DEA                 # 124
OUT_CH = 4                                 # rgb(3) + sigma(1)


def _relu(v):
    return jnp.maximum(v, 0.0)


def _softplus(v):
    # numerically stable softplus; exp/log run on the EUP slot
    return jnp.maximum(v, 0.0) + jnp.log(1.0 + jnp.exp(-jnp.abs(v)))


def _sigmoid(v):
    return 1.0 / (1.0 + jnp.exp(-v))


def _block_nerf_kernel(xyz_ref, dea_ref,
                       w_xyz0_ref, w_skip_ref, w_stack_ref, b_xyz_ref,
                       w_sigma_ref, w_dir0_feat_ref, w_dir0_dea_ref,
                       w_dir_stack_ref, b_dir_ref, w_rgb_ref, b_head_ref,
                       out_ref):
    """Fused Block_NeRF forward for one (tile_n, .) block of rows."""
    f32 = jnp.float32
    bf16 = jnp.bfloat16

    def bdot(a_f32, w_b16):
        # bf16 MXU matmul with f32 accumulation; elementwise math stays f32.
        return jnp.dot(a_f32.astype(bf16), w_b16, preferred_element_type=f32)

    xyz_b16 = xyz_ref[...].astype(bf16)
    dea_b16 = dea_ref[...].astype(bf16)

    # ---- xyz encoding MLP: layer 0, then layers 1..7 (skip before layer 4) ----
    h = _relu(jnp.dot(xyz_b16, w_xyz0_ref[...], preferred_element_type=f32)
              + b_xyz_ref[0:1, :])
    for i in range(1, D_LAYERS):
        z = bdot(h, w_stack_ref[i - 1])
        if i in SKIPS:
            # cat([h, input_xyz]) realized as split-weight partial matmuls
            z = z + jnp.dot(xyz_b16, w_skip_ref[...], preferred_element_type=f32)
        h = _relu(z + b_xyz_ref[i:i + 1, :])

    # ---- static_sigma head: Linear(W,1) as f32 mul + lane-reduce, Softplus ----
    sigma = _softplus(jnp.sum(h * w_sigma_ref[...], axis=-1, keepdims=True)
                      + b_head_ref[0:1, 3:4])

    # ---- xyz_encoding_final (no activation); stacked at slot D_LAYERS-1 ----
    feat = bdot(h, w_stack_ref[D_LAYERS - 1]) + b_xyz_ref[D_LAYERS:D_LAYERS + 1, :]

    # ---- dir_encoding: cat([feat, dir, exposure, appearance]) as 2 matmuls ----
    d = _relu(bdot(feat, w_dir0_feat_ref[...])
              + jnp.dot(dea_b16, w_dir0_dea_ref[...], preferred_element_type=f32)
              + b_dir_ref[0:1, :])
    for j in range(2):
        d = _relu(bdot(d, w_dir_stack_ref[j]) + b_dir_ref[j + 1:j + 2, :])

    # ---- static_rgb head; fused output block [rgb | sigma] ----
    rgb = _sigmoid(bdot(d, w_rgb_ref[...]) + b_head_ref[0:1, 0:3])

    out_ref[:, 0:3] = rgb.astype(out_ref.dtype)
    out_ref[:, 3:4] = sigma.astype(out_ref.dtype)


def _flatten_params(p):
    """Pack the params dict into the kernel's 11 consolidated arrays.

    Weight matrices corresponding to in-model concatenations are split here
    (kernel never concatenates along the lane axis); matmul weights are cast to
    bf16; biases stay f32.
    """
    bf16 = jnp.bfloat16
    f32 = jnp.float32

    w0, b0 = p["xyz_0"]
    stack, biases = [], [b0]
    w_skip = None
    for i in range(1, D_LAYERS):
        w, b = p[f"xyz_{i}"]
        if i in SKIPS:
            stack.append(w[:W_HIDDEN])     # rows multiplying h
            w_skip = w[W_HIDDEN:]          # rows multiplying input_xyz
        else:
            stack.append(w)
        biases.append(b)
    w_fin, b_fin = p["final"]
    stack.append(w_fin)
    biases.append(b_fin)

    w_sig, b_sig = p["sigma"]
    w_d0, b_d0 = p["dir_0"]
    w_d1, b_d1 = p["dir_1"]
    w_d2, b_d2 = p["dir_2"]
    w_rgb, b_rgb = p["rgb"]

    return [
        w0.astype(bf16),                                         # (60, 256)
        w_skip.astype(bf16),                                     # (60, 256)
        jnp.stack(stack).astype(bf16),                           # (8, 256, 256)
        jnp.stack(biases).astype(f32),                           # (9, 256)
        w_sig.reshape(1, W_HIDDEN).astype(f32),                  # (1, 256)
        w_d0[:W_HIDDEN].astype(bf16),                            # (256, 128)
        w_d0[W_HIDDEN:].astype(bf16),                            # (64, 128)
        jnp.stack([w_d1, w_d2]).astype(bf16),                    # (2, 128, 128)
        jnp.stack([b_d0, b_d1, b_d2]).astype(f32),               # (3, 128)
        w_rgb.astype(bf16),                                      # (128, 3)
        jnp.concatenate([b_rgb, b_sig]).reshape(1, 4).astype(f32),  # (1, 4)
    ]


def _round_up(v, m):
    return (v + m - 1) // m * m


@functools.partial(jax.jit, static_argnames=("tile_n",))
def block_nerf_forward(x, params, *, tile_n=1024):
    """Fused Block_NeRF forward (sigma_only=False path). x: (N, 124) float32."""
    n, c = x.shape
    assert c == IN_TOTAL, f"expected last dim {IN_TOTAL}, got {c}"

    # torch.split in the wrapper; dir/exposure/appearance are contiguous lanes
    # 60..124 so they are kept as ONE 64-wide stream (single K=64 matmul).
    xyz = x[:, :IN_XYZ]
    dea = x[:, IN_XYZ:]

    # Large row tile (amortizes per-grid-step overhead) but capped so the grid
    # keeps >= 2 steps -> both v7x TensorCores get work via "parallel".
    eff_tile = max(8, min(tile_n, _round_up(-(-n // 2), 8)))
    pad_n = (-n) % eff_tile
    if pad_n:
        xyz = jnp.pad(xyz, ((0, pad_n), (0, 0)))
        dea = jnp.pad(dea, ((0, pad_n), (0, 0)))
    n_total = n + pad_n
    grid = (n_total // eff_tile,)

    flat = _flatten_params(params)

    def row_spec(d):
        return pl.BlockSpec((eff_tile, d), lambda i: (i, 0))

    def const_spec(a):
        # Full-array block, constant index_map -> DMA'd once, VMEM-resident.
        nd = a.ndim
        return pl.BlockSpec(a.shape, lambda i: (0,) * nd)

    in_specs = [row_spec(IN_XYZ), row_spec(IN_DEA)] + [const_spec(a) for a in flat]

    flops_per_row = 2 * (IN_XYZ * W_HIDDEN                  # layer 0
                         + 7 * W_HIDDEN * W_HIDDEN          # layers 1..7
                         + IN_XYZ * W_HIDDEN                # skip re-injection
                         + W_HIDDEN                         # sigma head
                         + W_HIDDEN * W_HIDDEN              # xyz_encoding_final
                         + (W_HIDDEN + IN_DEA) * W_HALF     # dir layer 0
                         + 2 * W_HALF * W_HALF              # dir layers 1,2
                         + W_HALF * 3)                      # rgb head
    param_bytes = int(sum(a.size * a.dtype.itemsize for a in flat))
    cost = pl.CostEstimate(
        flops=flops_per_row * n_total,
        transcendentals=6 * n_total,                        # softplus + sigmoid
        bytes_accessed=4 * n_total * (IN_TOTAL + OUT_CH) + param_bytes,
    )

    out = pl.pallas_call(
        _block_nerf_kernel,
        out_shape=jax.ShapeDtypeStruct((n_total, OUT_CH), x.dtype),
        grid_spec=pltpu.PrefetchScalarGridSpec(
            num_scalar_prefetch=0,
            grid=grid,
            in_specs=in_specs,
            out_specs=pl.BlockSpec((eff_tile, OUT_CH), lambda i: (i, 0)),
        ),
        compiler_params=pltpu.CompilerParams(
            dimension_semantics=("parallel",),
            # ~2.6 MiB double-buffered bf16 weights + 2 input tiles + a few
            # (tile_n, 256) f32 intermediates ~= 10 MiB at tile_n=1024; 32 MiB
            # is safe on v5e/v6e (128 MiB physical) and v7x (64 MiB physical).
            vmem_limit_bytes=32 * 1024 * 1024,
        ),
        cost_estimate=cost,
    )(xyz, dea, *flat)

    return out[:n]


def init_params(key):
    """Deterministic Linear params stored as (fan_in, fan_out) + (fan_out,)."""
    def lin(k, fi, fo):
        kw, kb = jax.random.split(k)
        w = jax.random.normal(kw, (fi, fo), jnp.float32) / math.sqrt(fi)
        b = 0.01 * jax.random.normal(kb, (fo,), jnp.float32)
        return w, b

    keys = iter(jax.random.split(key, D_LAYERS + 6))
    p = {}
    for i in range(D_LAYERS):
        fi = IN_XYZ if i == 0 else (W_HIDDEN + IN_XYZ if i in SKIPS else W_HIDDEN)
        p[f"xyz_{i}"] = lin(next(keys), fi, W_HIDDEN)
    p["sigma"] = lin(next(keys), W_HIDDEN, 1)
    p["final"] = lin(next(keys), W_HIDDEN, W_HIDDEN)
    p["dir_0"] = lin(next(keys), W_HIDDEN + IN_DEA, W_HALF)
    p["dir_1"] = lin(next(keys), W_HALF, W_HALF)
    p["dir_2"] = lin(next(keys), W_HALF, W_HALF)
    p["rgb"] = lin(next(keys), W_HALF, 3)
    return p


def reference_forward(x, params, *, emulate_bf16=False):
    """Pure-JAX mirror of Block_NeRF.forward(x, sigma_only=False).

    emulate_bf16=True mirrors the kernel's exact numerics (bf16 matmul operands,
    f32 accumulation, f32 elementwise); False is the full-f32 module reference.
    """
    hp = jax.lax.Precision.HIGHEST

    def mm(a, w):
        if emulate_bf16:
            return jnp.dot(a.astype(jnp.bfloat16), w.astype(jnp.bfloat16),
                           preferred_element_type=jnp.float32)
        return jnp.dot(a, w, precision=hp)

    xyz_in = x[:, :IN_XYZ]
    dea_in = x[:, IN_XYZ:]

    h = xyz_in
    for i in range(D_LAYERS):
        w, b = params[f"xyz_{i}"]
        if i in SKIPS:
            z = mm(h, w[:W_HIDDEN]) + mm(xyz_in, w[W_HIDDEN:])
        else:
            z = mm(h, w)
        h = jax.nn.relu(z + b)

    w, b = params["sigma"]
    sigma = jax.nn.softplus(
        jnp.sum(h * w.reshape(1, -1), axis=-1, keepdims=True) + b)

    w, b = params["final"]
    feat = mm(h, w) + b

    w, b = params["dir_0"]
    d = jax.nn.relu(mm(feat, w[:W_HIDDEN]) + mm(dea_in, w[W_HIDDEN:]) + b)
    for name in ("dir_1", "dir_2"):
        w, b = params[name]
        d = jax.nn.relu(mm(d, w) + b)

    w, b = params["rgb"]
    rgb = jax.nn.sigmoid(mm(d, w) + b)
    return jnp.concatenate([rgb, sigma], axis=-1)


if __name__ == "__main__":
    key = jax.random.PRNGKey(0)
    kx, kp = jax.random.split(key)

    n = 512  # small demo; real NeRF batches are 1e5-1e7 rows
    x = jax.random.normal(kx, (n, IN_TOTAL), dtype=jnp.float32)
    params = init_params(kp)

    out = block_nerf_forward(x, params)
    out = jax.block_until_ready(out)
    assert out.shape == (n, OUT_CH), out.shape

    # Tight check against a pure-JAX mirror of the kernel's exact math
    # (bf16 matmuls with f32 accumulation, f32 elementwise).
    ref_emul = reference_forward(x, params, emulate_bf16=True)
    err_emul = float(jnp.max(jnp.abs(out - ref_emul)))
    assert jnp.allclose(out, ref_emul, atol=2e-3, rtol=2e-3), \
        f"kernel vs bf16-emulated reference mismatch (max abs err {err_emul})"

    # Loose module-fidelity check against the full-f32 reference
    # (difference is just the expected bf16 matmul quantization error).
    ref_f32 = reference_forward(x, params, emulate_bf16=False)
    err_f32 = float(jnp.max(jnp.abs(out - ref_f32)))
    assert jnp.allclose(out, ref_f32, atol=1e-1, rtol=1e-1), \
        f"kernel vs f32 reference mismatch (max abs err {err_f32})"

    print("KERNEL_OK")
</pallas_src>

<mosaic_0001>
module attributes {stable_mosaic.version = 11 : i64} {
  func.func @_block_nerf_kernel(%arg0: i32, %arg1: memref<256x60xf32, #tpu.memory_space<vmem>>, %arg2: memref<256x64xf32, #tpu.memory_space<vmem>>, %arg3: memref<60x256xbf16, #tpu.memory_space<vmem>>, %arg4: memref<60x256xbf16, #tpu.memory_space<vmem>>, %arg5: memref<8x256x256xbf16, #tpu.memory_space<vmem>>, %arg6: memref<9x256xf32, #tpu.memory_space<vmem>>, %arg7: memref<1x256xf32, #tpu.memory_space<vmem>>, %arg8: memref<256x128xbf16, #tpu.memory_space<vmem>>, %arg9: memref<64x128xbf16, #tpu.memory_space<vmem>>, %arg10: memref<2x128x128xbf16, #tpu.memory_space<vmem>>, %arg11: memref<3x128xf32, #tpu.memory_space<vmem>>, %arg12: memref<128x3xbf16, #tpu.memory_space<vmem>>, %arg13: memref<1x4xf32, #tpu.memory_space<vmem>>, %arg14: memref<256x4xf32, #tpu.memory_space<vmem>>) attributes {dimension_semantics = [#tpu.dimension_semantics<parallel>], iteration_bounds = array<i64: 2>, scalar_prefetch = 0 : i64, scratch_operands = 0 : i64, tpu.core_type = #tpu.core_type<tc>, window_params = [{transform_indices = @transform_0, window_bounds = array<i64: 256, 60>}, {transform_indices = @transform_1, window_bounds = array<i64: 256, 64>}, {pipeline_mode = #tpu.pipeline_mode<synchronous>, transform_indices = @transform_2, window_bounds = array<i64: 60, 256>}, {pipeline_mode = #tpu.pipeline_mode<synchronous>, transform_indices = @transform_3, window_bounds = array<i64: 60, 256>}, {pipeline_mode = #tpu.pipeline_mode<synchronous>, transform_indices = @transform_4, window_bounds = array<i64: 8, 256, 256>}, {pipeline_mode = #tpu.pipeline_mode<synchronous>, transform_indices = @transform_5, window_bounds = array<i64: 9, 256>}, {pipeline_mode = #tpu.pipeline_mode<synchronous>, transform_indices = @transform_6, window_bounds = array<i64: 1, 256>}, {pipeline_mode = #tpu.pipeline_mode<synchronous>, transform_indices = @transform_7, window_bounds = array<i64: 256, 128>}, {pipeline_mode = #tpu.pipeline_mode<synchronous>, transform_indices = @transform_8, window_bounds = array<i64: 64, 128>}, {pipeline_mode = #tpu.pipeline_mode<synchronous>, transform_indices = @transform_9, window_bounds = array<i64: 2, 128, 128>}, {pipeline_mode = #tpu.pipeline_mode<synchronous>, transform_indices = @transform_10, window_bounds = array<i64: 3, 128>}, {pipeline_mode = #tpu.pipeline_mode<synchronous>, transform_indices = @transform_11, window_bounds = array<i64: 128, 3>}, {pipeline_mode = #tpu.pipeline_mode<synchronous>, transform_indices = @transform_12, window_bounds = array<i64: 1, 4>}, {transform_indices = @transform_13, window_bounds = array<i64: 256, 4>}]} {
    %c0 = arith.constant 0 : index
    %c0_0 = arith.constant 0 : index
    %0 = vector.load %arg1[%c0, %c0_0] : memref<256x60xf32, #tpu.memory_space<vmem>>, vector<256x60xf32>
    %1 = arith.truncf %0 : vector<256x60xf32> to vector<256x60xbf16>
    %c0_1 = arith.constant 0 : index
    %c0_2 = arith.constant 0 : index
    %2 = vector.load %arg2[%c0_1, %c0_2] : memref<256x64xf32, #tpu.memory_space<vmem>>, vector<256x64xf32>
    %3 = arith.truncf %2 : vector<256x64xf32> to vector<256x64xbf16>
    %c0_3 = arith.constant 0 : index
    %c0_4 = arith.constant 0 : index
    %4 = vector.load %arg3[%c0_3, %c0_4] : memref<60x256xbf16, #tpu.memory_space<vmem>>, vector<60x256xbf16>
    %cst = arith.constant dense<0.000000e+00> : vector<256x256xf32>
    %5 = tpu.matmul %1, %4, %cst {dimension_numbers = #tpu.dot_dimension_numbers<[1], [0], [0], [1], [0, 0, 1, 1], [], []>} : vector<256x60xbf16>, vector<60x256xbf16>, vector<256x256xf32> -> vector<256x256xf32>
    %c0_5 = arith.constant 0 : index
    %c0_6 = arith.constant 0 : index
    %6 = vector.load %arg6[%c0_5, %c0_6] : memref<9x256xf32, #tpu.memory_space<vmem>>, vector<1x256xf32>
    %7 = vector.broadcast %6 : vector<1x256xf32> to vector<256x256xf32>
    %8 = arith.addf %5, %7 : vector<256x256xf32>
    %cst_7 = arith.constant 0.000000e+00 : f32
    %9 = vector.broadcast %cst_7 : f32 to vector<256x256xf32>
    %10 = arith.maximumf %8, %9 : vector<256x256xf32>
    %c0_8 = arith.constant 0 : index
    %c0_9 = arith.constant 0 : index
    %c0_10 = arith.constant 0 : index
    %11 = vector.load %arg5[%c0_8, %c0_9, %c0_10] : memref<8x256x256xbf16, #tpu.memory_space<vmem>>, vector<1x256x256xbf16>
    %12 = vector.shape_cast %11 : vector<1x256x256xbf16> to vector<256x256xbf16>
    %13 = arith.truncf %10 : vector<256x256xf32> to vector<256x256xbf16>
    %cst_11 = arith.constant dense<0.000000e+00> : vector<256x256xf32>
    %14 = tpu.matmul %13, %12, %cst_11 {dimension_numbers = #tpu.dot_dimension_numbers<[1], [0], [0], [1], [0, 0, 1, 1], [], []>} : vector<256x256xbf16>, vector<256x256xbf16>, vector<256x256xf32> -> vector<256x256xf32>
    %c1 = arith.constant 1 : index
    %c0_12 = arith.constant 0 : index
    %15 = vector.load %arg6[%c1, %c0_12] : memref<9x256xf32, #tpu.memory_space<vmem>>, vector<1x256xf32>
    %16 = vector.broadcast %15 : vector<1x256xf32> to vector<256x256xf32>
    %17 = arith.addf %14, %16 : vector<256x256xf32>
    %cst_13 = arith.constant 0.000000e+00 : f32
    %18 = vector.broadcast %cst_13 : f32 to vector<256x256xf32>
    %19 = arith.maximumf %17, %18 : vector<256x256xf32>
    %c1_14 = arith.constant 1 : index
    %c0_15 = arith.constant 0 : index
    %c0_16 = arith.constant 0 : index
    %20 = vector.load %arg5[%c1_14, %c0_15, %c0_16] : memref<8x256x256xbf16, #tpu.memory_space<vmem>>, vector<1x256x256xbf16>
    %21 = vector.shape_cast %20 : vector<1x256x256xbf16> to vector<256x256xbf16>
    %22 = arith.truncf %19 : vector<256x256xf32> to vector<256x256xbf16>
    %cst_17 = arith.constant dense<0.000000e+00> : vector<256x256xf32>
    %23 = tpu.matmul %22, %21, %cst_17 {dimension_numbers = #tpu.dot_dimension_numbers<[1], [0], [0], [1], [0, 0, 1, 1], [], []>} : vector<256x256xbf16>, vector<256x256xbf16>, vector<256x256xf32> -> vector<256x256xf32>
    %c2 = arith.constant 2 : index
    %c0_18 = arith.constant 0 : index
    %24 = vector.load %arg6[%c2, %c0_18] : memref<9x256xf32, #tpu.memory_space<vmem>>, vector<1x256xf32>
    %25 = vector.broadcast %24 : vector<1x256xf32> to vector<256x256xf32>
    %26 = arith.addf %23, %25 : vector<256x256xf32>
    %cst_19 = arith.constant 0.000000e+00 : f32
    %27 = vector.broadcast %cst_19 : f32 to vector<256x256xf32>
    %28 = arith.maximumf %26, %27 : vector<256x256xf32>
    %c2_20 = arith.constant 2 : index
    %c0_21 = arith.constant 0 : index
    %c0_22 = arith.constant 0 : index
    %29 = vector.load %arg5[%c2_20, %c0_21, %c0_22] : memref<8x256x256xbf16, #tpu.memory_space<vmem>>, vector<1x256x256xbf16>
    %30 = vector.shape_cast %29 : vector<1x256x256xbf16> to vector<256x256xbf16>
    %31 = arith.truncf %28 : vector<256x256xf32> to vector<256x256xbf16>
    %cst_23 = arith.constant dense<0.000000e+00> : vector<256x256xf32>
    %32 = tpu.matmul %31, %30, %cst_23 {dimension_numbers = #tpu.dot_dimension_numbers<[1], [0], [0], [1], [0, 0, 1, 1], [], []>} : vector<256x256xbf16>, vector<256x256xbf16>, vector<256x256xf32> -> vector<256x256xf32>
    %c3 = arith.constant 3 : index
    %c0_24 = arith.constant 0 : index
    %33 = vector.load %arg6[%c3, %c0_24] : memref<9x256xf32, #tpu.memory_space<vmem>>, vector<1x256xf32>
    %34 = vector.broadcast %33 : vector<1x256xf32> to vector<256x256xf32>
    %35 = arith.addf %32, %34 : vector<256x256xf32>
    %cst_25 = arith.constant 0.000000e+00 : f32
    %36 = vector.broadcast %cst_25 : f32 to vector<256x256xf32>
    %37 = arith.maximumf %35, %36 : vector<256x256xf32>
    %c3_26 = arith.constant 3 : index
    %c0_27 = arith.constant 0 : index
    %c0_28 = arith.constant 0 : index
    %38 = vector.load %arg5[%c3_26, %c0_27, %c0_28] : memref<8x256x256xbf16, #tpu.memory_space<vmem>>, vector<1x256x256xbf16>
    %39 = vector.shape_cast %38 : vector<1x256x256xbf16> to vector<256x256xbf16>
    %40 = arith.truncf %37 : vector<256x256xf32> to vector<256x256xbf16>
    %cst_29 = arith.constant dense<0.000000e+00> : vector<256x256xf32>
    %41 = tpu.matmul %40, %39, %cst_29 {dimension_numbers = #tpu.dot_dimension_numbers<[1], [0], [0], [1], [0, 0, 1, 1], [], []>} : vector<256x256xbf16>, vector<256x256xbf16>, vector<256x256xf32> -> vector<256x256xf32>
    %c0_30 = arith.constant 0 : index
    %c0_31 = arith.constant 0 : index
    %42 = vector.load %arg4[%c0_30, %c0_31] : memref<60x256xbf16, #tpu.memory_space<vmem>>, vector<60x256xbf16>
    %cst_32 = arith.constant dense<0.000000e+00> : vector<256x256xf32>
    %43 = tpu.matmul %1, %42, %cst_32 {dimension_numbers = #tpu.dot_dimension_numbers<[1], [0], [0], [1], [0, 0, 1, 1], [], []>} : vector<256x60xbf16>, vector<60x256xbf16>, vector<256x256xf32> -> vector<256x256xf32>
    %44 = arith.addf %41, %43 : vector<256x256xf32>
    %c4 = arith.constant 4 : index
    %c0_33 = arith.constant 0 : index
    %45 = vector.load %arg6[%c4, %c0_33] : memref<9x256xf32, #tpu.memory_space<vmem>>, vector<1x256xf32>
    %46 = vector.broadcast %45 : vector<1x256xf32> to vector<256x256xf32>
    %47 = arith.addf %44, %46 : vector<256x256xf32>
    %cst_34 = arith.constant 0.000000e+00 : f32
    %48 = vector.broadcast %cst_34 : f32 to vector<256x256xf32>
    %49 = arith.maximumf %47, %48 : vector<256x256xf32>
    %c4_35 = arith.constant 4 : index
    %c0_36 = arith.constant 0 : index
    %c0_37 = arith.constant 0 : index
    %50 = vector.load %arg5[%c4_35, %c0_36, %c0_37] : memref<8x256x256xbf16, #tpu.memory_space<vmem>>, vector<1x256x256xbf16>
    %51 = vector.shape_cast %50 : vector<1x256x256xbf16> to vector<256x256xbf16>
    %52 = arith.truncf %49 : vector<256x256xf32> to vector<256x256xbf16>
    %cst_38 = arith.constant dense<0.000000e+00> : vector<256x256xf32>
    %53 = tpu.matmul %52, %51, %cst_38 {dimension_numbers = #tpu.dot_dimension_numbers<[1], [0], [0], [1], [0, 0, 1, 1], [], []>} : vector<256x256xbf16>, vector<256x256xbf16>, vector<256x256xf32> -> vector<256x256xf32>
    %c5 = arith.constant 5 : index
    %c0_39 = arith.constant 0 : index
    %54 = vector.load %arg6[%c5, %c0_39] : memref<9x256xf32, #tpu.memory_space<vmem>>, vector<1x256xf32>
    %55 = vector.broadcast %54 : vector<1x256xf32> to vector<256x256xf32>
    %56 = arith.addf %53, %55 : vector<256x256xf32>
    %cst_40 = arith.constant 0.000000e+00 : f32
    %57 = vector.broadcast %cst_40 : f32 to vector<256x256xf32>
    %58 = arith.maximumf %56, %57 : vector<256x256xf32>
    %c5_41 = arith.constant 5 : index
    %c0_42 = arith.constant 0 : index
    %c0_43 = arith.constant 0 : index
    %59 = vector.load %arg5[%c5_41, %c0_42, %c0_43] : memref<8x256x256xbf16, #tpu.memory_space<vmem>>, vector<1x256x256xbf16>
    %60 = vector.shape_cast %59 : vector<1x256x256xbf16> to vector<256x256xbf16>
    %61 = arith.truncf %58 : vector<256x256xf32> to vector<256x256xbf16>
    %cst_44 = arith.constant dense<0.000000e+00> : vector<256x256xf32>
    %62 = tpu.matmul %61, %60, %cst_44 {dimension_numbers = #tpu.dot_dimension_numbers<[1], [0], [0], [1], [0, 0, 1, 1], [], []>} : vector<256x256xbf16>, vector<256x256xbf16>, vector<256x256xf32> -> vector<256x256xf32>
    %c6 = arith.constant 6 : index
    %c0_45 = arith.constant 0 : index
    %63 = vector.load %arg6[%c6, %c0_45] : memref<9x256xf32, #tpu.memory_space<vmem>>, vector<1x256xf32>
    %64 = vector.broadcast %63 : vector<1x256xf32> to vector<256x256xf32>
    %65 = arith.addf %62, %64 : vector<256x256xf32>
    %cst_46 = arith.constant 0.000000e+00 : f32
    %66 = vector.broadcast %cst_46 : f32 to vector<256x256xf32>
    %67 = arith.maximumf %65, %66 : vector<256x256xf32>
    %c6_47 = arith.constant 6 : index
    %c0_48 = arith.constant 0 : index
    %c0_49 = arith.constant 0 : index
    %68 = vector.load %arg5[%c6_47, %c0_48, %c0_49] : memref<8x256x256xbf16, #tpu.memory_space<vmem>>, vector<1x256x256xbf16>
    %69 = vector.shape_cast %68 : vector<1x256x256xbf16> to vector<256x256xbf16>
    %70 = arith.truncf %67 : vector<256x256xf32> to vector<256x256xbf16>
    %cst_50 = arith.constant dense<0.000000e+00> : vector<256x256xf32>
    %71 = tpu.matmul %70, %69, %cst_50 {dimension_numbers = #tpu.dot_dimension_numbers<[1], [0], [0], [1], [0, 0, 1, 1], [], []>} : vector<256x256xbf16>, vector<256x256xbf16>, vector<256x256xf32> -> vector<256x256xf32>
    %c7 = arith.constant 7 : index
    %c0_51 = arith.constant 0 : index
    %72 = vector.load %arg6[%c7, %c0_51] : memref<9x256xf32, #tpu.memory_space<vmem>>, vector<1x256xf32>
    %73 = vector.broadcast %72 : vector<1x256xf32> to vector<256x256xf32>
    %74 = arith.addf %71, %73 : vector<256x256xf32>
    %cst_52 = arith.constant 0.000000e+00 : f32
    %75 = vector.broadcast %cst_52 : f32 to vector<256x256xf32>
    %76 = arith.maximumf %74, %75 : vector<256x256xf32>
    %c0_53 = arith.constant 0 : index
    %c0_54 = arith.constant 0 : index
    %77 = vector.load %arg7[%c0_53, %c0_54] : memref<1x256xf32, #tpu.memory_space<vmem>>, vector<1x256xf32>
    %78 = vector.broadcast %77 : vector<1x256xf32> to vector<256x256xf32>
    %79 = arith.mulf %76, %78 : vector<256x256xf32>
    %cst_55 = arith.constant dense<0.000000e+00> : vector<256xf32>
    %80 = vector.multi_reduction <add>, %79, %cst_55 [1] : vector<256x256xf32> to vector<256xf32>
    %81 = vector.shape_cast %80 : vector<256xf32> to vector<256x1xf32>
    %c0_56 = arith.constant 0 : index
    %c3_57 = arith.constant 3 : index
    %82 = vector.load %arg13[%c0_56, %c3_57] : memref<1x4xf32, #tpu.memory_space<vmem>>, vector<1x1xf32>
    %83 = vector.broadcast %82 : vector<1x1xf32> to vector<256x1xf32>
    %84 = arith.addf %81, %83 : vector<256x1xf32>
    %cst_58 = arith.constant 0.000000e+00 : f32
    %85 = vector.broadcast %cst_58 : f32 to vector<256x1xf32>
    %86 = arith.maximumf %84, %85 : vector<256x1xf32>
    %87 = math.absf %84 : vector<256x1xf32>
    %cst_59 = arith.constant 0.000000e+00 : f32
    %88 = vector.broadcast %cst_59 : f32 to vector<256x1xf32>
    %89 = arith.subf %88, %87 : vector<256x1xf32>
    %90 = math.exp %89 : vector<256x1xf32>
    %cst_60 = arith.constant 1.000000e+00 : f32
    %91 = vector.broadcast %cst_60 : f32 to vector<256x1xf32>
    %92 = arith.addf %91, %90 : vector<256x1xf32>
    %93 = math.log %92 : vector<256x1xf32>
    %94 = arith.addf %86, %93 : vector<256x1xf32>
    %c7_61 = arith.constant 7 : index
    %c0_62 = arith.constant 0 : index
    %c0_63 = arith.constant 0 : index
    %95 = vector.load %arg5[%c7_61, %c0_62, %c0_63] : memref<8x256x256xbf16, #tpu.memory_space<vmem>>, vector<1x256x256xbf16>
    %96 = vector.shape_cast %95 : vector<1x256x256xbf16> to vector<256x256xbf16>
    %97 = arith.truncf %76 : vector<256x256xf32> to vector<256x256xbf16>
    %cst_64 = arith.constant dense<0.000000e+00> : vector<256x256xf32>
    %98 = tpu.matmul %97, %96, %cst_64 {dimension_numbers = #tpu.dot_dimension_numbers<[1], [0], [0], [1], [0, 0, 1, 1], [], []>} : vector<256x256xbf16>, vector<256x256xbf16>, vector<256x256xf32> -> vector<256x256xf32>
    %c8 = arith.constant 8 : index
    %c0_65 = arith.constant 0 : index
    %99 = vector.load %arg6[%c8, %c0_65] : memref<9x256xf32, #tpu.memory_space<vmem>>, vector<1x256xf32>
    %100 = vector.broadcast %99 : vector<1x256xf32> to vector<256x256xf32>
    %101 = arith.addf %98, %100 : vector<256x256xf32>
    %c0_66 = arith.constant 0 : index
    %c0_67 = arith.constant 0 : index
    %102 = vector.load %arg8[%c0_66, %c0_67] : memref<256x128xbf16, #tpu.memory_space<vmem>>, vector<256x128xbf16>
    %103 = arith.truncf %101 : vector<256x256xf32> to vector<256x256xbf16>
    %cst_68 = arith.constant dense<0.000000e+00> : vector<256x128xf32>
    %104 = tpu.matmul %103, %102, %cst_68 {dimension_numbers = #tpu.dot_dimension_numbers<[1], [0], [0], [1], [0, 0, 1, 1], [], []>} : vector<256x256xbf16>, vector<256x128xbf16>, vector<256x128xf32> -> vector<256x128xf32>
    %c0_69 = arith.constant 0 : index
    %c0_70 = arith.constant 0 : index
    %105 = vector.load %arg9[%c0_69, %c0_70] : memref<64x128xbf16, #tpu.memory_space<vmem>>, vector<64x128xbf16>
    %cst_71 = arith.constant dense<0.000000e+00> : vector<256x128xf32>
    %106 = tpu.matmul %3, %105, %cst_71 {dimension_numbers = #tpu.dot_dimension_numbers<[1], [0], [0], [1], [0, 0, 1, 1], [], []>} : vector<256x64xbf16>, vector<64x128xbf16>, vector<256x128xf32> -> vector<256x128xf32>
    %107 = arith.addf %104, %106 : vector<256x128xf32>
    %c0_72 = arith.constant 0 : index
    %c0_73 = arith.constant 0 : index
    %108 = vector.load %arg11[%c0_72, %c0_73] : memref<3x128xf32, #tpu.memory_space<vmem>>, vector<1x128xf32>
    %109 = vector.broadcast %108 : vector<1x128xf32> to vector<256x128xf32>
    %110 = arith.addf %107, %109 : vector<256x128xf32>
    %cst_74 = arith.constant 0.000000e+00 : f32
    %111 = vector.broadcast %cst_74 : f32 to vector<256x128xf32>
    %112 = arith.maximumf %110, %111 : vector<256x128xf32>
    %c0_75 = arith.constant 0 : index
    %c0_76 = arith.constant 0 : index
    %c0_77 = arith.constant 0 : index
    %113 = vector.load %arg10[%c0_75, %c0_76, %c0_77] : memref<2x128x128xbf16, #tpu.memory_space<vmem>>, vector<1x128x128xbf16>
    %114 = vector.shape_cast %113 : vector<1x128x128xbf16> to vector<128x128xbf16>
    %115 = arith.truncf %112 : vector<256x128xf32> to vector<256x128xbf16>
    %cst_78 = arith.constant dense<0.000000e+00> : vector<256x128xf32>
    %116 = tpu.matmul %115, %114, %cst_78 {dimension_numbers = #tpu.dot_dimension_numbers<[1], [0], [0], [1], [0, 0, 1, 1], [], []>} : vector<256x128xbf16>, vector<128x128xbf16>, vector<256x128xf32> -> vector<256x128xf32>
    %c1_79 = arith.constant 1 : index
    %c0_80 = arith.constant 0 : index
    %117 = vector.load %arg11[%c1_79, %c0_80] : memref<3x128xf32, #tpu.memory_space<vmem>>, vector<1x128xf32>
    %118 = vector.broadcast %117 : vector<1x128xf32> to vector<256x128xf32>
    %119 = arith.addf %116, %118 : vector<256x128xf32>
    %cst_81 = arith.constant 0.000000e+00 : f32
    %120 = vector.broadcast %cst_81 : f32 to vector<256x128xf32>
    %121 = arith.maximumf %119, %120 : vector<256x128xf32>
    %c1_82 = arith.constant 1 : index
    %c0_83 = arith.constant 0 : index
    %c0_84 = arith.constant 0 : index
    %122 = vector.load %arg10[%c1_82, %c0_83, %c0_84] : memref<2x128x128xbf16, #tpu.memory_space<vmem>>, vector<1x128x128xbf16>
    %123 = vector.shape_cast %122 : vector<1x128x128xbf16> to vector<128x128xbf16>
    %124 = arith.truncf %121 : vector<256x128xf32> to vector<256x128xbf16>
    %cst_85 = arith.constant dense<0.000000e+00> : vector<256x128xf32>
    %125 = tpu.matmul %124, %123, %cst_85 {dimension_numbers = #tpu.dot_dimension_numbers<[1], [0], [0], [1], [0, 0, 1, 1], [], []>} : vector<256x128xbf16>, vector<128x128xbf16>, vector<256x128xf32> -> vector<256x128xf32>
    %c2_86 = arith.constant 2 : index
    %c0_87 = arith.constant 0 : index
    %126 = vector.load %arg11[%c2_86, %c0_87] : memref<3x128xf32, #tpu.memory_space<vmem>>, vector<1x128xf32>
    %127 = vector.broadcast %126 : vector<1x128xf32> to vector<256x128xf32>
    %128 = arith.addf %125, %127 : vector<256x128xf32>
    %cst_88 = arith.constant 0.000000e+00 : f32
    %129 = vector.broadcast %cst_88 : f32 to vector<256x128xf32>
    %130 = arith.maximumf %128, %129 : vector<256x128xf32>
    %c0_89 = arith.constant 0 : index
    %c0_90 = arith.constant 0 : index
    %131 = vector.load %arg12[%c0_89, %c0_90] : memref<128x3xbf16, #tpu.memory_space<vmem>>, vector<128x3xbf16>
    %132 = arith.truncf %130 : vector<256x128xf32> to vector<256x128xbf16>
    %cst_91 = arith.constant dense<0.000000e+00> : vector<256x3xf32>
    %133 = tpu.matmul %132, %131, %cst_91 {dimension_numbers = #tpu.dot_dimension_numbers<[1], [0], [0], [1], [0, 0, 1, 1], [], []>} : vector<256x128xbf16>, vector<128x3xbf16>, vector<256x3xf32> -> vector<256x3xf32>
    %c0_92 = arith.constant 0 : index
    %c0_93 = arith.constant 0 : index
    %134 = vector.load %arg13[%c0_92, %c0_93] : memref<1x4xf32, #tpu.memory_space<vmem>>, vector<1x3xf32>
    %135 = vector.broadcast %134 : vector<1x3xf32> to vector<256x3xf32>
    %136 = arith.addf %133, %135 : vector<256x3xf32>
    %cst_94 = arith.constant 0.000000e+00 : f32
    %137 = vector.broadcast %cst_94 : f32 to vector<256x3xf32>
    %138 = arith.subf %137, %136 : vector<256x3xf32>
    %139 = math.exp %138 : vector<256x3xf32>
    %cst_95 = arith.constant 1.000000e+00 : f32
    %140 = vector.broadcast %cst_95 : f32 to vector<256x3xf32>
    %141 = arith.addf %140, %139 : vector<256x3xf32>
    %cst_96 = arith.constant 1.000000e+00 : f32
    %142 = vector.broadcast %cst_96 : f32 to vector<256x3xf32>
    %143 = arith.divf %142, %141 : vector<256x3xf32>
    %c0_97 = arith.constant 0 : index
    %c0_98 = arith.constant 0 : index
    %144 = vector.load %arg14[%c0_97, %c0_98] : memref<256x4xf32, #tpu.memory_space<vmem>>, vector<256x3xf32>
    tpu.vector_store %arg14[%c0_97, %c0_98], %143 {strides = array<i32>} : memref<256x4xf32, #tpu.memory_space<vmem>>, vector<256x3xf32>,
    %c0_99 = arith.constant 0 : index
    %c3_100 = arith.constant 3 : index
    %145 = vector.load %arg14[%c0_99, %c3_100] : memref<256x4xf32, #tpu.memory_space<vmem>>, vector<256x1xf32>
    tpu.vector_store %arg14[%c0_99, %c3_100], %94 {strides = array<i32>} : memref<256x4xf32, #tpu.memory_space<vmem>>, vector<256x1xf32>,
    return
  }
  func.func @transform_0(%arg0: i32) -> (i32, i32) {
    %c0_i32 = arith.constant 0 : i32
    %c0_i32_0 = arith.constant 0 : i32
    return %arg0, %c0_i32 : i32, i32
  }
  func.func @transform_1(%arg0: i32) -> (i32, i32) {
    %c0_i32 = arith.constant 0 : i32
    %c0_i32_0 = arith.constant 0 : i32
    return %arg0, %c0_i32 : i32, i32
  }
  func.func @transform_2(%arg0: i32) -> (i32, i32) {
    %c0_i32 = arith.constant 0 : i32
    %c0_i32_0 = arith.constant 0 : i32
    %c0_i32_1 = arith.constant 0 : i32
    return %c0_i32, %c0_i32_0 : i32, i32
  }
  func.func @transform_3(%arg0: i32) -> (i32, i32) {
    %c0_i32 = arith.constant 0 : i32
    %c0_i32_0 = arith.constant 0 : i32
    %c0_i32_1 = arith.constant 0 : i32
    return %c0_i32, %c0_i32_0 : i32, i32
  }
  func.func @transform_4(%arg0: i32) -> (i32, i32, i32) {
    %c0_i32 = arith.constant 0 : i32
    %c0_i32_0 = arith.constant 0 : i32
    %c0_i32_1 = arith.constant 0 : i32
    %c0_i32_2 = arith.constant 0 : i32
    return %c0_i32, %c0_i32_0, %c0_i32_1 : i32, i32, i32
  }
  func.func @transform_5(%arg0: i32) -> (i32, i32) {
    %c0_i32 = arith.constant 0 : i32
    %c0_i32_0 = arith.constant 0 : i32
    %c0_i32_1 = arith.constant 0 : i32
    return %c0_i32, %c0_i32_0 : i32, i32
  }
  func.func @transform_6(%arg0: i32) -> (i32, i32) {
    %c0_i32 = arith.constant 0 : i32
    %c0_i32_0 = arith.constant 0 : i32
    %c0_i32_1 = arith.constant 0 : i32
    return %c0_i32, %c0_i32_0 : i32, i32
  }
  func.func @transform_7(%arg0: i32) -> (i32, i32) {
    %c0_i32 = arith.constant 0 : i32
    %c0_i32_0 = arith.constant 0 : i32
    %c0_i32_1 = arith.constant 0 : i32
    return %c0_i32, %c0_i32_0 : i32, i32
  }
  func.func @transform_8(%arg0: i32) -> (i32, i32) {
    %c0_i32 = arith.constant 0 : i32
    %c0_i32_0 = arith.constant 0 : i32
    %c0_i32_1 = arith.constant 0 : i32
    return %c0_i32, %c0_i32_0 : i32, i32
  }
  func.func @transform_9(%arg0: i32) -> (i32, i32, i32) {
    %c0_i32 = arith.constant 0 : i32
    %c0_i32_0 = arith.constant 0 : i32
    %c0_i32_1 = arith.constant 0 : i32
    %c0_i32_2 = arith.constant 0 : i32
    return %c0_i32, %c0_i32_0, %c0_i32_1 : i32, i32, i32
  }
  func.func @transform_10(%arg0: i32) -> (i32, i32) {
    %c0_i32 = arith.constant 0 : i32
    %c0_i32_0 = arith.constant 0 : i32
    %c0_i32_1 = arith.constant 0 : i32
    return %c0_i32, %c0_i32_0 : i32, i32
  }
  func.func @transform_11(%arg0: i32) -> (i32, i32) {
    %c0_i32 = arith.constant 0 : i32
    %c0_i32_0 = arith.constant 0 : i32
    %c0_i32_1 = arith.constant 0 : i32
    return %c0_i32, %c0_i32_0 : i32, i32
  }
  func.func @transform_12(%arg0: i32) -> (i32, i32) {
    %c0_i32 = arith.constant 0 : i32
    %c0_i32_0 = arith.constant 0 : i32
    %c0_i32_1 = arith.constant 0 : i32
    return %c0_i32, %c0_i32_0 : i32, i32
  }
  func.func @transform_13(%arg0: i32) -> (i32, i32) {
    %c0_i32 = arith.constant 0 : i32
    %c0_i32_0 = arith.constant 0 : i32
    return %arg0, %c0_i32 : i32, i32
  }
}

</mosaic_0001>

<llo_original>
// kernel: block_nerf_forward.1
$region0: #{block_nerf_forward.1}
  #allocation0 [shape = 'u32[]', space=smem, size = 0x4, offset = 0x4, fixed_abs, tag = 'smem constant byte address 0x4 - core index']
  #allocation1 [shape = 'u32[144,128]{1,0:T(1,128)}', space=vmem, size = 0x12000, scoped, tag = 'internal scratch']
  %s0 = inlined_call_operand.vmem [shape: f32[512,60], index: 0, kind: input, shape index: {}]
  %s1 = inlined_call_operand.vmem [shape: f32[512,64], index: 1, kind: input, shape index: {}]
  %s2 = inlined_call_operand.vmem [shape: bf16[60,256], index: 2, kind: input, shape index: {}]
  %s3 = inlined_call_operand.vmem [shape: bf16[60,256], index: 3, kind: input, shape index: {}]
  %s4 = inlined_call_operand.vmem [shape: bf16[8,256,256], index: 4, kind: input, shape index: {}]
  %s5 = inlined_call_operand.vmem [shape: f32[9,256], index: 5, kind: input, shape index: {}]
  %s6 = inlined_call_operand.vmem [shape: f32[1,256], index: 6, kind: input, shape index: {}]
  %s7 = inlined_call_operand.vmem [shape: bf16[256,128], index: 7, kind: input, shape index: {}]
  %s8 = inlined_call_operand.vmem [shape: bf16[64,128], index: 8, kind: input, shape index: {}]
  %s9 = inlined_call_operand.vmem [shape: bf16[2,128,128], index: 9, kind: input, shape index: {}]
  %s10 = inlined_call_operand.vmem [shape: f32[3,128], index: 10, kind: input, shape index: {}]
  %s11 = inlined_call_operand.vmem [shape: bf16[128,3], index: 11, kind: input, shape index: {}]
  %s12 = inlined_call_operand.vmem [shape: f32[1,4], index: 12, kind: input, shape index: {}]
  %s13 = inlined_call_operand.vmem [shape: f32[512,4], index: 13, kind: output, shape index: {}]
  %s14 = sld [smem:[#allocation0]]
  $region85: #{block_nerf_forward.1} parent=0
    _
  %s16 = ssub.s32 1, %s14
  %s17 = scalar_select 0, %s16, %s14
  loop: start=0, step=1, limit=4
  $region2: #{block_nerf_forward.1} parent=0 // loop_pre_header
    _
  $region3: #{block_nerf_forward.1} parent=0 // loop_header
    %s19 = sphi 0, %s23
    %p20 = scmp.ge.s32.totalorder %s19, 4
    %s29 = sphi 0, %s31
    %s32 = sphi 0, %s29
    %s33 = sphi 0, %s32
    %s49 = sphi 0, %s33
    %s55 = sphi 0, %s57
    %s58 = sphi 0, %s55
    %s59 = sphi 0, %s58
    %s75 = sphi 0, %s59
    %s79 = sphi 0, %s79
    %s81 = sphi 0, %s79
    %s82 = sphi 0, %s81
    %s96 = sphi 0, %s82
    %s100 = sphi 0, %s100
    %s102 = sphi 0, %s100
    %s103 = sphi 0, %s102
    %s117 = sphi 0, %s103
    %s121 = sphi 0, %s121
    %s123 = sphi 0, %s121
    %s124 = sphi 0, %s123
    %s138 = sphi 0, %s124
    %s142 = sphi 0, %s142
    %s144 = sphi 0, %s142
    %s145 = sphi 0, %s144
    %s159 = sphi 0, %s145
    %s163 = sphi 0, %s163
    %s165 = sphi 0, %s163
    %s166 = sphi 0, %s165
    %s180 = sphi 0, %s166
    %s184 = sphi 0, %s184
    %s186 = sphi 0, %s184
    %s187 = sphi 0, %s186
    %s201 = sphi 0, %s187
    %s205 = sphi 0, %s205
    %s207 = sphi 0, %s205
    %s208 = sphi 0, %s207
    %s222 = sphi 0, %s208
    %s226 = sphi 0, %s226
    %s228 = sphi 0, %s226
    %s229 = sphi 0, %s228
    %s243 = sphi 0, %s229
    %s247 = sphi 0, %s247
    %s249 = sphi 0, %s247
    %s250 = sphi 0, %s249
    %s264 = sphi 0, %s250
    %s268 = sphi 0, %s268
    %s270 = sphi 0, %s268
    %s271 = sphi 0, %s270
    %s285 = sphi 0, %s271
    %s289 = sphi 0, %s289
    %s291 = sphi 0, %s289
    %s292 = sphi 0, %s291
    %s306 = sphi 0, %s292
    %s312 = sphi 0, %s314
    %s315 = sphi 0, %s312
    %s316 = sphi 0, %s315
    %s332 = sphi 0, %s316
  $region4: #{block_nerf_forward.1} parent=0 // loop_header_branch
    %22 = sbr.rel (%p20) target = $region8
  $region5: #{block_nerf_forward.1} parent=0 // loop_body
    %s24 = ssub.s32 %s19, 1
    %s25 = ssub.s32 %s19, 2
    %s26 = sadd.s32 %s19, 1
    %s27 = ssub.s32 %s19, %s26
    %p28 = scmp.eq.s32.totalorder %s27, 0
    %s30 = sadd.s32 %s29, 1
    %s31 = scalar_select %p28, %s29, %s30
    %p34 = pneg %p28
    %p35 = scmp.eq.s32.totalorder %s19, 1
    %p36 = por %p34, %p35
    %p37 = scmp.ne.s32.totalorder %s29, %s32
    %p38 = scmp.eq.s32.totalorder %s19, 0
    %p39 = por %p37, %p38
    %p40 = scmp.ne.s32.totalorder %s29, %s32
    %p41 = scmp.eq.s32.totalorder %s24, 1
    %p42 = por %p40, %p41
    %p43 = scmp.ne.s32.totalorder %s32, %s33
    %p44 = scmp.eq.s32.totalorder %s24, 0
    %p45 = por %p43, %p44
    %p46 = scmp.ne.s32.totalorder %s32, %s33
    %p47 = scmp.eq.s32.totalorder %s25, 1
    %p48 = por %p46, %p47
    %p50 = scmp.ne.s32.totalorder %s33, %s49
    %p51 = scmp.eq.s32.totalorder %s25, 0
    %p52 = por %p50, %p51
    %s53 = ssub.s32 %s19, %s26
    %p54 = scmp.eq.s32.totalorder %s53, 0
    %s56 = sadd.s32 %s55, 1
    %s57 = scalar_select %p54, %s55, %s56
    %p60 = pneg %p54
    %p61 = scmp.eq.s32.totalorder %s19, 1
    %p62 = por %p60, %p61
    %p63 = scmp.ne.s32.totalorder %s55, %s58
    %p64 = scmp.eq.s32.totalorder %s19, 0
    %p65 = por %p63, %p64
    %p66 = scmp.ne.s32.totalorder %s55, %s58
    %p67 = scmp.eq.s32.totalorder %s24, 1
    %p68 = por %p66, %p67
    %p69 = scmp.ne.s32.totalorder %s58, %s59
    %p70 = scmp.eq.s32.totalorder %s24, 0
    %p71 = por %p69, %p70
    %p72 = scmp.ne.s32.totalorder %s58, %s59
    %p73 = scmp.eq.s32.totalorder %s25, 1
    %p74 = por %p72, %p73
    %p76 = scmp.ne.s32.totalorder %s59, %s75
    %p77 = scmp.eq.s32.totalorder %s25, 0
    %p78 = por %p76, %p77
    %s80 = sadd.s32 %s79, 1
    %p83 = scmp.eq.s32.totalorder %s19, 1
    %p84 = scmp.ne.s32.totalorder %s79, %s81
    %p85 = scmp.eq.s32.totalorder %s19, 0
    %p86 = por %p84, %p85
    %p87 = scmp.ne.s32.totalorder %s79, %s81
    %p88 = scmp.eq.s32.totalorder %s24, 1
    %p89 = por %p87, %p88
    %p90 = scmp.ne.s32.totalorder %s81, %s82
    %p91 = scmp.eq.s32.totalorder %s24, 0
    %p92 = por %p90, %p91
    %p93 = scmp.ne.s32.totalorder %s81, %s82
    %p94 = scmp.eq.s32.totalorder %s25, 1
    %p95 = por %p93, %p94
    %p97 = scmp.ne.s32.totalorder %s82, %s96
    %p98 = scmp.eq.s32.totalorder %s25, 0
    %p99 = por %p97, %p98
    %s101 = sadd.s32 %s100, 1
    %p104 = scmp.eq.s32.totalorder %s19, 1
    %p105 = scmp.ne.s32.totalorder %s100, %s102
    %p106 = scmp.eq.s32.totalorder %s19, 0
    %p107 = por %p105, %p106
    %p108 = scmp.ne.s32.totalorder %s100, %s102
    %p109 = scmp.eq.s32.totalorder %s24, 1
    %p110 = por %p108, %p109
    %p111 = scmp.ne.s32.totalorder %s102, %s103
    %p112 = scmp.eq.s32.totalorder %s24, 0
    %p113 = por %p111, %p112
    %p114 = scmp.ne.s32.totalorder %s102, %s103
    %p115 = scmp.eq.s32.totalorder %s25, 1
    %p116 = por %p114, %p115
    %p118 = scmp.ne.s32.totalorder %s103, %s117
    %p119 = scmp.eq.s32.totalorder %s25, 0
    %p120 = por %p118, %p119
    %s122 = sadd.s32 %s121, 1
    %p125 = scmp.eq.s32.totalorder %s19, 1
    %p126 = scmp.ne.s32.totalorder %s121, %s123
    %p127 = scmp.eq.s32.totalorder %s19, 0
    %p128 = por %p126, %p127
    %p129 = scmp.ne.s32.totalorder %s121, %s123
    %p130 = scmp.eq.s32.totalorder %s24, 1
    %p131 = por %p129, %p130
    %p132 = scmp.ne.s32.totalorder %s123, %s124
    %p133 = scmp.eq.s32.totalorder %s24, 0
    %p134 = por %p132, %p133
    %p135 = scmp.ne.s32.totalorder %s123, %s124
    %p136 = scmp.eq.s32.totalorder %s25, 1
    %p137 = por %p135, %p136
    %p139 = scmp.ne.s32.totalorder %s124, %s138
    %p140 = scmp.eq.s32.totalorder %s25, 0
    %p141 = por %p139, %p140
    %s143 = sadd.s32 %s142, 1
    %p146 = scmp.eq.s32.totalorder %s19, 1
    %p147 = scmp.ne.s32.totalorder %s142, %s144
    %p148 = scmp.eq.s32.totalorder %s19, 0
    %p149 = por %p147, %p148
    %p150 = scmp.ne.s32.totalorder %s142, %s144
    %p151 = scmp.eq.s32.totalorder %s24, 1
    %p152 = por %p150, %p151
    %p153 = scmp.ne.s32.totalorder %s144, %s145
    %p154 = scmp.eq.s32.totalorder %s24, 0
    %p155 = por %p153, %p154
    %p156 = scmp.ne.s32.totalorder %s144, %s145
    %p157 = scmp.eq.s32.totalorder %s25, 1
    %p158 = por %p156, %p157
    %p160 = scmp.ne.s32.totalorder %s145, %s159
    %p161 = scmp.eq.s32.totalorder %s25, 0
    %p162 = por %p160, %p161
    %s164 = sadd.s32 %s163, 1
    %p167 = scmp.eq.s32.totalorder %s19, 1
    %p168 = scmp.ne.s32.totalorder %s163, %s165
    %p169 = scmp.eq.s32.totalorder %s19, 0
    %p170 = por %p168, %p169
    %p171 = scmp.ne.s32.totalorder %s163, %s165
    %p172 = scmp.eq.s32.totalorder %s24, 1
    %p173 = por %p171, %p172
    %p174 = scmp.ne.s32.totalorder %s165, %s166
    %p175 = scmp.eq.s32.totalorder %s24, 0
    %p176 = por %p174, %p175
    %p177 = scmp.ne.s32.totalorder %s165, %s166
    %p178 = scmp.eq.s32.totalorder %s25, 1
    %p179 = por %p177, %p178
    %p181 = scmp.ne.s32.totalorder %s166, %s180
    %p182 = scmp.eq.s32.totalorder %s25, 0
    %p183 = por %p181, %p182
    %s185 = sadd.s32 %s184, 1
    %p188 = scmp.eq.s32.totalorder %s19, 1
    %p189 = scmp.ne.s32.totalorder %s184, %s186
    %p190 = scmp.eq.s32.totalorder %s19, 0
    %p191 = por %p189, %p190
    %p192 = scmp.ne.s32.totalorder %s184, %s186
    %p193 = scmp.eq.s32.totalorder %s24, 1
    %p194 = por %p192, %p193
    %p195 = scmp.ne.s32.totalorder %s186, %s187
    %p196 = scmp.eq.s32.totalorder %s24, 0
    %p197 = por %p195, %p196
    %p198 = scmp.ne.s32.totalorder %s186, %s187
    %p199 = scmp.eq.s32.totalorder %s25, 1
    %p200 = por %p198, %p199
    %p202 = scmp.ne.s32.totalorder %s187, %s201
    %p203 = scmp.eq.s32.totalorder %s25, 0
    %p204 = por %p202, %p203
    %s206 = sadd.s32 %s205, 1
    %p209 = scmp.eq.s32.totalorder %s19, 1
    %p210 = scmp.ne.s32.totalorder %s205, %s207
    %p211 = scmp.eq.s32.totalorder %s19, 0
    %p212 = por %p210, %p211
    %p213 = scmp.ne.s32.totalorder %s205, %s207
    %p214 = scmp.eq.s32.totalorder %s24, 1
    %p215 = por %p213, %p214
    %p216 = scmp.ne.s32.totalorder %s207, %s208
    %p217 = scmp.eq.s32.totalorder %s24, 0
    %p218 = por %p216, %p217
    %p219 = scmp.ne.s32.totalorder %s207, %s208
    %p220 = scmp.eq.s32.totalorder %s25, 1
    %p221 = por %p219, %p220
    %p223 = scmp.ne.s32.totalorder %s208, %s222
    %p224 = scmp.eq.s32.totalorder %s25, 0
    %p225 = por %p223, %p224
    %s227 = sadd.s32 %s226, 1
    %p230 = scmp.eq.s32.totalorder %s19, 1
    %p231 = scmp.ne.s32.totalorder %s226, %s228
    %p232 = scmp.eq.s32.totalorder %s19, 0
    %p233 = por %p231, %p232
    %p234 = scmp.ne.s32.totalorder %s226, %s228
    %p235 = scmp.eq.s32.totalorder %s24, 1
    %p236 = por %p234, %p235
    %p237 = scmp.ne.s32.totalorder %s228, %s229
    %p238 = scmp.eq.s32.totalorder %s24, 0
    %p239 = por %p237, %p238
    %p240 = scmp.ne.s32.totalorder %s228, %s229
    %p241 = scmp.eq.s32.totalorder %s25, 1
    %p242 = por %p240, %p241
    %p244 = scmp.ne.s32.totalorder %s229, %s243
    %p245 = scmp.eq.s32.totalorder %s25, 0
    %p246 = por %p244, %p245
    %s248 = sadd.s32 %s247, 1
    %p251 = scmp.eq.s32.totalorder %s19, 1
    %p252 = scmp.ne.s32.totalorder %s247, %s249
    %p253 = scmp.eq.s32.totalorder %s19, 0
    %p254 = por %p252, %p253
    %p255 = scmp.ne.s32.totalorder %s247, %s249
    %p256 = scmp.eq.s32.totalorder %s24, 1
    %p257 = por %p255, %p256
    %p258 = scmp.ne.s32.totalorder %s249, %s250
    %p259 = scmp.eq.s32.totalorder %s24, 0
    %p260 = por %p258, %p259
    %p261 = scmp.ne.s32.totalorder %s249, %s250
    %p262 = scmp.eq.s32.totalorder %s25, 1
    %p263 = por %p261, %p262
    %p265 = scmp.ne.s32.totalorder %s250, %s264
    %p266 = scmp.eq.s32.totalorder %s25, 0
    %p267 = por %p265, %p266
    %s269 = sadd.s32 %s268, 1
    %p272 = scmp.eq.s32.totalorder %s19, 1
    %p273 = scmp.ne.s32.totalorder %s268, %s270
    %p274 = scmp.eq.s32.totalorder %s19, 0
    %p275 = por %p273, %p274
    %p276 = scmp.ne.s32.totalorder %s268, %s270
    %p277 = scmp.eq.s32.totalorder %s24, 1
    %p278 = por %p276, %p277
    %p279 = scmp.ne.s32.totalorder %s270, %s271
    %p280 = scmp.eq.s32.totalorder %s24, 0
    %p281 = por %p279, %p280
    %p282 = scmp.ne.s32.totalorder %s270, %s271
    %p283 = scmp.eq.s32.totalorder %s25, 1
    %p284 = por %p282, %p283
    %p286 = scmp.ne.s32.totalorder %s271, %s285
    %p287 = scmp.eq.s32.totalorder %s25, 0
    %p288 = por %p286, %p287
    %s290 = sadd.s32 %s289, 1
    %p293 = scmp.eq.s32.totalorder %s19, 1
    %p294 = scmp.ne.s32.totalorder %s289, %s291
    %p295 = scmp.eq.s32.totalorder %s19, 0
    %p296 = por %p294, %p295
    %p297 = scmp.ne.s32.totalorder %s289, %s291
    %p298 = scmp.eq.s32.totalorder %s24, 1
    %p299 = por %p297, %p298
    %p300 = scmp.ne.s32.totalorder %s291, %s292
    %p301 = scmp.eq.s32.totalorder %s24, 0
    %p302 = por %p300, %p301
    %p303 = scmp.ne.s32.totalorder %s291, %s292
    %p304 = scmp.eq.s32.totalorder %s25, 1
    %p305 = por %p303, %p304
    %p307 = scmp.ne.s32.totalorder %s292, %s306
    %p308 = scmp.eq.s32.totalorder %s25, 0
    %p309 = por %p307, %p308
    %s310 = ssub.s32 %s19, %s26
    %p311 = scmp.eq.s32.totalorder %s310, 0
    %s313 = sadd.s32 %s312, 1
    %s314 = scalar_select %p311, %s312, %s313
    %p317 = pneg %p311
    %p318 = scmp.eq.s32.totalorder %s19, 1
    %p319 = por %p317, %p318
    %p320 = scmp.ne.s32.totalorder %s312, %s315
    %p321 = scmp.eq.s32.totalorder %s19, 0
    %p322 = por %p320, %p321
    %p323 = scmp.ne.s32.totalorder %s312, %s315
    %p324 = scmp.eq.s32.totalorder %s24, 1
    %p325 = por %p323, %p324
    %p326 = scmp.ne.s32.totalorder %s315, %s316
    %p327 = scmp.eq.s32.totalorder %s24, 0
    %p328 = por %p326, %p327
    %p329 = scmp.ne.s32.totalorder %s315, %s316
    %p330 = scmp.eq.s32.totalorder %s25, 1
    %p331 = por %p329, %p330
    %p333 = scmp.ne.s32.totalorder %s316, %s332
    %p334 = scmp.eq.s32.totalorder %s25, 0
    %p335 = por %p333, %p334
    %p336 = scmp.le.s32.totalorder 1, %s19
    %p337 = scmp.lt.s32.totalorder %s19, 3
    %p338 = pnand %p336, %p337
    %p339 = pneg %p338
    // Predicated region
    $region9: #{block_nerf_forward.1} parent=5 // pred_check
      _
    $region10: #{block_nerf_forward.1} parent=5 // pred_check_branch
      %341 = sbr.rel (%p338) target = $region12
    $region11: #{block_nerf_forward.1} parent=5 // pred_region
      %s342 = ssub.s32 %s19, 1
      // Predicated region
      $region13: #{block_nerf_forward.1} parent=11 // pred_check
        %p343 = pneg %p92
      $region14: #{block_nerf_forward.1} parent=11 // pred_check_branch
        %345 = sbr.rel (%p343) target = $region16
      $region15: #{block_nerf_forward.1} parent=11 // pred_region
        _
      $region16: #{block_nerf_forward.1} parent=11 // pred_fallthru
        _
      // Predicated region
      $region17: #{block_nerf_forward.1} parent=11 // pred_check
        %p346 = pneg %p113
      $region18: #{block_nerf_forward.1} parent=11 // pred_check_branch
        %348 = sbr.rel (%p346) target = $region20
      $region19: #{block_nerf_forward.1} parent=11 // pred_region
        _
      $region20: #{block_nerf_forward.1} parent=11 // pred_fallthru
        _
      // Predicated region
      $region21: #{block_nerf_forward.1} parent=11 // pred_check
        %p349 = pneg %p134
      $region22: #{block_nerf_forward.1} parent=11 // pred_check_branch
        %351 = sbr.rel (%p349) target = $region24
      $region23: #{block_nerf_forward.1} parent=11 // pred_region
        _
      $region24: #{block_nerf_forward.1} parent=11 // pred_fallthru
        _
      // Predicated region
      $region25: #{block_nerf_forward.1} parent=11 // pred_check
        %p352 = pneg %p155
      $region26: #{block_nerf_forward.1} parent=11 // pred_check_branch
        %354 = sbr.rel (%p352) target = $region28
      $region27: #{block_nerf_forward.1} parent=11 // pred_region
        _
      $region28: #{block_nerf_forward.1} parent=11 // pred_fallthru
        _
      // Predicated region
      $region29: #{block_nerf_forward.1} parent=11 // pred_check
        %p355 = pneg %p176
      $region30: #{block_nerf_forward.1} parent=11 // pred_check_branch
        %357 = sbr.rel (%p355) target = $region32
      $region31: #{block_nerf_forward.1} parent=11 // pred_region
        _
      $region32: #{block_nerf_forward.1} parent=11 // pred_fallthru
        _
      // Predicated region
      $region33: #{block_nerf_forward.1} parent=11 // pred_check
        %p358 = pneg %p197
      $region34: #{block_nerf_forward.1} parent=11 // pred_check_branch
        %360 = sbr.rel (%p358) target = $region36
      $region35: #{block_nerf_forward.1} parent=11 // pred_region
        _
      $region36: #{block_nerf_forward.1} parent=11 // pred_fallthru
        _
      // Predicated region
      $region37: #{block_nerf_forward.1} parent=11 // pred_check
        %p361 = pneg %p218
      $region38: #{block_nerf_forward.1} parent=11 // pred_check_branch
        %363 = sbr.rel (%p361) target = $region40
      $region39: #{block_nerf_forward.1} parent=11 // pred_region
        _
      $region40: #{block_nerf_forward.1} parent=11 // pred_fallthru
        _
      // Predicated region
      $region41: #{block_nerf_forward.1} parent=11 // pred_check
        %p364 = pneg %p239
      $region42: #{block_nerf_forward.1} parent=11 // pred_check_branch
        %366 = sbr.rel (%p364) target = $region44
      $region43: #{block_nerf_forward.1} parent=11 // pred_region
        _
      $region44: #{block_nerf_forward.1} parent=11 // pred_fallthru
        _
      // Predicated region
      $region45: #{block_nerf_forward.1} parent=11 // pred_check
        %p367 = pneg %p260
      $region46: #{block_nerf_forward.1} parent=11 // pred_check_branch
        %369 = sbr.rel (%p367) target = $region48
      $region47: #{block_nerf_forward.1} parent=11 // pred_region
        _
      $region48: #{block_nerf_forward.1} parent=11 // pred_fallthru
        _
      // Predicated region
      $region49: #{block_nerf_forward.1} parent=11 // pred_check
        %p370 = pneg %p281
      $region50: #{block_nerf_forward.1} parent=11 // pred_check_branch
        %372 = sbr.rel (%p370) target = $region52
      $region51: #{block_nerf_forward.1} parent=11 // pred_region
        _
      $region52: #{block_nerf_forward.1} parent=11 // pred_fallthru
        _
      // Predicated region
      $region53: #{block_nerf_forward.1} parent=11 // pred_check
        %p373 = pneg %p302
      $region54: #{block_nerf_forward.1} parent=11 // pred_check_branch
        %375 = sbr.rel (%p373) target = $region56
      $region55: #{block_nerf_forward.1} parent=11 // pred_region
        _
      $region56: #{block_nerf_forward.1} parent=11 // pred_fallthru
        _
    $region12: #{block_nerf_forward.1} parent=5 // pred_fallthru
      _
    %p376 = scmp.lt.s32.totalorder %s19, 2
    // Predicated region
    $region57: #{block_nerf_forward.1} parent=5 // pred_check
      %p377 = pneg %p376
    $region58: #{block_nerf_forward.1} parent=5 // pred_check_branch
      %379 = sbr.rel (%p377) target = $region60
    $region59: #{block_nerf_forward.1} parent=5 // pred_region
      // Predicated region
      $region61: #{block_nerf_forward.1} parent=59 // pred_check
        %p380 = pneg %p39
      $region62: #{block_nerf_forward.1} parent=59 // pred_check_branch
        %382 = sbr.rel (%p380) target = $region64
      $region63: #{block_nerf_forward.1} parent=59 // pred_region
        %s383 = smul.u32 32, %s19
        %p384 = scmp.lt.s32.totalorder %s383, 63
        %s385 = scalar_select %p384, %s383, 63
        %s386 = smul.addr %s385, 8
        %s387 = scalar_lea.vmem %s0, %s386
        %s388 = smul.u32 32, %s19
      $region64: #{block_nerf_forward.1} parent=59 // pred_fallthru
        _
      // Predicated region
      $region65: #{block_nerf_forward.1} parent=59 // pred_check
        %p389 = pneg %p65
      $region66: #{block_nerf_forward.1} parent=59 // pred_check_branch
        %391 = sbr.rel (%p389) target = $region68
      $region67: #{block_nerf_forward.1} parent=59 // pred_region
        %s392 = smul.u32 32, %s19
        %p393 = scmp.lt.s32.totalorder %s392, 63
        %s394 = scalar_select %p393, %s392, 63
        %s395 = smul.addr %s394, 8
        %s396 = scalar_lea.vmem %s1, %s395
        %s397 = smul.u32 32, %s19
      $region68: #{block_nerf_forward.1} parent=59 // pred_fallthru
        _
    $region60: #{block_nerf_forward.1} parent=5 // pred_fallthru
      _
    %p398 = scmp.le.s32.totalorder 1, %s19
    %p399 = scmp.lt.s32.totalorder %s19, 3
    %p400 = pnand %p398, %p399
    %p401 = pneg %p400
    // Predicated region
    $region69: #{block_nerf_forward.1} parent=5 // pred_check
      _
    $region70: #{block_nerf_forward.1} parent=5 // pred_check_branch
      %403 = sbr.rel (%p400) target = $region72
    $region71: #{block_nerf_forward.1} parent=5 // pred_region
      %s404 = ssub.s32 %s19, 1
      %s405 = smul.u32 32, %s24
      %p406 = scmp.lt.s32.totalorder %s405, 63
      %s407 = scalar_select %p406, %s405, 63
      %s408 = smul.addr %s407, 8
      %s409 = scalar_lea.vmem %s0, %s408
      %p410 = pneg %p45
      %p411 = pneg %p42
      %s412 = smul.u32 32, %s24
      %p413 = scmp.lt.s32.totalorder %s412, 63
      %s414 = scalar_select %p413, %s412, 63
      %s415 = smul.addr %s414, 8
      %s416 = scalar_lea.vmem %s1, %s415
      %p417 = pneg %p71
      %p418 = pneg %p68
      %p419 = pneg %p92
      %p420 = pneg %p89
      %p421 = pneg %p113
      %p422 = pneg %p110
      %p423 = pneg %p134
      %p424 = pneg %p131
      %p425 = pneg %p155
      %p426 = pneg %p152
      %p427 = pneg %p176
      %p428 = pneg %p173
      %p429 = pneg %p197
      %p430 = pneg %p194
      %p431 = pneg %p218
      %p432 = pneg %p215
      %p433 = pneg %p239
      %p434 = pneg %p236
      %p435 = pneg %p260
      %p436 = pneg %p257
      %p437 = pneg %p281
      %p438 = pneg %p278
      %p439 = pneg %p302
      %p440 = pneg %p299
      %p441 = pneg %p328
      %p442 = pneg %p325
      %s443 = smul.u32 32, %s24
      %p444 = scmp.lt.s32.totalorder %s443, 63
      %s445 = scalar_select %p444, %s443, 63
      %s446 = smul.addr %s445, 8
      %s447 = scalar_lea.vmem %s13, %s446
      %s448 = smul.u32 32, %s24
      %p449 = scmp.lt.s32.totalorder %s448, 63
      %s450 = scalar_select %p449, %s448, 63
      %s451 = smul.addr %s450, 8
      %s452 = scalar_lea.vmem %s0, %s451
      %s453 = smul.u32 32, %s24
      %s454 = smul.u32 32, %s24
      %p455 = scmp.lt.s32.totalorder %s454, 63
      %s456 = scalar_select %p455, %s454, 63
      %s457 = smul.addr %s456, 8
      %s458 = scalar_lea.vmem %s1, %s457
      %s459 = smul.u32 32, %s24
      %s460 = smul.u32 32, %s24
      %p461 = scmp.lt.s32.totalorder %s460, 63
      %s462 = scalar_select %p461, %s460, 63
      %s463 = smul.addr %s462, 8
      %s464 = scalar_lea.vmem %s13, %s463
      %s465 = smul.u32 32, %s24
      %v467 = vld [vmem:[%s452] sm:$0xff]
      %v468 = vld [vmem:[%s452 + $0x8] sm:$0xff]
      %v469 = vld [vmem:[%s452 + $0x10] sm:$0xff]
      %v470 = vld [vmem:[%s452 + $0x18] sm:$0xff]
      %v471 = vld [vmem:[%s452 + $0x20] sm:$0xff]
      %v472 = vld [vmem:[%s452 + $0x28] sm:$0xff]
      %v473 = vld [vmem:[%s452 + $0x30] sm:$0xff]
      %v474 = vld [vmem:[%s452 + $0x38] sm:$0xff]
      %v475 = vld [vmem:[%s452 + $0x40] sm:$0xff]
      %v476 = vld [vmem:[%s452 + $0x48] sm:$0xff]
      %v477 = vld [vmem:[%s452 + $0x50] sm:$0xff]
      %v478 = vld [vmem:[%s452 + $0x58] sm:$0xff]
      %v479 = vld [vmem:[%s452 + $0x60] sm:$0xff]
      %v480 = vld [vmem:[%s452 + $0x68] sm:$0xff]
      %v481 = vld [vmem:[%s452 + $0x70] sm:$0xff]
      %v482 = vld [vmem:[%s452 + $0x78] sm:$0xff]
      %v483 = vld [vmem:[%s452 + $0x80] sm:$0xff]
      %v484 = vld [vmem:[%s452 + $0x88] sm:$0xff]
      %v485 = vld [vmem:[%s452 + $0x90] sm:$0xff]
      %v486 = vld [vmem:[%s452 + $0x98] sm:$0xff]
      %v487 = vld [vmem:[%s452 + $0xa0] sm:$0xff]
      %v488 = vld [vmem:[%s452 + $0xa8] sm:$0xff]
      %v489 = vld [vmem:[%s452 + $0xb0] sm:$0xff]
      %v490 = vld [vmem:[%s452 + $0xb8] sm:$0xff]
      %v491 = vld [vmem:[%s452 + $0xc0] sm:$0xff]
      %v492 = vld [vmem:[%s452 + $0xc8] sm:$0xff]
      %v493 = vld [vmem:[%s452 + $0xd0] sm:$0xff]
      %v494 = vld [vmem:[%s452 + $0xd8] sm:$0xff]
      %v495 = vld [vmem:[%s452 + $0xe0] sm:$0xff]
      %v496 = vld [vmem:[%s452 + $0xe8] sm:$0xff]
      %v497 = vld [vmem:[%s452 + $0xf0] sm:$0xff]
      %v498 = vld [vmem:[%s452 + $0xf8] sm:$0xff]
      %v499 = vpack.c.bf16 %v468, %v467
      %v500 = vpack.c.bf16 %v470, %v469
      %v501 = vpack.c.bf16 %v472, %v471
      %v502 = vpack.c.bf16 %v474, %v473
      %v503 = vpack.c.bf16 %v476, %v475
      %v504 = vpack.c.bf16 %v478, %v477
      %v505 = vpack.c.bf16 %v480, %v479
      %v506 = vpack.c.bf16 %v482, %v481
      %v507 = vpack.c.bf16 %v484, %v483
      %v508 = vpack.c.bf16 %v486, %v485
      %v509 = vpack.c.bf16 %v488, %v487
      %v510 = vpack.c.bf16 %v490, %v489
      %v511 = vpack.c.bf16 %v492, %v491
      %v512 = vpack.c.bf16 %v494, %v493
      %v513 = vpack.c.bf16 %v496, %v495
      %v514 = vpack.c.bf16 %v498, %v497
      %v515 = vld [vmem:[%s458] sm:$0xff]
      %v516 = vld [vmem:[%s458 + $0x8] sm:$0xff]
      %v517 = vld [vmem:[%s458 + $0x10] sm:$0xff]
      %v518 = vld [vmem:[%s458 + $0x18] sm:$0xff]
      %v519 = vld [vmem:[%s458 + $0x20] sm:$0xff]
      %v520 = vld [vmem:[%s458 + $0x28] sm:$0xff]
      %v521 = vld [vmem:[%s458 + $0x30] sm:$0xff]
      %v522 = vld [vmem:[%s458 + $0x38] sm:$0xff]
      %v523 = vld [vmem:[%s458 + $0x40] sm:$0xff]
      %v524 = vld [vmem:[%s458 + $0x48] sm:$0xff]
      %v525 = vld [vmem:[%s458 + $0x50] sm:$0xff]
      %v526 = vld [vmem:[%s458 + $0x58] sm:$0xff]
      %v527 = vld [vmem:[%s458 + $0x60] sm:$0xff]
      %v528 = vld [vmem:[%s458 + $0x68] sm:$0xff]
      %v529 = vld [vmem:[%s458 + $0x70] sm:$0xff]
      %v530 = vld [vmem:[%s458 + $0x78] sm:$0xff]
      %v531 = vld [vmem:[%s458 + $0x80] sm:$0xff]
      %v532 = vld [vmem:[%s458 + $0x88] sm:$0xff]
      %v533 = vld [vmem:[%s458 + $0x90] sm:$0xff]
      %v534 = vld [vmem:[%s458 + $0x98] sm:$0xff]
      %v535 = vld [vmem:[%s458 + $0xa0] sm:$0xff]
      %v536 = vld [vmem:[%s458 + $0xa8] sm:$0xff]
      %v537 = vld [vmem:[%s458 + $0xb0] sm:$0xff]
      %v538 = vld [vmem:[%s458 + $0xb8] sm:$0xff]
      %v539 = vld [vmem:[%s458 + $0xc0] sm:$0xff]
      %v540 = vld [vmem:[%s458 + $0xc8] sm:$0xff]
      %v541 = vld [vmem:[%s458 + $0xd0] sm:$0xff]
      %v542 = vld [vmem:[%s458 + $0xd8] sm:$0xff]
      %v543 = vld [vmem:[%s458 + $0xe0] sm:$0xff]
      %v544 = vld [vmem:[%s458 + $0xe8] sm:$0xff]
      %v545 = vld [vmem:[%s458 + $0xf0] sm:$0xff]
      %v546 = vld [vmem:[%s458 + $0xf8] sm:$0xff]
      %v547 = vpack.c.bf16 %v516, %v515
      %v548 = vpack.c.bf16 %v518, %v517
      %v549 = vpack.c.bf16 %v520, %v519
      %v550 = vpack.c.bf16 %v522, %v521
      %v551 = vpack.c.bf16 %v524, %v523
      %v552 = vpack.c.bf16 %v526, %v525
      %v553 = vpack.c.bf16 %v528, %v527
      %v554 = vpack.c.bf16 %v530, %v529
      %v555 = vpack.c.bf16 %v532, %v531
      %v556 = vpack.c.bf16 %v534, %v533
      %v557 = vpack.c.bf16 %v536, %v535
      %v558 = vpack.c.bf16 %v538, %v537
      %v559 = vpack.c.bf16 %v540, %v539
      %v560 = vpack.c.bf16 %v542, %v541
      %v561 = vpack.c.bf16 %v544, %v543
      %v562 = vpack.c.bf16 %v546, %v545
      %v563 = vld [vmem:[%s2] sm:$0xff]
      %v564 = vld [vmem:[%s2 + $0x8] sm:$0xff]
      %v565 = vld [vmem:[%s2 + $0x10] sm:$0xff]
      %v566 = vld [vmem:[%s2 + $0x18] sm:$0xff]
      %v567 = vld [vmem:[%s2 + $0x20] sm:$0xff]
      %v568 = vld [vmem:[%s2 + $0x28] sm:$0xff]
      %v569 = vld [vmem:[%s2 + $0x30] sm:$0xff]
      %v570 = vld [vmem:[%s2 + $0x38] sm:$0x33]
      %v571 = vld [vmem:[%s5] ss:$8 sm:$0x3]
      %v573 = vlaneseq
      %v574 = vshrl.u32 %v573, 7
      %v575 = vsub.s32 0, %v574
      %v576 = vrot.slane %v571, %v575
      %v577 = vlaneseq
      %v578 = vshrl.u32 %v577, 7
      %v579 = vsub.s32 1, %v578
      %v580 = vrot.slane %v571, %v579
      %v591 = vunpack.c.l.b16 %v563
      %v592 = vunpack.c.h.b16 %v563
      %v593 = vunpack.c.l.b16 %v564
      %v594 = vunpack.c.h.b16 %v564
      %v595 = vunpack.c.l.b16 %v565
      %v596 = vunpack.c.h.b16 %v565
      %v597 = vunpack.c.l.b16 %v566
      %v598 = vunpack.c.h.b16 %v566
      %v599 = vunpack.c.l.b16 %v567
      %v600 = vunpack.c.h.b16 %v567
      %v601 = vunpack.c.l.b16 %v568
      %v602 = vunpack.c.h.b16 %v568
      %v603 = vunpack.c.l.b16 %v569
      %v604 = vunpack.c.h.b16 %v569
      %v605 = vunpack.c.l.b16 %v570
      %v606 = vunpack.c.h.b16 %v570
      %v607 = vpack.c.b16 %v593, %v591
      %v608 = vpack.c.b16 %v594, %v592
      %v609 = vpack.c.b16 %v597, %v595
      %v610 = vpack.c.b16 %v598, %v596
      %v611 = vpack.c.b16 %v601, %v599
      %v612 = vpack.c.b16 %v602, %v600
      %v613 = vpack.c.b16 %v605, %v603
      %v614 = vpack.c.b16 %v606, %v604
      %vm621 = vcmask 490496
      %v623 = vsel %vm621, %v499, 0
      %v626 = vsel %vm621, %v500, 0
      %v629 = vsel %vm621, %v501, 0
      %v632 = vsel %vm621, %v502, 0
      %v635 = vsel %vm621, %v503, 0
      %v638 = vsel %vm621, %v504, 0
      %v641 = vsel %vm621, %v505, 0
      %v644 = vsel %vm621, %v506, 0
      %v647 = vsel %vm621, %v507, 0
      %v650 = vsel %vm621, %v508, 0
      %v653 = vsel %vm621, %v509, 0
      %v656 = vsel %vm621, %v510, 0
      %v659 = vsel %vm621, %v511, 0
      %v662 = vsel %vm621, %v512, 0
      %v665 = vsel %vm621, %v513, 0
      %v668 = vsel %vm621, %v514, 0
      %vm670 = vcmask 1045504
      %v672 = vsel %vm670, %v613, 0
      %v675 = vsel %vm670, %v614, 0
      %677 = vmatprep.subr.bf16.mxu0 %v608
      %678 = vmatpush1.bf16.msra.mxu0 %v607
      %679 = vmatprep.subr.bf16.mxu0 %v610
      %680 = vmatpush1.bf16.msra.mxu0 %v609
      %681 = vmatprep.subr.bf16.mxu0 %v612
      %682 = vmatpush1.bf16.msra.mxu0 %v611
      %683 = vmatprep.subr.bf16.mxu0 %v675
      %684 = vmatpush1.bf16.msra.mxu0 %v672
      %685 = vmatprep.subr.bf16.mxu0 0
      %686 = vmatpush1.bf16.msra.mxu0 0
      %687 = vmatprep.subr.bf16.mxu0 0
      %688 = vmatpush1.bf16.msra.mxu0 0
      %689 = vmatprep.subr.bf16.mxu0 0
      %690 = vmatpush1.bf16.msra.mxu0 0
      %691 = vmatprep.subr.bf16.mxu0 0
      %692 = vmatpush1.bf16.msra.mxu0 0
      %693 = vmatprep.subr.bf16.mxu0 0
      %694 = vmatpush1.bf16.msra.mxu0 0
      %695 = vmatprep.subr.bf16.mxu0 0
      %696 = vmatpush1.bf16.msra.mxu0 0
      %697 = vmatprep.subr.bf16.mxu0 0
      %698 = vmatpush1.bf16.msra.mxu0 0
      %699 = vmatprep.subr.bf16.mxu0 0
      %700 = vmatpush1.bf16.msra.mxu0 0
      %701 = vmatprep.subr.bf16.mxu0 0
      %702 = vmatpush1.bf16.msra.mxu0 0
      %703 = vmatprep.subr.bf16.mxu0 0
      %704 = vmatpush1.bf16.msra.mxu0 0
      %705 = vmatprep.subr.bf16.mxu0 0
      %706 = vmatpush1.bf16.msra.mxu0 0
      %707 = vmatprep.subr.bf16.mxu0 0
      %708 = vmatpush1.bf16.msra.mxu0 0
      %709 = vmatprep.mubr.bf16.mxu0 0
      %710 = vmatmul.mubr.bf16.gmra.mrb[0].mxu0 %v623
      %v711 = vpop.f32.mrb[0].mxu0
      %v712 = vadd.f32 %v576, %v711
      %v713 = vpop.f32.mrb[0].mxu0
      %v714 = vadd.f32 %v580, %v713
      %v715 = vpop.f32.mrb[0].mxu0
      %v716 = vadd.f32 %v576, %v715
      %v717 = vpop.f32.mrb[0].mxu0
      %v718 = vadd.f32 %v580, %v717
      %719 = vmatprep.mubr.bf16.mxu0 0
      %720 = vmatmul.mubr.bf16.gmra.mrb[0].mxu0 %v626
      %v721 = vpop.f32.mrb[0].mxu0
      %v722 = vadd.f32 %v576, %v721
      %v723 = vpop.f32.mrb[0].mxu0
      %v724 = vadd.f32 %v580, %v723
      %v725 = vpop.f32.mrb[0].mxu0
      %v726 = vadd.f32 %v576, %v725
      %v727 = vpop.f32.mrb[0].mxu0
      %v728 = vadd.f32 %v580, %v727
      %729 = vmatprep.mubr.bf16.mxu0 0
      %730 = vmatmul.mubr.bf16.gmra.mrb[0].mxu0 %v629
      %v731 = vpop.f32.mrb[0].mxu0
      %v732 = vadd.f32 %v576, %v731
      %v733 = vpop.f32.mrb[0].mxu0
      %v734 = vadd.f32 %v580, %v733
      %v735 = vpop.f32.mrb[0].mxu0
      %v736 = vadd.f32 %v576, %v735
      %v737 = vpop.f32.mrb[0].mxu0
      %v738 = vadd.f32 %v580, %v737
      %739 = vmatprep.mubr.bf16.mxu0 0
      %740 = vmatmul.mubr.bf16.gmra.mrb[0].mxu0 %v632
      %v741 = vpop.f32.mrb[0].mxu0
      %v742 = vadd.f32 %v576, %v741
      %v743 = vpop.f32.mrb[0].mxu0
      %v744 = vadd.f32 %v580, %v743
      %v745 = vpop.f32.mrb[0].mxu0
      %v746 = vadd.f32 %v576, %v745
      %v747 = vpop.f32.mrb[0].mxu0
      %v748 = vadd.f32 %v580, %v747
      %749 = vmatprep.mubr.bf16.mxu0 0
      %750 = vmatmul.mubr.bf16.gmra.mrb[0].mxu0 %v635
      %v751 = vpop.f32.mrb[0].mxu0
      %v752 = vadd.f32 %v576, %v751
      %v753 = vpop.f32.mrb[0].mxu0
      %v754 = vadd.f32 %v580, %v753
      %v755 = vpop.f32.mrb[0].mxu0
      %v756 = vadd.f32 %v576, %v755
      %v757 = vpop.f32.mrb[0].mxu0
      %v758 = vadd.f32 %v580, %v757
      %759 = vmatprep.mubr.bf16.mxu0 0
      %760 = vmatmul.mubr.bf16.gmra.mrb[0].mxu0 %v638
      %v761 = vpop.f32.mrb[0].mxu0
      %v762 = vadd.f32 %v576, %v761
      %v763 = vpop.f32.mrb[0].mxu0
      %v764 = vadd.f32 %v580, %v763
      %v765 = vpop.f32.mrb[0].mxu0
      %v766 = vadd.f32 %v576, %v765
      %v767 = vpop.f32.mrb[0].mxu0
      %v768 = vadd.f32 %v580, %v767
      %769 = vmatprep.mubr.bf16.mxu0 0
      %770 = vmatmul.mubr.bf16.gmra.mrb[0].mxu0 %v641
      %v771 = vpop.f32.mrb[0].mxu0
      %v772 = vadd.f32 %v576, %v771
      %v773 = vpop.f32.mrb[0].mxu0
      %v774 = vadd.f32 %v580, %v773
      %v775 = vpop.f32.mrb[0].mxu0
      %v776 = vadd.f32 %v576, %v775
      %v777 = vpop.f32.mrb[0].mxu0
      %v778 = vadd.f32 %v580, %v777
      %779 = vmatprep.mubr.bf16.mxu0 0
      %780 = vmatmul.mubr.bf16.gmra.mrb[0].mxu0 %v644
      %v781 = vpop.f32.mrb[0].mxu0
      %v782 = vadd.f32 %v576, %v781
      %v783 = vpop.f32.mrb[0].mxu0
      %v784 = vadd.f32 %v580, %v783
      %v785 = vpop.f32.mrb[0].mxu0
      %v786 = vadd.f32 %v576, %v785
      %v787 = vpop.f32.mrb[0].mxu0
      %v788 = vadd.f32 %v580, %v787
      %789 = vmatprep.mubr.bf16.mxu0 0
      %790 = vmatmul.mubr.bf16.gmra.mrb[0].mxu0 %v647
      %v791 = vpop.f32.mrb[0].mxu0
      %v792 = vadd.f32 %v576, %v791
      %v793 = vpop.f32.mrb[0].mxu0
      %v794 = vadd.f32 %v580, %v793
      %v795 = vpop.f32.mrb[0].mxu0
      %v796 = vadd.f32 %v576, %v795
      %v797 = vpop.f32.mrb[0].mxu0
      %v798 = vadd.f32 %v580, %v797
      %799 = vmatprep.mubr.bf16.mxu0 0
      %800 = vmatmul.mubr.bf16.gmra.mrb[0].mxu0 %v650
      %v801 = vpop.f32.mrb[0].mxu0
      %v802 = vadd.f32 %v576, %v801
      %v803 = vpop.f32.mrb[0].mxu0
      %v804 = vadd.f32 %v580, %v803
      %v805 = vpop.f32.mrb[0].mxu0
      %v806 = vadd.f32 %v576, %v805
      %v807 = vpop.f32.mrb[0].mxu0
      %v808 = vadd.f32 %v580, %v807
      %809 = vmatprep.mubr.bf16.mxu0 0
      %810 = vmatmul.mubr.bf16.gmra.mrb[0].mxu0 %v653
      %v811 = vpop.f32.mrb[0].mxu0
      %v812 = vadd.f32 %v576, %v811
      %v813 = vpop.f32.mrb[0].mxu0
      %v814 = vadd.f32 %v580, %v813
      %v815 = vpop.f32.mrb[0].mxu0
      %v816 = vadd.f32 %v576, %v815
      %v817 = vpop.f32.mrb[0].mxu0
      %v818 = vadd.f32 %v580, %v817
      %819 = vmatprep.mubr.bf16.mxu0 0
      %820 = vmatmul.mubr.bf16.gmra.mrb[0].mxu0 %v656
      %v821 = vpop.f32.mrb[0].mxu0
      %v822 = vadd.f32 %v576, %v821
      %v823 = vpop.f32.mrb[0].mxu0
      %v824 = vadd.f32 %v580, %v823
      %v825 = vpop.f32.mrb[0].mxu0
      %v826 = vadd.f32 %v576, %v825
      %v827 = vpop.f32.mrb[0].mxu0
      %v828 = vadd.f32 %v580, %v827
      %829 = vmatprep.mubr.bf16.mxu0 0
      %830 = vmatmul.mubr.bf16.gmra.mrb[0].mxu0 %v659
      %v831 = vpop.f32.mrb[0].mxu0
      %v832 = vadd.f32 %v576, %v831
      %v833 = vpop.f32.mrb[0].mxu0
      %v834 = vadd.f32 %v580, %v833
      %v835 = vpop.f32.mrb[0].mxu0
      %v836 = vadd.f32 %v576, %v835
      %v837 = vpop.f32.mrb[0].mxu0
      %v838 = vadd.f32 %v580, %v837
      %839 = vmatprep.mubr.bf16.mxu0 0
      %840 = vmatmul.mubr.bf16.gmra.mrb[0].mxu0 %v662
      %v841 = vpop.f32.mrb[0].mxu0
      %v842 = vadd.f32 %v576, %v841
      %v843 = vpop.f32.mrb[0].mxu0
      %v844 = vadd.f32 %v580, %v843
      %v845 = vpop.f32.mrb[0].mxu0
      %v846 = vadd.f32 %v576, %v845
      %v847 = vpop.f32.mrb[0].mxu0
      %v848 = vadd.f32 %v580, %v847
      %849 = vmatprep.mubr.bf16.mxu0 0
      %850 = vmatmul.mubr.bf16.gmra.mrb[0].mxu0 %v665
      %v851 = vpop.f32.mrb[0].mxu0
      %v852 = vadd.f32 %v576, %v851
      %v853 = vpop.f32.mrb[0].mxu0
      %v854 = vadd.f32 %v580, %v853
      %v855 = vpop.f32.mrb[0].mxu0
      %v856 = vadd.f32 %v576, %v855
      %v857 = vpop.f32.mrb[0].mxu0
      %v858 = vadd.f32 %v580, %v857
      %859 = vmatprep.mubr.bf16.mxu0 0
      %860 = vmatmul.mubr.bf16.gmra.mrb[0].mxu0 %v668
      %v861 = vpop.f32.mrb[0].mxu0
      %v862 = vadd.f32 %v576, %v861
      %v863 = vpop.f32.mrb[0].mxu0
      %v864 = vadd.f32 %v580, %v863
      %v865 = vpop.f32.mrb[0].mxu0
      %v866 = vadd.f32 %v576, %v865
      %v867 = vpop.f32.mrb[0].mxu0
      %v868 = vadd.f32 %v580, %v867
      %869 = vdwg.mxu0
      %v870 = vmax.f32 %v712, 0.0
      %v871 = vmax.f32 %v714, 0.0
      %v872 = vmax.f32 %v716, 0.0
      %v873 = vmax.f32 %v718, 0.0
      %v874 = vmax.f32 %v722, 0.0
      %v875 = vmax.f32 %v724, 0.0
      %v876 = vmax.f32 %v726, 0.0
      %v877 = vmax.f32 %v728, 0.0
      %v878 = vmax.f32 %v732, 0.0
      %v879 = vmax.f32 %v734, 0.0
      %v880 = vmax.f32 %v736, 0.0
      %v881 = vmax.f32 %v738, 0.0
      %v882 = vmax.f32 %v742, 0.0
      %v883 = vmax.f32 %v744, 0.0
      %v884 = vmax.f32 %v746, 0.0
      %v885 = vmax.f32 %v748, 0.0
      %v886 = vmax.f32 %v752, 0.0
      %v887 = vmax.f32 %v754, 0.0
      %v888 = vmax.f32 %v756, 0.0
      %v889 = vmax.f32 %v758, 0.0
      %v890 = vmax.f32 %v762, 0.0
      %v891 = vmax.f32 %v764, 0.0
      %v892 = vmax.f32 %v766, 0.0
      %v893 = vmax.f32 %v768, 0.0
      %v894 = vmax.f32 %v772, 0.0
      %v895 = vmax.f32 %v774, 0.0
      %v896 = vmax.f32 %v776, 0.0
      %v897 = vmax.f32 %v778, 0.0
      %v898 = vmax.f32 %v782, 0.0
      %v899 = vmax.f32 %v784, 0.0
      %v900 = vmax.f32 %v786, 0.0
      %v901 = vmax.f32 %v788, 0.0
      %v902 = vmax.f32 %v792, 0.0
      %v903 = vmax.f32 %v794, 0.0
      %v904 = vmax.f32 %v796, 0.0
      %v905 = vmax.f32 %v798, 0.0
      %v906 = vmax.f32 %v802, 0.0
      %v907 = vmax.f32 %v804, 0.0
      %v908 = vmax.f32 %v806, 0.0
      %v909 = vmax.f32 %v808, 0.0
      %v910 = vmax.f32 %v812, 0.0
      %v911 = vmax.f32 %v814, 0.0
      %v912 = vmax.f32 %v816, 0.0
      %v913 = vmax.f32 %v818, 0.0
      %v914 = vmax.f32 %v822, 0.0
      %v915 = vmax.f32 %v824, 0.0
      %v916 = vmax.f32 %v826, 0.0
      %v917 = vmax.f32 %v828, 0.0
      %v918 = vmax.f32 %v832, 0.0
      %v919 = vmax.f32 %v834, 0.0
      %v920 = vmax.f32 %v836, 0.0
      %v921 = vmax.f32 %v838, 0.0
      %v922 = vmax.f32 %v842, 0.0
      %v923 = vmax.f32 %v844, 0.0
      %v924 = vmax.f32 %v846, 0.0
      %v925 = vmax.f32 %v848, 0.0
      %v926 = vmax.f32 %v852, 0.0
      %v927 = vmax.f32 %v854, 0.0
      %v928 = vmax.f32 %v856, 0.0
      %v929 = vmax.f32 %v858, 0.0
      %v930 = vmax.f32 %v862, 0.0
      %v931 = vmax.f32 %v864, 0.0
      %v932 = vmax.f32 %v866, 0.0
      %v933 = vmax.f32 %v868, 0.0
      %v934 = vld [vmem:[%s4] sm:$0xff]
      %v935 = vld [vmem:[%s4 + $0x8] sm:$0xff]
      %v936 = vld [vmem:[%s4 + $0x10] sm:$0xff]
      %v937 = vld [vmem:[%s4 + $0x18] sm:$0xff]
      %v938 = vld [vmem:[%s4 + $0x20] sm:$0xff]
      %v939 = vld [vmem:[%s4 + $0x28] sm:$0xff]
      %v940 = vld [vmem:[%s4 + $0x30] sm:$0xff]
      %v941 = vld [vmem:[%s4 + $0x38] sm:$0xff]
      %v942 = vld [vmem:[%s4 + $0x40] sm:$0xff]
      %v943 = vld [vmem:[%s4 + $0x48] sm:$0xff]
      %v944 = vld [vmem:[%s4 + $0x50] sm:$0xff]
      %v945 = vld [vmem:[%s4 + $0x58] sm:$0xff]
      %v946 = vld [vmem:[%s4 + $0x60] sm:$0xff]
      %v947 = vld [vmem:[%s4 + $0x68] sm:$0xff]
      %v948 = vld [vmem:[%s4 + $0x70] sm:$0xff]
      %v949 = vld [vmem:[%s4 + $0x78] sm:$0xff]
      %v950 = vld [vmem:[%s4 + $0x80] sm:$0xff]
      %v951 = vld [vmem:[%s4 + $0x88] sm:$0xff]
      %v952 = vld [vmem:[%s4 + $0x90] sm:$0xff]
      %v953 = vld [vmem:[%s4 + $0x98] sm:$0xff]
      %v954 = vld [vmem:[%s4 + $0xa0] sm:$0xff]
      %v955 = vld [vmem:[%s4 + $0xa8] sm:$0xff]
      %v956 = vld [vmem:[%s4 + $0xb0] sm:$0xff]
      %v957 = vld [vmem:[%s4 + $0xb8] sm:$0xff]
      %v958 = vld [vmem:[%s4 + $0xc0] sm:$0xff]
      %v959 = vld [vmem:[%s4 + $0xc8] sm:$0xff]
      %v960 = vld [vmem:[%s4 + $0xd0] sm:$0xff]
      %v961 = vld [vmem:[%s4 + $0xd8] sm:$0xff]
      %v962 = vld [vmem:[%s4 + $0xe0] sm:$0xff]
      %v963 = vld [vmem:[%s4 + $0xe8] sm:$0xff]
      %v964 = vld [vmem:[%s4 + $0xf0] sm:$0xff]
      %v965 = vld [vmem:[%s4 + $0xf8] sm:$0xff]
      %v966 = vpack.c.bf16 %v872, %v870
      %v967 = vpack.c.bf16 %v873, %v871
      %v968 = vpack.c.bf16 %v876, %v874
      %v969 = vpack.c.bf16 %v877, %v875
      %v970 = vpack.c.bf16 %v880, %v878
      %v971 = vpack.c.bf16 %v881, %v879
      %v972 = vpack.c.bf16 %v884, %v882
      %v973 = vpack.c.bf16 %v885, %v883
      %v974 = vpack.c.bf16 %v888, %v886
      %v975 = vpack.c.bf16 %v889, %v887
      %v976 = vpack.c.bf16 %v892, %v890
      %v977 = vpack.c.bf16 %v893, %v891
      %v978 = vpack.c.bf16 %v896, %v894
      %v979 = vpack.c.bf16 %v897, %v895
      %v980 = vpack.c.bf16 %v900, %v898
      %v981 = vpack.c.bf16 %v901, %v899
      %v982 = vpack.c.bf16 %v904, %v902
      %v983 = vpack.c.bf16 %v905, %v903
      %v984 = vpack.c.bf16 %v908, %v906
      %v985 = vpack.c.bf16 %v909, %v907
      %v986 = vpack.c.bf16 %v912, %v910
      %v987 = vpack.c.bf16 %v913, %v911
      %v988 = vpack.c.bf16 %v916, %v914
      %v989 = vpack.c.bf16 %v917, %v915
      %v990 = vpack.c.bf16 %v920, %v918
      %v991 = vpack.c.bf16 %v921, %v919
      %v992 = vpack.c.bf16 %v924, %v922
      %v993 = vpack.c.bf16 %v925, %v923
      %v994 = vpack.c.bf16 %v928, %v926
      %v995 = vpack.c.bf16 %v929, %v927
      %v996 = vpack.c.bf16 %v932, %v930
      %v997 = vpack.c.bf16 %v933, %v931
      %s998 = scalar_lea.vmem %s5, 1
      %v999 = vld [vmem:[%s998] ss:$8 sm:$0x3]
      %v1001 = vlaneseq
      %v1002 = vshrl.u32 %v1001, 7
      %v1003 = vsub.s32 0, %v1002
      %v1004 = vrot.slane %v999, %v1003
      %v1005 = vlaneseq
      %v1006 = vshrl.u32 %v1005, 7
      %v1007 = vsub.s32 1, %v1006
      %v1008 = vrot.slane %v999, %v1007
      %v1043 = vunpack.c.l.b16 %v934
      %v1044 = vunpack.c.h.b16 %v934
      %v1045 = vunpack.c.l.b16 %v935
      %v1046 = vunpack.c.h.b16 %v935
      %v1047 = vunpack.c.l.b16 %v936
      %v1048 = vunpack.c.h.b16 %v936
      %v1049 = vunpack.c.l.b16 %v937
      %v1050 = vunpack.c.h.b16 %v937
      %v1051 = vunpack.c.l.b16 %v938
      %v1052 = vunpack.c.h.b16 %v938
      %v1053 = vunpack.c.l.b16 %v939
      %v1054 = vunpack.c.h.b16 %v939
      %v1055 = vunpack.c.l.b16 %v940
      %v1056 = vunpack.c.h.b16 %v940
      %v1057 = vunpack.c.l.b16 %v941
      %v1058 = vunpack.c.h.b16 %v941
      %v1059 = vunpack.c.l.b16 %v942
      %v1060 = vunpack.c.h.b16 %v942
      %v1061 = vunpack.c.l.b16 %v943
      %v1062 = vunpack.c.h.b16 %v943
      %v1063 = vunpack.c.l.b16 %v944
      %v1064 = vunpack.c.h.b16 %v944
      %v1065 = vunpack.c.l.b16 %v945
      %v1066 = vunpack.c.h.b16 %v945
      %v1067 = vunpack.c.l.b16 %v946
      %v1068 = vunpack.c.h.b16 %v946
      %v1069 = vunpack.c.l.b16 %v947
      %v1070 = vunpack.c.h.b16 %v947
      %v1071 = vunpack.c.l.b16 %v948
      %v1072 = vunpack.c.h.b16 %v948
      %v1073 = vunpack.c.l.b16 %v949
      %v1074 = vunpack.c.h.b16 %v949
      %v1075 = vunpack.c.l.b16 %v950
      %v1076 = vunpack.c.h.b16 %v950
      %v1077 = vunpack.c.l.b16 %v951
      %v1078 = vunpack.c.h.b16 %v951
      %v1079 = vunpack.c.l.b16 %v952
      %v1080 = vunpack.c.h.b16 %v952
      %v1081 = vunpack.c.l.b16 %v953
      %v1082 = vunpack.c.h.b16 %v953
      %v1083 = vunpack.c.l.b16 %v954
      %v1084 = vunpack.c.h.b16 %v954
      %v1085 = vunpack.c.l.b16 %v955
      %v1086 = vunpack.c.h.b16 %v955
      %v1087 = vunpack.c.l.b16 %v956
      %v1088 = vunpack.c.h.b16 %v956
      %v1089 = vunpack.c.l.b16 %v957
      %v1090 = vunpack.c.h.b16 %v957
      %v1091 = vunpack.c.l.b16 %v958
      %v1092 = vunpack.c.h.b16 %v958
      %v1093 = vunpack.c.l.b16 %v959
      %v1094 = vunpack.c.h.b16 %v959
      %v1095 = vunpack.c.l.b16 %v960
      %v1096 = vunpack.c.h.b16 %v960
      %v1097 = vunpack.c.l.b16 %v961
      %v1098 = vunpack.c.h.b16 %v961
      %v1099 = vunpack.c.l.b16 %v962
      %v1100 = vunpack.c.h.b16 %v962
      %v1101 = vunpack.c.l.b16 %v963
      %v1102 = vunpack.c.h.b16 %v963
      %v1103 = vunpack.c.l.b16 %v964
      %v1104 = vunpack.c.h.b16 %v964
      %v1105 = vunpack.c.l.b16 %v965
      %v1106 = vunpack.c.h.b16 %v965
      %v1107 = vpack.c.b16 %v1045, %v1043
      %v1108 = vpack.c.b16 %v1046, %v1044
      %v1109 = vpack.c.b16 %v1049, %v1047
      %v1110 = vpack.c.b16 %v1050, %v1048
      %v1111 = vpack.c.b16 %v1053, %v1051
      %v1112 = vpack.c.b16 %v1054, %v1052
      %v1113 = vpack.c.b16 %v1057, %v1055
      %v1114 = vpack.c.b16 %v1058, %v1056
      %v1115 = vpack.c.b16 %v1061, %v1059
      %v1116 = vpack.c.b16 %v1062, %v1060
      %v1117 = vpack.c.b16 %v1065, %v1063
      %v1118 = vpack.c.b16 %v1066, %v1064
      %v1119 = vpack.c.b16 %v1069, %v1067
      %v1120 = vpack.c.b16 %v1070, %v1068
      %v1121 = vpack.c.b16 %v1073, %v1071
      %v1122 = vpack.c.b16 %v1074, %v1072
      %v1123 = vpack.c.b16 %v1077, %v1075
      %v1124 = vpack.c.b16 %v1078, %v1076
      %v1125 = vpack.c.b16 %v1081, %v1079
      %v1126 = vpack.c.b16 %v1082, %v1080
      %v1127 = vpack.c.b16 %v1085, %v1083
      %v1128 = vpack.c.b16 %v1086, %v1084
      %v1129 = vpack.c.b16 %v1089, %v1087
      %v1130 = vpack.c.b16 %v1090, %v1088
      %v1131 = vpack.c.b16 %v1093, %v1091
      %v1132 = vpack.c.b16 %v1094, %v1092
      %v1133 = vpack.c.b16 %v1097, %v1095
      %v1134 = vpack.c.b16 %v1098, %v1096
      %v1135 = vpack.c.b16 %v1101, %v1099
      %v1136 = vpack.c.b16 %v1102, %v1100
      %v1137 = vpack.c.b16 %v1105, %v1103
      %v1138 = vpack.c.b16 %v1106, %v1104
      %1171 = vmatprep.subr.bf16.mxu0 %v1108
      %1172 = vmatpush1.bf16.msra.mxu0 %v1107
      %1173 = vmatprep.subr.bf16.mxu0 %v1110
      %1174 = vmatpush1.bf16.msra.mxu0 %v1109
      %1175 = vmatprep.subr.bf16.mxu0 %v1112
      %1176 = vmatpush1.bf16.msra.mxu0 %v1111
      %1177 = vmatprep.subr.bf16.mxu0 %v1114
      %1178 = vmatpush1.bf16.msra.mxu0 %v1113
      %1179 = vmatprep.subr.bf16.mxu0 %v1116
      %1180 = vmatpush1.bf16.msra.mxu0 %v1115
      %1181 = vmatprep.subr.bf16.mxu0 %v1118
      %1182 = vmatpush1.bf16.msra.mxu0 %v1117
      %1183 = vmatprep.subr.bf16.mxu0 %v1120
      %1184 = vmatpush1.bf16.msra.mxu0 %v1119
      %1185 = vmatprep.subr.bf16.mxu0 %v1122
      %1186 = vmatpush1.bf16.msra.mxu0 %v1121
      %1187 = vmatprep.subr.bf16.mxu0 %v1124
      %1188 = vmatpush1.bf16.msra.mxu0 %v1123
      %1189 = vmatprep.subr.bf16.mxu0 %v1126
      %1190 = vmatpush1.bf16.msra.mxu0 %v1125
      %1191 = vmatprep.subr.bf16.mxu0 %v1128
      %1192 = vmatpush1.bf16.msra.mxu0 %v1127
      %1193 = vmatprep.subr.bf16.mxu0 %v1130
      %1194 = vmatpush1.bf16.msra.mxu0 %v1129
      %1195 = vmatprep.subr.bf16.mxu0 %v1132
      %1196 = vmatpush1.bf16.msra.mxu0 %v1131
      %1197 = vmatprep.subr.bf16.mxu0 %v1134
      %1198 = vmatpush1.bf16.msra.mxu0 %v1133
      %1199 = vmatprep.subr.bf16.mxu0 %v1136
      %1200 = vmatpush1.bf16.msra.mxu0 %v1135
      %1201 = vmatprep.subr.bf16.mxu0 %v1138
      %1202 = vmatpush1.bf16.msra.mxu0 %v1137
      %1203 = vmatprep.mubr.bf16.mxu0 %v967
      %1204 = vmatmul.mubr.bf16.gmra.mrb[0].mxu0 %v966
      %v1205 = vpop.f32.mrb[0].mxu0
      %v1206 = vadd.f32 %v1004, %v1205
      %v1207 = vpop.f32.mrb[0].mxu0
      %v1208 = vadd.f32 %v1008, %v1207
      %v1209 = vpop.f32.mrb[0].mxu0
      %v1210 = vadd.f32 %v1004, %v1209
      %v1211 = vpop.f32.mrb[0].mxu0
      %v1212 = vadd.f32 %v1008, %v1211
      %1213 = vmatprep.mubr.bf16.mxu0 %v969
      %1214 = vmatmul.mubr.bf16.gmra.mrb[0].mxu0 %v968
      %v1215 = vpop.f32.mrb[0].mxu0
      %v1216 = vadd.f32 %v1004, %v1215
      %v1217 = vpop.f32.mrb[0].mxu0
      %v1218 = vadd.f32 %v1008, %v1217
      %v1219 = vpop.f32.mrb[0].mxu0
      %v1220 = vadd.f32 %v1004, %v1219
      %v1221 = vpop.f32.mrb[0].mxu0
      %v1222 = vadd.f32 %v1008, %v1221
      %1223 = vmatprep.mubr.bf16.mxu0 %v971
      %1224 = vmatmul.mubr.bf16.gmra.mrb[0].mxu0 %v970
      %v1225 = vpop.f32.mrb[0].mxu0
      %v1226 = vadd.f32 %v1004, %v1225
      %v1227 = vpop.f32.mrb[0].mxu0
      %v1228 = vadd.f32 %v1008, %v1227
      %v1229 = vpop.f32.mrb[0].mxu0
      %v1230 = vadd.f32 %v1004, %v1229
      %v1231 = vpop.f32.mrb[0].mxu0
      %v1232 = vadd.f32 %v1008, %v1231
      %1233 = vmatprep.mubr.bf16.mxu0 %v973
      %1234 = vmatmul.mubr.bf16.gmra.mrb[0].mxu0 %v972
      %v1235 = vpop.f32.mrb[0].mxu0
      %v1236 = vadd.f32 %v1004, %v1235
      %v1237 = vpop.f32.mrb[0].mxu0
      %v1238 = vadd.f32 %v1008, %v1237
      %v1239 = vpop.f32.mrb[0].mxu0
      %v1240 = vadd.f32 %v1004, %v1239
      %v1241 = vpop.f32.mrb[0].mxu0
      %v1242 = vadd.f32 %v1008, %v1241
      %1243 = vmatprep.mubr.bf16.mxu0 %v975
      %1244 = vmatmul.mubr.bf16.gmra.mrb[0].mxu0 %v974
      %v1245 = vpop.f32.mrb[0].mxu0
      %v1246 = vadd.f32 %v1004, %v1245
      %v1247 = vpop.f32.mrb[0].mxu0
      %v1248 = vadd.f32 %v1008, %v1247
      %v1249 = vpop.f32.mrb[0].mxu0
      %v1250 = vadd.f32 %v1004, %v1249
      %v1251 = vpop.f32.mrb[0].mxu0
      %v1252 = vadd.f32 %v1008, %v1251
      %1253 = vmatprep.mubr.bf16.mxu0 %v977
      %1254 = vmatmul.mubr.bf16.gmra.mrb[0].mxu0 %v976
      %v1255 = vpop.f32.mrb[0].mxu0
      %v1256 = vadd.f32 %v1004, %v1255
      %v1257 = vpop.f32.mrb[0].mxu0
      %v1258 = vadd.f32 %v1008, %v1257
      %v1259 = vpop.f32.mrb[0].mxu0
      %v1260 = vadd.f32 %v1004, %v1259
      %v1261 = vpop.f32.mrb[0].mxu0
      %v1262 = vadd.f32 %v1008, %v1261
      %1263 = vmatprep.mubr.bf16.mxu0 %v979
      %1264 = vmatmul.mubr.bf16.gmra.mrb[0].mxu0 %v978
      %v1265 = vpop.f32.mrb[0].mxu0
      %v1266 = vadd.f32 %v1004, %v1265
      %v1267 = vpop.f32.mrb[0].mxu0
      %v1268 = vadd.f32 %v1008, %v1267
      %v1269 = vpop.f32.mrb[0].mxu0
      %v1270 = vadd.f32 %v1004, %v1269
      %v1271 = vpop.f32.mrb[0].mxu0
      %v1272 = vadd.f32 %v1008, %v1271
      %1273 = vmatprep.mubr.bf16.mxu0 %v981
      %1274 = vmatmul.mubr.bf16.gmra.mrb[0].mxu0 %v980
      %v1275 = vpop.f32.mrb[0].mxu0
      %v1276 = vadd.f32 %v1004, %v1275
      %v1277 = vpop.f32.mrb[0].mxu0
      %v1278 = vadd.f32 %v1008, %v1277
      %v1279 = vpop.f32.mrb[0].mxu0
      %v1280 = vadd.f32 %v1004, %v1279
      %v1281 = vpop.f32.mrb[0].mxu0
      %v1282 = vadd.f32 %v1008, %v1281
      %1283 = vmatprep.mubr.bf16.mxu0 %v983
      %1284 = vmatmul.mubr.bf16.gmra.mrb[0].mxu0 %v982
      %v1285 = vpop.f32.mrb[0].mxu0
      %v1286 = vadd.f32 %v1004, %v1285
      %v1287 = vpop.f32.mrb[0].mxu0
      %v1288 = vadd.f32 %v1008, %v1287
      %v1289 = vpop.f32.mrb[0].mxu0
      %v1290 = vadd.f32 %v1004, %v1289
      %v1291 = vpop.f32.mrb[0].mxu0
      %v1292 = vadd.f32 %v1008, %v1291
      %1293 = vmatprep.mubr.bf16.mxu0 %v985
      %1294 = vmatmul.mubr.bf16.gmra.mrb[0].mxu0 %v984
      %v1295 = vpop.f32.mrb[0].mxu0
      %v1296 = vadd.f32 %v1004, %v1295
      %v1297 = vpop.f32.mrb[0].mxu0
      %v1298 = vadd.f32 %v1008, %v1297
      %v1299 = vpop.f32.mrb[0].mxu0
      %v1300 = vadd.f32 %v1004, %v1299
      %v1301 = vpop.f32.mrb[0].mxu0
      %v1302 = vadd.f32 %v1008, %v1301
      %1303 = vmatprep.mubr.bf16.mxu0 %v987
      %1304 = vmatmul.mubr.bf16.gmra.mrb[0].mxu0 %v986
      %v1305 = vpop.f32.mrb[0].mxu0
      %v1306 = vadd.f32 %v1004, %v1305
      %v1307 = vpop.f32.mrb[0].mxu0
      %v1308 = vadd.f32 %v1008, %v1307
      %v1309 = vpop.f32.mrb[0].mxu0
      %v1310 = vadd.f32 %v1004, %v1309
      %v1311 = vpop.f32.mrb[0].mxu0
      %v1312 = vadd.f32 %v1008, %v1311
      %1313 = vmatprep.mubr.bf16.mxu0 %v989
      %1314 = vmatmul.mubr.bf16.gmra.mrb[0].mxu0 %v988
      %v1315 = vpop.f32.mrb[0].mxu0
      %v1316 = vadd.f32 %v1004, %v1315
      %v1317 = vpop.f32.mrb[0].mxu0
      %v1318 = vadd.f32 %v1008, %v1317
      %v1319 = vpop.f32.mrb[0].mxu0
      %v1320 = vadd.f32 %v1004, %v1319
      %v1321 = vpop.f32.mrb[0].mxu0
      %v1322 = vadd.f32 %v1008, %v1321
      %1323 = vmatprep.mubr.bf16.mxu0 %v991
      %1324 = vmatmul.mubr.bf16.gmra.mrb[0].mxu0 %v990
      %v1325 = vpop.f32.mrb[0].mxu0
      %v1326 = vadd.f32 %v1004, %v1325
      %v1327 = vpop.f32.mrb[0].mxu0
      %v1328 = vadd.f32 %v1008, %v1327
      %v1329 = vpop.f32.mrb[0].mxu0
      %v1330 = vadd.f32 %v1004, %v1329
      %v1331 = vpop.f32.mrb[0].mxu0
      %v1332 = vadd.f32 %v1008, %v1331
      %1333 = vmatprep.mubr.bf16.mxu0 %v993
      %1334 = vmatmul.mubr.bf16.gmra.mrb[0].mxu0 %v992
      %v1335 = vpop.f32.mrb[0].mxu0
      %v1336 = vadd.f32 %v1004, %v1335
      %v1337 = vpop.f32.mrb[0].mxu0
      %v1338 = vadd.f32 %v1008, %v1337
      %v1339 = vpop.f32.mrb[0].mxu0
      %v1340 = vadd.f32 %v1004, %v1339
      %v1341 = vpop.f32.mrb[0].mxu0
      %v1342 = vadd.f32 %v1008, %v1341
      %1343 = vmatprep.mubr.bf16.mxu0 %v995
      %1344 = vmatmul.mubr.bf16.gmra.mrb[0].mxu0 %v994
      %v1345 = vpop.f32.mrb[0].mxu0
      %v1346 = vadd.f32 %v1004, %v1345
      %v1347 = vpop.f32.mrb[0].mxu0
      %v1348 = vadd.f32 %v1008, %v1347
      %v1349 = vpop.f32.mrb[0].mxu0
      %v1350 = vadd.f32 %v1004, %v1349
      %v1351 = vpop.f32.mrb[0].mxu0
      %v1352 = vadd.f32 %v1008, %v1351
      %1353 = vmatprep.mubr.bf16.mxu0 %v997
      %1354 = vmatmul.mubr.bf16.gmra.mrb[0].mxu0 %v996
      %v1355 = vpop.f32.mrb[0].mxu0
      %v1356 = vadd.f32 %v1004, %v1355
      %v1357 = vpop.f32.mrb[0].mxu0
      %v1358 = vadd.f32 %v1008, %v1357
      %v1359 = vpop.f32.mrb[0].mxu0
      %v1360 = vadd.f32 %v1004, %v1359
      %v1361 = vpop.f32.mrb[0].mxu0
      %v1362 = vadd.f32 %v1008, %v1361
      %1363 = vdwg.mxu0
      %v1364 = vmax.f32 %v1206, 0.0
      %v1365 = vmax.f32 %v1208, 0.0
      %v1366 = vmax.f32 %v1210, 0.0
      %v1367 = vmax.f32 %v1212, 0.0
      %v1368 = vmax.f32 %v1216, 0.0
      %v1369 = vmax.f32 %v1218, 0.0
      %v1370 = vmax.f32 %v1220, 0.0
      %v1371 = vmax.f32 %v1222, 0.0
      %v1372 = vmax.f32 %v1226, 0.0
      %v1373 = vmax.f32 %v1228, 0.0
      %v1374 = vmax.f32 %v1230, 0.0
      %v1375 = vmax.f32 %v1232, 0.0
      %v1376 = vmax.f32 %v1236, 0.0
      %v1377 = vmax.f32 %v1238, 0.0
      %v1378 = vmax.f32 %v1240, 0.0
      %v1379 = vmax.f32 %v1242, 0.0
      %v1380 = vmax.f32 %v1246, 0.0
      %v1381 = vmax.f32 %v1248, 0.0
      %v1382 = vmax.f32 %v1250, 0.0
      %v1383 = vmax.f32 %v1252, 0.0
      %v1384 = vmax.f32 %v1256, 0.0
      %v1385 = vmax.f32 %v1258, 0.0
      %v1386 = vmax.f32 %v1260, 0.0
      %v1387 = vmax.f32 %v1262, 0.0
      %v1388 = vmax.f32 %v1266, 0.0
      %v1389 = vmax.f32 %v1268, 0.0
      %v1390 = vmax.f32 %v1270, 0.0
      %v1391 = vmax.f32 %v1272, 0.0
      %v1392 = vmax.f32 %v1276, 0.0
      %v1393 = vmax.f32 %v1278, 0.0
      %v1394 = vmax.f32 %v1280, 0.0
      %v1395 = vmax.f32 %v1282, 0.0
      %v1396 = vmax.f32 %v1286, 0.0
      %v1397 = vmax.f32 %v1288, 0.0
      %v1398 = vmax.f32 %v1290, 0.0
      %v1399 = vmax.f32 %v1292, 0.0
      %v1400 = vmax.f32 %v1296, 0.0
      %v1401 = vmax.f32 %v1298, 0.0
      %v1402 = vmax.f32 %v1300, 0.0
      %v1403 = vmax.f32 %v1302, 0.0
      %v1404 = vmax.f32 %v1306, 0.0
      %v1405 = vmax.f32 %v1308, 0.0
      %v1406 = vmax.f32 %v1310, 0.0
      %v1407 = vmax.f32 %v1312, 0.0
      %v1408 = vmax.f32 %v1316, 0.0
      %v1409 = vmax.f32 %v1318, 0.0
      %v1410 = vmax.f32 %v1320, 0.0
      %v1411 = vmax.f32 %v1322, 0.0
      %v1412 = vmax.f32 %v1326, 0.0
      %v1413 = vmax.f32 %v1328, 0.0
      %v1414 = vmax.f32 %v1330, 0.0
      %v1415 = vmax.f32 %v1332, 0.0
      %v1416 = vmax.f32 %v1336, 0.0
      %v1417 = vmax.f32 %v1338, 0.0
      %v1418 = vmax.f32 %v1340, 0.0
      %v1419 = vmax.f32 %v1342, 0.0
      %v1420 = vmax.f32 %v1346, 0.0
      %v1421 = vmax.f32 %v1348, 0.0
      %v1422 = vmax.f32 %v1350, 0.0
      %v1423 = vmax.f32 %v1352, 0.0
      %v1424 = vmax.f32 %v1356, 0.0
      %v1425 = vmax.f32 %v1358, 0.0
      %v1426 = vmax.f32 %v1360, 0.0
      %v1427 = vmax.f32 %v1362, 0.0
      %s1428 = scalar_lea.vmem %s4, 256
      %v1429 = vld [vmem:[%s1428] sm:$0xff]
      %v1430 = vld [vmem:[%s1428 + $0x8] sm:$0xff]
      %v1431 = vld [vmem:[%s1428 + $0x10] sm:$0xff]
      %v1432 = vld [vmem:[%s1428 + $0x18] sm:$0xff]
      %v1433 = vld [vmem:[%s1428 + $0x20] sm:$0xff]
      %v1434 = vld [vmem:[%s1428 + $0x28] sm:$0xff]
      %v1435 = vld [vmem:[%s1428 + $0x30] sm:$0xff]
      %v1436 = vld [vmem:[%s1428 + $0x38] sm:$0xff]
      %v1437 = vld [vmem:[%s1428 + $0x40] sm:$0xff]
      %v1438 = vld [vmem:[%s1428 + $0x48] sm:$0xff]
      %v1439 = vld [vmem:[%s1428 + $0x50] sm:$0xff]
      %v1440 = vld [vmem:[%s1428 + $0x58] sm:$0xff]
      %v1441 = vld [vmem:[%s1428 + $0x60] sm:$0xff]
      %v1442 = vld [vmem:[%s1428 + $0x68] sm:$0xff]
      %v1443 = vld [vmem:[%s1428 + $0x70] sm:$0xff]
      %v1444 = vld [vmem:[%s1428 + $0x78] sm:$0xff]
      %v1445 = vld [vmem:[%s1428 + $0x80] sm:$0xff]
      %v1446 = vld [vmem:[%s1428 + $0x88] sm:$0xff]
      %v1447 = vld [vmem:[%s1428 + $0x90] sm:$0xff]
      %v1448 = vld [vmem:[%s1428 + $0x98] sm:$0xff]
      %v1449 = vld [vmem:[%s1428 + $0xa0] sm:$0xff]
      %v1450 = vld [vmem:[%s1428 + $0xa8] sm:$0xff]
      %v1451 = vld [vmem:[%s1428 + $0xb0] sm:$0xff]
      %v1452 = vld [vmem:[%s1428 + $0xb8] sm:$0xff]
      %v1453 = vld [vmem:[%s1428 + $0xc0] sm:$0xff]
      %v1454 = vld [vmem:[%s1428 + $0xc8] sm:$0xff]
      %v1455 = vld [vmem:[%s1428 + $0xd0] sm:$0xff]
      %v1456 = vld [vmem:[%s1428 + $0xd8] sm:$0xff]
      %v1457 = vld [vmem:[%s1428 + $0xe0] sm:$0xff]
      %v1458 = vld [vmem:[%s1428 + $0xe8] sm:$0xff]
      %v1459 = vld [vmem:[%s1428 + $0xf0] sm:$0xff]
      %v1460 = vld [vmem:[%s1428 + $0xf8] sm:$0xff]
      %v1461 = vpack.c.bf16 %v1366, %v1364
      %v1462 = vpack.c.bf16 %v1367, %v1365
      %v1463 = vpack.c.bf16 %v1370, %v1368
      %v1464 = vpack.c.bf16 %v1371, %v1369
      %v1465 = vpack.c.bf16 %v1374, %v1372
      %v1466 = vpack.c.bf16 %v1375, %v1373
      %v1467 = vpack.c.bf16 %v1378, %v1376
      %v1468 = vpack.c.bf16 %v1379, %v1377
      %v1469 = vpack.c.bf16 %v1382, %v1380
      %v1470 = vpack.c.bf16 %v1383, %v1381
      %v1471 = vpack.c.bf16 %v1386, %v1384
      %v1472 = vpack.c.bf16 %v1387, %v1385
      %v1473 = vpack.c.bf16 %v1390, %v1388
      %v1474 = vpack.c.bf16 %v1391, %v1389
      %v1475 = vpack.c.bf16 %v1394, %v1392
      %v1476 = vpack.c.bf16 %v1395, %v1393
      %v1477 = vpack.c.bf16 %v1398, %v1396
      %v1478 = vpack.c.bf16 %v1399, %v1397
      %v1479 = vpack.c.bf16 %v1402, %v1400
      %v1480 = vpack.c.bf16 %v1403, %v1401
      %v1481 = vpack.c.bf16 %v1406, %v1404
      %v1482 = vpack.c.bf16 %v1407, %v1405
      %v1483 = vpack.c.bf16 %v1410, %v1408
      %v1484 = vpack.c.bf16 %v1411, %v1409
      %v1485 = vpack.c.bf16 %v1414, %v1412
      %v1486 = vpack.c.bf16 %v1415, %v1413
      %v1487 = vpack.c.bf16 %v1418, %v1416
      %v1488 = vpack.c.bf16 %v1419, %v1417
      %v1489 = vpack.c.bf16 %v1422, %v1420
      %v1490 = vpack.c.bf16 %v1423, %v1421
      %v1491 = vpack.c.bf16 %v1426, %v1424
      %v1492 = vpack.c.bf16 %v1427, %v1425
      %s1493 = scalar_lea.vmem %s5, 2
      %v1494 = vld [vmem:[%s1493] ss:$8 sm:$0x3]
      %v1496 = vlaneseq
      %v1497 = vshrl.u32 %v1496, 7
      %v1498 = vsub.s32 0, %v1497
      %v1499 = vrot.slane %v1494, %v1498
      %v1500 = vlaneseq
      %v1501 = vshrl.u32 %v1500, 7
      %v1502 = vsub.s32 1, %v1501
      %v1503 = vrot.slane %v1494, %v1502
      %v1538 = vunpack.c.l.b16 %v1429
      %v1539 = vunpack.c.h.b16 %v1429
      %v1540 = vunpack.c.l.b16 %v1430
      %v1541 = vunpack.c.h.b16 %v1430
      %v1542 = vunpack.c.l.b16 %v1431
      %v1543 = vunpack.c.h.b16 %v1431
      %v1544 = vunpack.c.l.b16 %v1432
      %v1545 = vunpack.c.h.b16 %v1432
      %v1546 = vunpack.c.l.b16 %v1433
      %v1547 = vunpack.c.h.b16 %v1433
      %v1548 = vunpack.c.l.b16 %v1434
      %v1549 = vunpack.c.h.b16 %v1434
      %v1550 = vunpack.c.l.b16 %v1435
      %v1551 = vunpack.c.h.b16 %v1435
      %v1552 = vunpack.c.l.b16 %v1436
      %v1553 = vunpack.c.h.b16 %v1436
      %v1554 = vunpack.c.l.b16 %v1437
      %v1555 = vunpack.c.h.b16 %v1437
      %v1556 = vunpack.c.l.b16 %v1438
      %v1557 = vunpack.c.h.b16 %v1438
      %v1558 = vunpack.c.l.b16 %v1439
      %v1559 = vunpack.c.h.b16 %v1439
      %v1560 = vunpack.c.l.b16 %v1440
      %v1561 = vunpack.c.h.b16 %v1440
      %v1562 = vunpack.c.l.b16 %v1441
      %v1563 = vunpack.c.h.b16 %v1441
      %v1564 = vunpack.c.l.b16 %v1442
      %v1565 = vunpack.c.h.b16 %v1442
      %v1566 = vunpack.c.l.b16 %v1443
      %v1567 = vunpack.c.h.b16 %v1443
      %v1568 = vunpack.c.l.b16 %v1444
      %v1569 = vunpack.c.h.b16 %v1444
      %v1570 = vunpack.c.l.b16 %v1445
      %v1571 = vunpack.c.h.b16 %v1445
      %v1572 = vunpack.c.l.b16 %v1446
      %v1573 = vunpack.c.h.b16 %v1446
      %v1574 = vunpack.c.l.b16 %v1447
      %v1575 = vunpack.c.h.b16 %v1447
      %v1576 = vunpack.c.l.b16 %v1448
      %v1577 = vunpack.c.h.b16 %v1448
      %v1578 = vunpack.c.l.b16 %v1449
      %v1579 = vunpack.c.h.b16 %v1449
      %v1580 = vunpack.c.l.b16 %v1450
      %v1581 = vunpack.c.h.b16 %v1450
      %v1582 = vunpack.c.l.b16 %v1451
      %v1583 = vunpack.c.h.b16 %v1451
      %v1584 = vunpack.c.l.b16 %v1452
      %v1585 = vunpack.c.h.b16 %v1452
      %v1586 = vunpack.c.l.b16 %v1453
      %v1587 = vunpack.c.h.b16 %v1453
      %v1588 = vunpack.c.l.b16 %v1454
      %v1589 = vunpack.c.h.b16 %v1454
      %v1590 = vunpack.c.l.b16 %v1455
      %v1591 = vunpack.c.h.b16 %v1455
      %v1592 = vunpack.c.l.b16 %v1456
      %v1593 = vunpack.c.h.b16 %v1456
      %v1594 = vunpack.c.l.b16 %v1457
      %v1595 = vunpack.c.h.b16 %v1457
      %v1596 = vunpack.c.l.b16 %v1458
      %v1597 = vunpack.c.h.b16 %v1458
      %v1598 = vunpack.c.l.b16 %v1459
      %v1599 = vunpack.c.h.b16 %v1459
      %v1600 = vunpack.c.l.b16 %v1460
      %v1601 = vunpack.c.h.b16 %v1460
      %v1602 = vpack.c.b16 %v1540, %v1538
      %v1603 = vpack.c.b16 %v1541, %v1539
      %v1604 = vpack.c.b16 %v1544, %v1542
      %v1605 = vpack.c.b16 %v1545, %v1543
      %v1606 = vpack.c.b16 %v1548, %v1546
      %v1607 = vpack.c.b16 %v1549, %v1547
      %v1608 = vpack.c.b16 %v1552, %v1550
      %v1609 = vpack.c.b16 %v1553, %v1551
      %v1610 = vpack.c.b16 %v1556, %v1554
      %v1611 = vpack.c.b16 %v1557, %v1555
      %v1612 = vpack.c.b16 %v1560, %v1558
      %v1613 = vpack.c.b16 %v1561, %v1559
      %v1614 = vpack.c.b16 %v1564, %v1562
      %v1615 = vpack.c.b16 %v1565, %v1563
      %v1616 = vpack.c.b16 %v1568, %v1566
      %v1617 = vpack.c.b16 %v1569, %v1567
      %v1618 = vpack.c.b16 %v1572, %v1570
      %v1619 = vpack.c.b16 %v1573, %v1571
      %v1620 = vpack.c.b16 %v1576, %v1574
      %v1621 = vpack.c.b16 %v1577, %v1575
      %v1622 = vpack.c.b16 %v1580, %v1578
      %v1623 = vpack.c.b16 %v1581, %v1579
      %v1624 = vpack.c.b16 %v1584, %v1582
      %v1625 = vpack.c.b16 %v1585, %v1583
      %v1626 = vpack.c.b16 %v1588, %v1586
      %v1627 = vpack.c.b16 %v1589, %v1587
      %v1628 = vpack.c.b16 %v1592, %v1590
      %v1629 = vpack.c.b16 %v1593, %v1591
      %v1630 = vpack.c.b16 %v1596, %v1594
      %v1631 = vpack.c.b16 %v1597, %v1595
      %v1632 = vpack.c.b16 %v1600, %v1598
      %v1633 = vpack.c.b16 %v1601, %v1599
      %1666 = vmatprep.subr.bf16.mxu0 %v1603
      %1667 = vmatpush1.bf16.msra.mxu0 %v1602
      %1668 = vmatprep.subr.bf16.mxu0 %v1605
      %1669 = vmatpush1.bf16.msra.mxu0 %v1604
      %1670 = vmatprep.subr.bf16.mxu0 %v1607
      %1671 = vmatpush1.bf16.msra.mxu0 %v1606
      %1672 = vmatprep.subr.bf16.mxu0 %v1609
      %1673 = vmatpush1.bf16.msra.mxu0 %v1608
      %1674 = vmatprep.subr.bf16.mxu0 %v1611
      %1675 = vmatpush1.bf16.msra.mxu0 %v1610
      %1676 = vmatprep.subr.bf16.mxu0 %v1613
      %1677 = vmatpush1.bf16.msra.mxu0 %v1612
      %1678 = vmatprep.subr.bf16.mxu0 %v1615
      %1679 = vmatpush1.bf16.msra.mxu0 %v1614
      %1680 = vmatprep.subr.bf16.mxu0 %v1617
      %1681 = vmatpush1.bf16.msra.mxu0 %v1616
      %1682 = vmatprep.subr.bf16.mxu0 %v1619
      %1683 = vmatpush1.bf16.msra.mxu0 %v1618
      %1684 = vmatprep.subr.bf16.mxu0 %v1621
      %1685 = vmatpush1.bf16.msra.mxu0 %v1620
      %1686 = vmatprep.subr.bf16.mxu0 %v1623
      %1687 = vmatpush1.bf16.msra.mxu0 %v1622
      %1688 = vmatprep.subr.bf16.mxu0 %v1625
      %1689 = vmatpush1.bf16.msra.mxu0 %v1624
      %1690 = vmatprep.subr.bf16.mxu0 %v1627
      %1691 = vmatpush1.bf16.msra.mxu0 %v1626
      %1692 = vmatprep.subr.bf16.mxu0 %v1629
      %1693 = vmatpush1.bf16.msra.mxu0 %v1628
      %1694 = vmatprep.subr.bf16.mxu0 %v1631
      %1695 = vmatpush1.bf16.msra.mxu0 %v1630
      %1696 = vmatprep.subr.bf16.mxu0 %v1633
      %1697 = vmatpush1.bf16.msra.mxu0 %v1632
      %1698 = vmatprep.mubr.bf16.mxu0 %v1462
      %1699 = vmatmul.mubr.bf16.gmra.mrb[0].mxu0 %v1461
      %v1700 = vpop.f32.mrb[0].mxu0
      %v1701 = vadd.f32 %v1499, %v1700
      %v1702 = vpop.f32.mrb[0].mxu0
      %v1703 = vadd.f32 %v1503, %v1702
      %v1704 = vpop.f32.mrb[0].mxu0
      %v1705 = vadd.f32 %v1499, %v1704
      %v1706 = vpop.f32.mrb[0].mxu0
      %v1707 = vadd.f32 %v1503, %v1706
      %1708 = vmatprep.mubr.bf16.mxu0 %v1464
      %1709 = vmatmul.mubr.bf16.gmra.mrb[0].mxu0 %v1463
      %v1710 = vpop.f32.mrb[0].mxu0
      %v1711 = vadd.f32 %v1499, %v1710
      %v1712 = vpop.f32.mrb[0].mxu0
      %v1713 = vadd.f32 %v1503, %v1712
      %v1714 = vpop.f32.mrb[0].mxu0
      %v1715 = vadd.f32 %v1499, %v1714
      %v1716 = vpop.f32.mrb[0].mxu0
      %v1717 = vadd.f32 %v1503, %v1716
      %1718 = vmatprep.mubr.bf16.mxu0 %v1466
      %1719 = vmatmul.mubr.bf16.gmra.mrb[0].mxu0 %v1465
      %v1720 = vpop.f32.mrb[0].mxu0
      %v1721 = vadd.f32 %v1499, %v1720
      %v1722 = vpop.f32.mrb[0].mxu0
      %v1723 = vadd.f32 %v1503, %v1722
      %v1724 = vpop.f32.mrb[0].mxu0
      %v1725 = vadd.f32 %v1499, %v1724
      %v1726 = vpop.f32.mrb[0].mxu0
      %v1727 = vadd.f32 %v1503, %v1726
      %1728 = vmatprep.mubr.bf16.mxu0 %v1468
      %1729 = vmatmul.mubr.bf16.gmra.mrb[0].mxu0 %v1467
      %v1730 = vpop.f32.mrb[0].mxu0
      %v1731 = vadd.f32 %v1499, %v1730
      %v1732 = vpop.f32.mrb[0].mxu0
      %v1733 = vadd.f32 %v1503, %v1732
      %v1734 = vpop.f32.mrb[0].mxu0
      %v1735 = vadd.f32 %v1499, %v1734
      %v1736 = vpop.f32.mrb[0].mxu0
      %v1737 = vadd.f32 %v1503, %v1736
      %1738 = vmatprep.mubr.bf16.mxu0 %v1470
      %1739 = vmatmul.mubr.bf16.gmra.mrb[0].mxu0 %v1469
      %v1740 = vpop.f32.mrb[0].mxu0
      %v1741 = vadd.f32 %v1499, %v1740
      %v1742 = vpop.f32.mrb[0].mxu0
      %v1743 = vadd.f32 %v1503, %v1742
      %v1744 = vpop.f32.mrb[0].mxu0
      %v1745 = vadd.f32 %v1499, %v1744
      %v1746 = vpop.f32.mrb[0].mxu0
      %v1747 = vadd.f32 %v1503, %v1746
      %1748 = vmatprep.mubr.bf16.mxu0 %v1472
      %1749 = vmatmul.mubr.bf16.gmra.mrb[0].mxu0 %v1471
      %v1750 = vpop.f32.mrb[0].mxu0
      %v1751 = vadd.f32 %v1499, %v1750
      %v1752 = vpop.f32.mrb[0].mxu0
      %v1753 = vadd.f32 %v1503, %v1752
      %v1754 = vpop.f32.mrb[0].mxu0
      %v1755 = vadd.f32 %v1499, %v1754
      %v1756 = vpop.f32.mrb[0].mxu0
      %v1757 = vadd.f32 %v1503, %v1756
      %1758 = vmatprep.mubr.bf16.mxu0 %v1474
      %1759 = vmatmul.mubr.bf16.gmra.mrb[0].mxu0 %v1473
      %v1760 = vpop.f32.mrb[0].mxu0
      %v1761 = vadd.f32 %v1499, %v1760
      %v1762 = vpop.f32.mrb[0].mxu0
      %v1763 = vadd.f32 %v1503, %v1762
      %v1764 = vpop.f32.mrb[0].mxu0
      %v1765 = vadd.f32 %v1499, %v1764
      %v1766 = vpop.f32.mrb[0].mxu0
      %v1767 = vadd.f32 %v1503, %v1766
      %1768 = vmatprep.mubr.bf16.mxu0 %v1476
      %1769 = vmatmul.mubr.bf16.gmra.mrb[0].mxu0 %v1475
      %v1770 = vpop.f32.mrb[0].mxu0
      %v1771 = vadd.f32 %v1499, %v1770
      %v1772 = vpop.f32.mrb[0].mxu0
      %v1773 = vadd.f32 %v1503, %v1772
      %v1774 = vpop.f32.mrb[0].mxu0
      %v1775 = vadd.f32 %v1499, %v1774
      %v1776 = vpop.f32.mrb[0].mxu0
      %v1777 = vadd.f32 %v1503, %v1776
      %1778 = vmatprep.mubr.bf16.mxu0 %v1478
      %1779 = vmatmul.mubr.bf16.gmra.mrb[0].mxu0 %v1477
      %v1780 = vpop.f32.mrb[0].mxu0
      %v1781 = vadd.f32 %v1499, %v1780
      %v1782 = vpop.f32.mrb[0].mxu0
      %v1783 = vadd.f32 %v1503, %v1782
      %v1784 = vpop.f32.mrb[0].mxu0
      %v1785 = vadd.f32 %v1499, %v1784
      %v1786 = vpop.f32.mrb[0].mxu0
      %v1787 = vadd.f32 %v1503, %v1786
      %1788 = vmatprep.mubr.bf16.mxu0 %v1480
      %1789 = vmatmul.mubr.bf16.gmra.mrb[0].mxu0 %v1479
      %v1790 = vpop.f32.mrb[0].mxu0
      %v1791 = vadd.f32 %v1499, %v1790
      %v1792 = vpop.f32.mrb[0].mxu0
      %v1793 = vadd.f32 %v1503, %v1792
      %v1794 = vpop.f32.mrb[0].mxu0
      %v1795 = vadd.f32 %v1499, %v1794
      %v1796 = vpop.f32.mrb[0].mxu0
      %v1797 = vadd.f32 %v1503, %v1796
      %1798 = vmatprep.mubr.bf16.mxu0 %v1482
      %1799 = vmatmul.mubr.bf16.gmra.mrb[0].mxu0 %v1481
      %v1800 = vpop.f32.mrb[0].mxu0
      %v1801 = vadd.f32 %v1499, %v1800
      %v1802 = vpop.f32.mrb[0].mxu0
      %v1803 = vadd.f32 %v1503, %v1802
      %v1804 = vpop.f32.mrb[0].mxu0
      %v1805 = vadd.f32 %v1499, %v1804
      %v1806 = vpop.f32.mrb[0].mxu0
      %v1807 = vadd.f32 %v1503, %v1806
      %1808 = vmatprep.mubr.bf16.mxu0 %v1484
      %1809 = vmatmul.mubr.bf16.gmra.mrb[0].mxu0 %v1483
      %v1810 = vpop.f32.mrb[0].mxu0
      %v1811 = vadd.f32 %v1499, %v1810
      %v1812 = vpop.f32.mrb[0].mxu0
      %v1813 = vadd.f32 %v1503, %v1812
      %v1814 = vpop.f32.mrb[0].mxu0
      %v1815 = vadd.f32 %v1499, %v1814
      %v1816 = vpop.f32.mrb[0].mxu0
      %v1817 = vadd.f32 %v1503, %v1816
      %1818 = vmatprep.mubr.bf16.mxu0 %v1486
      %1819 = vmatmul.mubr.bf16.gmra.mrb[0].mxu0 %v1485
      %v1820 = vpop.f32.mrb[0].mxu0
      %v1821 = vadd.f32 %v1499, %v1820
      %v1822 = vpop.f32.mrb[0].mxu0
      %v1823 = vadd.f32 %v1503, %v1822
      %v1824 = vpop.f32.mrb[0].mxu0
      %v1825 = vadd.f32 %v1499, %v1824
      %v1826 = vpop.f32.mrb[0].mxu0
      %v1827 = vadd.f32 %v1503, %v1826
      %1828 = vmatprep.mubr.bf16.mxu0 %v1488
      %1829 = vmatmul.mubr.bf16.gmra.mrb[0].mxu0 %v1487
      %v1830 = vpop.f32.mrb[0].mxu0
      %v1831 = vadd.f32 %v1499, %v1830
      %v1832 = vpop.f32.mrb[0].mxu0
      %v1833 = vadd.f32 %v1503, %v1832
      %v1834 = vpop.f32.mrb[0].mxu0
      %v1835 = vadd.f32 %v1499, %v1834
      %v1836 = vpop.f32.mrb[0].mxu0
      %v1837 = vadd.f32 %v1503, %v1836
      %1838 = vmatprep.mubr.bf16.mxu0 %v1490
      %1839 = vmatmul.mubr.bf16.gmra.mrb[0].mxu0 %v1489
      %v1840 = vpop.f32.mrb[0].mxu0
      %v1841 = vadd.f32 %v1499, %v1840
      %v1842 = vpop.f32.mrb[0].mxu0
      %v1843 = vadd.f32 %v1503, %v1842
      %v1844 = vpop.f32.mrb[0].mxu0
      %v1845 = vadd.f32 %v1499, %v1844
      %v1846 = vpop.f32.mrb[0].mxu0
      %v1847 = vadd.f32 %v1503, %v1846
      %1848 = vmatprep.mubr.bf16.mxu0 %v1492
      %1849 = vmatmul.mubr.bf16.gmra.mrb[0].mxu0 %v1491
      %v1850 = vpop.f32.mrb[0].mxu0
      %v1851 = vadd.f32 %v1499, %v1850
      %v1852 = vpop.f32.mrb[0].mxu0
      %v1853 = vadd.f32 %v1503, %v1852
      %v1854 = vpop.f32.mrb[0].mxu0
      %v1855 = vadd.f32 %v1499, %v1854
      %v1856 = vpop.f32.mrb[0].mxu0
      %v1857 = vadd.f32 %v1503, %v1856
      %1858 = vdwg.mxu0
      %v1859 = vmax.f32 %v1701, 0.0
      %v1860 = vmax.f32 %v1703, 0.0
      %v1861 = vmax.f32 %v1705, 0.0
      %v1862 = vmax.f32 %v1707, 0.0
      %v1863 = vmax.f32 %v1711, 0.0
      %v1864 = vmax.f32 %v1713, 0.0
      %v1865 = vmax.f32 %v1715, 0.0
      %v1866 = vmax.f32 %v1717, 0.0
      %v1867 = vmax.f32 %v1721, 0.0
      %v1868 = vmax.f32 %v1723, 0.0
      %v1869 = vmax.f32 %v1725, 0.0
      %v1870 = vmax.f32 %v1727, 0.0
      %v1871 = vmax.f32 %v1731, 0.0
      %v1872 = vmax.f32 %v1733, 0.0
      %v1873 = vmax.f32 %v1735, 0.0
      %v1874 = vmax.f32 %v1737, 0.0
      %v1875 = vmax.f32 %v1741, 0.0
      %v1876 = vmax.f32 %v1743, 0.0
      %v1877 = vmax.f32 %v1745, 0.0
      %v1878 = vmax.f32 %v1747, 0.0
      %v1879 = vmax.f32 %v1751, 0.0
      %v1880 = vmax.f32 %v1753, 0.0
      %v1881 = vmax.f32 %v1755, 0.0
      %v1882 = vmax.f32 %v1757, 0.0
      %v1883 = vmax.f32 %v1761, 0.0
      %v1884 = vmax.f32 %v1763, 0.0
      %v1885 = vmax.f32 %v1765, 0.0
      %v1886 = vmax.f32 %v1767, 0.0
      %v1887 = vmax.f32 %v1771, 0.0
      %v1888 = vmax.f32 %v1773, 0.0
      %v1889 = vmax.f32 %v1775, 0.0
      %v1890 = vmax.f32 %v1777, 0.0
      %v1891 = vmax.f32 %v1781, 0.0
      %v1892 = vmax.f32 %v1783, 0.0
      %v1893 = vmax.f32 %v1785, 0.0
      %v1894 = vmax.f32 %v1787, 0.0
      %v1895 = vmax.f32 %v1791, 0.0
      %v1896 = vmax.f32 %v1793, 0.0
      %v1897 = vmax.f32 %v1795, 0.0
      %v1898 = vmax.f32 %v1797, 0.0
      %v1899 = vmax.f32 %v1801, 0.0
      %v1900 = vmax.f32 %v1803, 0.0
      %v1901 = vmax.f32 %v1805, 0.0
      %v1902 = vmax.f32 %v1807, 0.0
      %v1903 = vmax.f32 %v1811, 0.0
      %v1904 = vmax.f32 %v1813, 0.0
      %v1905 = vmax.f32 %v1815, 0.0
      %v1906 = vmax.f32 %v1817, 0.0
      %v1907 = vmax.f32 %v1821, 0.0
      %v1908 = vmax.f32 %v1823, 0.0
      %v1909 = vmax.f32 %v1825, 0.0
      %v1910 = vmax.f32 %v1827, 0.0
      %v1911 = vmax.f32 %v1831, 0.0
      %v1912 = vmax.f32 %v1833, 0.0
      %v1913 = vmax.f32 %v1835, 0.0
      %v1914 = vmax.f32 %v1837, 0.0
      %v1915 = vmax.f32 %v1841, 0.0
      %v1916 = vmax.f32 %v1843, 0.0
      %v1917 = vmax.f32 %v1845, 0.0
      %v1918 = vmax.f32 %v1847, 0.0
      %v1919 = vmax.f32 %v1851, 0.0
      %v1920 = vmax.f32 %v1853, 0.0
      %v1921 = vmax.f32 %v1855, 0.0
      %v1922 = vmax.f32 %v1857, 0.0
      %s1923 = scalar_lea.vmem %s4, 512
      %v1924 = vld [vmem:[%s1923] sm:$0xff]
      %v1925 = vld [vmem:[%s1923 + $0x8] sm:$0xff]
      %v1926 = vld [vmem:[%s1923 + $0x10] sm:$0xff]
      %v1927 = vld [vmem:[%s1923 + $0x18] sm:$0xff]
      %v1928 = vld [vmem:[%s1923 + $0x20] sm:$0xff]
      %v1929 = vld [vmem:[%s1923 + $0x28] sm:$0xff]
      %v1930 = vld [vmem:[%s1923 + $0x30] sm:$0xff]
      %v1931 = vld [vmem:[%s1923 + $0x38] sm:$0xff]
      %v1932 = vld [vmem:[%s1923 + $0x40] sm:$0xff]
      %v1933 = vld [vmem:[%s1923 + $0x48] sm:$0xff]
      %v1934 = vld [vmem:[%s1923 + $0x50] sm:$0xff]
      %v1935 = vld [vmem:[%s1923 + $0x58] sm:$0xff]
      %v1936 = vld [vmem:[%s1923 + $0x60] sm:$0xff]
      %v1937 = vld [vmem:[%s1923 + $0x68] sm:$0xff]
      %v1938 = vld [vmem:[%s1923 + $0x70] sm:$0xff]
      %v1939 = vld [vmem:[%s1923 + $0x78] sm:$0xff]
      %v1940 = vld [vmem:[%s1923 + $0x80] sm:$0xff]
      %v1941 = vld [vmem:[%s1923 + $0x88] sm:$0xff]
      %v1942 = vld [vmem:[%s1923 + $0x90] sm:$0xff]
      %v1943 = vld [vmem:[%s1923 + $0x98] sm:$0xff]
      %v1944 = vld [vmem:[%s1923 + $0xa0] sm:$0xff]
      %v1945 = vld [vmem:[%s1923 + $0xa8] sm:$0xff]
      %v1946 = vld [vmem:[%s1923 + $0xb0] sm:$0xff]
      %v1947 = vld [vmem:[%s1923 + $0xb8] sm:$0xff]
      %v1948 = vld [vmem:[%s1923 + $0xc0] sm:$0xff]
      %v1949 = vld [vmem:[%s1923 + $0xc8] sm:$0xff]
      %v1950 = vld [vmem:[%s1923 + $0xd0] sm:$0xff]
      %v1951 = vld [vmem:[%s1923 + $0xd8] sm:$0xff]
      %v1952 = vld [vmem:[%s1923 + $0xe0] sm:$0xff]
      %v1953 = vld [vmem:[%s1923 + $0xe8] sm:$0xff]
      %v1954 = vld [vmem:[%s1923 + $0xf0] sm:$0xff]
      %v1955 = vld [vmem:[%s1923 + $0xf8] sm:$0xff]
      %v1956 = vpack.c.bf16 %v1861, %v1859
      %v1957 = vpack.c.bf16 %v1862, %v1860
      %v1958 = vpack.c.bf16 %v1865, %v1863
      %v1959 = vpack.c.bf16 %v1866, %v1864
      %v1960 = vpack.c.bf16 %v1869, %v1867
      %v1961 = vpack.c.bf16 %v1870, %v1868
      %v1962 = vpack.c.bf16 %v1873, %v1871
      %v1963 = vpack.c.bf16 %v1874, %v1872
      %v1964 = vpack.c.bf16 %v1877, %v1875
      %v1965 = vpack.c.bf16 %v1878, %v1876
      %v1966 = vpack.c.bf16 %v1881, %v1879
      %v1967 = vpack.c.bf16 %v1882, %v1880
      %v1968 = vpack.c.bf16 %v1885, %v1883
      %v1969 = vpack.c.bf16 %v1886, %v1884
      %v1970 = vpack.c.bf16 %v1889, %v1887
      %v1971 = vpack.c.bf16 %v1890, %v1888
      %v1972 = vpack.c.bf16 %v1893, %v1891
      %v1973 = vpack.c.bf16 %v1894, %v1892
      %v1974 = vpack.c.bf16 %v1897, %v1895
      %v1975 = vpack.c.bf16 %v1898, %v1896
      %v1976 = vpack.c.bf16 %v1901, %v1899
      %v1977 = vpack.c.bf16 %v1902, %v1900
      %v1978 = vpack.c.bf16 %v1905, %v1903
      %v1979 = vpack.c.bf16 %v1906, %v1904
      %v1980 = vpack.c.bf16 %v1909, %v1907
      %v1981 = vpack.c.bf16 %v1910, %v1908
      %v1982 = vpack.c.bf16 %v1913, %v1911
      %v1983 = vpack.c.bf16 %v1914, %v1912
      %v1984 = vpack.c.bf16 %v1917, %v1915
      %v1985 = vpack.c.bf16 %v1918, %v1916
      %v1986 = vpack.c.bf16 %v1921, %v1919
      %v1987 = vpack.c.bf16 %v1922, %v1920
      %s1988 = scalar_lea.vmem %s5, 3
      %v1989 = vld [vmem:[%s1988] ss:$8 sm:$0x3]
      %v1991 = vlaneseq
      %v1992 = vshrl.u32 %v1991, 7
      %v1993 = vsub.s32 0, %v1992
      %v1994 = vrot.slane %v1989, %v1993
      %v1995 = vlaneseq
      %v1996 = vshrl.u32 %v1995, 7
      %v1997 = vsub.s32 1, %v1996
      %v1998 = vrot.slane %v1989, %v1997
      %v2033 = vunpack.c.l.b16 %v1924
      %v2034 = vunpack.c.h.b16 %v1924
      %v2035 = vunpack.c.l.b16 %v1925
      %v2036 = vunpack.c.h.b16 %v1925
      %v2037 = vunpack.c.l.b16 %v1926
      %v2038 = vunpack.c.h.b16 %v1926
      %v2039 = vunpack.c.l.b16 %v1927
      %v2040 = vunpack.c.h.b16 %v1927
      %v2041 = vunpack.c.l.b16 %v1928
      %v2042 = vunpack.c.h.b16 %v1928
      %v2043 = vunpack.c.l.b16 %v1929
      %v2044 = vunpack.c.h.b16 %v1929
      %v2045 = vunpack.c.l.b16 %v1930
      %v2046 = vunpack.c.h.b16 %v1930
      %v2047 = vunpack.c.l.b16 %v1931
      %v2048 = vunpack.c.h.b16 %v1931
      %v2049 = vunpack.c.l.b16 %v1932
      %v2050 = vunpack.c.h.b16 %v1932
      %v2051 = vunpack.c.l.b16 %v1933
      %v2052 = vunpack.c.h.b16 %v1933
      %v2053 = vunpack.c.l.b16 %v1934
      %v2054 = vunpack.c.h.b16 %v1934
      %v2055 = vunpack.c.l.b16 %v1935
      %v2056 = vunpack.c.h.b16 %v1935
      %v2057 = vunpack.c.l.b16 %v1936
      %v2058 = vunpack.c.h.b16 %v1936
      %v2059 = vunpack.c.l.b16 %v1937
      %v2060 = vunpack.c.h.b16 %v1937
      %v2061 = vunpack.c.l.b16 %v1938
      %v2062 = vunpack.c.h.b16 %v1938
      %v2063 = vunpack.c.l.b16 %v1939
      %v2064 = vunpack.c.h.b16 %v1939
      %v2065 = vunpack.c.l.b16 %v1940
      %v2066 = vunpack.c.h.b16 %v1940
      %v2067 = vunpack.c.l.b16 %v1941
      %v2068 = vunpack.c.h.b16 %v1941
      %v2069 = vunpack.c.l.b16 %v1942
      %v2070 = vunpack.c.h.b16 %v1942
      %v2071 = vunpack.c.l.b16 %v1943
      %v2072 = vunpack.c.h.b16 %v1943
      %v2073 = vunpack.c.l.b16 %v1944
      %v2074 = vunpack.c.h.b16 %v1944
      %v2075 = vunpack.c.l.b16 %v1945
      %v2076 = vunpack.c.h.b16 %v1945
      %v2077 = vunpack.c.l.b16 %v1946
      %v2078 = vunpack.c.h.b16 %v1946
      %v2079 = vunpack.c.l.b16 %v1947
      %v2080 = vunpack.c.h.b16 %v1947
      %v2081 = vunpack.c.l.b16 %v1948
      %v2082 = vunpack.c.h.b16 %v1948
      %v2083 = vunpack.c.l.b16 %v1949
      %v2084 = vunpack.c.h.b16 %v1949
      %v2085 = vunpack.c.l.b16 %v1950
      %v2086 = vunpack.c.h.b16 %v1950
      %v2087 = vunpack.c.l.b16 %v1951
      %v2088 = vunpack.c.h.b16 %v1951
      %v2089 = vunpack.c.l.b16 %v1952
      %v2090 = vunpack.c.h.b16 %v1952
      %v2091 = vunpack.c.l.b16 %v1953
      %v2092 = vunpack.c.h.b16 %v1953
      %v2093 = vunpack.c.l.b16 %v1954
      %v2094 = vunpack.c.h.b16 %v1954
      %v2095 = vunpack.c.l.b16 %v1955
      %v2096 = vunpack.c.h.b16 %v1955
      %v2097 = vpack.c.b16 %v2035, %v2033
      %v2098 = vpack.c.b16 %v2036, %v2034
      %v2099 = vpack.c.b16 %v2039, %v2037
      %v2100 = vpack.c.b16 %v2040, %v2038
      %v2101 = vpack.c.b16 %v2043, %v2041
      %v2102 = vpack.c.b16 %v2044, %v2042
      %v2103 = vpack.c.b16 %v2047, %v2045
      %v2104 = vpack.c.b16 %v2048, %v2046
      %v2105 = vpack.c.b16 %v2051, %v2049
      %v2106 = vpack.c.b16 %v2052, %v2050
      %v2107 = vpack.c.b16 %v2055, %v2053
      %v2108 = vpack.c.b16 %v2056, %v2054
      %v2109 = vpack.c.b16 %v2059, %v2057
      %v2110 = vpack.c.b16 %v2060, %v2058
      %v2111 = vpack.c.b16 %v2063, %v2061
      %v2112 = vpack.c.b16 %v2064, %v2062
      %v2113 = vpack.c.b16 %v2067, %v2065
      %v2114 = vpack.c.b16 %v2068, %v2066
      %v2115 = vpack.c.b16 %v2071, %v2069
      %v2116 = vpack.c.b16 %v2072, %v2070
      %v2117 = vpack.c.b16 %v2075, %v2073
      %v2118 = vpack.c.b16 %v2076, %v2074
      %v2119 = vpack.c.b16 %v2079, %v2077
      %v2120 = vpack.c.b16 %v2080, %v2078
      %v2121 = vpack.c.b16 %v2083, %v2081
      %v2122 = vpack.c.b16 %v2084, %v2082
      %v2123 = vpack.c.b16 %v2087, %v2085
      %v2124 = vpack.c.b16 %v2088, %v2086
      %v2125 = vpack.c.b16 %v2091, %v2089
      %v2126 = vpack.c.b16 %v2092, %v2090
      %v2127 = vpack.c.b16 %v2095, %v2093
      %v2128 = vpack.c.b16 %v2096, %v2094
      %2161 = vmatprep.subr.bf16.mxu0 %v2098
      %2162 = vmatpush1.bf16.msra.mxu0 %v2097
      %2163 = vmatprep.subr.bf16.mxu0 %v2100
      %2164 = vmatpush1.bf16.msra.mxu0 %v2099
      %2165 = vmatprep.subr.bf16.mxu0 %v2102
      %2166 = vmatpush1.bf16.msra.mxu0 %v2101
      %2167 = vmatprep.subr.bf16.mxu0 %v2104
      %2168 = vmatpush1.bf16.msra.mxu0 %v2103
      %2169 = vmatprep.subr.bf16.mxu0 %v2106
      %2170 = vmatpush1.bf16.msra.mxu0 %v2105
      %2171 = vmatprep.subr.bf16.mxu0 %v2108
      %2172 = vmatpush1.bf16.msra.mxu0 %v2107
      %2173 = vmatprep.subr.bf16.mxu0 %v2110
      %2174 = vmatpush1.bf16.msra.mxu0 %v2109
      %2175 = vmatprep.subr.bf16.mxu0 %v2112
      %2176 = vmatpush1.bf16.msra.mxu0 %v2111
      %2177 = vmatprep.subr.bf16.mxu0 %v2114
      %2178 = vmatpush1.bf16.msra.mxu0 %v2113
      %2179 = vmatprep.subr.bf16.mxu0 %v2116
      %2180 = vmatpush1.bf16.msra.mxu0 %v2115
      %2181 = vmatprep.subr.bf16.mxu0 %v2118
      %2182 = vmatpush1.bf16.msra.mxu0 %v2117
      %2183 = vmatprep.subr.bf16.mxu0 %v2120
      %2184 = vmatpush1.bf16.msra.mxu0 %v2119
      %2185 = vmatprep.subr.bf16.mxu0 %v2122
      %2186 = vmatpush1.bf16.msra.mxu0 %v2121
      %2187 = vmatprep.subr.bf16.mxu0 %v2124
      %2188 = vmatpush1.bf16.msra.mxu0 %v2123
      %2189 = vmatprep.subr.bf16.mxu0 %v2126
      %2190 = vmatpush1.bf16.msra.mxu0 %v2125
      %2191 = vmatprep.subr.bf16.mxu0 %v2128
      %2192 = vmatpush1.bf16.msra.mxu0 %v2127
      %2193 = vmatprep.mubr.bf16.mxu0 %v1957
      %2194 = vmatmul.mubr.bf16.gmra.mrb[0].mxu0 %v1956
      %v2195 = vpop.f32.mrb[0].mxu0
      %v2196 = vadd.f32 %v1994, %v2195
      %v2197 = vpop.f32.mrb[0].mxu0
      %v2198 = vadd.f32 %v1998, %v2197
      %v2199 = vpop.f32.mrb[0].mxu0
      %v2200 = vadd.f32 %v1994, %v2199
      %v2201 = vpop.f32.mrb[0].mxu0
      %v2202 = vadd.f32 %v1998, %v2201
      %2203 = vmatprep.mubr.bf16.mxu0 %v1959
      %2204 = vmatmul.mubr.bf16.gmra.mrb[0].mxu0 %v1958
      %v2205 = vpop.f32.mrb[0].mxu0
      %v2206 = vadd.f32 %v1994, %v2205
      %v2207 = vpop.f32.mrb[0].mxu0
      %v2208 = vadd.f32 %v1998, %v2207
      %v2209 = vpop.f32.mrb[0].mxu0
      %v2210 = vadd.f32 %v1994, %v2209
      %v2211 = vpop.f32.mrb[0].mxu0
      %v2212 = vadd.f32 %v1998, %v2211
      %2213 = vmatprep.mubr.bf16.mxu0 %v1961
      %2214 = vmatmul.mubr.bf16.gmra.mrb[0].mxu0 %v1960
      %v2215 = vpop.f32.mrb[0].mxu0
      %v2216 = vadd.f32 %v1994, %v2215
      %v2217 = vpop.f32.mrb[0].mxu0
      %v2218 = vadd.f32 %v1998, %v2217
      %v2219 = vpop.f32.mrb[0].mxu0
      %v2220 = vadd.f32 %v1994, %v2219
      %v2221 = vpop.f32.mrb[0].mxu0
      %v2222 = vadd.f32 %v1998, %v2221
      %2223 = vmatprep.mubr.bf16.mxu0 %v1963
      %2224 = vmatmul.mubr.bf16.gmra.mrb[0].mxu0 %v1962
      %v2225 = vpop.f32.mrb[0].mxu0
      %v2226 = vadd.f32 %v1994, %v2225
      %v2227 = vpop.f32.mrb[0].mxu0
      %v2228 = vadd.f32 %v1998, %v2227
      %v2229 = vpop.f32.mrb[0].mxu0
      %v2230 = vadd.f32 %v1994, %v2229
      %v2231 = vpop.f32.mrb[0].mxu0
      %v2232 = vadd.f32 %v1998, %v2231
      %2233 = vmatprep.mubr.bf16.mxu0 %v1965
      %2234 = vmatmul.mubr.bf16.gmra.mrb[0].mxu0 %v1964
      %v2235 = vpop.f32.mrb[0].mxu0
      %v2236 = vadd.f32 %v1994, %v2235
      %v2237 = vpop.f32.mrb[0].mxu0
      %v2238 = vadd.f32 %v1998, %v2237
      %v2239 = vpop.f32.mrb[0].mxu0
      %v2240 = vadd.f32 %v1994, %v2239
      %v2241 = vpop.f32.mrb[0].mxu0
      %v2242 = vadd.f32 %v1998, %v2241
      %2243 = vmatprep.mubr.bf16.mxu0 %v1967
      %2244 = vmatmul.mubr.bf16.gmra.mrb[0].mxu0 %v1966
      %v2245 = vpop.f32.mrb[0].mxu0
      %v2246 = vadd.f32 %v1994, %v2245
      %v2247 = vpop.f32.mrb[0].mxu0
      %v2248 = vadd.f32 %v1998, %v2247
      %v2249 = vpop.f32.mrb[0].mxu0
      %v2250 = vadd.f32 %v1994, %v2249
      %v2251 = vpop.f32.mrb[0].mxu0
      %v2252 = vadd.f32 %v1998, %v2251
      %2253 = vmatprep.mubr.bf16.mxu0 %v1969
      %2254 = vmatmul.mubr.bf16.gmra.mrb[0].mxu0 %v1968
      %v2255 = vpop.f32.mrb[0].mxu0
      %v2256 = vadd.f32 %v1994, %v2255
      %v2257 = vpop.f32.mrb[0].mxu0
      %v2258 = vadd.f32 %v1998, %v2257
      %v2259 = vpop.f32.mrb[0].mxu0
      %v2260 = vadd.f32 %v1994, %v2259
      %v2261 = vpop.f32.mrb[0].mxu0
      %v2262 = vadd.f32 %v1998, %v2261
      %2263 = vmatprep.mubr.bf16.mxu0 %v1971
      %2264 = vmatmul.mubr.bf16.gmra.mrb[0].mxu0 %v1970
      %v2265 = vpop.f32.mrb[0].mxu0
      %v2266 = vadd.f32 %v1994, %v2265
      %v2267 = vpop.f32.mrb[0].mxu0
      %v2268 = vadd.f32 %v1998, %v2267
      %v2269 = vpop.f32.mrb[0].mxu0
      %v2270 = vadd.f32 %v1994, %v2269
      %v2271 = vpop.f32.mrb[0].mxu0
      %v2272 = vadd.f32 %v1998, %v2271
      %2273 = vmatprep.mubr.bf16.mxu0 %v1973
      %2274 = vmatmul.mubr.bf16.gmra.mrb[0].mxu0 %v1972
      %v2275 = vpop.f32.mrb[0].mxu0
      %v2276 = vadd.f32 %v1994, %v2275
      %v2277 = vpop.f32.mrb[0].mxu0
      %v2278 = vadd.f32 %v1998, %v2277
      %v2279 = vpop.f32.mrb[0].mxu0
      %v2280 = vadd.f32 %v1994, %v2279
      %v2281 = vpop.f32.mrb[0].mxu0
      %v2282 = vadd.f32 %v1998, %v2281
      %2283 = vmatprep.mubr.bf16.mxu0 %v1975
      %2284 = vmatmul.mubr.bf16.gmra.mrb[0].mxu0 %v1974
      %v2285 = vpop.f32.mrb[0].mxu0
      %v2286 = vadd.f32 %v1994, %v2285
      %v2287 = vpop.f32.mrb[0].mxu0
      %v2288 = vadd.f32 %v1998, %v2287
      %v2289 = vpop.f32.mrb[0].mxu0
      %v2290 = vadd.f32 %v1994, %v2289
      %v2291 = vpop.f32.mrb[0].mxu0
      %v2292 = vadd.f32 %v1998, %v2291
      %2293 = vmatprep.mubr.bf16.mxu0 %v1977
      %2294 = vmatmul.mubr.bf16.gmra.mrb[0].mxu0 %v1976
      %v2295 = vpop.f32.mrb[0].mxu0
      %v2296 = vadd.f32 %v1994, %v2295
      %v2297 = vpop.f32.mrb[0].mxu0
      %v2298 = vadd.f32 %v1998, %v2297
      %v2299 = vpop.f32.mrb[0].mxu0
      %v2300 = vadd.f32 %v1994, %v2299
      %v2301 = vpop.f32.mrb[0].mxu0
      %v2302 = vadd.f32 %v1998, %v2301
      %2303 = vmatprep.mubr.bf16.mxu0 %v1979
      %2304 = vmatmul.mubr.bf16.gmra.mrb[0].mxu0 %v1978
      %v2305 = vpop.f32.mrb[0].mxu0
      %v2306 = vadd.f32 %v1994, %v2305
      %v2307 = vpop.f32.mrb[0].mxu0
      %v2308 = vadd.f32 %v1998, %v2307
      %v2309 = vpop.f32.mrb[0].mxu0
      %v2310 = vadd.f32 %v1994, %v2309
      %v2311 = vpop.f32.mrb[0].mxu0
      %v2312 = vadd.f32 %v1998, %v2311
      %2313 = vmatprep.mubr.bf16.mxu0 %v1981
      %2314 = vmatmul.mubr.bf16.gmra.mrb[0].mxu0 %v1980
      %v2315 = vpop.f32.mrb[0].mxu0
      %v2316 = vadd.f32 %v1994, %v2315
      %v2317 = vpop.f32.mrb[0].mxu0
      %v2318 = vadd.f32 %v1998, %v2317
      %v2319 = vpop.f32.mrb[0].mxu0
      %v2320 = vadd.f32 %v1994, %v2319
      %v2321 = vpop.f32.mrb[0].mxu0
      %v2322 = vadd.f32 %v1998, %v2321
      %2323 = vmatprep.mubr.bf16.mxu0 %v1983
      %2324 = vmatmul.mubr.bf16.gmra.mrb[0].mxu0 %v1982
      %v2325 = vpop.f32.mrb[0].mxu0
      %v2326 = vadd.f32 %v1994, %v2325
      %v2327 = vpop.f32.mrb[0].mxu0
      %v2328 = vadd.f32 %v1998, %v2327
      %v2329 = vpop.f32.mrb[0].mxu0
      %v2330 = vadd.f32 %v1994, %v2329
      %v2331 = vpop.f32.mrb[0].mxu0
      %v2332 = vadd.f32 %v1998, %v2331
      %2333 = vmatprep.mubr.bf16.mxu0 %v1985
      %2334 = vmatmul.mubr.bf16.gmra.mrb[0].mxu0 %v1984
      %v2335 = vpop.f32.mrb[0].mxu0
      %v2336 = vadd.f32 %v1994, %v2335
      %v2337 = vpop.f32.mrb[0].mxu0
      %v2338 = vadd.f32 %v1998, %v2337
      %v2339 = vpop.f32.mrb[0].mxu0
      %v2340 = vadd.f32 %v1994, %v2339
      %v2341 = vpop.f32.mrb[0].mxu0
      %v2342 = vadd.f32 %v1998, %v2341
      %2343 = vmatprep.mubr.bf16.mxu0 %v1987
      %2344 = vmatmul.mubr.bf16.gmra.mrb[0].mxu0 %v1986
      %v2345 = vpop.f32.mrb[0].mxu0
      %v2346 = vadd.f32 %v1994, %v2345
      %v2347 = vpop.f32.mrb[0].mxu0
      %v2348 = vadd.f32 %v1998, %v2347
      %v2349 = vpop.f32.mrb[0].mxu0
      %v2350 = vadd.f32 %v1994, %v2349
      %v2351 = vpop.f32.mrb[0].mxu0
      %v2352 = vadd.f32 %v1998, %v2351
      %2353 = vdwg.mxu0
      %v2354 = vmax.f32 %v2196, 0.0
      %v2355 = vmax.f32 %v2198, 0.0
      %v2356 = vmax.f32 %v2200, 0.0
      %v2357 = vmax.f32 %v2202, 0.0
      %v2358 = vmax.f32 %v2206, 0.0
      %v2359 = vmax.f32 %v2208, 0.0
      %v2360 = vmax.f32 %v2210, 0.0
      %v2361 = vmax.f32 %v2212, 0.0
      %v2362 = vmax.f32 %v2216, 0.0
      %v2363 = vmax.f32 %v2218, 0.0
      %v2364 = vmax.f32 %v2220, 0.0
      %v2365 = vmax.f32 %v2222, 0.0
      %v2366 = vmax.f32 %v2226, 0.0
      %v2367 = vmax.f32 %v2228, 0.0
      %v2368 = vmax.f32 %v2230, 0.0
      %v2369 = vmax.f32 %v2232, 0.0
      %v2370 = vmax.f32 %v2236, 0.0
      %v2371 = vmax.f32 %v2238, 0.0
      %v2372 = vmax.f32 %v2240, 0.0
      %v2373 = vmax.f32 %v2242, 0.0
      %v2374 = vmax.f32 %v2246, 0.0
      %v2375 = vmax.f32 %v2248, 0.0
      %v2376 = vmax.f32 %v2250, 0.0
      %v2377 = vmax.f32 %v2252, 0.0
      %v2378 = vmax.f32 %v2256, 0.0
      %v2379 = vmax.f32 %v2258, 0.0
      %v2380 = vmax.f32 %v2260, 0.0
      %v2381 = vmax.f32 %v2262, 0.0
      %v2382 = vmax.f32 %v2266, 0.0
      %v2383 = vmax.f32 %v2268, 0.0
      %v2384 = vmax.f32 %v2270, 0.0
      %v2385 = vmax.f32 %v2272, 0.0
      %v2386 = vmax.f32 %v2276, 0.0
      %v2387 = vmax.f32 %v2278, 0.0
      %v2388 = vmax.f32 %v2280, 0.0
      %v2389 = vmax.f32 %v2282, 0.0
      %v2390 = vmax.f32 %v2286, 0.0
      %v2391 = vmax.f32 %v2288, 0.0
      %v2392 = vmax.f32 %v2290, 0.0
      %v2393 = vmax.f32 %v2292, 0.0
      %v2394 = vmax.f32 %v2296, 0.0
      %v2395 = vmax.f32 %v2298, 0.0
      %v2396 = vmax.f32 %v2300, 0.0
      %v2397 = vmax.f32 %v2302, 0.0
      %v2398 = vmax.f32 %v2306, 0.0
      %v2399 = vmax.f32 %v2308, 0.0
      %v2400 = vmax.f32 %v2310, 0.0
      %v2401 = vmax.f32 %v2312, 0.0
      %v2402 = vmax.f32 %v2316, 0.0
      %v2403 = vmax.f32 %v2318, 0.0
      %v2404 = vmax.f32 %v2320, 0.0
      %v2405 = vmax.f32 %v2322, 0.0
      %v2406 = vmax.f32 %v2326, 0.0
      %v2407 = vmax.f32 %v2328, 0.0
      %v2408 = vmax.f32 %v2330, 0.0
      %v2409 = vmax.f32 %v2332, 0.0
      %v2410 = vmax.f32 %v2336, 0.0
      %v2411 = vmax.f32 %v2338, 0.0
      %v2412 = vmax.f32 %v2340, 0.0
      %v2413 = vmax.f32 %v2342, 0.0
      %v2414 = vmax.f32 %v2346, 0.0
      %v2415 = vmax.f32 %v2348, 0.0
      %v2416 = vmax.f32 %v2350, 0.0
      %v2417 = vmax.f32 %v2352, 0.0
      %s2418 = scalar_lea.vmem %s4, 768
      %v2419 = vld [vmem:[%s2418] sm:$0xff]
      %v2420 = vld [vmem:[%s2418 + $0x8] sm:$0xff]
      %v2421 = vld [vmem:[%s2418 + $0x10] sm:$0xff]
      %v2422 = vld [vmem:[%s2418 + $0x18] sm:$0xff]
      %v2423 = vld [vmem:[%s2418 + $0x20] sm:$0xff]
      %v2424 = vld [vmem:[%s2418 + $0x28] sm:$0xff]
      %v2425 = vld [vmem:[%s2418 + $0x30] sm:$0xff]
      %v2426 = vld [vmem:[%s2418 + $0x38] sm:$0xff]
      %v2427 = vld [vmem:[%s2418 + $0x40] sm:$0xff]
      %v2428 = vld [vmem:[%s2418 + $0x48] sm:$0xff]
      %v2429 = vld [vmem:[%s2418 + $0x50] sm:$0xff]
      %v2430 = vld [vmem:[%s2418 + $0x58] sm:$0xff]
      %v2431 = vld [vmem:[%s2418 + $0x60] sm:$0xff]
      %v2432 = vld [vmem:[%s2418 + $0x68] sm:$0xff]
      %v2433 = vld [vmem:[%s2418 + $0x70] sm:$0xff]
      %v2434 = vld [vmem:[%s2418 + $0x78] sm:$0xff]
      %v2435 = vld [vmem:[%s2418 + $0x80] sm:$0xff]
      %v2436 = vld [vmem:[%s2418 + $0x88] sm:$0xff]
      %v2437 = vld [vmem:[%s2418 + $0x90] sm:$0xff]
      %v2438 = vld [vmem:[%s2418 + $0x98] sm:$0xff]
      %v2439 = vld [vmem:[%s2418 + $0xa0] sm:$0xff]
      %v2440 = vld [vmem:[%s2418 + $0xa8] sm:$0xff]
      %v2441 = vld [vmem:[%s2418 + $0xb0] sm:$0xff]
      %v2442 = vld [vmem:[%s2418 + $0xb8] sm:$0xff]
      %v2443 = vld [vmem:[%s2418 + $0xc0] sm:$0xff]
      %v2444 = vld [vmem:[%s2418 + $0xc8] sm:$0xff]
      %v2445 = vld [vmem:[%s2418 + $0xd0] sm:$0xff]
      %v2446 = vld [vmem:[%s2418 + $0xd8] sm:$0xff]
      %v2447 = vld [vmem:[%s2418 + $0xe0] sm:$0xff]
      %v2448 = vld [vmem:[%s2418 + $0xe8] sm:$0xff]
      %v2449 = vld [vmem:[%s2418 + $0xf0] sm:$0xff]
      %v2450 = vld [vmem:[%s2418 + $0xf8] sm:$0xff]
      %v2451 = vpack.c.bf16 %v2356, %v2354
      %v2452 = vpack.c.bf16 %v2357, %v2355
      %v2453 = vpack.c.bf16 %v2360, %v2358
      %v2454 = vpack.c.bf16 %v2361, %v2359
      %v2455 = vpack.c.bf16 %v2364, %v2362
      %v2456 = vpack.c.bf16 %v2365, %v2363
      %v2457 = vpack.c.bf16 %v2368, %v2366
      %v2458 = vpack.c.bf16 %v2369, %v2367
      %v2459 = vpack.c.bf16 %v2372, %v2370
      %v2460 = vpack.c.bf16 %v2373, %v2371
      %v2461 = vpack.c.bf16 %v2376, %v2374
      %v2462 = vpack.c.bf16 %v2377, %v2375
      %v2463 = vpack.c.bf16 %v2380, %v2378
      %v2464 = vpack.c.bf16 %v2381, %v2379
      %v2465 = vpack.c.bf16 %v2384, %v2382
      %v2466 = vpack.c.bf16 %v2385, %v2383
      %v2467 = vpack.c.bf16 %v2388, %v2386
      %v2468 = vpack.c.bf16 %v2389, %v2387
      %v2469 = vpack.c.bf16 %v2392, %v2390
      %v2470 = vpack.c.bf16 %v2393, %v2391
      %v2471 = vpack.c.bf16 %v2396, %v2394
      %v2472 = vpack.c.bf16 %v2397, %v2395
      %v2473 = vpack.c.bf16 %v2400, %v2398
      %v2474 = vpack.c.bf16 %v2401, %v2399
      %v2475 = vpack.c.bf16 %v2404, %v2402
      %v2476 = vpack.c.bf16 %v2405, %v2403
      %v2477 = vpack.c.bf16 %v2408, %v2406
      %v2478 = vpack.c.bf16 %v2409, %v2407
      %v2479 = vpack.c.bf16 %v2412, %v2410
      %v2480 = vpack.c.bf16 %v2413, %v2411
      %v2481 = vpack.c.bf16 %v2416, %v2414
      %v2482 = vpack.c.bf16 %v2417, %v2415
      %v2483 = vld [vmem:[%s3] sm:$0xff]
      %v2484 = vld [vmem:[%s3 + $0x8] sm:$0xff]
      %v2485 = vld [vmem:[%s3 + $0x10] sm:$0xff]
      %v2486 = vld [vmem:[%s3 + $0x18] sm:$0xff]
      %v2487 = vld [vmem:[%s3 + $0x20] sm:$0xff]
      %v2488 = vld [vmem:[%s3 + $0x28] sm:$0xff]
      %v2489 = vld [vmem:[%s3 + $0x30] sm:$0xff]
      %v2490 = vld [vmem:[%s3 + $0x38] sm:$0x33]
      %v2499 = vunpack.c.l.b16 %v2483
      %v2500 = vunpack.c.h.b16 %v2483
      %v2501 = vunpack.c.l.b16 %v2484
      %v2502 = vunpack.c.h.b16 %v2484
      %v2503 = vunpack.c.l.b16 %v2485
      %v2504 = vunpack.c.h.b16 %v2485
      %v2505 = vunpack.c.l.b16 %v2486
      %v2506 = vunpack.c.h.b16 %v2486
      %v2507 = vunpack.c.l.b16 %v2487
      %v2508 = vunpack.c.h.b16 %v2487
      %v2509 = vunpack.c.l.b16 %v2488
      %v2510 = vunpack.c.h.b16 %v2488
      %v2511 = vunpack.c.l.b16 %v2489
      %v2512 = vunpack.c.h.b16 %v2489
      %v2513 = vunpack.c.l.b16 %v2490
      %v2514 = vunpack.c.h.b16 %v2490
      %v2515 = vpack.c.b16 %v2501, %v2499
      %v2516 = vpack.c.b16 %v2502, %v2500
      %v2517 = vpack.c.b16 %v2505, %v2503
      %v2518 = vpack.c.b16 %v2506, %v2504
      %v2519 = vpack.c.b16 %v2509, %v2507
      %v2520 = vpack.c.b16 %v2510, %v2508
      %v2521 = vpack.c.b16 %v2513, %v2511
      %v2522 = vpack.c.b16 %v2514, %v2512
      %v2530 = vsel %vm670, %v2521, 0
      %v2533 = vsel %vm670, %v2522, 0
      %2535 = vmatprep.subr.bf16.mxu0 %v2516
      %2536 = vmatpush1.bf16.msra.mxu0 %v2515
      %2537 = vmatprep.subr.bf16.mxu0 %v2518
      %2538 = vmatpush1.bf16.msra.mxu0 %v2517
      %2539 = vmatprep.subr.bf16.mxu0 %v2520
      %2540 = vmatpush1.bf16.msra.mxu0 %v2519
      %2541 = vmatprep.subr.bf16.mxu0 %v2533
      %2542 = vmatpush1.bf16.msra.mxu0 %v2530
      %2543 = vmatprep.subr.bf16.mxu0 0
      %2544 = vmatpush1.bf16.msra.mxu0 0
      %2545 = vmatprep.subr.bf16.mxu0 0
      %2546 = vmatpush1.bf16.msra.mxu0 0
      %2547 = vmatprep.subr.bf16.mxu0 0
      %2548 = vmatpush1.bf16.msra.mxu0 0
      %2549 = vmatprep.subr.bf16.mxu0 0
      %2550 = vmatpush1.bf16.msra.mxu0 0
      %2551 = vmatprep.subr.bf16.mxu0 0
      %2552 = vmatpush1.bf16.msra.mxu0 0
      %2553 = vmatprep.subr.bf16.mxu0 0
      %2554 = vmatpush1.bf16.msra.mxu0 0
      %2555 = vmatprep.subr.bf16.mxu0 0
      %2556 = vmatpush1.bf16.msra.mxu0 0
      %2557 = vmatprep.subr.bf16.mxu0 0
      %2558 = vmatpush1.bf16.msra.mxu0 0
      %2559 = vmatprep.subr.bf16.mxu0 0
      %2560 = vmatpush1.bf16.msra.mxu0 0
      %2561 = vmatprep.subr.bf16.mxu0 0
      %2562 = vmatpush1.bf16.msra.mxu0 0
      %2563 = vmatprep.subr.bf16.mxu0 0
      %2564 = vmatpush1.bf16.msra.mxu0 0
      %2565 = vmatprep.subr.bf16.mxu0 0
      %2566 = vmatpush1.bf16.msra.mxu0 0
      %2567 = vmatprep.mubr.bf16.mxu0 0
      %2568 = vmatmul.mubr.bf16.gmra.mrb[0].mxu0 %v623
      %v2569 = vpop.f32.mrb[0].mxu0
      %v2570 = vadd.f32 0.0, %v2569
      %v2571 = vpop.f32.mrb[0].mxu0
      %v2572 = vadd.f32 0.0, %v2571
      %v2573 = vpop.f32.mrb[0].mxu0
      %v2574 = vadd.f32 0.0, %v2573
      %v2575 = vpop.f32.mrb[0].mxu0
      %v2576 = vadd.f32 0.0, %v2575
      %2577 = vmatprep.mubr.bf16.mxu0 0
      %2578 = vmatmul.mubr.bf16.gmra.mrb[0].mxu0 %v626
      %v2579 = vpop.f32.mrb[0].mxu0
      %v2580 = vadd.f32 0.0, %v2579
      %v2581 = vpop.f32.mrb[0].mxu0
      %v2582 = vadd.f32 0.0, %v2581
      %v2583 = vpop.f32.mrb[0].mxu0
      %v2584 = vadd.f32 0.0, %v2583
      %v2585 = vpop.f32.mrb[0].mxu0
      %v2586 = vadd.f32 0.0, %v2585
      %2587 = vmatprep.mubr.bf16.mxu0 0
      %2588 = vmatmul.mubr.bf16.gmra.mrb[0].mxu0 %v629
      %v2589 = vpop.f32.mrb[0].mxu0
      %v2590 = vadd.f32 0.0, %v2589
      %v2591 = vpop.f32.mrb[0].mxu0
      %v2592 = vadd.f32 0.0, %v2591
      %v2593 = vpop.f32.mrb[0].mxu0
      %v2594 = vadd.f32 0.0, %v2593
      %v2595 = vpop.f32.mrb[0].mxu0
      %v2596 = vadd.f32 0.0, %v2595
      %2597 = vmatprep.mubr.bf16.mxu0 0
      %2598 = vmatmul.mubr.bf16.gmra.mrb[0].mxu0 %v632
      %v2599 = vpop.f32.mrb[0].mxu0
      %v2600 = vadd.f32 0.0, %v2599
      %v2601 = vpop.f32.mrb[0].mxu0
      %v2602 = vadd.f32 0.0, %v2601
      %v2603 = vpop.f32.mrb[0].mxu0
      %v2604 = vadd.f32 0.0, %v2603
      %v2605 = vpop.f32.mrb[0].mxu0
      %v2606 = vadd.f32 0.0, %v2605
      %2607 = vmatprep.mubr.bf16.mxu0 0
      %2608 = vmatmul.mubr.bf16.gmra.mrb[0].mxu0 %v635
      %v2609 = vpop.f32.mrb[0].mxu0
      %v2610 = vadd.f32 0.0, %v2609
      %v2611 = vpop.f32.mrb[0].mxu0
      %v2612 = vadd.f32 0.0, %v2611
      %v2613 = vpop.f32.mrb[0].mxu0
      %v2614 = vadd.f32 0.0, %v2613
      %v2615 = vpop.f32.mrb[0].mxu0
      %v2616 = vadd.f32 0.0, %v2615
      %2617 = vmatprep.mubr.bf16.mxu0 0
      %2618 = vmatmul.mubr.bf16.gmra.mrb[0].mxu0 %v638
      %v2619 = vpop.f32.mrb[0].mxu0
      %v2620 = vadd.f32 0.0, %v2619
      %v2621 = vpop.f32.mrb[0].mxu0
      %v2622 = vadd.f32 0.0, %v2621
      %v2623 = vpop.f32.mrb[0].mxu0
      %v2624 = vadd.f32 0.0, %v2623
      %v2625 = vpop.f32.mrb[0].mxu0
      %v2626 = vadd.f32 0.0, %v2625
      %2627 = vmatprep.mubr.bf16.mxu0 0
      %2628 = vmatmul.mubr.bf16.gmra.mrb[0].mxu0 %v641
      %v2629 = vpop.f32.mrb[0].mxu0
      %v2630 = vadd.f32 0.0, %v2629
      %v2631 = vpop.f32.mrb[0].mxu0
      %v2632 = vadd.f32 0.0, %v2631
      %v2633 = vpop.f32.mrb[0].mxu0
      %v2634 = vadd.f32 0.0, %v2633
      %v2635 = vpop.f32.mrb[0].mxu0
      %v2636 = vadd.f32 0.0, %v2635
      %2637 = vmatprep.mubr.bf16.mxu0 0
      %2638 = vmatmul.mubr.bf16.gmra.mrb[0].mxu0 %v644
      %v2639 = vpop.f32.mrb[0].mxu0
      %v2640 = vadd.f32 0.0, %v2639
      %v2641 = vpop.f32.mrb[0].mxu0
      %v2642 = vadd.f32 0.0, %v2641
      %v2643 = vpop.f32.mrb[0].mxu0
      %v2644 = vadd.f32 0.0, %v2643
      %v2645 = vpop.f32.mrb[0].mxu0
      %v2646 = vadd.f32 0.0, %v2645
      %2647 = vmatprep.mubr.bf16.mxu0 0
      %2648 = vmatmul.mubr.bf16.gmra.mrb[0].mxu0 %v647
      %v2649 = vpop.f32.mrb[0].mxu0
      %v2650 = vadd.f32 0.0, %v2649
      %v2651 = vpop.f32.mrb[0].mxu0
      %v2652 = vadd.f32 0.0, %v2651
      %v2653 = vpop.f32.mrb[0].mxu0
      %v2654 = vadd.f32 0.0, %v2653
      %v2655 = vpop.f32.mrb[0].mxu0
      %v2656 = vadd.f32 0.0, %v2655
      %2657 = vmatprep.mubr.bf16.mxu0 0
      %2658 = vmatmul.mubr.bf16.gmra.mrb[0].mxu0 %v650
      %v2659 = vpop.f32.mrb[0].mxu0
      %v2660 = vadd.f32 0.0, %v2659
      %v2661 = vpop.f32.mrb[0].mxu0
      %v2662 = vadd.f32 0.0, %v2661
      %v2663 = vpop.f32.mrb[0].mxu0
      %v2664 = vadd.f32 0.0, %v2663
      %v2665 = vpop.f32.mrb[0].mxu0
      %v2666 = vadd.f32 0.0, %v2665
      %2667 = vmatprep.mubr.bf16.mxu0 0
      %2668 = vmatmul.mubr.bf16.gmra.mrb[0].mxu0 %v653
      %v2669 = vpop.f32.mrb[0].mxu0
      %v2670 = vadd.f32 0.0, %v2669
      %v2671 = vpop.f32.mrb[0].mxu0
      %v2672 = vadd.f32 0.0, %v2671
      %v2673 = vpop.f32.mrb[0].mxu0
      %v2674 = vadd.f32 0.0, %v2673
      %v2675 = vpop.f32.mrb[0].mxu0
      %v2676 = vadd.f32 0.0, %v2675
      %2677 = vmatprep.mubr.bf16.mxu0 0
      %2678 = vmatmul.mubr.bf16.gmra.mrb[0].mxu0 %v656
      %v2679 = vpop.f32.mrb[0].mxu0
      %v2680 = vadd.f32 0.0, %v2679
      %v2681 = vpop.f32.mrb[0].mxu0
      %v2682 = vadd.f32 0.0, %v2681
      %v2683 = vpop.f32.mrb[0].mxu0
      %v2684 = vadd.f32 0.0, %v2683
      %v2685 = vpop.f32.mrb[0].mxu0
      %v2686 = vadd.f32 0.0, %v2685
      %2687 = vmatprep.mubr.bf16.mxu0 0
      %2688 = vmatmul.mubr.bf16.gmra.mrb[0].mxu0 %v659
      %v2689 = vpop.f32.mrb[0].mxu0
      %v2690 = vadd.f32 0.0, %v2689
      %v2691 = vpop.f32.mrb[0].mxu0
      %v2692 = vadd.f32 0.0, %v2691
      %v2693 = vpop.f32.mrb[0].mxu0
      %v2694 = vadd.f32 0.0, %v2693
      %v2695 = vpop.f32.mrb[0].mxu0
      %v2696 = vadd.f32 0.0, %v2695
      %2697 = vmatprep.mubr.bf16.mxu0 0
      %2698 = vmatmul.mubr.bf16.gmra.mrb[0].mxu0 %v662
      %v2699 = vpop.f32.mrb[0].mxu0
      %v2700 = vadd.f32 0.0, %v2699
      %v2701 = vpop.f32.mrb[0].mxu0
      %v2702 = vadd.f32 0.0, %v2701
      %v2703 = vpop.f32.mrb[0].mxu0
      %v2704 = vadd.f32 0.0, %v2703
      %v2705 = vpop.f32.mrb[0].mxu0
      %v2706 = vadd.f32 0.0, %v2705
      %2707 = vmatprep.mubr.bf16.mxu0 0
      %2708 = vmatmul.mubr.bf16.gmra.mrb[0].mxu0 %v665
      %v2709 = vpop.f32.mrb[0].mxu0
      %v2710 = vadd.f32 0.0, %v2709
      %v2711 = vpop.f32.mrb[0].mxu0
      %v2712 = vadd.f32 0.0, %v2711
      %v2713 = vpop.f32.mrb[0].mxu0
      %v2714 = vadd.f32 0.0, %v2713
      %v2715 = vpop.f32.mrb[0].mxu0
      %v2716 = vadd.f32 0.0, %v2715
      %2717 = vmatprep.mubr.bf16.mxu0 0
      %2718 = vmatmul.mubr.bf16.gmra.mrb[0].mxu0 %v668
      %v2719 = vpop.f32.mrb[0].mxu0
      %v2720 = vadd.f32 0.0, %v2719
      %v2721 = vpop.f32.mrb[0].mxu0
      %v2722 = vadd.f32 0.0, %v2721
      %v2723 = vpop.f32.mrb[0].mxu0
      %v2724 = vadd.f32 0.0, %v2723
      %v2725 = vpop.f32.mrb[0].mxu0
      %v2726 = vadd.f32 0.0, %v2725
      %2727 = vdwg.mxu0
      %v2760 = vunpack.c.l.b16 %v2419
      %v2761 = vunpack.c.h.b16 %v2419
      %v2762 = vunpack.c.l.b16 %v2420
      %v2763 = vunpack.c.h.b16 %v2420
      %v2764 = vunpack.c.l.b16 %v2421
      %v2765 = vunpack.c.h.b16 %v2421
      %v2766 = vunpack.c.l.b16 %v2422
      %v2767 = vunpack.c.h.b16 %v2422
      %v2768 = vunpack.c.l.b16 %v2423
      %v2769 = vunpack.c.h.b16 %v2423
      %v2770 = vunpack.c.l.b16 %v2424
      %v2771 = vunpack.c.h.b16 %v2424
      %v2772 = vunpack.c.l.b16 %v2425
      %v2773 = vunpack.c.h.b16 %v2425
      %v2774 = vunpack.c.l.b16 %v2426
      %v2775 = vunpack.c.h.b16 %v2426
      %v2776 = vunpack.c.l.b16 %v2427
      %v2777 = vunpack.c.h.b16 %v2427
      %v2778 = vunpack.c.l.b16 %v2428
      %v2779 = vunpack.c.h.b16 %v2428
      %v2780 = vunpack.c.l.b16 %v2429
      %v2781 = vunpack.c.h.b16 %v2429
      %v2782 = vunpack.c.l.b16 %v2430
      %v2783 = vunpack.c.h.b16 %v2430
      %v2784 = vunpack.c.l.b16 %v2431
      %v2785 = vunpack.c.h.b16 %v2431
      %v2786 = vunpack.c.l.b16 %v2432
      %v2787 = vunpack.c.h.b16 %v2432
      %v2788 = vunpack.c.l.b16 %v2433
      %v2789 = vunpack.c.h.b16 %v2433
      %v2790 = vunpack.c.l.b16 %v2434
      %v2791 = vunpack.c.h.b16 %v2434
      %v2792 = vunpack.c.l.b16 %v2435
      %v2793 = vunpack.c.h.b16 %v2435
      %v2794 = vunpack.c.l.b16 %v2436
      %v2795 = vunpack.c.h.b16 %v2436
      %v2796 = vunpack.c.l.b16 %v2437
      %v2797 = vunpack.c.h.b16 %v2437
      %v2798 = vunpack.c.l.b16 %v2438
      %v2799 = vunpack.c.h.b16 %v2438
      %v2800 = vunpack.c.l.b16 %v2439
      %v2801 = vunpack.c.h.b16 %v2439
      %v2802 = vunpack.c.l.b16 %v2440
      %v2803 = vunpack.c.h.b16 %v2440
      %v2804 = vunpack.c.l.b16 %v2441
      %v2805 = vunpack.c.h.b16 %v2441
      %v2806 = vunpack.c.l.b16 %v2442
      %v2807 = vunpack.c.h.b16 %v2442
      %v2808 = vunpack.c.l.b16 %v2443
      %v2809 = vunpack.c.h.b16 %v2443
      %v2810 = vunpack.c.l.b16 %v2444
      %v2811 = vunpack.c.h.b16 %v2444
      %v2812 = vunpack.c.l.b16 %v2445
      %v2813 = vunpack.c.h.b16 %v2445
      %v2814 = vunpack.c.l.b16 %v2446
      %v2815 = vunpack.c.h.b16 %v2446
      %v2816 = vunpack.c.l.b16 %v2447
      %v2817 = vunpack.c.h.b16 %v2447
      %v2818 = vunpack.c.l.b16 %v2448
      %v2819 = vunpack.c.h.b16 %v2448
      %v2820 = vunpack.c.l.b16 %v2449
      %v2821 = vunpack.c.h.b16 %v2449
      %v2822 = vunpack.c.l.b16 %v2450
      %v2823 = vunpack.c.h.b16 %v2450
      %v2824 = vpack.c.b16 %v2762, %v2760
      %v2825 = vpack.c.b16 %v2763, %v2761
      %v2826 = vpack.c.b16 %v2766, %v2764
      %v2827 = vpack.c.b16 %v2767, %v2765
      %v2828 = vpack.c.b16 %v2770, %v2768
      %v2829 = vpack.c.b16 %v2771, %v2769
      %v2830 = vpack.c.b16 %v2774, %v2772
      %v2831 = vpack.c.b16 %v2775, %v2773
      %v2832 = vpack.c.b16 %v2778, %v2776
      %v2833 = vpack.c.b16 %v2779, %v2777
      %v2834 = vpack.c.b16 %v2782, %v2780
      %v2835 = vpack.c.b16 %v2783, %v2781
      %v2836 = vpack.c.b16 %v2786, %v2784
      %v2837 = vpack.c.b16 %v2787, %v2785
      %v2838 = vpack.c.b16 %v2790, %v2788
      %v2839 = vpack.c.b16 %v2791, %v2789
      %v2840 = vpack.c.b16 %v2794, %v2792
      %v2841 = vpack.c.b16 %v2795, %v2793
      %v2842 = vpack.c.b16 %v2798, %v2796
      %v2843 = vpack.c.b16 %v2799, %v2797
      %v2844 = vpack.c.b16 %v2802, %v2800
      %v2845 = vpack.c.b16 %v2803, %v2801
      %v2846 = vpack.c.b16 %v2806, %v2804
      %v2847 = vpack.c.b16 %v2807, %v2805
      %v2848 = vpack.c.b16 %v2810, %v2808
      %v2849 = vpack.c.b16 %v2811, %v2809
      %v2850 = vpack.c.b16 %v2814, %v2812
      %v2851 = vpack.c.b16 %v2815, %v2813
      %v2852 = vpack.c.b16 %v2818, %v2816
      %v2853 = vpack.c.b16 %v2819, %v2817
      %v2854 = vpack.c.b16 %v2822, %v2820
      %v2855 = vpack.c.b16 %v2823, %v2821
      %2888 = vmatprep.subr.bf16.mxu0 %v2825
      %2889 = vmatpush1.bf16.msra.mxu0 %v2824
      %2890 = vmatprep.subr.bf16.mxu0 %v2827
      %2891 = vmatpush1.bf16.msra.mxu0 %v2826
      %2892 = vmatprep.subr.bf16.mxu0 %v2829
      %2893 = vmatpush1.bf16.msra.mxu0 %v2828
      %2894 = vmatprep.subr.bf16.mxu0 %v2831
      %2895 = vmatpush1.bf16.msra.mxu0 %v2830
      %2896 = vmatprep.subr.bf16.mxu0 %v2833
      %2897 = vmatpush1.bf16.msra.mxu0 %v2832
      %2898 = vmatprep.subr.bf16.mxu0 %v2835
      %2899 = vmatpush1.bf16.msra.mxu0 %v2834
      %2900 = vmatprep.subr.bf16.mxu0 %v2837
      %2901 = vmatpush1.bf16.msra.mxu0 %v2836
      %2902 = vmatprep.subr.bf16.mxu0 %v2839
      %2903 = vmatpush1.bf16.msra.mxu0 %v2838
      %2904 = vmatprep.subr.bf16.mxu0 %v2841
      %2905 = vmatpush1.bf16.msra.mxu0 %v2840
      %2906 = vmatprep.subr.bf16.mxu0 %v2843
      %2907 = vmatpush1.bf16.msra.mxu0 %v2842
      %2908 = vmatprep.subr.bf16.mxu0 %v2845
      %2909 = vmatpush1.bf16.msra.mxu0 %v2844
      %2910 = vmatprep.subr.bf16.mxu0 %v2847
      %2911 = vmatpush1.bf16.msra.mxu0 %v2846
      %2912 = vmatprep.subr.bf16.mxu0 %v2849
      %2913 = vmatpush1.bf16.msra.mxu0 %v2848
      %2914 = vmatprep.subr.bf16.mxu0 %v2851
      %2915 = vmatpush1.bf16.msra.mxu0 %v2850
      %2916 = vmatprep.subr.bf16.mxu0 %v2853
      %2917 = vmatpush1.bf16.msra.mxu0 %v2852
      %2918 = vmatprep.subr.bf16.mxu0 %v2855
      %2919 = vmatpush1.bf16.msra.mxu0 %v2854
      %2920 = vmatprep.mubr.bf16.mxu0 %v2452
      %2921 = vmatmul.mubr.bf16.gmra.mrb[0].mxu0 %v2451
      %v2922 = vpop.f32.mrb[0].mxu0
      %v2923 = vadd.f32 %v2570, %v2922
      %v2924 = vpop.f32.mrb[0].mxu0
      %v2925 = vadd.f32 %v2572, %v2924
      %v2926 = vpop.f32.mrb[0].mxu0
      %v2927 = vadd.f32 %v2574, %v2926
      %v2928 = vpop.f32.mrb[0].mxu0
      %v2929 = vadd.f32 %v2576, %v2928
      %2930 = vmatprep.mubr.bf16.mxu0 %v2454
      %2931 = vmatmul.mubr.bf16.gmra.mrb[0].mxu0 %v2453
      %v2932 = vpop.f32.mrb[0].mxu0
      %v2933 = vadd.f32 %v2580, %v2932
      %v2934 = vpop.f32.mrb[0].mxu0
      %v2935 = vadd.f32 %v2582, %v2934
      %v2936 = vpop.f32.mrb[0].mxu0
      %v2937 = vadd.f32 %v2584, %v2936
      %v2938 = vpop.f32.mrb[0].mxu0
      %v2939 = vadd.f32 %v2586, %v2938
      %2940 = vmatprep.mubr.bf16.mxu0 %v2456
      %2941 = vmatmul.mubr.bf16.gmra.mrb[0].mxu0 %v2455
      %v2942 = vpop.f32.mrb[0].mxu0
      %v2943 = vadd.f32 %v2590, %v2942
      %v2944 = vpop.f32.mrb[0].mxu0
      %v2945 = vadd.f32 %v2592, %v2944
      %v2946 = vpop.f32.mrb[0].mxu0
      %v2947 = vadd.f32 %v2594, %v2946
      %v2948 = vpop.f32.mrb[0].mxu0
      %v2949 = vadd.f32 %v2596, %v2948
      %2950 = vmatprep.mubr.bf16.mxu0 %v2458
      %2951 = vmatmul.mubr.bf16.gmra.mrb[0].mxu0 %v2457
      %v2952 = vpop.f32.mrb[0].mxu0
      %v2953 = vadd.f32 %v2600, %v2952
      %v2954 = vpop.f32.mrb[0].mxu0
      %v2955 = vadd.f32 %v2602, %v2954
      %v2956 = vpop.f32.mrb[0].mxu0
      %v2957 = vadd.f32 %v2604, %v2956
      %v2958 = vpop.f32.mrb[0].mxu0
      %v2959 = vadd.f32 %v2606, %v2958
      %2960 = vmatprep.mubr.bf16.mxu0 %v2460
      %2961 = vmatmul.mubr.bf16.gmra.mrb[0].mxu0 %v2459
      %v2962 = vpop.f32.mrb[0].mxu0
      %v2963 = vadd.f32 %v2610, %v2962
      %v2964 = vpop.f32.mrb[0].mxu0
      %v2965 = vadd.f32 %v2612, %v2964
      %v2966 = vpop.f32.mrb[0].mxu0
      %v2967 = vadd.f32 %v2614, %v2966
      %v2968 = vpop.f32.mrb[0].mxu0
      %v2969 = vadd.f32 %v2616, %v2968
      %2970 = vmatprep.mubr.bf16.mxu0 %v2462
      %2971 = vmatmul.mubr.bf16.gmra.mrb[0].mxu0 %v2461
      %v2972 = vpop.f32.mrb[0].mxu0
      %v2973 = vadd.f32 %v2620, %v2972
      %v2974 = vpop.f32.mrb[0].mxu0
      %v2975 = vadd.f32 %v2622, %v2974
      %v2976 = vpop.f32.mrb[0].mxu0
      %v2977 = vadd.f32 %v2624, %v2976
      %v2978 = vpop.f32.mrb[0].mxu0
      %v2979 = vadd.f32 %v2626, %v2978
      %2980 = vmatprep.mubr.bf16.mxu0 %v2464
      %2981 = vmatmul.mubr.bf16.gmra.mrb[0].mxu0 %v2463
      %v2982 = vpop.f32.mrb[0].mxu0
      %v2983 = vadd.f32 %v2630, %v2982
      %v2984 = vpop.f32.mrb[0].mxu0
      %v2985 = vadd.f32 %v2632, %v2984
      %v2986 = vpop.f32.mrb[0].mxu0
      %v2987 = vadd.f32 %v2634, %v2986
      %v2988 = vpop.f32.mrb[0].mxu0
      %v2989 = vadd.f32 %v2636, %v2988
      %2990 = vmatprep.mubr.bf16.mxu0 %v2466
      %2991 = vmatmul.mubr.bf16.gmra.mrb[0].mxu0 %v2465
      %v2992 = vpop.f32.mrb[0].mxu0
      %v2993 = vadd.f32 %v2640, %v2992
      %v2994 = vpop.f32.mrb[0].mxu0
      %v2995 = vadd.f32 %v2642, %v2994
      %v2996 = vpop.f32.mrb[0].mxu0
      %v2997 = vadd.f32 %v2644, %v2996
      %v2998 = vpop.f32.mrb[0].mxu0
      %v2999 = vadd.f32 %v2646, %v2998
      %3000 = vmatprep.mubr.bf16.mxu0 %v2468
      %3001 = vmatmul.mubr.bf16.gmra.mrb[0].mxu0 %v2467
      %v3002 = vpop.f32.mrb[0].mxu0
      %v3003 = vadd.f32 %v2650, %v3002
      %v3004 = vpop.f32.mrb[0].mxu0
      %v3005 = vadd.f32 %v2652, %v3004
      %v3006 = vpop.f32.mrb[0].mxu0
      %v3007 = vadd.f32 %v2654, %v3006
      %v3008 = vpop.f32.mrb[0].mxu0
      %v3009 = vadd.f32 %v2656, %v3008
      %3010 = vmatprep.mubr.bf16.mxu0 %v2470
      %3011 = vmatmul.mubr.bf16.gmra.mrb[0].mxu0 %v2469
      %v3012 = vpop.f32.mrb[0].mxu0
      %v3013 = vadd.f32 %v2660, %v3012
      %v3014 = vpop.f32.mrb[0].mxu0
      %v3015 = vadd.f32 %v2662, %v3014
      %v3016 = vpop.f32.mrb[0].mxu0
      %v3017 = vadd.f32 %v2664, %v3016
      %v3018 = vpop.f32.mrb[0].mxu0
      %v3019 = vadd.f32 %v2666, %v3018
      %3020 = vmatprep.mubr.bf16.mxu0 %v2472
      %3021 = vmatmul.mubr.bf16.gmra.mrb[0].mxu0 %v2471
      %v3022 = vpop.f32.mrb[0].mxu0
      %v3023 = vadd.f32 %v2670, %v3022
      %v3024 = vpop.f32.mrb[0].mxu0
      %v3025 = vadd.f32 %v2672, %v3024
      %v3026 = vpop.f32.mrb[0].mxu0
      %v3027 = vadd.f32 %v2674, %v3026
      %v3028 = vpop.f32.mrb[0].mxu0
      %v3029 = vadd.f32 %v2676, %v3028
      %3030 = vmatprep.mubr.bf16.mxu0 %v2474
      %3031 = vmatmul.mubr.bf16.gmra.mrb[0].mxu0 %v2473
      %v3032 = vpop.f32.mrb[0].mxu0
      %v3033 = vadd.f32 %v2680, %v3032
      %v3034 = vpop.f32.mrb[0].mxu0
      %v3035 = vadd.f32 %v2682, %v3034
      %v3036 = vpop.f32.mrb[0].mxu0
      %v3037 = vadd.f32 %v2684, %v3036
      %v3038 = vpop.f32.mrb[0].mxu0
      %v3039 = vadd.f32 %v2686, %v3038
      %3040 = vmatprep.mubr.bf16.mxu0 %v2476
      %3041 = vmatmul.mubr.bf16.gmra.mrb[0].mxu0 %v2475
      %v3042 = vpop.f32.mrb[0].mxu0
      %v3043 = vadd.f32 %v2690, %v3042
      %v3044 = vpop.f32.mrb[0].mxu0
      %v3045 = vadd.f32 %v2692, %v3044
      %v3046 = vpop.f32.mrb[0].mxu0
      %v3047 = vadd.f32 %v2694, %v3046
      %v3048 = vpop.f32.mrb[0].mxu0
      %v3049 = vadd.f32 %v2696, %v3048
      %3050 = vmatprep.mubr.bf16.mxu0 %v2478
      %3051 = vmatmul.mubr.bf16.gmra.mrb[0].mxu0 %v2477
      %v3052 = vpop.f32.mrb[0].mxu0
      %v3053 = vadd.f32 %v2700, %v3052
      %v3054 = vpop.f32.mrb[0].mxu0
      %v3055 = vadd.f32 %v2702, %v3054
      %v3056 = vpop.f32.mrb[0].mxu0
      %v3057 = vadd.f32 %v2704, %v3056
      %v3058 = vpop.f32.mrb[0].mxu0
      %v3059 = vadd.f32 %v2706, %v3058
      %3060 = vmatprep.mubr.bf16.mxu0 %v2480
      %3061 = vmatmul.mubr.bf16.gmra.mrb[0].mxu0 %v2479
      %v3062 = vpop.f32.mrb[0].mxu0
      %v3063 = vadd.f32 %v2710, %v3062
      %v3064 = vpop.f32.mrb[0].mxu0
      %v3065 = vadd.f32 %v2712, %v3064
      %v3066 = vpop.f32.mrb[0].mxu0
      %v3067 = vadd.f32 %v2714, %v3066
      %v3068 = vpop.f32.mrb[0].mxu0
      %v3069 = vadd.f32 %v2716, %v3068
      %3070 = vmatprep.mubr.bf16.mxu0 %v2482
      %3071 = vmatmul.mubr.bf16.gmra.mrb[0].mxu0 %v2481
      %v3072 = vpop.f32.mrb[0].mxu0
      %v3073 = vadd.f32 %v2720, %v3072
      %v3074 = vpop.f32.mrb[0].mxu0
      %v3075 = vadd.f32 %v2722, %v3074
      %v3076 = vpop.f32.mrb[0].mxu0
      %v3077 = vadd.f32 %v2724, %v3076
      %v3078 = vpop.f32.mrb[0].mxu0
      %v3079 = vadd.f32 %v2726, %v3078
      %3080 = vdwg.mxu0
      %s3081 = scalar_lea.vmem %s5, 4
      %v3082 = vld [vmem:[%s3081] ss:$8 sm:$0x3]
      %v3084 = vlaneseq
      %v3085 = vshrl.u32 %v3084, 7
      %v3086 = vsub.s32 0, %v3085
      %v3087 = vrot.slane %v3082, %v3086
      %v3088 = vlaneseq
      %v3089 = vshrl.u32 %v3088, 7
      %v3090 = vsub.s32 1, %v3089
      %v3091 = vrot.slane %v3082, %v3090
      %v3094 = vadd.f32 %v2923, %v3087
      %v3095 = vadd.f32 %v2925, %v3091
      %v3096 = vadd.f32 %v2927, %v3087
      %v3097 = vadd.f32 %v2929, %v3091
      %v3098 = vadd.f32 %v2933, %v3087
      %v3099 = vadd.f32 %v2935, %v3091
      %v3100 = vadd.f32 %v2937, %v3087
      %v3101 = vadd.f32 %v2939, %v3091
      %v3102 = vadd.f32 %v2943, %v3087
      %v3103 = vadd.f32 %v2945, %v3091
      %v3104 = vadd.f32 %v2947, %v3087
      %v3105 = vadd.f32 %v2949, %v3091
      %v3106 = vadd.f32 %v2953, %v3087
      %v3107 = vadd.f32 %v2955, %v3091
      %v3108 = vadd.f32 %v2957, %v3087
      %v3109 = vadd.f32 %v2959, %v3091
      %v3110 = vadd.f32 %v2963, %v3087
      %v3111 = vadd.f32 %v2965, %v3091
      %v3112 = vadd.f32 %v2967, %v3087
      %v3113 = vadd.f32 %v2969, %v3091
      %v3114 = vadd.f32 %v2973, %v3087
      %v3115 = vadd.f32 %v2975, %v3091
      %v3116 = vadd.f32 %v2977, %v3087
      %v3117 = vadd.f32 %v2979, %v3091
      %v3118 = vadd.f32 %v2983, %v3087
      %v3119 = vadd.f32 %v2985, %v3091
      %v3120 = vadd.f32 %v2987, %v3087
      %v3121 = vadd.f32 %v2989, %v3091
      %v3122 = vadd.f32 %v2993, %v3087
      %v3123 = vadd.f32 %v2995, %v3091
      %v3124 = vadd.f32 %v2997, %v3087
      %v3125 = vadd.f32 %v2999, %v3091
      %v3126 = vadd.f32 %v3003, %v3087
      %v3127 = vadd.f32 %v3005, %v3091
      %v3128 = vadd.f32 %v3007, %v3087
      %v3129 = vadd.f32 %v3009, %v3091
      %v3130 = vadd.f32 %v3013, %v3087
      %v3131 = vadd.f32 %v3015, %v3091
      %v3132 = vadd.f32 %v3017, %v3087
      %v3133 = vadd.f32 %v3019, %v3091
      %v3134 = vadd.f32 %v3023, %v3087
      %v3135 = vadd.f32 %v3025, %v3091
      %v3136 = vadd.f32 %v3027, %v3087
      %v3137 = vadd.f32 %v3029, %v3091
      %v3138 = vadd.f32 %v3033, %v3087
      %v3139 = vadd.f32 %v3035, %v3091
      %v3140 = vadd.f32 %v3037, %v3087
      %v3141 = vadd.f32 %v3039, %v3091
      %v3142 = vadd.f32 %v3043, %v3087
      %v3143 = vadd.f32 %v3045, %v3091
      %v3144 = vadd.f32 %v3047, %v3087
      %v3145 = vadd.f32 %v3049, %v3091
      %v3146 = vadd.f32 %v3053, %v3087
      %v3147 = vadd.f32 %v3055, %v3091
      %v3148 = vadd.f32 %v3057, %v3087
      %v3149 = vadd.f32 %v3059, %v3091
      %v3150 = vadd.f32 %v3063, %v3087
      %v3151 = vadd.f32 %v3065, %v3091
      %v3152 = vadd.f32 %v3067, %v3087
      %v3153 = vadd.f32 %v3069, %v3091
      %v3154 = vadd.f32 %v3073, %v3087
      %v3155 = vadd.f32 %v3075, %v3091
      %v3156 = vadd.f32 %v3077, %v3087
      %v3157 = vadd.f32 %v3079, %v3091
      %v3158 = vmax.f32 %v3094, 0.0
      %v3159 = vmax.f32 %v3095, 0.0
      %v3160 = vmax.f32 %v3096, 0.0
      %v3161 = vmax.f32 %v3097, 0.0
      %v3162 = vmax.f32 %v3098, 0.0
      %v3163 = vmax.f32 %v3099, 0.0
      %v3164 = vmax.f32 %v3100, 0.0
      %v3165 = vmax.f32 %v3101, 0.0
      %v3166 = vmax.f32 %v3102, 0.0
      %v3167 = vmax.f32 %v3103, 0.0
      %v3168 = vmax.f32 %v3104, 0.0
      %v3169 = vmax.f32 %v3105, 0.0
      %v3170 = vmax.f32 %v3106, 0.0
      %v3171 = vmax.f32 %v3107, 0.0
      %v3172 = vmax.f32 %v3108, 0.0
      %v3173 = vmax.f32 %v3109, 0.0
      %v3174 = vmax.f32 %v3110, 0.0
      %v3175 = vmax.f32 %v3111, 0.0
      %v3176 = vmax.f32 %v3112, 0.0
      %v3177 = vmax.f32 %v3113, 0.0
      %v3178 = vmax.f32 %v3114, 0.0
      %v3179 = vmax.f32 %v3115, 0.0
      %v3180 = vmax.f32 %v3116, 0.0
      %v3181 = vmax.f32 %v3117, 0.0
      %v3182 = vmax.f32 %v3118, 0.0
      %v3183 = vmax.f32 %v3119, 0.0
      %v3184 = vmax.f32 %v3120, 0.0
      %v3185 = vmax.f32 %v3121, 0.0
      %v3186 = vmax.f32 %v3122, 0.0
      %v3187 = vmax.f32 %v3123, 0.0
      %v3188 = vmax.f32 %v3124, 0.0
      %v3189 = vmax.f32 %v3125, 0.0
      %v3190 = vmax.f32 %v3126, 0.0
      %v3191 = vmax.f32 %v3127, 0.0
      %v3192 = vmax.f32 %v3128, 0.0
      %v3193 = vmax.f32 %v3129, 0.0
      %v3194 = vmax.f32 %v3130, 0.0
      %v3195 = vmax.f32 %v3131, 0.0
      %v3196 = vmax.f32 %v3132, 0.0
      %v3197 = vmax.f32 %v3133, 0.0
      %v3198 = vmax.f32 %v3134, 0.0
      %v3199 = vmax.f32 %v3135, 0.0
      %v3200 = vmax.f32 %v3136, 0.0
      %v3201 = vmax.f32 %v3137, 0.0
      %v3202 = vmax.f32 %v3138, 0.0
      %v3203 = vmax.f32 %v3139, 0.0
      %v3204 = vmax.f32 %v3140, 0.0
      %v3205 = vmax.f32 %v3141, 0.0
      %v3206 = vmax.f32 %v3142, 0.0
      %v3207 = vmax.f32 %v3143, 0.0
      %v3208 = vmax.f32 %v3144, 0.0
      %v3209 = vmax.f32 %v3145, 0.0
      %v3210 = vmax.f32 %v3146, 0.0
      %v3211 = vmax.f32 %v3147, 0.0
      %v3212 = vmax.f32 %v3148, 0.0
      %v3213 = vmax.f32 %v3149, 0.0
      %v3214 = vmax.f32 %v3150, 0.0
      %v3215 = vmax.f32 %v3151, 0.0
      %v3216 = vmax.f32 %v3152, 0.0
      %v3217 = vmax.f32 %v3153, 0.0
      %v3218 = vmax.f32 %v3154, 0.0
      %v3219 = vmax.f32 %v3155, 0.0
      %v3220 = vmax.f32 %v3156, 0.0
      %v3221 = vmax.f32 %v3157, 0.0
      %s3222 = scalar_lea.vmem %s4, 1024
      %v3223 = vld [vmem:[%s3222] sm:$0xff]
      %v3224 = vld [vmem:[%s3222 + $0x8] sm:$0xff]
      %v3225 = vld [vmem:[%s3222 + $0x10] sm:$0xff]
      %v3226 = vld [vmem:[%s3222 + $0x18] sm:$0xff]
      %v3227 = vld [vmem:[%s3222 + $0x20] sm:$0xff]
      %v3228 = vld [vmem:[%s3222 + $0x28] sm:$0xff]
      %v3229 = vld [vmem:[%s3222 + $0x30] sm:$0xff]
      %v3230 = vld [vmem:[%s3222 + $0x38] sm:$0xff]
      %v3231 = vld [vmem:[%s3222 + $0x40] sm:$0xff]
      %v3232 = vld [vmem:[%s3222 + $0x48] sm:$0xff]
      %v3233 = vld [vmem:[%s3222 + $0x50] sm:$0xff]
      %v3234 = vld [vmem:[%s3222 + $0x58] sm:$0xff]
      %v3235 = vld [vmem:[%s3222 + $0x60] sm:$0xff]
      %v3236 = vld [vmem:[%s3222 + $0x68] sm:$0xff]
      %v3237 = vld [vmem:[%s3222 + $0x70] sm:$0xff]
      %v3238 = vld [vmem:[%s3222 + $0x78] sm:$0xff]
      %v3239 = vld [vmem:[%s3222 + $0x80] sm:$0xff]
      %v3240 = vld [vmem:[%s3222 + $0x88] sm:$0xff]
      %v3241 = vld [vmem:[%s3222 + $0x90] sm:$0xff]
      %v3242 = vld [vmem:[%s3222 + $0x98] sm:$0xff]
      %v3243 = vld [vmem:[%s3222 + $0xa0] sm:$0xff]
      %v3244 = vld [vmem:[%s3222 + $0xa8] sm:$0xff]
      %v3245 = vld [vmem:[%s3222 + $0xb0] sm:$0xff]
      %v3246 = vld [vmem:[%s3222 + $0xb8] sm:$0xff]
      %v3247 = vld [vmem:[%s3222 + $0xc0] sm:$0xff]
      %v3248 = vld [vmem:[%s3222 + $0xc8] sm:$0xff]
      %v3249 = vld [vmem:[%s3222 + $0xd0] sm:$0xff]
      %v3250 = vld [vmem:[%s3222 + $0xd8] sm:$0xff]
      %v3251 = vld [vmem:[%s3222 + $0xe0] sm:$0xff]
      %v3252 = vld [vmem:[%s3222 + $0xe8] sm:$0xff]
      %v3253 = vld [vmem:[%s3222 + $0xf0] sm:$0xff]
      %v3254 = vld [vmem:[%s3222 + $0xf8] sm:$0xff]
      %v3255 = vpack.c.bf16 %v3160, %v3158
      %v3256 = vpack.c.bf16 %v3161, %v3159
      %v3257 = vpack.c.bf16 %v3164, %v3162
      %v3258 = vpack.c.bf16 %v3165, %v3163
      %v3259 = vpack.c.bf16 %v3168, %v3166
      %v3260 = vpack.c.bf16 %v3169, %v3167
      %v3261 = vpack.c.bf16 %v3172, %v3170
      %v3262 = vpack.c.bf16 %v3173, %v3171
      %v3263 = vpack.c.bf16 %v3176, %v3174
      %v3264 = vpack.c.bf16 %v3177, %v3175
      %v3265 = vpack.c.bf16 %v3180, %v3178
      %v3266 = vpack.c.bf16 %v3181, %v3179
      %v3267 = vpack.c.bf16 %v3184, %v3182
      %v3268 = vpack.c.bf16 %v3185, %v3183
      %v3269 = vpack.c.bf16 %v3188, %v3186
      %v3270 = vpack.c.bf16 %v3189, %v3187
      %v3271 = vpack.c.bf16 %v3192, %v3190
      %v3272 = vpack.c.bf16 %v3193, %v3191
      %v3273 = vpack.c.bf16 %v3196, %v3194
      %v3274 = vpack.c.bf16 %v3197, %v3195
      %v3275 = vpack.c.bf16 %v3200, %v3198
      %v3276 = vpack.c.bf16 %v3201, %v3199
      %v3277 = vpack.c.bf16 %v3204, %v3202
      %v3278 = vpack.c.bf16 %v3205, %v3203
      %v3279 = vpack.c.bf16 %v3208, %v3206
      %v3280 = vpack.c.bf16 %v3209, %v3207
      %v3281 = vpack.c.bf16 %v3212, %v3210
      %v3282 = vpack.c.bf16 %v3213, %v3211
      %v3283 = vpack.c.bf16 %v3216, %v3214
      %v3284 = vpack.c.bf16 %v3217, %v3215
      %v3285 = vpack.c.bf16 %v3220, %v3218
      %v3286 = vpack.c.bf16 %v3221, %v3219
      %s3287 = scalar_lea.vmem %s5, 5
      %v3288 = vld [vmem:[%s3287] ss:$8 sm:$0x3]
      %v3290 = vlaneseq
      %v3291 = vshrl.u32 %v3290, 7
      %v3292 = vsub.s32 0, %v3291
      %v3293 = vrot.slane %v3288, %v3292
      %v3294 = vlaneseq
      %v3295 = vshrl.u32 %v3294, 7
      %v3296 = vsub.s32 1, %v3295
      %v3297 = vrot.slane %v3288, %v3296
      %v3332 = vunpack.c.l.b16 %v3223
      %v3333 = vunpack.c.h.b16 %v3223
      %v3334 = vunpack.c.l.b16 %v3224
      %v3335 = vunpack.c.h.b16 %v3224
      %v3336 = vunpack.c.l.b16 %v3225
      %v3337 = vunpack.c.h.b16 %v3225
      %v3338 = vunpack.c.l.b16 %v3226
      %v3339 = vunpack.c.h.b16 %v3226
      %v3340 = vunpack.c.l.b16 %v3227
      %v3341 = vunpack.c.h.b16 %v3227
      %v3342 = vunpack.c.l.b16 %v3228
      %v3343 = vunpack.c.h.b16 %v3228
      %v3344 = vunpack.c.l.b16 %v3229
      %v3345 = vunpack.c.h.b16 %v3229
      %v3346 = vunpack.c.l.b16 %v3230
      %v3347 = vunpack.c.h.b16 %v3230
      %v3348 = vunpack.c.l.b16 %v3231
      %v3349 = vunpack.c.h.b16 %v3231
      %v3350 = vunpack.c.l.b16 %v3232
      %v3351 = vunpack.c.h.b16 %v3232
      %v3352 = vunpack.c.l.b16 %v3233
      %v3353 = vunpack.c.h.b16 %v3233
      %v3354 = vunpack.c.l.b16 %v3234
      %v3355 = vunpack.c.h.b16 %v3234
      %v3356 = vunpack.c.l.b16 %v3235
      %v3357 = vunpack.c.h.b16 %v3235
      %v3358 = vunpack.c.l.b16 %v3236
      %v3359 = vunpack.c.h.b16 %v3236
      %v3360 = vunpack.c.l.b16 %v3237
      %v3361 = vunpack.c.h.b16 %v3237
      %v3362 = vunpack.c.l.b16 %v3238
      %v3363 = vunpack.c.h.b16 %v3238
      %v3364 = vunpack.c.l.b16 %v3239
      %v3365 = vunpack.c.h.b16 %v3239
      %v3366 = vunpack.c.l.b16 %v3240
      %v3367 = vunpack.c.h.b16 %v3240
      %v3368 = vunpack.c.l.b16 %v3241
      %v3369 = vunpack.c.h.b16 %v3241
      %v3370 = vunpack.c.l.b16 %v3242
      %v3371 = vunpack.c.h.b16 %v3242
      %v3372 = vunpack.c.l.b16 %v3243
      %v3373 = vunpack.c.h.b16 %v3243
      %v3374 = vunpack.c.l.b16 %v3244
      %v3375 = vunpack.c.h.b16 %v3244
      %v3376 = vunpack.c.l.b16 %v3245
      %v3377 = vunpack.c.h.b16 %v3245
      %v3378 = vunpack.c.l.b16 %v3246
      %v3379 = vunpack.c.h.b16 %v3246
      %v3380 = vunpack.c.l.b16 %v3247
      %v3381 = vunpack.c.h.b16 %v3247
      %v3382 = vunpack.c.l.b16 %v3248
      %v3383 = vunpack.c.h.b16 %v3248
      %v3384 = vunpack.c.l.b16 %v3249
      %v3385 = vunpack.c.h.b16 %v3249
      %v3386 = vunpack.c.l.b16 %v3250
      %v3387 = vunpack.c.h.b16 %v3250
      %v3388 = vunpack.c.l.b16 %v3251
      %v3389 = vunpack.c.h.b16 %v3251
      %v3390 = vunpack.c.l.b16 %v3252
      %v3391 = vunpack.c.h.b16 %v3252
      %v3392 = vunpack.c.l.b16 %v3253
      %v3393 = vunpack.c.h.b16 %v3253
      %v3394 = vunpack.c.l.b16 %v3254
      %v3395 = vunpack.c.h.b16 %v3254
      %v3396 = vpack.c.b16 %v3334, %v3332
      %v3397 = vpack.c.b16 %v3335, %v3333
      %v3398 = vpack.c.b16 %v3338, %v3336
      %v3399 = vpack.c.b16 %v3339, %v3337
      %v3400 = vpack.c.b16 %v3342, %v3340
      %v3401 = vpack.c.b16 %v3343, %v3341
      %v3402 = vpack.c.b16 %v3346, %v3344
      %v3403 = vpack.c.b16 %v3347, %v3345
      %v3404 = vpack.c.b16 %v3350, %v3348
      %v3405 = vpack.c.b16 %v3351, %v3349
      %v3406 = vpack.c.b16 %v3354, %v3352
      %v3407 = vpack.c.b16 %v3355, %v3353
      %v3408 = vpack.c.b16 %v3358, %v3356
      %v3409 = vpack.c.b16 %v3359, %v3357
      %v3410 = vpack.c.b16 %v3362, %v3360
      %v3411 = vpack.c.b16 %v3363, %v3361
      %v3412 = vpack.c.b16 %v3366, %v3364
      %v3413 = vpack.c.b16 %v3367, %v3365
      %v3414 = vpack.c.b16 %v3370, %v3368
      %v3415 = vpack.c.b16 %v3371, %v3369
      %v3416 = vpack.c.b16 %v3374, %v3372
      %v3417 = vpack.c.b16 %v3375, %v3373
      %v3418 = vpack.c.b16 %v3378, %v3376
      %v3419 = vpack.c.b16 %v3379, %v3377
      %v3420 = vpack.c.b16 %v3382, %v3380
      %v3421 = vpack.c.b16 %v3383, %v3381
      %v3422 = vpack.c.b16 %v3386, %v3384
      %v3423 = vpack.c.b16 %v3387, %v3385
      %v3424 = vpack.c.b16 %v3390, %v3388
      %v3425 = vpack.c.b16 %v3391, %v3389
      %v3426 = vpack.c.b16 %v3394, %v3392
      %v3427 = vpack.c.b16 %v3395, %v3393
      %3460 = vmatprep.subr.bf16.mxu0 %v3397
      %3461 = vmatpush1.bf16.msra.mxu0 %v3396
      %3462 = vmatprep.subr.bf16.mxu0 %v3399
      %3463 = vmatpush1.bf16.msra.mxu0 %v3398
      %3464 = vmatprep.subr.bf16.mxu0 %v3401
      %3465 = vmatpush1.bf16.msra.mxu0 %v3400
      %3466 = vmatprep.subr.bf16.mxu0 %v3403
      %3467 = vmatpush1.bf16.msra.mxu0 %v3402
      %3468 = vmatprep.subr.bf16.mxu0 %v3405
      %3469 = vmatpush1.bf16.msra.mxu0 %v3404
      %3470 = vmatprep.subr.bf16.mxu0 %v3407
      %3471 = vmatpush1.bf16.msra.mxu0 %v3406
      %3472 = vmatprep.subr.bf16.mxu0 %v3409
      %3473 = vmatpush1.bf16.msra.mxu0 %v3408
      %3474 = vmatprep.subr.bf16.mxu0 %v3411
      %3475 = vmatpush1.bf16.msra.mxu0 %v3410
      %3476 = vmatprep.subr.bf16.mxu0 %v3413
      %3477 = vmatpush1.bf16.msra.mxu0 %v3412
      %3478 = vmatprep.subr.bf16.mxu0 %v3415
      %3479 = vmatpush1.bf16.msra.mxu0 %v3414
      %3480 = vmatprep.subr.bf16.mxu0 %v3417
      %3481 = vmatpush1.bf16.msra.mxu0 %v3416
      %3482 = vmatprep.subr.bf16.mxu0 %v3419
      %3483 = vmatpush1.bf16.msra.mxu0 %v3418
      %3484 = vmatprep.subr.bf16.mxu0 %v3421
      %3485 = vmatpush1.bf16.msra.mxu0 %v3420
      %3486 = vmatprep.subr.bf16.mxu0 %v3423
      %3487 = vmatpush1.bf16.msra.mxu0 %v3422
      %3488 = vmatprep.subr.bf16.mxu0 %v3425
      %3489 = vmatpush1.bf16.msra.mxu0 %v3424
      %3490 = vmatprep.subr.bf16.mxu0 %v3427
      %3491 = vmatpush1.bf16.msra.mxu0 %v3426
      %3492 = vmatprep.mubr.bf16.mxu0 %v3256
      %3493 = vmatmul.mubr.bf16.gmra.mrb[0].mxu0 %v3255
      %v3494 = vpop.f32.mrb[0].mxu0
      %v3495 = vadd.f32 %v3293, %v3494
      %v3496 = vpop.f32.mrb[0].mxu0
      %v3497 = vadd.f32 %v3297, %v3496
      %v3498 = vpop.f32.mrb[0].mxu0
      %v3499 = vadd.f32 %v3293, %v3498
      %v3500 = vpop.f32.mrb[0].mxu0
      %v3501 = vadd.f32 %v3297, %v3500
      %3502 = vmatprep.mubr.bf16.mxu0 %v3258
      %3503 = vmatmul.mubr.bf16.gmra.mrb[0].mxu0 %v3257
      %v3504 = vpop.f32.mrb[0].mxu0
      %v3505 = vadd.f32 %v3293, %v3504
      %v3506 = vpop.f32.mrb[0].mxu0
      %v3507 = vadd.f32 %v3297, %v3506
      %v3508 = vpop.f32.mrb[0].mxu0
      %v3509 = vadd.f32 %v3293, %v3508
      %v3510 = vpop.f32.mrb[0].mxu0
      %v3511 = vadd.f32 %v3297, %v3510
      %3512 = vmatprep.mubr.bf16.mxu0 %v3260
      %3513 = vmatmul.mubr.bf16.gmra.mrb[0].mxu0 %v3259
      %v3514 = vpop.f32.mrb[0].mxu0
      %v3515 = vadd.f32 %v3293, %v3514
      %v3516 = vpop.f32.mrb[0].mxu0
      %v3517 = vadd.f32 %v3297, %v3516
      %v3518 = vpop.f32.mrb[0].mxu0
      %v3519 = vadd.f32 %v3293, %v3518
      %v3520 = vpop.f32.mrb[0].mxu0
      %v3521 = vadd.f32 %v3297, %v3520
      %3522 = vmatprep.mubr.bf16.mxu0 %v3262
      %3523 = vmatmul.mubr.bf16.gmra.mrb[0].mxu0 %v3261
      %v3524 = vpop.f32.mrb[0].mxu0
      %v3525 = vadd.f32 %v3293, %v3524
      %v3526 = vpop.f32.mrb[0].mxu0
      %v3527 = vadd.f32 %v3297, %v3526
      %v3528 = vpop.f32.mrb[0].mxu0
      %v3529 = vadd.f32 %v3293, %v3528
      %v3530 = vpop.f32.mrb[0].mxu0
      %v3531 = vadd.f32 %v3297, %v3530
      %3532 = vmatprep.mubr.bf16.mxu0 %v3264
      %3533 = vmatmul.mubr.bf16.gmra.mrb[0].mxu0 %v3263
      %v3534 = vpop.f32.mrb[0].mxu0
      %v3535 = vadd.f32 %v3293, %v3534
      %v3536 = vpop.f32.mrb[0].mxu0
      %v3537 = vadd.f32 %v3297, %v3536
      %v3538 = vpop.f32.mrb[0].mxu0
      %v3539 = vadd.f32 %v3293, %v3538
      %v3540 = vpop.f32.mrb[0].mxu0
      %v3541 = vadd.f32 %v3297, %v3540
      %3542 = vmatprep.mubr.bf16.mxu0 %v3266
      %3543 = vmatmul.mubr.bf16.gmra.mrb[0].mxu0 %v3265
      %v3544 = vpop.f32.mrb[0].mxu0
      %v3545 = vadd.f32 %v3293, %v3544
      %v3546 = vpop.f32.mrb[0].mxu0
      %v3547 = vadd.f32 %v3297, %v3546
      %v3548 = vpop.f32.mrb[0].mxu0
      %v3549 = vadd.f32 %v3293, %v3548
      %v3550 = vpop.f32.mrb[0].mxu0
      %v3551 = vadd.f32 %v3297, %v3550
      %3552 = vmatprep.mubr.bf16.mxu0 %v3268
      %3553 = vmatmul.mubr.bf16.gmra.mrb[0].mxu0 %v3267
      %v3554 = vpop.f32.mrb[0].mxu0
      %v3555 = vadd.f32 %v3293, %v3554
      %v3556 = vpop.f32.mrb[0].mxu0
      %v3557 = vadd.f32 %v3297, %v3556
      %v3558 = vpop.f32.mrb[0].mxu0
      %v3559 = vadd.f32 %v3293, %v3558
      %v3560 = vpop.f32.mrb[0].mxu0
      %v3561 = vadd.f32 %v3297, %v3560
      %3562 = vmatprep.mubr.bf16.mxu0 %v3270
      %3563 = vmatmul.mubr.bf16.gmra.mrb[0].mxu0 %v3269
      %v3564 = vpop.f32.mrb[0].mxu0
      %v3565 = vadd.f32 %v3293, %v3564
      %v3566 = vpop.f32.mrb[0].mxu0
      %v3567 = vadd.f32 %v3297, %v3566
      %v3568 = vpop.f32.mrb[0].mxu0
      %v3569 = vadd.f32 %v3293, %v3568
      %v3570 = vpop.f32.mrb[0].mxu0
      %v3571 = vadd.f32 %v3297, %v3570
      %3572 = vmatprep.mubr.bf16.mxu0 %v3272
      %3573 = vmatmul.mubr.bf16.gmra.mrb[0].mxu0 %v3271
      %v3574 = vpop.f32.mrb[0].mxu0
      %v3575 = vadd.f32 %v3293, %v3574
      %v3576 = vpop.f32.mrb[0].mxu0
      %v3577 = vadd.f32 %v3297, %v3576
      %v3578 = vpop.f32.mrb[0].mxu0
      %v3579 = vadd.f32 %v3293, %v3578
      %v3580 = vpop.f32.mrb[0].mxu0
      %v3581 = vadd.f32 %v3297, %v3580
      %3582 = vmatprep.mubr.bf16.mxu0 %v3274
      %3583 = vmatmul.mubr.bf16.gmra.mrb[0].mxu0 %v3273
      %v3584 = vpop.f32.mrb[0].mxu0
      %v3585 = vadd.f32 %v3293, %v3584
      %v3586 = vpop.f32.mrb[0].mxu0
      %v3587 = vadd.f32 %v3297, %v3586
      %v3588 = vpop.f32.mrb[0].mxu0
      %v3589 = vadd.f32 %v3293, %v3588
      %v3590 = vpop.f32.mrb[0].mxu0
      %v3591 = vadd.f32 %v3297, %v3590
      %3592 = vmatprep.mubr.bf16.mxu0 %v3276
      %3593 = vmatmul.mubr.bf16.gmra.mrb[0].mxu0 %v3275
      %v3594 = vpop.f32.mrb[0].mxu0
      %v3595 = vadd.f32 %v3293, %v3594
      %v3596 = vpop.f32.mrb[0].mxu0
      %v3597 = vadd.f32 %v3297, %v3596
      %v3598 = vpop.f32.mrb[0].mxu0
      %v3599 = vadd.f32 %v3293, %v3598
      %v3600 = vpop.f32.mrb[0].mxu0
      %v3601 = vadd.f32 %v3297, %v3600
      %3602 = vmatprep.mubr.bf16.mxu0 %v3278
      %3603 = vmatmul.mubr.bf16.gmra.mrb[0].mxu0 %v3277
      %v3604 = vpop.f32.mrb[0].mxu0
      %v3605 = vadd.f32 %v3293, %v3604
      %v3606 = vpop.f32.mrb[0].mxu0
      %v3607 = vadd.f32 %v3297, %v3606
      %v3608 = vpop.f32.mrb[0].mxu0
      %v3609 = vadd.f32 %v3293, %v3608
      %v3610 = vpop.f32.mrb[0].mxu0
      %v3611 = vadd.f32 %v3297, %v3610
      %3612 = vmatprep.mubr.bf16.mxu0 %v3280
      %3613 = vmatmul.mubr.bf16.gmra.mrb[0].mxu0 %v3279
      %v3614 = vpop.f32.mrb[0].mxu0
      %v3615 = vadd.f32 %v3293, %v3614
      %v3616 = vpop.f32.mrb[0].mxu0
      %v3617 = vadd.f32 %v3297, %v3616
      %v3618 = vpop.f32.mrb[0].mxu0
      %v3619 = vadd.f32 %v3293, %v3618
      %v3620 = vpop.f32.mrb[0].mxu0
      %v3621 = vadd.f32 %v3297, %v3620
      %3622 = vmatprep.mubr.bf16.mxu0 %v3282
      %3623 = vmatmul.mubr.bf16.gmra.mrb[0].mxu0 %v3281
      %v3624 = vpop.f32.mrb[0].mxu0
      %v3625 = vadd.f32 %v3293, %v3624
      %v3626 = vpop.f32.mrb[0].mxu0
      %v3627 = vadd.f32 %v3297, %v3626
      %v3628 = vpop.f32.mrb[0].mxu0
      %v3629 = vadd.f32 %v3293, %v3628
      %v3630 = vpop.f32.mrb[0].mxu0
      %v3631 = vadd.f32 %v3297, %v3630
      %3632 = vmatprep.mubr.bf16.mxu0 %v3284
      %3633 = vmatmul.mubr.bf16.gmra.mrb[0].mxu0 %v3283
      %v3634 = vpop.f32.mrb[0].mxu0
      %v3635 = vadd.f32 %v3293, %v3634
      %v3636 = vpop.f32.mrb[0].mxu0
      %v3637 = vadd.f32 %v3297, %v3636
      %v3638 = vpop.f32.mrb[0].mxu0
      %v3639 = vadd.f32 %v3293, %v3638
      %v3640 = vpop.f32.mrb[0].mxu0
      %v3641 = vadd.f32 %v3297, %v3640
      %3642 = vmatprep.mubr.bf16.mxu0 %v3286
      %3643 = vmatmul.mubr.bf16.gmra.mrb[0].mxu0 %v3285
      %v3644 = vpop.f32.mrb[0].mxu0
      %v3645 = vadd.f32 %v3293, %v3644
      %v3646 = vpop.f32.mrb[0].mxu0
      %v3647 = vadd.f32 %v3297, %v3646
      %v3648 = vpop.f32.mrb[0].mxu0
      %v3649 = vadd.f32 %v3293, %v3648
      %v3650 = vpop.f32.mrb[0].mxu0
      %v3651 = vadd.f32 %v3297, %v3650
      %3652 = vdwg.mxu0
      %v3653 = vmax.f32 %v3495, 0.0
      %v3654 = vmax.f32 %v3497, 0.0
      %v3655 = vmax.f32 %v3499, 0.0
      %v3656 = vmax.f32 %v3501, 0.0
      %v3657 = vmax.f32 %v3505, 0.0
      %v3658 = vmax.f32 %v3507, 0.0
      %v3659 = vmax.f32 %v3509, 0.0
      %v3660 = vmax.f32 %v3511, 0.0
      %v3661 = vmax.f32 %v3515, 0.0
      %v3662 = vmax.f32 %v3517, 0.0
      %v3663 = vmax.f32 %v3519, 0.0
      %v3664 = vmax.f32 %v3521, 0.0
      %v3665 = vmax.f32 %v3525, 0.0
      %v3666 = vmax.f32 %v3527, 0.0
      %v3667 = vmax.f32 %v3529, 0.0
      %v3668 = vmax.f32 %v3531, 0.0
      %v3669 = vmax.f32 %v3535, 0.0
      %v3670 = vmax.f32 %v3537, 0.0
      %v3671 = vmax.f32 %v3539, 0.0
      %v3672 = vmax.f32 %v3541, 0.0
      %v3673 = vmax.f32 %v3545, 0.0
      %v3674 = vmax.f32 %v3547, 0.0
      %v3675 = vmax.f32 %v3549, 0.0
      %v3676 = vmax.f32 %v3551, 0.0
      %v3677 = vmax.f32 %v3555, 0.0
      %v3678 = vmax.f32 %v3557, 0.0
      %v3679 = vmax.f32 %v3559, 0.0
      %v3680 = vmax.f32 %v3561, 0.0
      %v3681 = vmax.f32 %v3565, 0.0
      %v3682 = vmax.f32 %v3567, 0.0
      %v3683 = vmax.f32 %v3569, 0.0
      %v3684 = vmax.f32 %v3571, 0.0
      %v3685 = vmax.f32 %v3575, 0.0
      %v3686 = vmax.f32 %v3577, 0.0
      %v3687 = vmax.f32 %v3579, 0.0
      %v3688 = vmax.f32 %v3581, 0.0
      %v3689 = vmax.f32 %v3585, 0.0
      %v3690 = vmax.f32 %v3587, 0.0
      %v3691 = vmax.f32 %v3589, 0.0
      %v3692 = vmax.f32 %v3591, 0.0
      %v3693 = vmax.f32 %v3595, 0.0
      %v3694 = vmax.f32 %v3597, 0.0
      %v3695 = vmax.f32 %v3599, 0.0
      %v3696 = vmax.f32 %v3601, 0.0
      %v3697 = vmax.f32 %v3605, 0.0
      %v3698 = vmax.f32 %v3607, 0.0
      %v3699 = vmax.f32 %v3609, 0.0
      %v3700 = vmax.f32 %v3611, 0.0
      %v3701 = vmax.f32 %v3615, 0.0
      %v3702 = vmax.f32 %v3617, 0.0
      %v3703 = vmax.f32 %v3619, 0.0
      %v3704 = vmax.f32 %v3621, 0.0
      %v3705 = vmax.f32 %v3625, 0.0
      %v3706 = vmax.f32 %v3627, 0.0
      %v3707 = vmax.f32 %v3629, 0.0
      %v3708 = vmax.f32 %v3631, 0.0
      %v3709 = vmax.f32 %v3635, 0.0
      %v3710 = vmax.f32 %v3637, 0.0
      %v3711 = vmax.f32 %v3639, 0.0
      %v3712 = vmax.f32 %v3641, 0.0
      %v3713 = vmax.f32 %v3645, 0.0
      %v3714 = vmax.f32 %v3647, 0.0
      %v3715 = vmax.f32 %v3649, 0.0
      %v3716 = vmax.f32 %v3651, 0.0
      %s3717 = scalar_lea.vmem %s4, 1280
      %v3718 = vld [vmem:[%s3717] sm:$0xff]
      %v3719 = vld [vmem:[%s3717 + $0x8] sm:$0xff]
      %v3720 = vld [vmem:[%s3717 + $0x10] sm:$0xff]
      %v3721 = vld [vmem:[%s3717 + $0x18] sm:$0xff]
      %v3722 = vld [vmem:[%s3717 + $0x20] sm:$0xff]
      %v3723 = vld [vmem:[%s3717 + $0x28] sm:$0xff]
      %v3724 = vld [vmem:[%s3717 + $0x30] sm:$0xff]
      %v3725 = vld [vmem:[%s3717 + $0x38] sm:$0xff]
      %v3726 = vld [vmem:[%s3717 + $0x40] sm:$0xff]
      %v3727 = vld [vmem:[%s3717 + $0x48] sm:$0xff]
      %v3728 = vld [vmem:[%s3717 + $0x50] sm:$0xff]
      %v3729 = vld [vmem:[%s3717 + $0x58] sm:$0xff]
      %v3730 = vld [vmem:[%s3717 + $0x60] sm:$0xff]
      %v3731 = vld [vmem:[%s3717 + $0x68] sm:$0xff]
      %v3732 = vld [vmem:[%s3717 + $0x70] sm:$0xff]
      %v3733 = vld [vmem:[%s3717 + $0x78] sm:$0xff]
      %v3734 = vld [vmem:[%s3717 + $0x80] sm:$0xff]
      %v3735 = vld [vmem:[%s3717 + $0x88] sm:$0xff]
      %v3736 = vld [vmem:[%s3717 + $0x90] sm:$0xff]
      %v3737 = vld [vmem:[%s3717 + $0x98] sm:$0xff]
      %v3738 = vld [vmem:[%s3717 + $0xa0] sm:$0xff]
      %v3739 = vld [vmem:[%s3717 + $0xa8] sm:$0xff]
      %v3740 = vld [vmem:[%s3717 + $0xb0] sm:$0xff]
      %v3741 = vld [vmem:[%s3717 + $0xb8] sm:$0xff]
      %v3742 = vld [vmem:[%s3717 + $0xc0] sm:$0xff]
      %v3743 = vld [vmem:[%s3717 + $0xc8] sm:$0xff]
      %v3744 = vld [vmem:[%s3717 + $0xd0] sm:$0xff]
      %v3745 = vld [vmem:[%s3717 + $0xd8] sm:$0xff]
      %v3746 = vld [vmem:[%s3717 + $0xe0] sm:$0xff]
      %v3747 = vld [vmem:[%s3717 + $0xe8] sm:$0xff]
      %v3748 = vld [vmem:[%s3717 + $0xf0] sm:$0xff]
      %v3749 = vld [vmem:[%s3717 + $0xf8] sm:$0xff]
      %v3750 = vpack.c.bf16 %v3655, %v3653
      %v3751 = vpack.c.bf16 %v3656, %v3654
      %v3752 = vpack.c.bf16 %v3659, %v3657
      %v3753 = vpack.c.bf16 %v3660, %v3658
      %v3754 = vpack.c.bf16 %v3663, %v3661
      %v3755 = vpack.c.bf16 %v3664, %v3662
      %v3756 = vpack.c.bf16 %v3667, %v3665
      %v3757 = vpack.c.bf16 %v3668, %v3666
      %v3758 = vpack.c.bf16 %v3671, %v3669
      %v3759 = vpack.c.bf16 %v3672, %v3670
      %v3760 = vpack.c.bf16 %v3675, %v3673
      %v3761 = vpack.c.bf16 %v3676, %v3674
      %v3762 = vpack.c.bf16 %v3679, %v3677
      %v3763 = vpack.c.bf16 %v3680, %v3678
      %v3764 = vpack.c.bf16 %v3683, %v3681
      %v3765 = vpack.c.bf16 %v3684, %v3682
      %v3766 = vpack.c.bf16 %v3687, %v3685
      %v3767 = vpack.c.bf16 %v3688, %v3686
      %v3768 = vpack.c.bf16 %v3691, %v3689
      %v3769 = vpack.c.bf16 %v3692, %v3690
      %v3770 = vpack.c.bf16 %v3695, %v3693
      %v3771 = vpack.c.bf16 %v3696, %v3694
      %v3772 = vpack.c.bf16 %v3699, %v3697
      %v3773 = vpack.c.bf16 %v3700, %v3698
      %v3774 = vpack.c.bf16 %v3703, %v3701
      %v3775 = vpack.c.bf16 %v3704, %v3702
      %v3776 = vpack.c.bf16 %v3707, %v3705
      %v3777 = vpack.c.bf16 %v3708, %v3706
      %v3778 = vpack.c.bf16 %v3711, %v3709
      %v3779 = vpack.c.bf16 %v3712, %v3710
      %v3780 = vpack.c.bf16 %v3715, %v3713
      %v3781 = vpack.c.bf16 %v3716, %v3714
      %s3782 = scalar_lea.vmem %s5, 6
      %v3783 = vld [vmem:[%s3782] ss:$8 sm:$0x3]
      %v3785 = vlaneseq
      %v3786 = vshrl.u32 %v3785, 7
      %v3787 = vsub.s32 0, %v3786
      %v3788 = vrot.slane %v3783, %v3787
      %v3789 = vlaneseq
      %v3790 = vshrl.u32 %v3789, 7
      %v3791 = vsub.s32 1, %v3790
      %v3792 = vrot.slane %v3783, %v3791
      %v3827 = vunpack.c.l.b16 %v3718
      %v3828 = vunpack.c.h.b16 %v3718
      %v3829 = vunpack.c.l.b16 %v3719
      %v3830 = vunpack.c.h.b16 %v3719
      %v3831 = vunpack.c.l.b16 %v3720
      %v3832 = vunpack.c.h.b16 %v3720
      %v3833 = vunpack.c.l.b16 %v3721
      %v3834 = vunpack.c.h.b16 %v3721
      %v3835 = vunpack.c.l.b16 %v3722
      %v3836 = vunpack.c.h.b16 %v3722
      %v3837 = vunpack.c.l.b16 %v3723
      %v3838 = vunpack.c.h.b16 %v3723
      %v3839 = vunpack.c.l.b16 %v3724
      %v3840 = vunpack.c.h.b16 %v3724
      %v3841 = vunpack.c.l.b16 %v3725
      %v3842 = vunpack.c.h.b16 %v3725
      %v3843 = vunpack.c.l.b16 %v3726
      %v3844 = vunpack.c.h.b16 %v3726
      %v3845 = vunpack.c.l.b16 %v3727
      %v3846 = vunpack.c.h.b16 %v3727
      %v3847 = vunpack.c.l.b16 %v3728
      %v3848 = vunpack.c.h.b16 %v3728
      %v3849 = vunpack.c.l.b16 %v3729
      %v3850 = vunpack.c.h.b16 %v3729
      %v3851 = vunpack.c.l.b16 %v3730
      %v3852 = vunpack.c.h.b16 %v3730
      %v3853 = vunpack.c.l.b16 %v3731
      %v3854 = vunpack.c.h.b16 %v3731
      %v3855 = vunpack.c.l.b16 %v3732
      %v3856 = vunpack.c.h.b16 %v3732
      %v3857 = vunpack.c.l.b16 %v3733
      %v3858 = vunpack.c.h.b16 %v3733
      %v3859 = vunpack.c.l.b16 %v3734
      %v3860 = vunpack.c.h.b16 %v3734
      %v3861 = vunpack.c.l.b16 %v3735
      %v3862 = vunpack.c.h.b16 %v3735
      %v3863 = vunpack.c.l.b16 %v3736
      %v3864 = vunpack.c.h.b16 %v3736
      %v3865 = vunpack.c.l.b16 %v3737
      %v3866 = vunpack.c.h.b16 %v3737
      %v3867 = vunpack.c.l.b16 %v3738
      %v3868 = vunpack.c.h.b16 %v3738
      %v3869 = vunpack.c.l.b16 %v3739
      %v3870 = vunpack.c.h.b16 %v3739
      %v3871 = vunpack.c.l.b16 %v3740
      %v3872 = vunpack.c.h.b16 %v3740
      %v3873 = vunpack.c.l.b16 %v3741
      %v3874 = vunpack.c.h.b16 %v3741
      %v3875 = vunpack.c.l.b16 %v3742
      %v3876 = vunpack.c.h.b16 %v3742
      %v3877 = vunpack.c.l.b16 %v3743
      %v3878 = vunpack.c.h.b16 %v3743
      %v3879 = vunpack.c.l.b16 %v3744
      %v3880 = vunpack.c.h.b16 %v3744
      %v3881 = vunpack.c.l.b16 %v3745
      %v3882 = vunpack.c.h.b16 %v3745
      %v3883 = vunpack.c.l.b16 %v3746
      %v3884 = vunpack.c.h.b16 %v3746
      %v3885 = vunpack.c.l.b16 %v3747
      %v3886 = vunpack.c.h.b16 %v3747
      %v3887 = vunpack.c.l.b16 %v3748
      %v3888 = vunpack.c.h.b16 %v3748
      %v3889 = vunpack.c.l.b16 %v3749
      %v3890 = vunpack.c.h.b16 %v3749
      %v3891 = vpack.c.b16 %v3829, %v3827
      %v3892 = vpack.c.b16 %v3830, %v3828
      %v3893 = vpack.c.b16 %v3833, %v3831
      %v3894 = vpack.c.b16 %v3834, %v3832
      %v3895 = vpack.c.b16 %v3837, %v3835
      %v3896 = vpack.c.b16 %v3838, %v3836
      %v3897 = vpack.c.b16 %v3841, %v3839
      %v3898 = vpack.c.b16 %v3842, %v3840
      %v3899 = vpack.c.b16 %v3845, %v3843
      %v3900 = vpack.c.b16 %v3846, %v3844
      %v3901 = vpack.c.b16 %v3849, %v3847
      %v3902 = vpack.c.b16 %v3850, %v3848
      %v3903 = vpack.c.b16 %v3853, %v3851
      %v3904 = vpack.c.b16 %v3854, %v3852
      %v3905 = vpack.c.b16 %v3857, %v3855
      %v3906 = vpack.c.b16 %v3858, %v3856
      %v3907 = vpack.c.b16 %v3861, %v3859
      %v3908 = vpack.c.b16 %v3862, %v3860
      %v3909 = vpack.c.b16 %v3865, %v3863
      %v3910 = vpack.c.b16 %v3866, %v3864
      %v3911 = vpack.c.b16 %v3869, %v3867
      %v3912 = vpack.c.b16 %v3870, %v3868
      %v3913 = vpack.c.b16 %v3873, %v3871
      %v3914 = vpack.c.b16 %v3874, %v3872
      %v3915 = vpack.c.b16 %v3877, %v3875
      %v3916 = vpack.c.b16 %v3878, %v3876
      %v3917 = vpack.c.b16 %v3881, %v3879
      %v3918 = vpack.c.b16 %v3882, %v3880
      %v3919 = vpack.c.b16 %v3885, %v3883
      %v3920 = vpack.c.b16 %v3886, %v3884
      %v3921 = vpack.c.b16 %v3889, %v3887
      %v3922 = vpack.c.b16 %v3890, %v3888
      %3955 = vmatprep.subr.bf16.mxu0 %v3892
      %3956 = vmatpush1.bf16.msra.mxu0 %v3891
      %3957 = vmatprep.subr.bf16.mxu0 %v3894
      %3958 = vmatpush1.bf16.msra.mxu0 %v3893
      %3959 = vmatprep.subr.bf16.mxu0 %v3896
      %3960 = vmatpush1.bf16.msra.mxu0 %v3895
      %3961 = vmatprep.subr.bf16.mxu0 %v3898
      %3962 = vmatpush1.bf16.msra.mxu0 %v3897
      %3963 = vmatprep.subr.bf16.mxu0 %v3900
      %3964 = vmatpush1.bf16.msra.mxu0 %v3899
      %3965 = vmatprep.subr.bf16.mxu0 %v3902
      %3966 = vmatpush1.bf16.msra.mxu0 %v3901
      %3967 = vmatprep.subr.bf16.mxu0 %v3904
      %3968 = vmatpush1.bf16.msra.mxu0 %v3903
      %3969 = vmatprep.subr.bf16.mxu0 %v3906
      %3970 = vmatpush1.bf16.msra.mxu0 %v3905
      %3971 = vmatprep.subr.bf16.mxu0 %v3908
      %3972 = vmatpush1.bf16.msra.mxu0 %v3907
      %3973 = vmatprep.subr.bf16.mxu0 %v3910
      %3974 = vmatpush1.bf16.msra.mxu0 %v3909
      %3975 = vmatprep.subr.bf16.mxu0 %v3912
      %3976 = vmatpush1.bf16.msra.mxu0 %v3911
      %3977 = vmatprep.subr.bf16.mxu0 %v3914
      %3978 = vmatpush1.bf16.msra.mxu0 %v3913
      %3979 = vmatprep.subr.bf16.mxu0 %v3916
      %3980 = vmatpush1.bf16.msra.mxu0 %v3915
      %3981 = vmatprep.subr.bf16.mxu0 %v3918
      %3982 = vmatpush1.bf16.msra.mxu0 %v3917
      %3983 = vmatprep.subr.bf16.mxu0 %v3920
      %3984 = vmatpush1.bf16.msra.mxu0 %v3919
      %3985 = vmatprep.subr.bf16.mxu0 %v3922
      %3986 = vmatpush1.bf16.msra.mxu0 %v3921
      %3987 = vmatprep.mubr.bf16.mxu0 %v3751
      %3988 = vmatmul.mubr.bf16.gmra.mrb[0].mxu0 %v3750
      %v3989 = vpop.f32.mrb[0].mxu0
      %v3990 = vadd.f32 %v3788, %v3989
      %v3991 = vpop.f32.mrb[0].mxu0
      %v3992 = vadd.f32 %v3792, %v3991
      %v3993 = vpop.f32.mrb[0].mxu0
      %v3994 = vadd.f32 %v3788, %v3993
      %v3995 = vpop.f32.mrb[0].mxu0
      %v3996 = vadd.f32 %v3792, %v3995
      %3997 = vmatprep.mubr.bf16.mxu0 %v3753
      %3998 = vmatmul.mubr.bf16.gmra.mrb[0].mxu0 %v3752
      %v3999 = vpop.f32.mrb[0].mxu0
      %v4000 = vadd.f32 %v3788, %v3999
      %v4001 = vpop.f32.mrb[0].mxu0
      %v4002 = vadd.f32 %v3792, %v4001
      %v4003 = vpop.f32.mrb[0].mxu0
      %v4004 = vadd.f32 %v3788, %v4003
      %v4005 = vpop.f32.mrb[0].mxu0
      %v4006 = vadd.f32 %v3792, %v4005
      %4007 = vmatprep.mubr.bf16.mxu0 %v3755
      %4008 = vmatmul.mubr.bf16.gmra.mrb[0].mxu0 %v3754
      %v4009 = vpop.f32.mrb[0].mxu0
      %v4010 = vadd.f32 %v3788, %v4009
      %v4011 = vpop.f32.mrb[0].mxu0
      %v4012 = vadd.f32 %v3792, %v4011
      %v4013 = vpop.f32.mrb[0].mxu0
      %v4014 = vadd.f32 %v3788, %v4013
      %v4015 = vpop.f32.mrb[0].mxu0
      %v4016 = vadd.f32 %v3792, %v4015
      %4017 = vmatprep.mubr.bf16.mxu0 %v3757
      %4018 = vmatmul.mubr.bf16.gmra.mrb[0].mxu0 %v3756
      %v4019 = vpop.f32.mrb[0].mxu0
      %v4020 = vadd.f32 %v3788, %v4019
      %v4021 = vpop.f32.mrb[0].mxu0
      %v4022 = vadd.f32 %v3792, %v4021
      %v4023 = vpop.f32.mrb[0].mxu0
      %v4024 = vadd.f32 %v3788, %v4023
      %v4025 = vpop.f32.mrb[0].mxu0
      %v4026 = vadd.f32 %v3792, %v4025
      %4027 = vmatprep.mubr.bf16.mxu0 %v3759
      %4028 = vmatmul.mubr.bf16.gmra.mrb[0].mxu0 %v3758
      %v4029 = vpop.f32.mrb[0].mxu0
      %v4030 = vadd.f32 %v3788, %v4029
      %v4031 = vpop.f32.mrb[0].mxu0
      %v4032 = vadd.f32 %v3792, %v4031
      %v4033 = vpop.f32.mrb[0].mxu0
      %v4034 = vadd.f32 %v3788, %v4033
      %v4035 = vpop.f32.mrb[0].mxu0
      %v4036 = vadd.f32 %v3792, %v4035
      %4037 = vmatprep.mubr.bf16.mxu0 %v3761
      %4038 = vmatmul.mubr.bf16.gmra.mrb[0].mxu0 %v3760
      %v4039 = vpop.f32.mrb[0].mxu0
      %v4040 = vadd.f32 %v3788, %v4039
      %v4041 = vpop.f32.mrb[0].mxu0
      %v4042 = vadd.f32 %v3792, %v4041
      %v4043 = vpop.f32.mrb[0].mxu0
      %v4044 = vadd.f32 %v3788, %v4043
      %v4045 = vpop.f32.mrb[0].mxu0
      %v4046 = vadd.f32 %v3792, %v4045
      %4047 = vmatprep.mubr.bf16.mxu0 %v3763
      %4048 = vmatmul.mubr.bf16.gmra.mrb[0].mxu0 %v3762
      %v4049 = vpop.f32.mrb[0].mxu0
      %v4050 = vadd.f32 %v3788, %v4049
      %v4051 = vpop.f32.mrb[0].mxu0
      %v4052 = vadd.f32 %v3792, %v4051
      %v4053 = vpop.f32.mrb[0].mxu0
      %v4054 = vadd.f32 %v3788, %v4053
      %v4055 = vpop.f32.mrb[0].mxu0
      %v4056 = vadd.f32 %v3792, %v4055
      %4057 = vmatprep.mubr.bf16.mxu0 %v3765
      %4058 = vmatmul.mubr.bf16.gmra.mrb[0].mxu0 %v3764
      %v4059 = vpop.f32.mrb[0].mxu0
      %v4060 = vadd.f32 %v3788, %v4059
      %v4061 = vpop.f32.mrb[0].mxu0
      %v4062 = vadd.f32 %v3792, %v4061
      %v4063 = vpop.f32.mrb[0].mxu0
      %v4064 = vadd.f32 %v3788, %v4063
      %v4065 = vpop.f32.mrb[0].mxu0
      %v4066 = vadd.f32 %v3792, %v4065
      %4067 = vmatprep.mubr.bf16.mxu0 %v3767
      %4068 = vmatmul.mubr.bf16.gmra.mrb[0].mxu0 %v3766
      %v4069 = vpop.f32.mrb[0].mxu0
      %v4070 = vadd.f32 %v3788, %v4069
      %v4071 = vpop.f32.mrb[0].mxu0
      %v4072 = vadd.f32 %v3792, %v4071
      %v4073 = vpop.f32.mrb[0].mxu0
      %v4074 = vadd.f32 %v3788, %v4073
      %v4075 = vpop.f32.mrb[0].mxu0
      %v4076 = vadd.f32 %v3792, %v4075
      %4077 = vmatprep.mubr.bf16.mxu0 %v3769
      %4078 = vmatmul.mubr.bf16.gmra.mrb[0].mxu0 %v3768
      %v4079 = vpop.f32.mrb[0].mxu0
      %v4080 = vadd.f32 %v3788, %v4079
      %v4081 = vpop.f32.mrb[0].mxu0
      %v4082 = vadd.f32 %v3792, %v4081
      %v4083 = vpop.f32.mrb[0].mxu0
      %v4084 = vadd.f32 %v3788, %v4083
      %v4085 = vpop.f32.mrb[0].mxu0
      %v4086 = vadd.f32 %v3792, %v4085
      %4087 = vmatprep.mubr.bf16.mxu0 %v3771
      %4088 = vmatmul.mubr.bf16.gmra.mrb[0].mxu0 %v3770
      %v4089 = vpop.f32.mrb[0].mxu0
      %v4090 = vadd.f32 %v3788, %v4089
      %v4091 = vpop.f32.mrb[0].mxu0
      %v4092 = vadd.f32 %v3792, %v4091
      %v4093 = vpop.f32.mrb[0].mxu0
      %v4094 = vadd.f32 %v3788, %v4093
      %v4095 = vpop.f32.mrb[0].mxu0
      %v4096 = vadd.f32 %v3792, %v4095
      %4097 = vmatprep.mubr.bf16.mxu0 %v3773
      %4098 = vmatmul.mubr.bf16.gmra.mrb[0].mxu0 %v3772
      %v4099 = vpop.f32.mrb[0].mxu0
      %v4100 = vadd.f32 %v3788, %v4099
      %v4101 = vpop.f32.mrb[0].mxu0
      %v4102 = vadd.f32 %v3792, %v4101
      %v4103 = vpop.f32.mrb[0].mxu0
      %v4104 = vadd.f32 %v3788, %v4103
      %v4105 = vpop.f32.mrb[0].mxu0
      %v4106 = vadd.f32 %v3792, %v4105
      %4107 = vmatprep.mubr.bf16.mxu0 %v3775
      %4108 = vmatmul.mubr.bf16.gmra.mrb[0].mxu0 %v3774
      %v4109 = vpop.f32.mrb[0].mxu0
      %v4110 = vadd.f32 %v3788, %v4109
      %v4111 = vpop.f32.mrb[0].mxu0
      %v4112 = vadd.f32 %v3792, %v4111
      %v4113 = vpop.f32.mrb[0].mxu0
      %v4114 = vadd.f32 %v3788, %v4113
      %v4115 = vpop.f32.mrb[0].mxu0
      %v4116 = vadd.f32 %v3792, %v4115
      %4117 = vmatprep.mubr.bf16.mxu0 %v3777
      %4118 = vmatmul.mubr.bf16.gmra.mrb[0].mxu0 %v3776
      %v4119 = vpop.f32.mrb[0].mxu0
      %v4120 = vadd.f32 %v3788, %v4119
      %v4121 = vpop.f32.mrb[0].mxu0
      %v4122 = vadd.f32 %v3792, %v4121
      %v4123 = vpop.f32.mrb[0].mxu0
      %v4124 = vadd.f32 %v3788, %v4123
      %v4125 = vpop.f32.mrb[0].mxu0
      %v4126 = vadd.f32 %v3792, %v4125
      %4127 = vmatprep.mubr.bf16.mxu0 %v3779
      %4128 = vmatmul.mubr.bf16.gmra.mrb[0].mxu0 %v3778
      %v4129 = vpop.f32.mrb[0].mxu0
      %v4130 = vadd.f32 %v3788, %v4129
      %v4131 = vpop.f32.mrb[0].mxu0
      %v4132 = vadd.f32 %v3792, %v4131
      %v4133 = vpop.f32.mrb[0].mxu0
      %v4134 = vadd.f32 %v3788, %v4133
      %v4135 = vpop.f32.mrb[0].mxu0
      %v4136 = vadd.f32 %v3792, %v4135
      %4137 = vmatprep.mubr.bf16.mxu0 %v3781
      %4138 = vmatmul.mubr.bf16.gmra.mrb[0].mxu0 %v3780
      %v4139 = vpop.f32.mrb[0].mxu0
      %v4140 = vadd.f32 %v3788, %v4139
      %v4141 = vpop.f32.mrb[0].mxu0
      %v4142 = vadd.f32 %v3792, %v4141
      %v4143 = vpop.f32.mrb[0].mxu0
      %v4144 = vadd.f32 %v3788, %v4143
      %v4145 = vpop.f32.mrb[0].mxu0
      %v4146 = vadd.f32 %v3792, %v4145
      %4147 = vdwg.mxu0
      %v4148 = vmax.f32 %v3990, 0.0
      %v4149 = vmax.f32 %v3992, 0.0
      %v4150 = vmax.f32 %v3994, 0.0
      %v4151 = vmax.f32 %v3996, 0.0
      %v4152 = vmax.f32 %v4000, 0.0
      %v4153 = vmax.f32 %v4002, 0.0
      %v4154 = vmax.f32 %v4004, 0.0
      %v4155 = vmax.f32 %v4006, 0.0
      %v4156 = vmax.f32 %v4010, 0.0
      %v4157 = vmax.f32 %v4012, 0.0
      %v4158 = vmax.f32 %v4014, 0.0
      %v4159 = vmax.f32 %v4016, 0.0
      %v4160 = vmax.f32 %v4020, 0.0
      %v4161 = vmax.f32 %v4022, 0.0
      %v4162 = vmax.f32 %v4024, 0.0
      %v4163 = vmax.f32 %v4026, 0.0
      %v4164 = vmax.f32 %v4030, 0.0
      %v4165 = vmax.f32 %v4032, 0.0
      %v4166 = vmax.f32 %v4034, 0.0
      %v4167 = vmax.f32 %v4036, 0.0
      %v4168 = vmax.f32 %v4040, 0.0
      %v4169 = vmax.f32 %v4042, 0.0
      %v4170 = vmax.f32 %v4044, 0.0
      %v4171 = vmax.f32 %v4046, 0.0
      %v4172 = vmax.f32 %v4050, 0.0
      %v4173 = vmax.f32 %v4052, 0.0
      %v4174 = vmax.f32 %v4054, 0.0
      %v4175 = vmax.f32 %v4056, 0.0
      %v4176 = vmax.f32 %v4060, 0.0
      %v4177 = vmax.f32 %v4062, 0.0
      %v4178 = vmax.f32 %v4064, 0.0
      %v4179 = vmax.f32 %v4066, 0.0
      %v4180 = vmax.f32 %v4070, 0.0
      %v4181 = vmax.f32 %v4072, 0.0
      %v4182 = vmax.f32 %v4074, 0.0
      %v4183 = vmax.f32 %v4076, 0.0
      %v4184 = vmax.f32 %v4080, 0.0
      %v4185 = vmax.f32 %v4082, 0.0
      %v4186 = vmax.f32 %v4084, 0.0
      %v4187 = vmax.f32 %v4086, 0.0
      %v4188 = vmax.f32 %v4090, 0.0
      %v4189 = vmax.f32 %v4092, 0.0
      %v4190 = vmax.f32 %v4094, 0.0
      %v4191 = vmax.f32 %v4096, 0.0
      %v4192 = vmax.f32 %v4100, 0.0
      %v4193 = vmax.f32 %v4102, 0.0
      %v4194 = vmax.f32 %v4104, 0.0
      %v4195 = vmax.f32 %v4106, 0.0
      %v4196 = vmax.f32 %v4110, 0.0
      %v4197 = vmax.f32 %v4112, 0.0
      %v4198 = vmax.f32 %v4114, 0.0
      %v4199 = vmax.f32 %v4116, 0.0
      %v4200 = vmax.f32 %v4120, 0.0
      %v4201 = vmax.f32 %v4122, 0.0
      %v4202 = vmax.f32 %v4124, 0.0
      %v4203 = vmax.f32 %v4126, 0.0
      %v4204 = vmax.f32 %v4130, 0.0
      %v4205 = vmax.f32 %v4132, 0.0
      %v4206 = vmax.f32 %v4134, 0.0
      %v4207 = vmax.f32 %v4136, 0.0
      %v4208 = vmax.f32 %v4140, 0.0
      %v4209 = vmax.f32 %v4142, 0.0
      %v4210 = vmax.f32 %v4144, 0.0
      %v4211 = vmax.f32 %v4146, 0.0
      %s4212 = scalar_lea.vmem %s4, 1536
      %v4213 = vld [vmem:[%s4212] sm:$0xff]
      %v4214 = vld [vmem:[%s4212 + $0x8] sm:$0xff]
      %v4215 = vld [vmem:[%s4212 + $0x10] sm:$0xff]
      %v4216 = vld [vmem:[%s4212 + $0x18] sm:$0xff]
      %v4217 = vld [vmem:[%s4212 + $0x20] sm:$0xff]
      %v4218 = vld [vmem:[%s4212 + $0x28] sm:$0xff]
      %v4219 = vld [vmem:[%s4212 + $0x30] sm:$0xff]
      %v4220 = vld [vmem:[%s4212 + $0x38] sm:$0xff]
      %v4221 = vld [vmem:[%s4212 + $0x40] sm:$0xff]
      %v4222 = vld [vmem:[%s4212 + $0x48] sm:$0xff]
      %v4223 = vld [vmem:[%s4212 + $0x50] sm:$0xff]
      %v4224 = vld [vmem:[%s4212 + $0x58] sm:$0xff]
      %v4225 = vld [vmem:[%s4212 + $0x60] sm:$0xff]
      %v4226 = vld [vmem:[%s4212 + $0x68] sm:$0xff]
      %v4227 = vld [vmem:[%s4212 + $0x70] sm:$0xff]
      %v4228 = vld [vmem:[%s4212 + $0x78] sm:$0xff]
      %v4229 = vld [vmem:[%s4212 + $0x80] sm:$0xff]
      %v4230 = vld [vmem:[%s4212 + $0x88] sm:$0xff]
      %v4231 = vld [vmem:[%s4212 + $0x90] sm:$0xff]
      %v4232 = vld [vmem:[%s4212 + $0x98] sm:$0xff]
      %v4233 = vld [vmem:[%s4212 + $0xa0] sm:$0xff]
      %v4234 = vld [vmem:[%s4212 + $0xa8] sm:$0xff]
      %v4235 = vld [vmem:[%s4212 + $0xb0] sm:$0xff]
      %v4236 = vld [vmem:[%s4212 + $0xb8] sm:$0xff]
      %v4237 = vld [vmem:[%s4212 + $0xc0] sm:$0xff]
      %v4238 = vld [vmem:[%s4212 + $0xc8] sm:$0xff]
      %v4239 = vld [vmem:[%s4212 + $0xd0] sm:$0xff]
      %v4240 = vld [vmem:[%s4212 + $0xd8] sm:$0xff]
      %v4241 = vld [vmem:[%s4212 + $0xe0] sm:$0xff]
      %v4242 = vld [vmem:[%s4212 + $0xe8] sm:$0xff]
      %v4243 = vld [vmem:[%s4212 + $0xf0] sm:$0xff]
      %v4244 = vld [vmem:[%s4212 + $0xf8] sm:$0xff]
      %v4245 = vpack.c.bf16 %v4150, %v4148
      %v4246 = vpack.c.bf16 %v4151, %v4149
      %v4247 = vpack.c.bf16 %v4154, %v4152
      %v4248 = vpack.c.bf16 %v4155, %v4153
      %v4249 = vpack.c.bf16 %v4158, %v4156
      %v4250 = vpack.c.bf16 %v4159, %v4157
      %v4251 = vpack.c.bf16 %v4162, %v4160
      %v4252 = vpack.c.bf16 %v4163, %v4161
      %v4253 = vpack.c.bf16 %v4166, %v4164
      %v4254 = vpack.c.bf16 %v4167, %v4165
      %v4255 = vpack.c.bf16 %v4170, %v4168
      %v4256 = vpack.c.bf16 %v4171, %v4169
      %v4257 = vpack.c.bf16 %v4174, %v4172
      %v4258 = vpack.c.bf16 %v4175, %v4173
      %v4259 = vpack.c.bf16 %v4178, %v4176
      %v4260 = vpack.c.bf16 %v4179, %v4177
      %v4261 = vpack.c.bf16 %v4182, %v4180
      %v4262 = vpack.c.bf16 %v4183, %v4181
      %v4263 = vpack.c.bf16 %v4186, %v4184
      %v4264 = vpack.c.bf16 %v4187, %v4185
      %v4265 = vpack.c.bf16 %v4190, %v4188
      %v4266 = vpack.c.bf16 %v4191, %v4189
      %v4267 = vpack.c.bf16 %v4194, %v4192
      %v4268 = vpack.c.bf16 %v4195, %v4193
      %v4269 = vpack.c.bf16 %v4198, %v4196
      %v4270 = vpack.c.bf16 %v4199, %v4197
      %v4271 = vpack.c.bf16 %v4202, %v4200
      %v4272 = vpack.c.bf16 %v4203, %v4201
      %v4273 = vpack.c.bf16 %v4206, %v4204
      %v4274 = vpack.c.bf16 %v4207, %v4205
      %v4275 = vpack.c.bf16 %v4210, %v4208
      %v4276 = vpack.c.bf16 %v4211, %v4209
      %s4277 = scalar_lea.vmem %s5, 7
      %v4278 = vld [vmem:[%s4277] ss:$8 sm:$0x3]
      %v4280 = vlaneseq
      %v4281 = vshrl.u32 %v4280, 7
      %v4282 = vsub.s32 0, %v4281
      %v4283 = vrot.slane %v4278, %v4282
      %v4284 = vlaneseq
      %v4285 = vshrl.u32 %v4284, 7
      %v4286 = vsub.s32 1, %v4285
      %v4287 = vrot.slane %v4278, %v4286
      %v4322 = vunpack.c.l.b16 %v4213
      %v4323 = vunpack.c.h.b16 %v4213
      %v4324 = vunpack.c.l.b16 %v4214
      %v4325 = vunpack.c.h.b16 %v4214
      %v4326 = vunpack.c.l.b16 %v4215
      %v4327 = vunpack.c.h.b16 %v4215
      %v4328 = vunpack.c.l.b16 %v4216
      %v4329 = vunpack.c.h.b16 %v4216
      %v4330 = vunpack.c.l.b16 %v4217
      %v4331 = vunpack.c.h.b16 %v4217
      %v4332 = vunpack.c.l.b16 %v4218
      %v4333 = vunpack.c.h.b16 %v4218
      %v4334 = vunpack.c.l.b16 %v4219
      %v4335 = vunpack.c.h.b16 %v4219
      %v4336 = vunpack.c.l.b16 %v4220
      %v4337 = vunpack.c.h.b16 %v4220
      %v4338 = vunpack.c.l.b16 %v4221
      %v4339 = vunpack.c.h.b16 %v4221
      %v4340 = vunpack.c.l.b16 %v4222
      %v4341 = vunpack.c.h.b16 %v4222
      %v4342 = vunpack.c.l.b16 %v4223
      %v4343 = vunpack.c.h.b16 %v4223
      %v4344 = vunpack.c.l.b16 %v4224
      %v4345 = vunpack.c.h.b16 %v4224
      %v4346 = vunpack.c.l.b16 %v4225
      %v4347 = vunpack.c.h.b16 %v4225
      %v4348 = vunpack.c.l.b16 %v4226
      %v4349 = vunpack.c.h.b16 %v4226
      %v4350 = vunpack.c.l.b16 %v4227
      %v4351 = vunpack.c.h.b16 %v4227
      %v4352 = vunpack.c.l.b16 %v4228
      %v4353 = vunpack.c.h.b16 %v4228
      %v4354 = vunpack.c.l.b16 %v4229
      %v4355 = vunpack.c.h.b16 %v4229
      %v4356 = vunpack.c.l.b16 %v4230
      %v4357 = vunpack.c.h.b16 %v4230
      %v4358 = vunpack.c.l.b16 %v4231
      %v4359 = vunpack.c.h.b16 %v4231
      %v4360 = vunpack.c.l.b16 %v4232
      %v4361 = vunpack.c.h.b16 %v4232
      %v4362 = vunpack.c.l.b16 %v4233
      %v4363 = vunpack.c.h.b16 %v4233
      %v4364 = vunpack.c.l.b16 %v4234
      %v4365 = vunpack.c.h.b16 %v4234
      %v4366 = vunpack.c.l.b16 %v4235
      %v4367 = vunpack.c.h.b16 %v4235
      %v4368 = vunpack.c.l.b16 %v4236
      %v4369 = vunpack.c.h.b16 %v4236
      %v4370 = vunpack.c.l.b16 %v4237
      %v4371 = vunpack.c.h.b16 %v4237
      %v4372 = vunpack.c.l.b16 %v4238
      %v4373 = vunpack.c.h.b16 %v4238
      %v4374 = vunpack.c.l.b16 %v4239
      %v4375 = vunpack.c.h.b16 %v4239
      %v4376 = vunpack.c.l.b16 %v4240
      %v4377 = vunpack.c.h.b16 %v4240
      %v4378 = vunpack.c.l.b16 %v4241
      %v4379 = vunpack.c.h.b16 %v4241
      %v4380 = vunpack.c.l.b16 %v4242
      %v4381 = vunpack.c.h.b16 %v4242
      %v4382 = vunpack.c.l.b16 %v4243
      %v4383 = vunpack.c.h.b16 %v4243
      %v4384 = vunpack.c.l.b16 %v4244
      %v4385 = vunpack.c.h.b16 %v4244
      %v4386 = vpack.c.b16 %v4324, %v4322
      %v4387 = vpack.c.b16 %v4325, %v4323
      %v4388 = vpack.c.b16 %v4328, %v4326
      %v4389 = vpack.c.b16 %v4329, %v4327
      %v4390 = vpack.c.b16 %v4332, %v4330
      %v4391 = vpack.c.b16 %v4333, %v4331
      %v4392 = vpack.c.b16 %v4336, %v4334
      %v4393 = vpack.c.b16 %v4337, %v4335
      %v4394 = vpack.c.b16 %v4340, %v4338
      %v4395 = vpack.c.b16 %v4341, %v4339
      %v4396 = vpack.c.b16 %v4344, %v4342
      %v4397 = vpack.c.b16 %v4345, %v4343
      %v4398 = vpack.c.b16 %v4348, %v4346
      %v4399 = vpack.c.b16 %v4349, %v4347
      %v4400 = vpack.c.b16 %v4352, %v4350
      %v4401 = vpack.c.b16 %v4353, %v4351
      %v4402 = vpack.c.b16 %v4356, %v4354
      %v4403 = vpack.c.b16 %v4357, %v4355
      %v4404 = vpack.c.b16 %v4360, %v4358
      %v4405 = vpack.c.b16 %v4361, %v4359
      %v4406 = vpack.c.b16 %v4364, %v4362
      %v4407 = vpack.c.b16 %v4365, %v4363
      %v4408 = vpack.c.b16 %v4368, %v4366
      %v4409 = vpack.c.b16 %v4369, %v4367
      %v4410 = vpack.c.b16 %v4372, %v4370
      %v4411 = vpack.c.b16 %v4373, %v4371
      %v4412 = vpack.c.b16 %v4376, %v4374
      %v4413 = vpack.c.b16 %v4377, %v4375
      %v4414 = vpack.c.b16 %v4380, %v4378
      %v4415 = vpack.c.b16 %v4381, %v4379
      %v4416 = vpack.c.b16 %v4384, %v4382
      %v4417 = vpack.c.b16 %v4385, %v4383
      %4450 = vmatprep.subr.bf16.mxu0 %v4387
      %4451 = vmatpush1.bf16.msra.mxu0 %v4386
      %4452 = vmatprep.subr.bf16.mxu0 %v4389
      %4453 = vmatpush1.bf16.msra.mxu0 %v4388
      %4454 = vmatprep.subr.bf16.mxu0 %v4391
      %4455 = vmatpush1.bf16.msra.mxu0 %v4390
      %4456 = vmatprep.subr.bf16.mxu0 %v4393
      %4457 = vmatpush1.bf16.msra.mxu0 %v4392
      %4458 = vmatprep.subr.bf16.mxu0 %v4395
      %4459 = vmatpush1.bf16.msra.mxu0 %v4394
      %4460 = vmatprep.subr.bf16.mxu0 %v4397
      %4461 = vmatpush1.bf16.msra.mxu0 %v4396
      %4462 = vmatprep.subr.bf16.mxu0 %v4399
      %4463 = vmatpush1.bf16.msra.mxu0 %v4398
      %4464 = vmatprep.subr.bf16.mxu0 %v4401
      %4465 = vmatpush1.bf16.msra.mxu0 %v4400
      %4466 = vmatprep.subr.bf16.mxu0 %v4403
      %4467 = vmatpush1.bf16.msra.mxu0 %v4402
      %4468 = vmatprep.subr.bf16.mxu0 %v4405
      %4469 = vmatpush1.bf16.msra.mxu0 %v4404
      %4470 = vmatprep.subr.bf16.mxu0 %v4407
      %4471 = vmatpush1.bf16.msra.mxu0 %v4406
      %4472 = vmatprep.subr.bf16.mxu0 %v4409
      %4473 = vmatpush1.bf16.msra.mxu0 %v4408
      %4474 = vmatprep.subr.bf16.mxu0 %v4411
      %4475 = vmatpush1.bf16.msra.mxu0 %v4410
      %4476 = vmatprep.subr.bf16.mxu0 %v4413
      %4477 = vmatpush1.bf16.msra.mxu0 %v4412
      %4478 = vmatprep.subr.bf16.mxu0 %v4415
      %4479 = vmatpush1.bf16.msra.mxu0 %v4414
      %4480 = vmatprep.subr.bf16.mxu0 %v4417
      %4481 = vmatpush1.bf16.msra.mxu0 %v4416
      %4482 = vmatprep.mubr.bf16.mxu0 %v4246
      %4483 = vmatmul.mubr.bf16.gmra.mrb[0].mxu0 %v4245
      %v4484 = vpop.f32.mrb[0].mxu0
      %v4485 = vadd.f32 %v4283, %v4484
      %v4486 = vpop.f32.mrb[0].mxu0
      %v4487 = vadd.f32 %v4287, %v4486
      %v4488 = vpop.f32.mrb[0].mxu0
      %v4489 = vadd.f32 %v4283, %v4488
      %v4490 = vpop.f32.mrb[0].mxu0
      %v4491 = vadd.f32 %v4287, %v4490
      %4492 = vmatprep.mubr.bf16.mxu0 %v4248
      %4493 = vmatmul.mubr.bf16.gmra.mrb[0].mxu0 %v4247
      %v4494 = vpop.f32.mrb[0].mxu0
      %v4495 = vadd.f32 %v4283, %v4494
      %v4496 = vpop.f32.mrb[0].mxu0
      %v4497 = vadd.f32 %v4287, %v4496
      %v4498 = vpop.f32.mrb[0].mxu0
      %v4499 = vadd.f32 %v4283, %v4498
      %v4500 = vpop.f32.mrb[0].mxu0
      %v4501 = vadd.f32 %v4287, %v4500
      %4502 = vmatprep.mubr.bf16.mxu0 %v4250
      %4503 = vmatmul.mubr.bf16.gmra.mrb[0].mxu0 %v4249
      %v4504 = vpop.f32.mrb[0].mxu0
      %v4505 = vadd.f32 %v4283, %v4504
      %v4506 = vpop.f32.mrb[0].mxu0
      %v4507 = vadd.f32 %v4287, %v4506
      %v4508 = vpop.f32.mrb[0].mxu0
      %v4509 = vadd.f32 %v4283, %v4508
      %v4510 = vpop.f32.mrb[0].mxu0
      %v4511 = vadd.f32 %v4287, %v4510
      %4512 = vmatprep.mubr.bf16.mxu0 %v4252
      %4513 = vmatmul.mubr.bf16.gmra.mrb[0].mxu0 %v4251
      %v4514 = vpop.f32.mrb[0].mxu0
      %v4515 = vadd.f32 %v4283, %v4514
      %v4516 = vpop.f32.mrb[0].mxu0
      %v4517 = vadd.f32 %v4287, %v4516
      %v4518 = vpop.f32.mrb[0].mxu0
      %v4519 = vadd.f32 %v4283, %v4518
      %v4520 = vpop.f32.mrb[0].mxu0
      %v4521 = vadd.f32 %v4287, %v4520
      %4522 = vmatprep.mubr.bf16.mxu0 %v4254
      %4523 = vmatmul.mubr.bf16.gmra.mrb[0].mxu0 %v4253
      %v4524 = vpop.f32.mrb[0].mxu0
      %v4525 = vadd.f32 %v4283, %v4524
      %v4526 = vpop.f32.mrb[0].mxu0
      %v4527 = vadd.f32 %v4287, %v4526
      %v4528 = vpop.f32.mrb[0].mxu0
      %v4529 = vadd.f32 %v4283, %v4528
      %v4530 = vpop.f32.mrb[0].mxu0
      %v4531 = vadd.f32 %v4287, %v4530
      %4532 = vmatprep.mubr.bf16.mxu0 %v4256
      %4533 = vmatmul.mubr.bf16.gmra.mrb[0].mxu0 %v4255
      %v4534 = vpop.f32.mrb[0].mxu0
      %v4535 = vadd.f32 %v4283, %v4534
      %v4536 = vpop.f32.mrb[0].mxu0
      %v4537 = vadd.f32 %v4287, %v4536
      %v4538 = vpop.f32.mrb[0].mxu0
      %v4539 = vadd.f32 %v4283, %v4538
      %v4540 = vpop.f32.mrb[0].mxu0
      %v4541 = vadd.f32 %v4287, %v4540
      %4542 = vmatprep.mubr.bf16.mxu0 %v4258
      %4543 = vmatmul.mubr.bf16.gmra.mrb[0].mxu0 %v4257
      %v4544 = vpop.f32.mrb[0].mxu0
      %v4545 = vadd.f32 %v4283, %v4544
      %v4546 = vpop.f32.mrb[0].mxu0
      %v4547 = vadd.f32 %v4287, %v4546
      %v4548 = vpop.f32.mrb[0].mxu0
      %v4549 = vadd.f32 %v4283, %v4548
      %v4550 = vpop.f32.mrb[0].mxu0
      %v4551 = vadd.f32 %v4287, %v4550
      %4552 = vmatprep.mubr.bf16.mxu0 %v4260
      %4553 = vmatmul.mubr.bf16.gmra.mrb[0].mxu0 %v4259
      %v4554 = vpop.f32.mrb[0].mxu0
      %v4555 = vadd.f32 %v4283, %v4554
      %v4556 = vpop.f32.mrb[0].mxu0
      %v4557 = vadd.f32 %v4287, %v4556
      %v4558 = vpop.f32.mrb[0].mxu0
      %v4559 = vadd.f32 %v4283, %v4558
      %v4560 = vpop.f32.mrb[0].mxu0
      %v4561 = vadd.f32 %v4287, %v4560
      %4562 = vmatprep.mubr.bf16.mxu0 %v4262
      %4563 = vmatmul.mubr.bf16.gmra.mrb[0].mxu0 %v4261
      %v4564 = vpop.f32.mrb[0].mxu0
      %v4565 = vadd.f32 %v4283, %v4564
      %v4566 = vpop.f32.mrb[0].mxu0
      %v4567 = vadd.f32 %v4287, %v4566
      %v4568 = vpop.f32.mrb[0].mxu0
      %v4569 = vadd.f32 %v4283, %v4568
      %v4570 = vpop.f32.mrb[0].mxu0
      %v4571 = vadd.f32 %v4287, %v4570
      %4572 = vmatprep.mubr.bf16.mxu0 %v4264
      %4573 = vmatmul.mubr.bf16.gmra.mrb[0].mxu0 %v4263
      %v4574 = vpop.f32.mrb[0].mxu0
      %v4575 = vadd.f32 %v4283, %v4574
      %v4576 = vpop.f32.mrb[0].mxu0
      %v4577 = vadd.f32 %v4287, %v4576
      %v4578 = vpop.f32.mrb[0].mxu0
      %v4579 = vadd.f32 %v4283, %v4578
      %v4580 = vpop.f32.mrb[0].mxu0
      %v4581 = vadd.f32 %v4287, %v4580
      %4582 = vmatprep.mubr.bf16.mxu0 %v4266
      %4583 = vmatmul.mubr.bf16.gmra.mrb[0].mxu0 %v4265
      %v4584 = vpop.f32.mrb[0].mxu0
      %v4585 = vadd.f32 %v4283, %v4584
      %v4586 = vpop.f32.mrb[0].mxu0
      %v4587 = vadd.f32 %v4287, %v4586
      %v4588 = vpop.f32.mrb[0].mxu0
      %v4589 = vadd.f32 %v4283, %v4588
      %v4590 = vpop.f32.mrb[0].mxu0
      %v4591 = vadd.f32 %v4287, %v4590
      %4592 = vmatprep.mubr.bf16.mxu0 %v4268
      %4593 = vmatmul.mubr.bf16.gmra.mrb[0].mxu0 %v4267
      %v4594 = vpop.f32.mrb[0].mxu0
      %v4595 = vadd.f32 %v4283, %v4594
      %v4596 = vpop.f32.mrb[0].mxu0
      %v4597 = vadd.f32 %v4287, %v4596
      %v4598 = vpop.f32.mrb[0].mxu0
      %v4599 = vadd.f32 %v4283, %v4598
      %v4600 = vpop.f32.mrb[0].mxu0
      %v4601 = vadd.f32 %v4287, %v4600
      %4602 = vmatprep.mubr.bf16.mxu0 %v4270
      %4603 = vmatmul.mubr.bf16.gmra.mrb[0].mxu0 %v4269
      %v4604 = vpop.f32.mrb[0].mxu0
      %v4605 = vadd.f32 %v4283, %v4604
      %v4606 = vpop.f32.mrb[0].mxu0
      %v4607 = vadd.f32 %v4287, %v4606
      %v4608 = vpop.f32.mrb[0].mxu0
      %v4609 = vadd.f32 %v4283, %v4608
      %v4610 = vpop.f32.mrb[0].mxu0
      %v4611 = vadd.f32 %v4287, %v4610
      %4612 = vmatprep.mubr.bf16.mxu0 %v4272
      %4613 = vmatmul.mubr.bf16.gmra.mrb[0].mxu0 %v4271
      %v4614 = vpop.f32.mrb[0].mxu0
      %v4615 = vadd.f32 %v4283, %v4614
      %v4616 = vpop.f32.mrb[0].mxu0
      %v4617 = vadd.f32 %v4287, %v4616
      %v4618 = vpop.f32.mrb[0].mxu0
      %v4619 = vadd.f32 %v4283, %v4618
      %v4620 = vpop.f32.mrb[0].mxu0
      %v4621 = vadd.f32 %v4287, %v4620
      %4622 = vmatprep.mubr.bf16.mxu0 %v4274
      %4623 = vmatmul.mubr.bf16.gmra.mrb[0].mxu0 %v4273
      %v4624 = vpop.f32.mrb[0].mxu0
      %v4625 = vadd.f32 %v4283, %v4624
      %v4626 = vpop.f32.mrb[0].mxu0
      %v4627 = vadd.f32 %v4287, %v4626
      %v4628 = vpop.f32.mrb[0].mxu0
      %v4629 = vadd.f32 %v4283, %v4628
      %v4630 = vpop.f32.mrb[0].mxu0
      %v4631 = vadd.f32 %v4287, %v4630
      %4632 = vmatprep.mubr.bf16.mxu0 %v4276
      %4633 = vmatmul.mubr.bf16.gmra.mrb[0].mxu0 %v4275
      %v4634 = vpop.f32.mrb[0].mxu0
      %v4635 = vadd.f32 %v4283, %v4634
      %v4636 = vpop.f32.mrb[0].mxu0
      %v4637 = vadd.f32 %v4287, %v4636
      %v4638 = vpop.f32.mrb[0].mxu0
      %v4639 = vadd.f32 %v4283, %v4638
      %v4640 = vpop.f32.mrb[0].mxu0
      %v4641 = vadd.f32 %v4287, %v4640
      %4642 = vdwg.mxu0
      %v4643 = vmax.f32 %v4485, 0.0
      %v4644 = vmax.f32 %v4487, 0.0
      %v4645 = vmax.f32 %v4489, 0.0
      %v4646 = vmax.f32 %v4491, 0.0
      %v4647 = vmax.f32 %v4495, 0.0
      %v4648 = vmax.f32 %v4497, 0.0
      %v4649 = vmax.f32 %v4499, 0.0
      %v4650 = vmax.f32 %v4501, 0.0
      %v4651 = vmax.f32 %v4505, 0.0
      %v4652 = vmax.f32 %v4507, 0.0
      %v4653 = vmax.f32 %v4509, 0.0
      %v4654 = vmax.f32 %v4511, 0.0
      %v4655 = vmax.f32 %v4515, 0.0
      %v4656 = vmax.f32 %v4517, 0.0
      %v4657 = vmax.f32 %v4519, 0.0
      %v4658 = vmax.f32 %v4521, 0.0
      %v4659 = vmax.f32 %v4525, 0.0
      %v4660 = vmax.f32 %v4527, 0.0
      %v4661 = vmax.f32 %v4529, 0.0
      %v4662 = vmax.f32 %v4531, 0.0
      %v4663 = vmax.f32 %v4535, 0.0
      %v4664 = vmax.f32 %v4537, 0.0
      %v4665 = vmax.f32 %v4539, 0.0
      %v4666 = vmax.f32 %v4541, 0.0
      %v4667 = vmax.f32 %v4545, 0.0
      %v4668 = vmax.f32 %v4547, 0.0
      %v4669 = vmax.f32 %v4549, 0.0
      %v4670 = vmax.f32 %v4551, 0.0
      %v4671 = vmax.f32 %v4555, 0.0
      %v4672 = vmax.f32 %v4557, 0.0
      %v4673 = vmax.f32 %v4559, 0.0
      %v4674 = vmax.f32 %v4561, 0.0
      %v4675 = vmax.f32 %v4565, 0.0
      %v4676 = vmax.f32 %v4567, 0.0
      %v4677 = vmax.f32 %v4569, 0.0
      %v4678 = vmax.f32 %v4571, 0.0
      %v4679 = vmax.f32 %v4575, 0.0
      %v4680 = vmax.f32 %v4577, 0.0
      %v4681 = vmax.f32 %v4579, 0.0
      %v4682 = vmax.f32 %v4581, 0.0
      %v4683 = vmax.f32 %v4585, 0.0
      %v4684 = vmax.f32 %v4587, 0.0
      %v4685 = vmax.f32 %v4589, 0.0
      %v4686 = vmax.f32 %v4591, 0.0
      %v4687 = vmax.f32 %v4595, 0.0
      %v4688 = vmax.f32 %v4597, 0.0
      %v4689 = vmax.f32 %v4599, 0.0
      %v4690 = vmax.f32 %v4601, 0.0
      %v4691 = vmax.f32 %v4605, 0.0
      %v4692 = vmax.f32 %v4607, 0.0
      %v4693 = vmax.f32 %v4609, 0.0
      %v4694 = vmax.f32 %v4611, 0.0
      %v4695 = vmax.f32 %v4615, 0.0
      %v4696 = vmax.f32 %v4617, 0.0
      %v4697 = vmax.f32 %v4619, 0.0
      %v4698 = vmax.f32 %v4621, 0.0
      %v4699 = vmax.f32 %v4625, 0.0
      %v4700 = vmax.f32 %v4627, 0.0
      %v4701 = vmax.f32 %v4629, 0.0
      %v4702 = vmax.f32 %v4631, 0.0
      %v4703 = vmax.f32 %v4635, 0.0
      %v4704 = vmax.f32 %v4637, 0.0
      %v4705 = vmax.f32 %v4639, 0.0
      %v4706 = vmax.f32 %v4641, 0.0
      %v4707 = vld [vmem:[%s6] sm:$0x3]
      %v4709 = vlaneseq
      %v4710 = vshrl.u32 %v4709, 7
      %v4711 = vsub.s32 0, %v4710
      %v4712 = vrot.slane %v4707, %v4711
      %v4713 = vlaneseq
      %v4714 = vshrl.u32 %v4713, 7
      %v4715 = vsub.s32 1, %v4714
      %v4716 = vrot.slane %v4707, %v4715
      %v4719 = vmul.f32 %v4643, %v4712
      %v4720 = vmul.f32 %v4644, %v4716
      %v4721 = vmul.f32 %v4645, %v4712
      %v4722 = vmul.f32 %v4646, %v4716
      %v4723 = vmul.f32 %v4647, %v4712
      %v4724 = vmul.f32 %v4648, %v4716
      %v4725 = vmul.f32 %v4649, %v4712
      %v4726 = vmul.f32 %v4650, %v4716
      %v4727 = vmul.f32 %v4651, %v4712
      %v4728 = vmul.f32 %v4652, %v4716
      %v4729 = vmul.f32 %v4653, %v4712
      %v4730 = vmul.f32 %v4654, %v4716
      %v4731 = vmul.f32 %v4655, %v4712
      %v4732 = vmul.f32 %v4656, %v4716
      %v4733 = vmul.f32 %v4657, %v4712
      %v4734 = vmul.f32 %v4658, %v4716
      %v4735 = vmul.f32 %v4659, %v4712
      %v4736 = vmul.f32 %v4660, %v4716
      %v4737 = vmul.f32 %v4661, %v4712
      %v4738 = vmul.f32 %v4662, %v4716
      %v4739 = vmul.f32 %v4663, %v4712
      %v4740 = vmul.f32 %v4664, %v4716
      %v4741 = vmul.f32 %v4665, %v4712
      %v4742 = vmul.f32 %v4666, %v4716
      %v4743 = vmul.f32 %v4667, %v4712
      %v4744 = vmul.f32 %v4668, %v4716
      %v4745 = vmul.f32 %v4669, %v4712
      %v4746 = vmul.f32 %v4670, %v4716
      %v4747 = vmul.f32 %v4671, %v4712
      %v4748 = vmul.f32 %v4672, %v4716
      %v4749 = vmul.f32 %v4673, %v4712
      %v4750 = vmul.f32 %v4674, %v4716
      %v4751 = vmul.f32 %v4675, %v4712
      %v4752 = vmul.f32 %v4676, %v4716
      %v4753 = vmul.f32 %v4677, %v4712
      %v4754 = vmul.f32 %v4678, %v4716
      %v4755 = vmul.f32 %v4679, %v4712
      %v4756 = vmul.f32 %v4680, %v4716
      %v4757 = vmul.f32 %v4681, %v4712
      %v4758 = vmul.f32 %v4682, %v4716
      %v4759 = vmul.f32 %v4683, %v4712
      %v4760 = vmul.f32 %v4684, %v4716
      %v4761 = vmul.f32 %v4685, %v4712
      %v4762 = vmul.f32 %v4686, %v4716
      %v4763 = vmul.f32 %v4687, %v4712
      %v4764 = vmul.f32 %v4688, %v4716
      %v4765 = vmul.f32 %v4689, %v4712
      %v4766 = vmul.f32 %v4690, %v4716
      %v4767 = vmul.f32 %v4691, %v4712
      %v4768 = vmul.f32 %v4692, %v4716
      %v4769 = vmul.f32 %v4693, %v4712
      %v4770 = vmul.f32 %v4694, %v4716
      %v4771 = vmul.f32 %v4695, %v4712
      %v4772 = vmul.f32 %v4696, %v4716
      %v4773 = vmul.f32 %v4697, %v4712
      %v4774 = vmul.f32 %v4698, %v4716
      %v4775 = vmul.f32 %v4699, %v4712
      %v4776 = vmul.f32 %v4700, %v4716
      %v4777 = vmul.f32 %v4701, %v4712
      %v4778 = vmul.f32 %v4702, %v4716
      %v4779 = vmul.f32 %v4703, %v4712
      %v4780 = vmul.f32 %v4704, %v4716
      %v4781 = vmul.f32 %v4705, %v4712
      %v4782 = vmul.f32 %v4706, %v4716
      %v4783 = vadd.f32 %v4719, %v4720
      %4784 = vadd.xlane.f32.xlu0 %v4783
      %v4785 = vpop.xlane.xlu0 %4784
      %v4786 = vadd.f32 %v4721, %v4722
      %4787 = vadd.xlane.f32.xlu0 %v4786
      %v4788 = vpop.xlane.xlu0 %4787
      %v4789 = vadd.f32 %v4723, %v4724
      %4790 = vadd.xlane.f32.xlu0 %v4789
      %v4791 = vpop.xlane.xlu0 %4790
      %v4792 = vadd.f32 %v4725, %v4726
      %4793 = vadd.xlane.f32.xlu0 %v4792
      %v4794 = vpop.xlane.xlu0 %4793
      %v4795 = vadd.f32 %v4727, %v4728
      %4796 = vadd.xlane.f32.xlu0 %v4795
      %v4797 = vpop.xlane.xlu0 %4796
      %v4798 = vadd.f32 %v4729, %v4730
      %4799 = vadd.xlane.f32.xlu0 %v4798
      %v4800 = vpop.xlane.xlu0 %4799
      %v4801 = vadd.f32 %v4731, %v4732
      %4802 = vadd.xlane.f32.xlu0 %v4801
      %v4803 = vpop.xlane.xlu0 %4802
      %v4804 = vadd.f32 %v4733, %v4734
      %4805 = vadd.xlane.f32.xlu0 %v4804
      %v4806 = vpop.xlane.xlu0 %4805
      %v4807 = vadd.f32 %v4735, %v4736
      %4808 = vadd.xlane.f32.xlu0 %v4807
      %v4809 = vpop.xlane.xlu0 %4808
      %v4810 = vadd.f32 %v4737, %v4738
      %4811 = vadd.xlane.f32.xlu0 %v4810
      %v4812 = vpop.xlane.xlu0 %4811
      %v4813 = vadd.f32 %v4739, %v4740
      %4814 = vadd.xlane.f32.xlu0 %v4813
      %v4815 = vpop.xlane.xlu0 %4814
      %v4816 = vadd.f32 %v4741, %v4742
      %4817 = vadd.xlane.f32.xlu0 %v4816
      %v4818 = vpop.xlane.xlu0 %4817
      %v4819 = vadd.f32 %v4743, %v4744
      %4820 = vadd.xlane.f32.xlu0 %v4819
      %v4821 = vpop.xlane.xlu0 %4820
      %v4822 = vadd.f32 %v4745, %v4746
      %4823 = vadd.xlane.f32.xlu0 %v4822
      %v4824 = vpop.xlane.xlu0 %4823
      %v4825 = vadd.f32 %v4747, %v4748
      %4826 = vadd.xlane.f32.xlu0 %v4825
      %v4827 = vpop.xlane.xlu0 %4826
      %v4828 = vadd.f32 %v4749, %v4750
      %4829 = vadd.xlane.f32.xlu0 %v4828
      %v4830 = vpop.xlane.xlu0 %4829
      %v4831 = vadd.f32 %v4751, %v4752
      %4832 = vadd.xlane.f32.xlu0 %v4831
      %v4833 = vpop.xlane.xlu0 %4832
      %v4834 = vadd.f32 %v4753, %v4754
      %4835 = vadd.xlane.f32.xlu0 %v4834
      %v4836 = vpop.xlane.xlu0 %4835
      %v4837 = vadd.f32 %v4755, %v4756
      %4838 = vadd.xlane.f32.xlu0 %v4837
      %v4839 = vpop.xlane.xlu0 %4838
      %v4840 = vadd.f32 %v4757, %v4758
      %4841 = vadd.xlane.f32.xlu0 %v4840
      %v4842 = vpop.xlane.xlu0 %4841
      %v4843 = vadd.f32 %v4759, %v4760
      %4844 = vadd.xlane.f32.xlu0 %v4843
      %v4845 = vpop.xlane.xlu0 %4844
      %v4846 = vadd.f32 %v4761, %v4762
      %4847 = vadd.xlane.f32.xlu0 %v4846
      %v4848 = vpop.xlane.xlu0 %4847
      %v4849 = vadd.f32 %v4763, %v4764
      %4850 = vadd.xlane.f32.xlu0 %v4849
      %v4851 = vpop.xlane.xlu0 %4850
      %v4852 = vadd.f32 %v4765, %v4766
      %4853 = vadd.xlane.f32.xlu0 %v4852
      %v4854 = vpop.xlane.xlu0 %4853
      %v4855 = vadd.f32 %v4767, %v4768
      %4856 = vadd.xlane.f32.xlu0 %v4855
      %v4857 = vpop.xlane.xlu0 %4856
      %v4858 = vadd.f32 %v4769, %v4770
      %4859 = vadd.xlane.f32.xlu0 %v4858
      %v4860 = vpop.xlane.xlu0 %4859
      %v4861 = vadd.f32 %v4771, %v4772
      %4862 = vadd.xlane.f32.xlu0 %v4861
      %v4863 = vpop.xlane.xlu0 %4862
      %v4864 = vadd.f32 %v4773, %v4774
      %4865 = vadd.xlane.f32.xlu0 %v4864
      %v4866 = vpop.xlane.xlu0 %4865
      %v4867 = vadd.f32 %v4775, %v4776
      %4868 = vadd.xlane.f32.xlu0 %v4867
      %v4869 = vpop.xlane.xlu0 %4868
      %v4870 = vadd.f32 %v4777, %v4778
      %4871 = vadd.xlane.f32.xlu0 %v4870
      %v4872 = vpop.xlane.xlu0 %4871
      %v4873 = vadd.f32 %v4779, %v4780
      %4874 = vadd.xlane.f32.xlu0 %v4873
      %v4875 = vpop.xlane.xlu0 %4874
      %v4876 = vadd.f32 %v4781, %v4782
      %4877 = vadd.xlane.f32.xlu0 %v4876
      %v4878 = vpop.xlane.xlu0 %4877
      %v4879 = vld [vmem:[%s12] sm:$0x1]
      %v4881 = vlaneseq
      %v4882 = vshrl.u32 %v4881, 7
      %v4883 = vsub.s32 0, %v4882
      %v4884 = vrot.slane %v4879, %v4883
      %v4886 = vadd.f32 %v4785, %v4884
      %v4887 = vadd.f32 %v4788, %v4884
      %v4888 = vadd.f32 %v4791, %v4884
      %v4889 = vadd.f32 %v4794, %v4884
      %v4890 = vadd.f32 %v4797, %v4884
      %v4891 = vadd.f32 %v4800, %v4884
      %v4892 = vadd.f32 %v4803, %v4884
      %v4893 = vadd.f32 %v4806, %v4884
      %v4894 = vadd.f32 %v4809, %v4884
      %v4895 = vadd.f32 %v4812, %v4884
      %v4896 = vadd.f32 %v4815, %v4884
      %v4897 = vadd.f32 %v4818, %v4884
      %v4898 = vadd.f32 %v4821, %v4884
      %v4899 = vadd.f32 %v4824, %v4884
      %v4900 = vadd.f32 %v4827, %v4884
      %v4901 = vadd.f32 %v4830, %v4884
      %v4902 = vadd.f32 %v4833, %v4884
      %v4903 = vadd.f32 %v4836, %v4884
      %v4904 = vadd.f32 %v4839, %v4884
      %v4905 = vadd.f32 %v4842, %v4884
      %v4906 = vadd.f32 %v4845, %v4884
      %v4907 = vadd.f32 %v4848, %v4884
      %v4908 = vadd.f32 %v4851, %v4884
      %v4909 = vadd.f32 %v4854, %v4884
      %v4910 = vadd.f32 %v4857, %v4884
      %v4911 = vadd.f32 %v4860, %v4884
      %v4912 = vadd.f32 %v4863, %v4884
      %v4913 = vadd.f32 %v4866, %v4884
      %v4914 = vadd.f32 %v4869, %v4884
      %v4915 = vadd.f32 %v4872, %v4884
      %v4916 = vadd.f32 %v4875, %v4884
      %v4917 = vadd.f32 %v4878, %v4884
      %v4918 = vmax.f32 %v4886, 0.0
      %v4919 = vmax.f32 %v4887, 0.0
      %v4920 = vmax.f32 %v4888, 0.0
      %v4921 = vmax.f32 %v4889, 0.0
      %v4922 = vmax.f32 %v4890, 0.0
      %v4923 = vmax.f32 %v4891, 0.0
      %v4924 = vmax.f32 %v4892, 0.0
      %v4925 = vmax.f32 %v4893, 0.0
      %v4926 = vmax.f32 %v4894, 0.0
      %v4927 = vmax.f32 %v4895, 0.0
      %v4928 = vmax.f32 %v4896, 0.0
      %v4929 = vmax.f32 %v4897, 0.0
      %v4930 = vmax.f32 %v4898, 0.0
      %v4931 = vmax.f32 %v4899, 0.0
      %v4932 = vmax.f32 %v4900, 0.0
      %v4933 = vmax.f32 %v4901, 0.0
      %v4934 = vmax.f32 %v4902, 0.0
      %v4935 = vmax.f32 %v4903, 0.0
      %v4936 = vmax.f32 %v4904, 0.0
      %v4937 = vmax.f32 %v4905, 0.0
      %v4938 = vmax.f32 %v4906, 0.0
      %v4939 = vmax.f32 %v4907, 0.0
      %v4940 = vmax.f32 %v4908, 0.0
      %v4941 = vmax.f32 %v4909, 0.0
      %v4942 = vmax.f32 %v4910, 0.0
      %v4943 = vmax.f32 %v4911, 0.0
      %v4944 = vmax.f32 %v4912, 0.0
      %v4945 = vmax.f32 %v4913, 0.0
      %v4946 = vmax.f32 %v4914, 0.0
      %v4947 = vmax.f32 %v4915, 0.0
      %v4948 = vmax.f32 %v4916, 0.0
      %v4949 = vmax.f32 %v4917, 0.0
      %v4950 = vand.u32 2147483647, %v4886
      %v4951 = vand.u32 2147483647, %v4887
      %v4952 = vand.u32 2147483647, %v4888
      %v4953 = vand.u32 2147483647, %v4889
      %v4954 = vand.u32 2147483647, %v4890
      %v4955 = vand.u32 2147483647, %v4891
      %v4956 = vand.u32 2147483647, %v4892
      %v4957 = vand.u32 2147483647, %v4893
      %v4958 = vand.u32 2147483647, %v4894
      %v4959 = vand.u32 2147483647, %v4895
      %v4960 = vand.u32 2147483647, %v4896
      %v4961 = vand.u32 2147483647, %v4897
      %v4962 = vand.u32 2147483647, %v4898
      %v4963 = vand.u32 2147483647, %v4899
      %v4964 = vand.u32 2147483647, %v4900
      %v4965 = vand.u32 2147483647, %v4901
      %v4966 = vand.u32 2147483647, %v4902
      %v4967 = vand.u32 2147483647, %v4903
      %v4968 = vand.u32 2147483647, %v4904
      %v4969 = vand.u32 2147483647, %v4905
      %v4970 = vand.u32 2147483647, %v4906
      %v4971 = vand.u32 2147483647, %v4907
      %v4972 = vand.u32 2147483647, %v4908
      %v4973 = vand.u32 2147483647, %v4909
      %v4974 = vand.u32 2147483647, %v4910
      %v4975 = vand.u32 2147483647, %v4911
      %v4976 = vand.u32 2147483647, %v4912
      %v4977 = vand.u32 2147483647, %v4913
      %v4978 = vand.u32 2147483647, %v4914
      %v4979 = vand.u32 2147483647, %v4915
      %v4980 = vand.u32 2147483647, %v4916
      %v4981 = vand.u32 2147483647, %v4917
      %v4982 = vsub.f32 0.0, %v4950
      %v4983 = vsub.f32 0.0, %v4951
      %v4984 = vsub.f32 0.0, %v4952
      %v4985 = vsub.f32 0.0, %v4953
      %v4986 = vsub.f32 0.0, %v4954
      %v4987 = vsub.f32 0.0, %v4955
      %v4988 = vsub.f32 0.0, %v4956
      %v4989 = vsub.f32 0.0, %v4957
      %v4990 = vsub.f32 0.0, %v4958
      %v4991 = vsub.f32 0.0, %v4959
      %v4992 = vsub.f32 0.0, %v4960
      %v4993 = vsub.f32 0.0, %v4961
      %v4994 = vsub.f32 0.0, %v4962
      %v4995 = vsub.f32 0.0, %v4963
      %v4996 = vsub.f32 0.0, %v4964
      %v4997 = vsub.f32 0.0, %v4965
      %v4998 = vsub.f32 0.0, %v4966
      %v4999 = vsub.f32 0.0, %v4967
      %v5000 = vsub.f32 0.0, %v4968
      %v5001 = vsub.f32 0.0, %v4969
      %v5002 = vsub.f32 0.0, %v4970
      %v5003 = vsub.f32 0.0, %v4971
      %v5004 = vsub.f32 0.0, %v4972
      %v5005 = vsub.f32 0.0, %v4973
      %v5006 = vsub.f32 0.0, %v4974
      %v5007 = vsub.f32 0.0, %v4975
      %v5008 = vsub.f32 0.0, %v4976
      %v5009 = vsub.f32 0.0, %v4977
      %v5010 = vsub.f32 0.0, %v4978
      %v5011 = vsub.f32 0.0, %v4979
      %v5012 = vsub.f32 0.0, %v4980
      %v5013 = vsub.f32 0.0, %v4981
      %v5014 = vmul.f32 %v4982, 1.442695
      %v5015 = vpow.pop %v5014
      %v5016 = vmul.f32 %v4983, 1.442695
      %v5017 = vpow.pop %v5016
      %v5018 = vmul.f32 %v4984, 1.442695
      %v5019 = vpow.pop %v5018
      %v5020 = vmul.f32 %v4985, 1.442695
      %v5021 = vpow.pop %v5020
      %v5022 = vmul.f32 %v4986, 1.442695
      %v5023 = vpow.pop %v5022
      %v5024 = vmul.f32 %v4987, 1.442695
      %v5025 = vpow.pop %v5024
      %v5026 = vmul.f32 %v4988, 1.442695
      %v5027 = vpow.pop %v5026
      %v5028 = vmul.f32 %v4989, 1.442695
      %v5029 = vpow.pop %v5028
      %v5030 = vmul.f32 %v4990, 1.442695
      %v5031 = vpow.pop %v5030
      %v5032 = vmul.f32 %v4991, 1.442695
      %v5033 = vpow.pop %v5032
      %v5034 = vmul.f32 %v4992, 1.442695
      %v5035 = vpow.pop %v5034
      %v5036 = vmul.f32 %v4993, 1.442695
      %v5037 = vpow.pop %v5036
      %v5038 = vmul.f32 %v4994, 1.442695
      %v5039 = vpow.pop %v5038
      %v5040 = vmul.f32 %v4995, 1.442695
      %v5041 = vpow.pop %v5040
      %v5042 = vmul.f32 %v4996, 1.442695
      %v5043 = vpow.pop %v5042
      %v5044 = vmul.f32 %v4997, 1.442695
      %v5045 = vpow.pop %v5044
      %v5046 = vmul.f32 %v4998, 1.442695
      %v5047 = vpow.pop %v5046
      %v5048 = vmul.f32 %v4999, 1.442695
      %v5049 = vpow.pop %v5048
      %v5050 = vmul.f32 %v5000, 1.442695
      %v5051 = vpow.pop %v5050
      %v5052 = vmul.f32 %v5001, 1.442695
      %v5053 = vpow.pop %v5052
      %v5054 = vmul.f32 %v5002, 1.442695
      %v5055 = vpow.pop %v5054
      %v5056 = vmul.f32 %v5003, 1.442695
      %v5057 = vpow.pop %v5056
      %v5058 = vmul.f32 %v5004, 1.442695
      %v5059 = vpow.pop %v5058
      %v5060 = vmul.f32 %v5005, 1.442695
      %v5061 = vpow.pop %v5060
      %v5062 = vmul.f32 %v5006, 1.442695
      %v5063 = vpow.pop %v5062
      %v5064 = vmul.f32 %v5007, 1.442695
      %v5065 = vpow.pop %v5064
      %v5066 = vmul.f32 %v5008, 1.442695
      %v5067 = vpow.pop %v5066
      %v5068 = vmul.f32 %v5009, 1.442695
      %v5069 = vpow.pop %v5068
      %v5070 = vmul.f32 %v5010, 1.442695
      %v5071 = vpow.pop %v5070
      %v5072 = vmul.f32 %v5011, 1.442695
      %v5073 = vpow.pop %v5072
      %v5074 = vmul.f32 %v5012, 1.442695
      %v5075 = vpow.pop %v5074
      %v5076 = vmul.f32 %v5013, 1.442695
      %v5077 = vpow.pop %v5076
      %v5078 = vadd.f32 %v5015, 1.0
      %v5079 = vadd.f32 %v5017, 1.0
      %v5080 = vadd.f32 %v5019, 1.0
      %v5081 = vadd.f32 %v5021, 1.0
      %v5082 = vadd.f32 %v5023, 1.0
      %v5083 = vadd.f32 %v5025, 1.0
      %v5084 = vadd.f32 %v5027, 1.0
      %v5085 = vadd.f32 %v5029, 1.0
      %v5086 = vadd.f32 %v5031, 1.0
      %v5087 = vadd.f32 %v5033, 1.0
      %v5088 = vadd.f32 %v5035, 1.0
      %v5089 = vadd.f32 %v5037, 1.0
      %v5090 = vadd.f32 %v5039, 1.0
      %v5091 = vadd.f32 %v5041, 1.0
      %v5092 = vadd.f32 %v5043, 1.0
      %v5093 = vadd.f32 %v5045, 1.0
      %v5094 = vadd.f32 %v5047, 1.0
      %v5095 = vadd.f32 %v5049, 1.0
      %v5096 = vadd.f32 %v5051, 1.0
      %v5097 = vadd.f32 %v5053, 1.0
      %v5098 = vadd.f32 %v5055, 1.0
      %v5099 = vadd.f32 %v5057, 1.0
      %v5100 = vadd.f32 %v5059, 1.0
      %v5101 = vadd.f32 %v5061, 1.0
      %v5102 = vadd.f32 %v5063, 1.0
      %v5103 = vadd.f32 %v5065, 1.0
      %v5104 = vadd.f32 %v5067, 1.0
      %v5105 = vadd.f32 %v5069, 1.0
      %v5106 = vadd.f32 %v5071, 1.0
      %v5107 = vadd.f32 %v5073, 1.0
      %v5108 = vadd.f32 %v5075, 1.0
      %v5109 = vadd.f32 %v5077, 1.0
      %v5110 = vlog2.pop %v5078
      %v5111 = vmul.f32 %v5110, 0.6931472
      %v5112 = vlog2.pop %v5079
      %v5113 = vmul.f32 %v5112, 0.6931472
      %v5114 = vlog2.pop %v5080
      %v5115 = vmul.f32 %v5114, 0.6931472
      %v5116 = vlog2.pop %v5081
      %v5117 = vmul.f32 %v5116, 0.6931472
      %v5118 = vlog2.pop %v5082
      %v5119 = vmul.f32 %v5118, 0.6931472
      %v5120 = vlog2.pop %v5083
      %v5121 = vmul.f32 %v5120, 0.6931472
      %v5122 = vlog2.pop %v5084
      %v5123 = vmul.f32 %v5122, 0.6931472
      %v5124 = vlog2.pop %v5085
      %v5125 = vmul.f32 %v5124, 0.6931472
      %v5126 = vlog2.pop %v5086
      %v5127 = vmul.f32 %v5126, 0.6931472
      %v5128 = vlog2.pop %v5087
      %v5129 = vmul.f32 %v5128, 0.6931472
      %v5130 = vlog2.pop %v5088
      %v5131 = vmul.f32 %v5130, 0.6931472
      %v5132 = vlog2.pop %v5089
      %v5133 = vmul.f32 %v5132, 0.6931472
      %v5134 = vlog2.pop %v5090
      %v5135 = vmul.f32 %v5134, 0.6931472
      %v5136 = vlog2.pop %v5091
      %v5137 = vmul.f32 %v5136, 0.6931472
      %v5138 = vlog2.pop %v5092
      %v5139 = vmul.f32 %v5138, 0.6931472
      %v5140 = vlog2.pop %v5093
      %v5141 = vmul.f32 %v5140, 0.6931472
      %v5142 = vlog2.pop %v5094
      %v5143 = vmul.f32 %v5142, 0.6931472
      %v5144 = vlog2.pop %v5095
      %v5145 = vmul.f32 %v5144, 0.6931472
      %v5146 = vlog2.pop %v5096
      %v5147 = vmul.f32 %v5146, 0.6931472
      %v5148 = vlog2.pop %v5097
      %v5149 = vmul.f32 %v5148, 0.6931472
      %v5150 = vlog2.pop %v5098
      %v5151 = vmul.f32 %v5150, 0.6931472
      %v5152 = vlog2.pop %v5099
      %v5153 = vmul.f32 %v5152, 0.6931472
      %v5154 = vlog2.pop %v5100
      %v5155 = vmul.f32 %v5154, 0.6931472
      %v5156 = vlog2.pop %v5101
      %v5157 = vmul.f32 %v5156, 0.6931472
      %v5158 = vlog2.pop %v5102
      %v5159 = vmul.f32 %v5158, 0.6931472
      %v5160 = vlog2.pop %v5103
      %v5161 = vmul.f32 %v5160, 0.6931472
      %v5162 = vlog2.pop %v5104
      %v5163 = vmul.f32 %v5162, 0.6931472
      %v5164 = vlog2.pop %v5105
      %v5165 = vmul.f32 %v5164, 0.6931472
      %v5166 = vlog2.pop %v5106
      %v5167 = vmul.f32 %v5166, 0.6931472
      %v5168 = vlog2.pop %v5107
      %v5169 = vmul.f32 %v5168, 0.6931472
      %v5170 = vlog2.pop %v5108
      %v5171 = vmul.f32 %v5170, 0.6931472
      %v5172 = vlog2.pop %v5109
      %v5173 = vmul.f32 %v5172, 0.6931472
      %v5174 = vadd.f32 %v4918, %v5111
      %v5175 = vadd.f32 %v4919, %v5113
      %v5176 = vadd.f32 %v4920, %v5115
      %v5177 = vadd.f32 %v4921, %v5117
      %v5178 = vadd.f32 %v4922, %v5119
      %v5179 = vadd.f32 %v4923, %v5121
      %v5180 = vadd.f32 %v4924, %v5123
      %v5181 = vadd.f32 %v4925, %v5125
      %v5182 = vadd.f32 %v4926, %v5127
      %v5183 = vadd.f32 %v4927, %v5129
      %v5184 = vadd.f32 %v4928, %v5131
      %v5185 = vadd.f32 %v4929, %v5133
      %v5186 = vadd.f32 %v4930, %v5135
      %v5187 = vadd.f32 %v4931, %v5137
      %v5188 = vadd.f32 %v4932, %v5139
      %v5189 = vadd.f32 %v4933, %v5141
      %v5190 = vadd.f32 %v4934, %v5143
      %v5191 = vadd.f32 %v4935, %v5145
      %v5192 = vadd.f32 %v4936, %v5147
      %v5193 = vadd.f32 %v4937, %v5149
      %v5194 = vadd.f32 %v4938, %v5151
      %v5195 = vadd.f32 %v4939, %v5153
      %v5196 = vadd.f32 %v4940, %v5155
      %v5197 = vadd.f32 %v4941, %v5157
      %v5198 = vadd.f32 %v4942, %v5159
      %v5199 = vadd.f32 %v4943, %v5161
      %v5200 = vadd.f32 %v4944, %v5163
      %v5201 = vadd.f32 %v4945, %v5165
      %v5202 = vadd.f32 %v4946, %v5167
      %v5203 = vadd.f32 %v4947, %v5169
      %v5204 = vadd.f32 %v4948, %v5171
      %v5205 = vadd.f32 %v4949, %v5173
      %s5206 = scalar_lea.vmem %s4, 1792
      %v5207 = vld [vmem:[%s5206] sm:$0xff]
      %v5208 = vld [vmem:[%s5206 + $0x8] sm:$0xff]
      %v5209 = vld [vmem:[%s5206 + $0x10] sm:$0xff]
      %v5210 = vld [vmem:[%s5206 + $0x18] sm:$0xff]
      %v5211 = vld [vmem:[%s5206 + $0x20] sm:$0xff]
      %v5212 = vld [vmem:[%s5206 + $0x28] sm:$0xff]
      %v5213 = vld [vmem:[%s5206 + $0x30] sm:$0xff]
      %v5214 = vld [vmem:[%s5206 + $0x38] sm:$0xff]
      %v5215 = vld [vmem:[%s5206 + $0x40] sm:$0xff]
      %v5216 = vld [vmem:[%s5206 + $0x48] sm:$0xff]
      %v5217 = vld [vmem:[%s5206 + $0x50] sm:$0xff]
      %v5218 = vld [vmem:[%s5206 + $0x58] sm:$0xff]
      %v5219 = vld [vmem:[%s5206 + $0x60] sm:$0xff]
      %v5220 = vld [vmem:[%s5206 + $0x68] sm:$0xff]
      %v5221 = vld [vmem:[%s5206 + $0x70] sm:$0xff]
      %v5222 = vld [vmem:[%s5206 + $0x78] sm:$0xff]
      %v5223 = vld [vmem:[%s5206 + $0x80] sm:$0xff]
      %v5224 = vld [vmem:[%s5206 + $0x88] sm:$0xff]
      %v5225 = vld [vmem:[%s5206 + $0x90] sm:$0xff]
      %v5226 = vld [vmem:[%s5206 + $0x98] sm:$0xff]
      %v5227 = vld [vmem:[%s5206 + $0xa0] sm:$0xff]
      %v5228 = vld [vmem:[%s5206 + $0xa8] sm:$0xff]
      %v5229 = vld [vmem:[%s5206 + $0xb0] sm:$0xff]
      %v5230 = vld [vmem:[%s5206 + $0xb8] sm:$0xff]
      %v5231 = vld [vmem:[%s5206 + $0xc0] sm:$0xff]
      %v5232 = vld [vmem:[%s5206 + $0xc8] sm:$0xff]
      %v5233 = vld [vmem:[%s5206 + $0xd0] sm:$0xff]
      %v5234 = vld [vmem:[%s5206 + $0xd8] sm:$0xff]
      %v5235 = vld [vmem:[%s5206 + $0xe0] sm:$0xff]
      %v5236 = vld [vmem:[%s5206 + $0xe8] sm:$0xff]
      %v5237 = vld [vmem:[%s5206 + $0xf0] sm:$0xff]
      %v5238 = vld [vmem:[%s5206 + $0xf8] sm:$0xff]
      %v5239 = vpack.c.bf16 %v4645, %v4643
      %v5240 = vpack.c.bf16 %v4646, %v4644
      %v5241 = vpack.c.bf16 %v4649, %v4647
      %v5242 = vpack.c.bf16 %v4650, %v4648
      %v5243 = vpack.c.bf16 %v4653, %v4651
      %v5244 = vpack.c.bf16 %v4654, %v4652
      %v5245 = vpack.c.bf16 %v4657, %v4655
      %v5246 = vpack.c.bf16 %v4658, %v4656
      %v5247 = vpack.c.bf16 %v4661, %v4659
      %v5248 = vpack.c.bf16 %v4662, %v4660
      %v5249 = vpack.c.bf16 %v4665, %v4663
      %v5250 = vpack.c.bf16 %v4666, %v4664
      %v5251 = vpack.c.bf16 %v4669, %v4667
      %v5252 = vpack.c.bf16 %v4670, %v4668
      %v5253 = vpack.c.bf16 %v4673, %v4671
      %v5254 = vpack.c.bf16 %v4674, %v4672
      %v5255 = vpack.c.bf16 %v4677, %v4675
      %v5256 = vpack.c.bf16 %v4678, %v4676
      %v5257 = vpack.c.bf16 %v4681, %v4679
      %v5258 = vpack.c.bf16 %v4682, %v4680
      %v5259 = vpack.c.bf16 %v4685, %v4683
      %v5260 = vpack.c.bf16 %v4686, %v4684
      %v5261 = vpack.c.bf16 %v4689, %v4687
      %v5262 = vpack.c.bf16 %v4690, %v4688
      %v5263 = vpack.c.bf16 %v4693, %v4691
      %v5264 = vpack.c.bf16 %v4694, %v4692
      %v5265 = vpack.c.bf16 %v4697, %v4695
      %v5266 = vpack.c.bf16 %v4698, %v4696
      %v5267 = vpack.c.bf16 %v4701, %v4699
      %v5268 = vpack.c.bf16 %v4702, %v4700
      %v5269 = vpack.c.bf16 %v4705, %v4703
      %v5270 = vpack.c.bf16 %v4706, %v4704
      %s5271 = scalar_lea.vmem %s5, 16
      %v5272 = vld [vmem:[%s5271] ss:$8 sm:$0x3]
      %v5274 = vlaneseq
      %v5275 = vshrl.u32 %v5274, 7
      %v5276 = vsub.s32 0, %v5275
      %v5277 = vrot.slane %v5272, %v5276
      %v5278 = vlaneseq
      %v5279 = vshrl.u32 %v5278, 7
      %v5280 = vsub.s32 1, %v5279
      %v5281 = vrot.slane %v5272, %v5280
      %v5316 = vunpack.c.l.b16 %v5207
      %v5317 = vunpack.c.h.b16 %v5207
      %v5318 = vunpack.c.l.b16 %v5208
      %v5319 = vunpack.c.h.b16 %v5208
      %v5320 = vunpack.c.l.b16 %v5209
      %v5321 = vunpack.c.h.b16 %v5209
      %v5322 = vunpack.c.l.b16 %v5210
      %v5323 = vunpack.c.h.b16 %v5210
      %v5324 = vunpack.c.l.b16 %v5211
      %v5325 = vunpack.c.h.b16 %v5211
      %v5326 = vunpack.c.l.b16 %v5212
      %v5327 = vunpack.c.h.b16 %v5212
      %v5328 = vunpack.c.l.b16 %v5213
      %v5329 = vunpack.c.h.b16 %v5213
      %v5330 = vunpack.c.l.b16 %v5214
      %v5331 = vunpack.c.h.b16 %v5214
      %v5332 = vunpack.c.l.b16 %v5215
      %v5333 = vunpack.c.h.b16 %v5215
      %v5334 = vunpack.c.l.b16 %v5216
      %v5335 = vunpack.c.h.b16 %v5216
      %v5336 = vunpack.c.l.b16 %v5217
      %v5337 = vunpack.c.h.b16 %v5217
      %v5338 = vunpack.c.l.b16 %v5218
      %v5339 = vunpack.c.h.b16 %v5218
      %v5340 = vunpack.c.l.b16 %v5219
      %v5341 = vunpack.c.h.b16 %v5219
      %v5342 = vunpack.c.l.b16 %v5220
      %v5343 = vunpack.c.h.b16 %v5220
      %v5344 = vunpack.c.l.b16 %v5221
      %v5345 = vunpack.c.h.b16 %v5221
      %v5346 = vunpack.c.l.b16 %v5222
      %v5347 = vunpack.c.h.b16 %v5222
      %v5348 = vunpack.c.l.b16 %v5223
      %v5349 = vunpack.c.h.b16 %v5223
      %v5350 = vunpack.c.l.b16 %v5224
      %v5351 = vunpack.c.h.b16 %v5224
      %v5352 = vunpack.c.l.b16 %v5225
      %v5353 = vunpack.c.h.b16 %v5225
      %v5354 = vunpack.c.l.b16 %v5226
      %v5355 = vunpack.c.h.b16 %v5226
      %v5356 = vunpack.c.l.b16 %v5227
      %v5357 = vunpack.c.h.b16 %v5227
      %v5358 = vunpack.c.l.b16 %v5228
      %v5359 = vunpack.c.h.b16 %v5228
      %v5360 = vunpack.c.l.b16 %v5229
      %v5361 = vunpack.c.h.b16 %v5229
      %v5362 = vunpack.c.l.b16 %v5230
      %v5363 = vunpack.c.h.b16 %v5230
      %v5364 = vunpack.c.l.b16 %v5231
      %v5365 = vunpack.c.h.b16 %v5231
      %v5366 = vunpack.c.l.b16 %v5232
      %v5367 = vunpack.c.h.b16 %v5232
      %v5368 = vunpack.c.l.b16 %v5233
      %v5369 = vunpack.c.h.b16 %v5233
      %v5370 = vunpack.c.l.b16 %v5234
      %v5371 = vunpack.c.h.b16 %v5234
      %v5372 = vunpack.c.l.b16 %v5235
      %v5373 = vunpack.c.h.b16 %v5235
      %v5374 = vunpack.c.l.b16 %v5236
      %v5375 = vunpack.c.h.b16 %v5236
      %v5376 = vunpack.c.l.b16 %v5237
      %v5377 = vunpack.c.h.b16 %v5237
      %v5378 = vunpack.c.l.b16 %v5238
      %v5379 = vunpack.c.h.b16 %v5238
      %v5380 = vpack.c.b16 %v5318, %v5316
      %v5381 = vpack.c.b16 %v5319, %v5317
      %v5382 = vpack.c.b16 %v5322, %v5320
      %v5383 = vpack.c.b16 %v5323, %v5321
      %v5384 = vpack.c.b16 %v5326, %v5324
      %v5385 = vpack.c.b16 %v5327, %v5325
      %v5386 = vpack.c.b16 %v5330, %v5328
      %v5387 = vpack.c.b16 %v5331, %v5329
      %v5388 = vpack.c.b16 %v5334, %v5332
      %v5389 = vpack.c.b16 %v5335, %v5333
      %v5390 = vpack.c.b16 %v5338, %v5336
      %v5391 = vpack.c.b16 %v5339, %v5337
      %v5392 = vpack.c.b16 %v5342, %v5340
      %v5393 = vpack.c.b16 %v5343, %v5341
      %v5394 = vpack.c.b16 %v5346, %v5344
      %v5395 = vpack.c.b16 %v5347, %v5345
      %v5396 = vpack.c.b16 %v5350, %v5348
      %v5397 = vpack.c.b16 %v5351, %v5349
      %v5398 = vpack.c.b16 %v5354, %v5352
      %v5399 = vpack.c.b16 %v5355, %v5353
      %v5400 = vpack.c.b16 %v5358, %v5356
      %v5401 = vpack.c.b16 %v5359, %v5357
      %v5402 = vpack.c.b16 %v5362, %v5360
      %v5403 = vpack.c.b16 %v5363, %v5361
      %v5404 = vpack.c.b16 %v5366, %v5364
      %v5405 = vpack.c.b16 %v5367, %v5365
      %v5406 = vpack.c.b16 %v5370, %v5368
      %v5407 = vpack.c.b16 %v5371, %v5369
      %v5408 = vpack.c.b16 %v5374, %v5372
      %v5409 = vpack.c.b16 %v5375, %v5373
      %v5410 = vpack.c.b16 %v5378, %v5376
      %v5411 = vpack.c.b16 %v5379, %v5377
      %5444 = vmatprep.subr.bf16.mxu0 %v5381
      %5445 = vmatpush1.bf16.msra.mxu0 %v5380
      %5446 = vmatprep.subr.bf16.mxu0 %v5383
      %5447 = vmatpush1.bf16.msra.mxu0 %v5382
      %5448 = vmatprep.subr.bf16.mxu0 %v5385
      %5449 = vmatpush1.bf16.msra.mxu0 %v5384
      %5450 = vmatprep.subr.bf16.mxu0 %v5387
      %5451 = vmatpush1.bf16.msra.mxu0 %v5386
      %5452 = vmatprep.subr.bf16.mxu0 %v5389
      %5453 = vmatpush1.bf16.msra.mxu0 %v5388
      %5454 = vmatprep.subr.bf16.mxu0 %v5391
      %5455 = vmatpush1.bf16.msra.mxu0 %v5390
      %5456 = vmatprep.subr.bf16.mxu0 %v5393
      %5457 = vmatpush1.bf16.msra.mxu0 %v5392
      %5458 = vmatprep.subr.bf16.mxu0 %v5395
      %5459 = vmatpush1.bf16.msra.mxu0 %v5394
      %5460 = vmatprep.subr.bf16.mxu0 %v5397
      %5461 = vmatpush1.bf16.msra.mxu0 %v5396
      %5462 = vmatprep.subr.bf16.mxu0 %v5399
      %5463 = vmatpush1.bf16.msra.mxu0 %v5398
      %5464 = vmatprep.subr.bf16.mxu0 %v5401
      %5465 = vmatpush1.bf16.msra.mxu0 %v5400
      %5466 = vmatprep.subr.bf16.mxu0 %v5403
      %5467 = vmatpush1.bf16.msra.mxu0 %v5402
      %5468 = vmatprep.subr.bf16.mxu0 %v5405
      %5469 = vmatpush1.bf16.msra.mxu0 %v5404
      %5470 = vmatprep.subr.bf16.mxu0 %v5407
      %5471 = vmatpush1.bf16.msra.mxu0 %v5406
      %5472 = vmatprep.subr.bf16.mxu0 %v5409
      %5473 = vmatpush1.bf16.msra.mxu0 %v5408
      %5474 = vmatprep.subr.bf16.mxu0 %v5411
      %5475 = vmatpush1.bf16.msra.mxu0 %v5410
      %5476 = vmatprep.mubr.bf16.mxu0 %v5240
      %5477 = vmatmul.mubr.bf16.gmra.mrb[0].mxu0 %v5239
      %v5478 = vpop.f32.mrb[0].mxu0
      %v5479 = vadd.f32 %v5277, %v5478
      %v5480 = vpop.f32.mrb[0].mxu0
      %v5481 = vadd.f32 %v5281, %v5480
      %v5482 = vpop.f32.mrb[0].mxu0
      %v5483 = vadd.f32 %v5277, %v5482
      %v5484 = vpop.f32.mrb[0].mxu0
      %v5485 = vadd.f32 %v5281, %v5484
      %5486 = vmatprep.mubr.bf16.mxu0 %v5242
      %5487 = vmatmul.mubr.bf16.gmra.mrb[0].mxu0 %v5241
      %v5488 = vpop.f32.mrb[0].mxu0
      %v5489 = vadd.f32 %v5277, %v5488
      %v5490 = vpop.f32.mrb[0].mxu0
      %v5491 = vadd.f32 %v5281, %v5490
      %v5492 = vpop.f32.mrb[0].mxu0
      %v5493 = vadd.f32 %v5277, %v5492
      %v5494 = vpop.f32.mrb[0].mxu0
      %v5495 = vadd.f32 %v5281, %v5494
      %5496 = vmatprep.mubr.bf16.mxu0 %v5244
      %5497 = vmatmul.mubr.bf16.gmra.mrb[0].mxu0 %v5243
      %v5498 = vpop.f32.mrb[0].mxu0
      %v5499 = vadd.f32 %v5277, %v5498
      %v5500 = vpop.f32.mrb[0].mxu0
      %v5501 = vadd.f32 %v5281, %v5500
      %v5502 = vpop.f32.mrb[0].mxu0
      %v5503 = vadd.f32 %v5277, %v5502
      %v5504 = vpop.f32.mrb[0].mxu0
      %v5505 = vadd.f32 %v5281, %v5504
      %5506 = vmatprep.mubr.bf16.mxu0 %v5246
      %5507 = vmatmul.mubr.bf16.gmra.mrb[0].mxu0 %v5245
      %v5508 = vpop.f32.mrb[0].mxu0
      %v5509 = vadd.f32 %v5277, %v5508
      %v5510 = vpop.f32.mrb[0].mxu0
      %v5511 = vadd.f32 %v5281, %v5510
      %v5512 = vpop.f32.mrb[0].mxu0
      %v5513 = vadd.f32 %v5277, %v5512
      %v5514 = vpop.f32.mrb[0].mxu0
      %v5515 = vadd.f32 %v5281, %v5514
      %5516 = vmatprep.mubr.bf16.mxu0 %v5248
      %5517 = vmatmul.mubr.bf16.gmra.mrb[0].mxu0 %v5247
      %v5518 = vpop.f32.mrb[0].mxu0
      %v5519 = vadd.f32 %v5277, %v5518
      %v5520 = vpop.f32.mrb[0].mxu0
      %v5521 = vadd.f32 %v5281, %v5520
      %v5522 = vpop.f32.mrb[0].mxu0
      %v5523 = vadd.f32 %v5277, %v5522
      %v5524 = vpop.f32.mrb[0].mxu0
      %v5525 = vadd.f32 %v5281, %v5524
      %5526 = vmatprep.mubr.bf16.mxu0 %v5250
      %5527 = vmatmul.mubr.bf16.gmra.mrb[0].mxu0 %v5249
      %v5528 = vpop.f32.mrb[0].mxu0
      %v5529 = vadd.f32 %v5277, %v5528
      %v5530 = vpop.f32.mrb[0].mxu0
      %v5531 = vadd.f32 %v5281, %v5530
      %v5532 = vpop.f32.mrb[0].mxu0
      %v5533 = vadd.f32 %v5277, %v5532
      %v5534 = vpop.f32.mrb[0].mxu0
      %v5535 = vadd.f32 %v5281, %v5534
      %5536 = vmatprep.mubr.bf16.mxu0 %v5252
      %5537 = vmatmul.mubr.bf16.gmra.mrb[0].mxu0 %v5251
      %v5538 = vpop.f32.mrb[0].mxu0
      %v5539 = vadd.f32 %v5277, %v5538
      %v5540 = vpop.f32.mrb[0].mxu0
      %v5541 = vadd.f32 %v5281, %v5540
      %v5542 = vpop.f32.mrb[0].mxu0
      %v5543 = vadd.f32 %v5277, %v5542
      %v5544 = vpop.f32.mrb[0].mxu0
      %v5545 = vadd.f32 %v5281, %v5544
      %5546 = vmatprep.mubr.bf16.mxu0 %v5254
      %5547 = vmatmul.mubr.bf16.gmra.mrb[0].mxu0 %v5253
      %v5548 = vpop.f32.mrb[0].mxu0
      %v5549 = vadd.f32 %v5277, %v5548
      %v5550 = vpop.f32.mrb[0].mxu0
      %v5551 = vadd.f32 %v5281, %v5550
      %v5552 = vpop.f32.mrb[0].mxu0
      %v5553 = vadd.f32 %v5277, %v5552
      %v5554 = vpop.f32.mrb[0].mxu0
      %v5555 = vadd.f32 %v5281, %v5554
      %5556 = vmatprep.mubr.bf16.mxu0 %v5256
      %5557 = vmatmul.mubr.bf16.gmra.mrb[0].mxu0 %v5255
      %v5558 = vpop.f32.mrb[0].mxu0
      %v5559 = vadd.f32 %v5277, %v5558
      %v5560 = vpop.f32.mrb[0].mxu0
      %v5561 = vadd.f32 %v5281, %v5560
      %v5562 = vpop.f32.mrb[0].mxu0
      %v5563 = vadd.f32 %v5277, %v5562
      %v5564 = vpop.f32.mrb[0].mxu0
      %v5565 = vadd.f32 %v5281, %v5564
      %5566 = vmatprep.mubr.bf16.mxu0 %v5258
      %5567 = vmatmul.mubr.bf16.gmra.mrb[0].mxu0 %v5257
      %v5568 = vpop.f32.mrb[0].mxu0
      %v5569 = vadd.f32 %v5277, %v5568
      %v5570 = vpop.f32.mrb[0].mxu0
      %v5571 = vadd.f32 %v5281, %v5570
      %v5572 = vpop.f32.mrb[0].mxu0
      %v5573 = vadd.f32 %v5277, %v5572
      %v5574 = vpop.f32.mrb[0].mxu0
      %v5575 = vadd.f32 %v5281, %v5574
      %5576 = vmatprep.mubr.bf16.mxu0 %v5260
      %5577 = vmatmul.mubr.bf16.gmra.mrb[0].mxu0 %v5259
      %v5578 = vpop.f32.mrb[0].mxu0
      %v5579 = vadd.f32 %v5277, %v5578
      %v5580 = vpop.f32.mrb[0].mxu0
      %v5581 = vadd.f32 %v5281, %v5580
      %v5582 = vpop.f32.mrb[0].mxu0
      %v5583 = vadd.f32 %v5277, %v5582
      %v5584 = vpop.f32.mrb[0].mxu0
      %v5585 = vadd.f32 %v5281, %v5584
      %5586 = vmatprep.mubr.bf16.mxu0 %v5262
      %5587 = vmatmul.mubr.bf16.gmra.mrb[0].mxu0 %v5261
      %v5588 = vpop.f32.mrb[0].mxu0
      %v5589 = vadd.f32 %v5277, %v5588
      %v5590 = vpop.f32.mrb[0].mxu0
      %v5591 = vadd.f32 %v5281, %v5590
      %v5592 = vpop.f32.mrb[0].mxu0
      %v5593 = vadd.f32 %v5277, %v5592
      %v5594 = vpop.f32.mrb[0].mxu0
      %v5595 = vadd.f32 %v5281, %v5594
      %5596 = vmatprep.mubr.bf16.mxu0 %v5264
      %5597 = vmatmul.mubr.bf16.gmra.mrb[0].mxu0 %v5263
      %v5598 = vpop.f32.mrb[0].mxu0
      %v5599 = vadd.f32 %v5277, %v5598
      %v5600 = vpop.f32.mrb[0].mxu0
      %v5601 = vadd.f32 %v5281, %v5600
      %v5602 = vpop.f32.mrb[0].mxu0
      %v5603 = vadd.f32 %v5277, %v5602
      %v5604 = vpop.f32.mrb[0].mxu0
      %v5605 = vadd.f32 %v5281, %v5604
      %5606 = vmatprep.mubr.bf16.mxu0 %v5266
      %5607 = vmatmul.mubr.bf16.gmra.mrb[0].mxu0 %v5265
      %v5608 = vpop.f32.mrb[0].mxu0
      %v5609 = vadd.f32 %v5277, %v5608
      %v5610 = vpop.f32.mrb[0].mxu0
      %v5611 = vadd.f32 %v5281, %v5610
      %v5612 = vpop.f32.mrb[0].mxu0
      %v5613 = vadd.f32 %v5277, %v5612
      %v5614 = vpop.f32.mrb[0].mxu0
      %v5615 = vadd.f32 %v5281, %v5614
      %5616 = vmatprep.mubr.bf16.mxu0 %v5268
      %5617 = vmatmul.mubr.bf16.gmra.mrb[0].mxu0 %v5267
      %v5618 = vpop.f32.mrb[0].mxu0
      %v5619 = vadd.f32 %v5277, %v5618
      %v5620 = vpop.f32.mrb[0].mxu0
      %v5621 = vadd.f32 %v5281, %v5620
      %v5622 = vpop.f32.mrb[0].mxu0
      %v5623 = vadd.f32 %v5277, %v5622
      %v5624 = vpop.f32.mrb[0].mxu0
      %v5625 = vadd.f32 %v5281, %v5624
      %5626 = vmatprep.mubr.bf16.mxu0 %v5270
      %5627 = vmatmul.mubr.bf16.gmra.mrb[0].mxu0 %v5269
      %v5628 = vpop.f32.mrb[0].mxu0
      %v5629 = vadd.f32 %v5277, %v5628
      %v5630 = vpop.f32.mrb[0].mxu0
      %v5631 = vadd.f32 %v5281, %v5630
      %v5632 = vpop.f32.mrb[0].mxu0
      %v5633 = vadd.f32 %v5277, %v5632
      %v5634 = vpop.f32.mrb[0].mxu0
      %v5635 = vadd.f32 %v5281, %v5634
      %5636 = vdwg.mxu0
      %v5637 = vld [vmem:[%s7] sm:$0xf]
      %v5638 = vld [vmem:[%s7 + $0x4] sm:$0xf]
      %v5639 = vld [vmem:[%s7 + $0x8] sm:$0xf]
      %v5640 = vld [vmem:[%s7 + $0xc] sm:$0xf]
      %v5641 = vld [vmem:[%s7 + $0x10] sm:$0xf]
      %v5642 = vld [vmem:[%s7 + $0x14] sm:$0xf]
      %v5643 = vld [vmem:[%s7 + $0x18] sm:$0xf]
      %v5644 = vld [vmem:[%s7 + $0x1c] sm:$0xf]
      %v5645 = vld [vmem:[%s7 + $0x20] sm:$0xf]
      %v5646 = vld [vmem:[%s7 + $0x24] sm:$0xf]
      %v5647 = vld [vmem:[%s7 + $0x28] sm:$0xf]
      %v5648 = vld [vmem:[%s7 + $0x2c] sm:$0xf]
      %v5649 = vld [vmem:[%s7 + $0x30] sm:$0xf]
      %v5650 = vld [vmem:[%s7 + $0x34] sm:$0xf]
      %v5651 = vld [vmem:[%s7 + $0x38] sm:$0xf]
      %v5652 = vld [vmem:[%s7 + $0x3c] sm:$0xf]
      %v5653 = vld [vmem:[%s7 + $0x40] sm:$0xf]
      %v5654 = vld [vmem:[%s7 + $0x44] sm:$0xf]
      %v5655 = vld [vmem:[%s7 + $0x48] sm:$0xf]
      %v5656 = vld [vmem:[%s7 + $0x4c] sm:$0xf]
      %v5657 = vld [vmem:[%s7 + $0x50] sm:$0xf]
      %v5658 = vld [vmem:[%s7 + $0x54] sm:$0xf]
      %v5659 = vld [vmem:[%s7 + $0x58] sm:$0xf]
      %v5660 = vld [vmem:[%s7 + $0x5c] sm:$0xf]
      %v5661 = vld [vmem:[%s7 + $0x60] sm:$0xf]
      %v5662 = vld [vmem:[%s7 + $0x64] sm:$0xf]
      %v5663 = vld [vmem:[%s7 + $0x68] sm:$0xf]
      %v5664 = vld [vmem:[%s7 + $0x6c] sm:$0xf]
      %v5665 = vld [vmem:[%s7 + $0x70] sm:$0xf]
      %v5666 = vld [vmem:[%s7 + $0x74] sm:$0xf]
      %v5667 = vld [vmem:[%s7 + $0x78] sm:$0xf]
      %v5668 = vld [vmem:[%s7 + $0x7c] sm:$0xf]
      %v5669 = vpack.c.bf16 %v5483, %v5479
      %v5670 = vpack.c.bf16 %v5485, %v5481
      %v5671 = vpack.c.bf16 %v5493, %v5489
      %v5672 = vpack.c.bf16 %v5495, %v5491
      %v5673 = vpack.c.bf16 %v5503, %v5499
      %v5674 = vpack.c.bf16 %v5505, %v5501
      %v5675 = vpack.c.bf16 %v5513, %v5509
      %v5676 = vpack.c.bf16 %v5515, %v5511
      %v5677 = vpack.c.bf16 %v5523, %v5519
      %v5678 = vpack.c.bf16 %v5525, %v5521
      %v5679 = vpack.c.bf16 %v5533, %v5529
      %v5680 = vpack.c.bf16 %v5535, %v5531
      %v5681 = vpack.c.bf16 %v5543, %v5539
      %v5682 = vpack.c.bf16 %v5545, %v5541
      %v5683 = vpack.c.bf16 %v5553, %v5549
      %v5684 = vpack.c.bf16 %v5555, %v5551
      %v5685 = vpack.c.bf16 %v5563, %v5559
      %v5686 = vpack.c.bf16 %v5565, %v5561
      %v5687 = vpack.c.bf16 %v5573, %v5569
      %v5688 = vpack.c.bf16 %v5575, %v5571
      %v5689 = vpack.c.bf16 %v5583, %v5579
      %v5690 = vpack.c.bf16 %v5585, %v5581
      %v5691 = vpack.c.bf16 %v5593, %v5589
      %v5692 = vpack.c.bf16 %v5595, %v5591
      %v5693 = vpack.c.bf16 %v5603, %v5599
      %v5694 = vpack.c.bf16 %v5605, %v5601
      %v5695 = vpack.c.bf16 %v5613, %v5609
      %v5696 = vpack.c.bf16 %v5615, %v5611
      %v5697 = vpack.c.bf16 %v5623, %v5619
      %v5698 = vpack.c.bf16 %v5625, %v5621
      %v5699 = vpack.c.bf16 %v5633, %v5629
      %v5700 = vpack.c.bf16 %v5635, %v5631
      %v5701 = vld [vmem:[%s8] sm:$0xf]
      %v5702 = vld [vmem:[%s8 + $0x4] sm:$0xf]
      %v5703 = vld [vmem:[%s8 + $0x8] sm:$0xf]
      %v5704 = vld [vmem:[%s8 + $0xc] sm:$0xf]
      %v5705 = vld [vmem:[%s8 + $0x10] sm:$0xf]
      %v5706 = vld [vmem:[%s8 + $0x14] sm:$0xf]
      %v5707 = vld [vmem:[%s8 + $0x18] sm:$0xf]
      %v5708 = vld [vmem:[%s8 + $0x1c] sm:$0xf]
      %v5717 = vunpack.c.l.b16 %v5701
      %v5718 = vunpack.c.l.b16 %v5702
      %v5719 = vunpack.c.l.b16 %v5703
      %v5720 = vunpack.c.l.b16 %v5704
      %v5721 = vunpack.c.l.b16 %v5705
      %v5722 = vunpack.c.l.b16 %v5706
      %v5723 = vunpack.c.l.b16 %v5707
      %v5724 = vunpack.c.l.b16 %v5708
      %v5725 = vpack.c.b16 %v5718, %v5717
      %v5726 = vpack.c.b16 %v5720, %v5719
      %v5727 = vpack.c.b16 %v5722, %v5721
      %v5728 = vpack.c.b16 %v5724, %v5723
      %vm5733 = vcmask 523264
      %v5735 = vsel %vm5733, %v547, 0
      %v5738 = vsel %vm5733, %v548, 0
      %v5741 = vsel %vm5733, %v549, 0
      %v5744 = vsel %vm5733, %v550, 0
      %v5747 = vsel %vm5733, %v551, 0
      %v5750 = vsel %vm5733, %v552, 0
      %v5753 = vsel %vm5733, %v553, 0
      %v5756 = vsel %vm5733, %v554, 0
      %v5759 = vsel %vm5733, %v555, 0
      %v5762 = vsel %vm5733, %v556, 0
      %v5765 = vsel %vm5733, %v557, 0
      %v5768 = vsel %vm5733, %v558, 0
      %v5771 = vsel %vm5733, %v559, 0
      %v5774 = vsel %vm5733, %v560, 0
      %v5777 = vsel %vm5733, %v561, 0
      %v5780 = vsel %vm5733, %v562, 0
      %5782 = vmatprep.subr.bf16.mxu0 0
      %5783 = vmatpush1.bf16.msra.mxu0 %v5725
      %5784 = vmatprep.subr.bf16.mxu0 0
      %5785 = vmatpush1.bf16.msra.mxu0 %v5726
      %5786 = vmatprep.subr.bf16.mxu0 0
      %5787 = vmatpush1.bf16.msra.mxu0 %v5727
      %5788 = vmatprep.subr.bf16.mxu0 0
      %5789 = vmatpush1.bf16.msra.mxu0 %v5728
      %5790 = vmatprep.subr.bf16.mxu0 0
      %5791 = vmatpush1.bf16.msra.mxu0 0
      %5792 = vmatprep.subr.bf16.mxu0 0
      %5793 = vmatpush1.bf16.msra.mxu0 0
      %5794 = vmatprep.subr.bf16.mxu0 0
      %5795 = vmatpush1.bf16.msra.mxu0 0
      %5796 = vmatprep.subr.bf16.mxu0 0
      %5797 = vmatpush1.bf16.msra.mxu0 0
      %5798 = vmatprep.subr.bf16.mxu0 0
      %5799 = vmatpush1.bf16.msra.mxu0 0
      %5800 = vmatprep.subr.bf16.mxu0 0
      %5801 = vmatpush1.bf16.msra.mxu0 0
      %5802 = vmatprep.subr.bf16.mxu0 0
      %5803 = vmatpush1.bf16.msra.mxu0 0
      %5804 = vmatprep.subr.bf16.mxu0 0
      %5805 = vmatpush1.bf16.msra.mxu0 0
      %5806 = vmatprep.subr.bf16.mxu0 0
      %5807 = vmatpush1.bf16.msra.mxu0 0
      %5808 = vmatprep.subr.bf16.mxu0 0
      %5809 = vmatpush1.bf16.msra.mxu0 0
      %5810 = vmatprep.subr.bf16.mxu0 0
      %5811 = vmatpush1.bf16.msra.mxu0 0
      %5812 = vmatprep.subr.bf16.mxu0 0
      %5813 = vmatpush1.bf16.msra.mxu0 0
      %5814 = vmatprep.mubr.bf16.mxu0 0
      %5815 = vmatmul.mubr.bf16.gmra.mrb[0].mxu0 %v5735
      %v5816 = vpop.f32.mrb[0].mxu0
      %v5817 = vadd.f32 0.0, %v5816
      %v5818 = vpop.f32.mrb[0].mxu0
      %v5819 = vpop.f32.mrb[0].mxu0
      %v5820 = vadd.f32 0.0, %v5819
      %v5821 = vpop.f32.mrb[0].mxu0
      %5822 = vmatprep.mubr.bf16.mxu0 0
      %5823 = vmatmul.mubr.bf16.gmra.mrb[0].mxu0 %v5738
      %v5824 = vpop.f32.mrb[0].mxu0
      %v5825 = vadd.f32 0.0, %v5824
      %v5826 = vpop.f32.mrb[0].mxu0
      %v5827 = vpop.f32.mrb[0].mxu0
      %v5828 = vadd.f32 0.0, %v5827
      %v5829 = vpop.f32.mrb[0].mxu0
      %5830 = vmatprep.mubr.bf16.mxu0 0
      %5831 = vmatmul.mubr.bf16.gmra.mrb[0].mxu0 %v5741
      %v5832 = vpop.f32.mrb[0].mxu0
      %v5833 = vadd.f32 0.0, %v5832
      %v5834 = vpop.f32.mrb[0].mxu0
      %v5835 = vpop.f32.mrb[0].mxu0
      %v5836 = vadd.f32 0.0, %v5835
      %v5837 = vpop.f32.mrb[0].mxu0
      %5838 = vmatprep.mubr.bf16.mxu0 0
      %5839 = vmatmul.mubr.bf16.gmra.mrb[0].mxu0 %v5744
      %v5840 = vpop.f32.mrb[0].mxu0
      %v5841 = vadd.f32 0.0, %v5840
      %v5842 = vpop.f32.mrb[0].mxu0
      %v5843 = vpop.f32.mrb[0].mxu0
      %v5844 = vadd.f32 0.0, %v5843
      %v5845 = vpop.f32.mrb[0].mxu0
      %5846 = vmatprep.mubr.bf16.mxu0 0
      %5847 = vmatmul.mubr.bf16.gmra.mrb[0].mxu0 %v5747
      %v5848 = vpop.f32.mrb[0].mxu0
      %v5849 = vadd.f32 0.0, %v5848
      %v5850 = vpop.f32.mrb[0].mxu0
      %v5851 = vpop.f32.mrb[0].mxu0
      %v5852 = vadd.f32 0.0, %v5851
      %v5853 = vpop.f32.mrb[0].mxu0
      %5854 = vmatprep.mubr.bf16.mxu0 0
      %5855 = vmatmul.mubr.bf16.gmra.mrb[0].mxu0 %v5750
      %v5856 = vpop.f32.mrb[0].mxu0
      %v5857 = vadd.f32 0.0, %v5856
      %v5858 = vpop.f32.mrb[0].mxu0
      %v5859 = vpop.f32.mrb[0].mxu0
      %v5860 = vadd.f32 0.0, %v5859
      %v5861 = vpop.f32.mrb[0].mxu0
      %5862 = vmatprep.mubr.bf16.mxu0 0
      %5863 = vmatmul.mubr.bf16.gmra.mrb[0].mxu0 %v5753
      %v5864 = vpop.f32.mrb[0].mxu0
      %v5865 = vadd.f32 0.0, %v5864
      %v5866 = vpop.f32.mrb[0].mxu0
      %v5867 = vpop.f32.mrb[0].mxu0
      %v5868 = vadd.f32 0.0, %v5867
      %v5869 = vpop.f32.mrb[0].mxu0
      %5870 = vmatprep.mubr.bf16.mxu0 0
      %5871 = vmatmul.mubr.bf16.gmra.mrb[0].mxu0 %v5756
      %v5872 = vpop.f32.mrb[0].mxu0
      %v5873 = vadd.f32 0.0, %v5872
      %v5874 = vpop.f32.mrb[0].mxu0
      %v5875 = vpop.f32.mrb[0].mxu0
      %v5876 = vadd.f32 0.0, %v5875
      %v5877 = vpop.f32.mrb[0].mxu0
      %5878 = vmatprep.mubr.bf16.mxu0 0
      %5879 = vmatmul.mubr.bf16.gmra.mrb[0].mxu0 %v5759
      %v5880 = vpop.f32.mrb[0].mxu0
      %v5881 = vadd.f32 0.0, %v5880
      %v5882 = vpop.f32.mrb[0].mxu0
      %v5883 = vpop.f32.mrb[0].mxu0
      %v5884 = vadd.f32 0.0, %v5883
      %v5885 = vpop.f32.mrb[0].mxu0
      %5886 = vmatprep.mubr.bf16.mxu0 0
      %5887 = vmatmul.mubr.bf16.gmra.mrb[0].mxu0 %v5762
      %v5888 = vpop.f32.mrb[0].mxu0
      %v5889 = vadd.f32 0.0, %v5888
      %v5890 = vpop.f32.mrb[0].mxu0
      %v5891 = vpop.f32.mrb[0].mxu0
      %v5892 = vadd.f32 0.0, %v5891
      %v5893 = vpop.f32.mrb[0].mxu0
      %5894 = vmatprep.mubr.bf16.mxu0 0
      %5895 = vmatmul.mubr.bf16.gmra.mrb[0].mxu0 %v5765
      %v5896 = vpop.f32.mrb[0].mxu0
      %v5897 = vadd.f32 0.0, %v5896
      %v5898 = vpop.f32.mrb[0].mxu0
      %v5899 = vpop.f32.mrb[0].mxu0
      %v5900 = vadd.f32 0.0, %v5899
      %v5901 = vpop.f32.mrb[0].mxu0
      %5902 = vmatprep.mubr.bf16.mxu0 0
      %5903 = vmatmul.mubr.bf16.gmra.mrb[0].mxu0 %v5768
      %v5904 = vpop.f32.mrb[0].mxu0
      %v5905 = vadd.f32 0.0, %v5904
      %v5906 = vpop.f32.mrb[0].mxu0
      %v5907 = vpop.f32.mrb[0].mxu0
      %v5908 = vadd.f32 0.0, %v5907
      %v5909 = vpop.f32.mrb[0].mxu0
      %5910 = vmatprep.mubr.bf16.mxu0 0
      %5911 = vmatmul.mubr.bf16.gmra.mrb[0].mxu0 %v5771
      %v5912 = vpop.f32.mrb[0].mxu0
      %v5913 = vadd.f32 0.0, %v5912
      %v5914 = vpop.f32.mrb[0].mxu0
      %v5915 = vpop.f32.mrb[0].mxu0
      %v5916 = vadd.f32 0.0, %v5915
      %v5917 = vpop.f32.mrb[0].mxu0
      %5918 = vmatprep.mubr.bf16.mxu0 0
      %5919 = vmatmul.mubr.bf16.gmra.mrb[0].mxu0 %v5774
      %v5920 = vpop.f32.mrb[0].mxu0
      %v5921 = vadd.f32 0.0, %v5920
      %v5922 = vpop.f32.mrb[0].mxu0
      %v5923 = vpop.f32.mrb[0].mxu0
      %v5924 = vadd.f32 0.0, %v5923
      %v5925 = vpop.f32.mrb[0].mxu0
      %5926 = vmatprep.mubr.bf16.mxu0 0
      %5927 = vmatmul.mubr.bf16.gmra.mrb[0].mxu0 %v5777
      %v5928 = vpop.f32.mrb[0].mxu0
      %v5929 = vadd.f32 0.0, %v5928
      %v5930 = vpop.f32.mrb[0].mxu0
      %v5931 = vpop.f32.mrb[0].mxu0
      %v5932 = vadd.f32 0.0, %v5931
      %v5933 = vpop.f32.mrb[0].mxu0
      %5934 = vmatprep.mubr.bf16.mxu0 0
      %5935 = vmatmul.mubr.bf16.gmra.mrb[0].mxu0 %v5780
      %v5936 = vpop.f32.mrb[0].mxu0
      %v5937 = vadd.f32 0.0, %v5936
      %v5938 = vpop.f32.mrb[0].mxu0
      %v5939 = vpop.f32.mrb[0].mxu0
      %v5940 = vadd.f32 0.0, %v5939
      %v5941 = vpop.f32.mrb[0].mxu0
      %5942 = vdwg.mxu0
      %v5975 = vunpack.c.l.b16 %v5637
      %v5976 = vunpack.c.l.b16 %v5638
      %v5977 = vunpack.c.l.b16 %v5639
      %v5978 = vunpack.c.l.b16 %v5640
      %v5979 = vunpack.c.l.b16 %v5641
      %v5980 = vunpack.c.l.b16 %v5642
      %v5981 = vunpack.c.l.b16 %v5643
      %v5982 = vunpack.c.l.b16 %v5644
      %v5983 = vunpack.c.l.b16 %v5645
      %v5984 = vunpack.c.l.b16 %v5646
      %v5985 = vunpack.c.l.b16 %v5647
      %v5986 = vunpack.c.l.b16 %v5648
      %v5987 = vunpack.c.l.b16 %v5649
      %v5988 = vunpack.c.l.b16 %v5650
      %v5989 = vunpack.c.l.b16 %v5651
      %v5990 = vunpack.c.l.b16 %v5652
      %v5991 = vunpack.c.l.b16 %v5653
      %v5992 = vunpack.c.l.b16 %v5654
      %v5993 = vunpack.c.l.b16 %v5655
      %v5994 = vunpack.c.l.b16 %v5656
      %v5995 = vunpack.c.l.b16 %v5657
      %v5996 = vunpack.c.l.b16 %v5658
      %v5997 = vunpack.c.l.b16 %v5659
      %v5998 = vunpack.c.l.b16 %v5660
      %v5999 = vunpack.c.l.b16 %v5661
      %v6000 = vunpack.c.l.b16 %v5662
      %v6001 = vunpack.c.l.b16 %v5663
      %v6002 = vunpack.c.l.b16 %v5664
      %v6003 = vunpack.c.l.b16 %v5665
      %v6004 = vunpack.c.l.b16 %v5666
      %v6005 = vunpack.c.l.b16 %v5667
      %v6006 = vunpack.c.l.b16 %v5668
      %v6007 = vpack.c.b16 %v5976, %v5975
      %v6008 = vpack.c.b16 %v5978, %v5977
      %v6009 = vpack.c.b16 %v5980, %v5979
      %v6010 = vpack.c.b16 %v5982, %v5981
      %v6011 = vpack.c.b16 %v5984, %v5983
      %v6012 = vpack.c.b16 %v5986, %v5985
      %v6013 = vpack.c.b16 %v5988, %v5987
      %v6014 = vpack.c.b16 %v5990, %v5989
      %v6015 = vpack.c.b16 %v5992, %v5991
      %v6016 = vpack.c.b16 %v5994, %v5993
      %v6017 = vpack.c.b16 %v5996, %v5995
      %v6018 = vpack.c.b16 %v5998, %v5997
      %v6019 = vpack.c.b16 %v6000, %v5999
      %v6020 = vpack.c.b16 %v6002, %v6001
      %v6021 = vpack.c.b16 %v6004, %v6003
      %v6022 = vpack.c.b16 %v6006, %v6005
      %6039 = vmatprep.subr.bf16.mxu0 0
      %6040 = vmatpush1.bf16.msra.mxu0 %v6007
      %6041 = vmatprep.subr.bf16.mxu0 0
      %6042 = vmatpush1.bf16.msra.mxu0 %v6008
      %6043 = vmatprep.subr.bf16.mxu0 0
      %6044 = vmatpush1.bf16.msra.mxu0 %v6009
      %6045 = vmatprep.subr.bf16.mxu0 0
      %6046 = vmatpush1.bf16.msra.mxu0 %v6010
      %6047 = vmatprep.subr.bf16.mxu0 0
      %6048 = vmatpush1.bf16.msra.mxu0 %v6011
      %6049 = vmatprep.subr.bf16.mxu0 0
      %6050 = vmatpush1.bf16.msra.mxu0 %v6012
      %6051 = vmatprep.subr.bf16.mxu0 0
      %6052 = vmatpush1.bf16.msra.mxu0 %v6013
      %6053 = vmatprep.subr.bf16.mxu0 0
      %6054 = vmatpush1.bf16.msra.mxu0 %v6014
      %6055 = vmatprep.subr.bf16.mxu0 0
      %6056 = vmatpush1.bf16.msra.mxu0 %v6015
      %6057 = vmatprep.subr.bf16.mxu0 0
      %6058 = vmatpush1.bf16.msra.mxu0 %v6016
      %6059 = vmatprep.subr.bf16.mxu0 0
      %6060 = vmatpush1.bf16.msra.mxu0 %v6017
      %6061 = vmatprep.subr.bf16.mxu0 0
      %6062 = vmatpush1.bf16.msra.mxu0 %v6018
      %6063 = vmatprep.subr.bf16.mxu0 0
      %6064 = vmatpush1.bf16.msra.mxu0 %v6019
      %6065 = vmatprep.subr.bf16.mxu0 0
      %6066 = vmatpush1.bf16.msra.mxu0 %v6020
      %6067 = vmatprep.subr.bf16.mxu0 0
      %6068 = vmatpush1.bf16.msra.mxu0 %v6021
      %6069 = vmatprep.subr.bf16.mxu0 0
      %6070 = vmatpush1.bf16.msra.mxu0 %v6022
      %6071 = vmatprep.mubr.bf16.mxu0 %v5670
      %6072 = vmatmul.mubr.bf16.gmra.mrb[0].mxu0 %v5669
      %v6073 = vpop.f32.mrb[0].mxu0
      %v6074 = vadd.f32 %v5817, %v6073
      %v6075 = vpop.f32.mrb[0].mxu0
      %v6076 = vpop.f32.mrb[0].mxu0
      %v6077 = vadd.f32 %v5820, %v6076
      %v6078 = vpop.f32.mrb[0].mxu0
      %6079 = vmatprep.mubr.bf16.mxu0 %v5672
      %6080 = vmatmul.mubr.bf16.gmra.mrb[0].mxu0 %v5671
      %v6081 = vpop.f32.mrb[0].mxu0
      %v6082 = vadd.f32 %v5825, %v6081
      %v6083 = vpop.f32.mrb[0].mxu0
      %v6084 = vpop.f32.mrb[0].mxu0
      %v6085 = vadd.f32 %v5828, %v6084
      %v6086 = vpop.f32.mrb[0].mxu0
      %6087 = vmatprep.mubr.bf16.mxu0 %v5674
      %6088 = vmatmul.mubr.bf16.gmra.mrb[0].mxu0 %v5673
      %v6089 = vpop.f32.mrb[0].mxu0
      %v6090 = vadd.f32 %v5833, %v6089
      %v6091 = vpop.f32.mrb[0].mxu0
      %v6092 = vpop.f32.mrb[0].mxu0
      %v6093 = vadd.f32 %v5836, %v6092
      %v6094 = vpop.f32.mrb[0].mxu0
      %6095 = vmatprep.mubr.bf16.mxu0 %v5676
      %6096 = vmatmul.mubr.bf16.gmra.mrb[0].mxu0 %v5675
      %v6097 = vpop.f32.mrb[0].mxu0
      %v6098 = vadd.f32 %v5841, %v6097
      %v6099 = vpop.f32.mrb[0].mxu0
      %v6100 = vpop.f32.mrb[0].mxu0
      %v6101 = vadd.f32 %v5844, %v6100
      %v6102 = vpop.f32.mrb[0].mxu0
      %6103 = vmatprep.mubr.bf16.mxu0 %v5678
      %6104 = vmatmul.mubr.bf16.gmra.mrb[0].mxu0 %v5677
      %v6105 = vpop.f32.mrb[0].mxu0
      %v6106 = vadd.f32 %v5849, %v6105
      %v6107 = vpop.f32.mrb[0].mxu0
      %v6108 = vpop.f32.mrb[0].mxu0
      %v6109 = vadd.f32 %v5852, %v6108
      %v6110 = vpop.f32.mrb[0].mxu0
      %6111 = vmatprep.mubr.bf16.mxu0 %v5680
      %6112 = vmatmul.mubr.bf16.gmra.mrb[0].mxu0 %v5679
      %v6113 = vpop.f32.mrb[0].mxu0
      %v6114 = vadd.f32 %v5857, %v6113
      %v6115 = vpop.f32.mrb[0].mxu0
      %v6116 = vpop.f32.mrb[0].mxu0
      %v6117 = vadd.f32 %v5860, %v6116
      %v6118 = vpop.f32.mrb[0].mxu0
      %6119 = vmatprep.mubr.bf16.mxu0 %v5682
      %6120 = vmatmul.mubr.bf16.gmra.mrb[0].mxu0 %v5681
      %v6121 = vpop.f32.mrb[0].mxu0
      %v6122 = vadd.f32 %v5865, %v6121
      %v6123 = vpop.f32.mrb[0].mxu0
      %v6124 = vpop.f32.mrb[0].mxu0
      %v6125 = vadd.f32 %v5868, %v6124
      %v6126 = vpop.f32.mrb[0].mxu0
      %6127 = vmatprep.mubr.bf16.mxu0 %v5684
      %6128 = vmatmul.mubr.bf16.gmra.mrb[0].mxu0 %v5683
      %v6129 = vpop.f32.mrb[0].mxu0
      %v6130 = vadd.f32 %v5873, %v6129
      %v6131 = vpop.f32.mrb[0].mxu0
      %v6132 = vpop.f32.mrb[0].mxu0
      %v6133 = vadd.f32 %v5876, %v6132
      %v6134 = vpop.f32.mrb[0].mxu0
      %6135 = vmatprep.mubr.bf16.mxu0 %v5686
      %6136 = vmatmul.mubr.bf16.gmra.mrb[0].mxu0 %v5685
      %v6137 = vpop.f32.mrb[0].mxu0
      %v6138 = vadd.f32 %v5881, %v6137
      %v6139 = vpop.f32.mrb[0].mxu0
      %v6140 = vpop.f32.mrb[0].mxu0
      %v6141 = vadd.f32 %v5884, %v6140
      %v6142 = vpop.f32.mrb[0].mxu0
      %6143 = vmatprep.mubr.bf16.mxu0 %v5688
      %6144 = vmatmul.mubr.bf16.gmra.mrb[0].mxu0 %v5687
      %v6145 = vpop.f32.mrb[0].mxu0
      %v6146 = vadd.f32 %v5889, %v6145
      %v6147 = vpop.f32.mrb[0].mxu0
      %v6148 = vpop.f32.mrb[0].mxu0
      %v6149 = vadd.f32 %v5892, %v6148
      %v6150 = vpop.f32.mrb[0].mxu0
      %6151 = vmatprep.mubr.bf16.mxu0 %v5690
      %6152 = vmatmul.mubr.bf16.gmra.mrb[0].mxu0 %v5689
      %v6153 = vpop.f32.mrb[0].mxu0
      %v6154 = vadd.f32 %v5897, %v6153
      %v6155 = vpop.f32.mrb[0].mxu0
      %v6156 = vpop.f32.mrb[0].mxu0
      %v6157 = vadd.f32 %v5900, %v6156
      %v6158 = vpop.f32.mrb[0].mxu0
      %6159 = vmatprep.mubr.bf16.mxu0 %v5692
      %6160 = vmatmul.mubr.bf16.gmra.mrb[0].mxu0 %v5691
      %v6161 = vpop.f32.mrb[0].mxu0
      %v6162 = vadd.f32 %v5905, %v6161
      %v6163 = vpop.f32.mrb[0].mxu0
      %v6164 = vpop.f32.mrb[0].mxu0
      %v6165 = vadd.f32 %v5908, %v6164
      %v6166 = vpop.f32.mrb[0].mxu0
      %6167 = vmatprep.mubr.bf16.mxu0 %v5694
      %6168 = vmatmul.mubr.bf16.gmra.mrb[0].mxu0 %v5693
      %v6169 = vpop.f32.mrb[0].mxu0
      %v6170 = vadd.f32 %v5913, %v6169
      %v6171 = vpop.f32.mrb[0].mxu0
      %v6172 = vpop.f32.mrb[0].mxu0
      %v6173 = vadd.f32 %v5916, %v6172
      %v6174 = vpop.f32.mrb[0].mxu0
      %6175 = vmatprep.mubr.bf16.mxu0 %v5696
      %6176 = vmatmul.mubr.bf16.gmra.mrb[0].mxu0 %v5695
      %v6177 = vpop.f32.mrb[0].mxu0
      %v6178 = vadd.f32 %v5921, %v6177
      %v6179 = vpop.f32.mrb[0].mxu0
      %v6180 = vpop.f32.mrb[0].mxu0
      %v6181 = vadd.f32 %v5924, %v6180
      %v6182 = vpop.f32.mrb[0].mxu0
      %6183 = vmatprep.mubr.bf16.mxu0 %v5698
      %6184 = vmatmul.mubr.bf16.gmra.mrb[0].mxu0 %v5697
      %v6185 = vpop.f32.mrb[0].mxu0
      %v6186 = vadd.f32 %v5929, %v6185
      %v6187 = vpop.f32.mrb[0].mxu0
      %v6188 = vpop.f32.mrb[0].mxu0
      %v6189 = vadd.f32 %v5932, %v6188
      %v6190 = vpop.f32.mrb[0].mxu0
      %6191 = vmatprep.mubr.bf16.mxu0 %v5700
      %6192 = vmatmul.mubr.bf16.gmra.mrb[0].mxu0 %v5699
      %v6193 = vpop.f32.mrb[0].mxu0
      %v6194 = vadd.f32 %v5937, %v6193
      %v6195 = vpop.f32.mrb[0].mxu0
      %v6196 = vpop.f32.mrb[0].mxu0
      %v6197 = vadd.f32 %v5940, %v6196
      %v6198 = vpop.f32.mrb[0].mxu0
      %6199 = vdwg.mxu0
      %v6200 = vld [vmem:[%s10] sm:$0x1]
      %v6201 = vlaneseq
      %v6202 = vshrl.u32 %v6201, 7
      %v6203 = vsub.s32 0, %v6202
      %v6204 = vrot.slane %v6200, %v6203
      %v6205 = vadd.f32 %v6074, %v6204
      %v6206 = vadd.f32 %v6077, %v6204
      %v6207 = vadd.f32 %v6082, %v6204
      %v6208 = vadd.f32 %v6085, %v6204
      %v6209 = vadd.f32 %v6090, %v6204
      %v6210 = vadd.f32 %v6093, %v6204
      %v6211 = vadd.f32 %v6098, %v6204
      %v6212 = vadd.f32 %v6101, %v6204
      %v6213 = vadd.f32 %v6106, %v6204
      %v6214 = vadd.f32 %v6109, %v6204
      %v6215 = vadd.f32 %v6114, %v6204
      %v6216 = vadd.f32 %v6117, %v6204
      %v6217 = vadd.f32 %v6122, %v6204
      %v6218 = vadd.f32 %v6125, %v6204
      %v6219 = vadd.f32 %v6130, %v6204
      %v6220 = vadd.f32 %v6133, %v6204
      %v6221 = vadd.f32 %v6138, %v6204
      %v6222 = vadd.f32 %v6141, %v6204
      %v6223 = vadd.f32 %v6146, %v6204
      %v6224 = vadd.f32 %v6149, %v6204
      %v6225 = vadd.f32 %v6154, %v6204
      %v6226 = vadd.f32 %v6157, %v6204
      %v6227 = vadd.f32 %v6162, %v6204
      %v6228 = vadd.f32 %v6165, %v6204
      %v6229 = vadd.f32 %v6170, %v6204
      %v6230 = vadd.f32 %v6173, %v6204
      %v6231 = vadd.f32 %v6178, %v6204
      %v6232 = vadd.f32 %v6181, %v6204
      %v6233 = vadd.f32 %v6186, %v6204
      %v6234 = vadd.f32 %v6189, %v6204
      %v6235 = vadd.f32 %v6194, %v6204
      %v6236 = vadd.f32 %v6197, %v6204
      %v6237 = vmax.f32 %v6205, 0.0
      %v6238 = vmax.f32 %v6206, 0.0
      %v6239 = vmax.f32 %v6207, 0.0
      %v6240 = vmax.f32 %v6208, 0.0
      %v6241 = vmax.f32 %v6209, 0.0
      %v6242 = vmax.f32 %v6210, 0.0
      %v6243 = vmax.f32 %v6211, 0.0
      %v6244 = vmax.f32 %v6212, 0.0
      %v6245 = vmax.f32 %v6213, 0.0
      %v6246 = vmax.f32 %v6214, 0.0
      %v6247 = vmax.f32 %v6215, 0.0
      %v6248 = vmax.f32 %v6216, 0.0
      %v6249 = vmax.f32 %v6217, 0.0
      %v6250 = vmax.f32 %v6218, 0.0
      %v6251 = vmax.f32 %v6219, 0.0
      %v6252 = vmax.f32 %v6220, 0.0
      %v6253 = vmax.f32 %v6221, 0.0
      %v6254 = vmax.f32 %v6222, 0.0
      %v6255 = vmax.f32 %v6223, 0.0
      %v6256 = vmax.f32 %v6224, 0.0
      %v6257 = vmax.f32 %v6225, 0.0
      %v6258 = vmax.f32 %v6226, 0.0
      %v6259 = vmax.f32 %v6227, 0.0
      %v6260 = vmax.f32 %v6228, 0.0
      %v6261 = vmax.f32 %v6229, 0.0
      %v6262 = vmax.f32 %v6230, 0.0
      %v6263 = vmax.f32 %v6231, 0.0
      %v6264 = vmax.f32 %v6232, 0.0
      %v6265 = vmax.f32 %v6233, 0.0
      %v6266 = vmax.f32 %v6234, 0.0
      %v6267 = vmax.f32 %v6235, 0.0
      %v6268 = vmax.f32 %v6236, 0.0
      %v6269 = vld [vmem:[%s9] sm:$0xf]
      %v6270 = vld [vmem:[%s9 + $0x4] sm:$0xf]
      %v6271 = vld [vmem:[%s9 + $0x8] sm:$0xf]
      %v6272 = vld [vmem:[%s9 + $0xc] sm:$0xf]
      %v6273 = vld [vmem:[%s9 + $0x10] sm:$0xf]
      %v6274 = vld [vmem:[%s9 + $0x14] sm:$0xf]
      %v6275 = vld [vmem:[%s9 + $0x18] sm:$0xf]
      %v6276 = vld [vmem:[%s9 + $0x1c] sm:$0xf]
      %v6277 = vld [vmem:[%s9 + $0x20] sm:$0xf]
      %v6278 = vld [vmem:[%s9 + $0x24] sm:$0xf]
      %v6279 = vld [vmem:[%s9 + $0x28] sm:$0xf]
      %v6280 = vld [vmem:[%s9 + $0x2c] sm:$0xf]
      %v6281 = vld [vmem:[%s9 + $0x30] sm:$0xf]
      %v6282 = vld [vmem:[%s9 + $0x34] sm:$0xf]
      %v6283 = vld [vmem:[%s9 + $0x38] sm:$0xf]
      %v6284 = vld [vmem:[%s9 + $0x3c] sm:$0xf]
      %v6285 = vpack.c.bf16 %v6238, %v6237
      %v6286 = vpack.c.bf16 %v6240, %v6239
      %v6287 = vpack.c.bf16 %v6242, %v6241
      %v6288 = vpack.c.bf16 %v6244, %v6243
      %v6289 = vpack.c.bf16 %v6246, %v6245
      %v6290 = vpack.c.bf16 %v6248, %v6247
      %v6291 = vpack.c.bf16 %v6250, %v6249
      %v6292 = vpack.c.bf16 %v6252, %v6251
      %v6293 = vpack.c.bf16 %v6254, %v6253
      %v6294 = vpack.c.bf16 %v6256, %v6255
      %v6295 = vpack.c.bf16 %v6258, %v6257
      %v6296 = vpack.c.bf16 %v6260, %v6259
      %v6297 = vpack.c.bf16 %v6262, %v6261
      %v6298 = vpack.c.bf16 %v6264, %v6263
      %v6299 = vpack.c.bf16 %v6266, %v6265
      %v6300 = vpack.c.bf16 %v6268, %v6267
      %v6301 = vld [vmem:[%s10 + $0x1] sm:$0x1]
      %v6302 = vlaneseq
      %v6303 = vshrl.u32 %v6302, 7
      %v6304 = vsub.s32 0, %v6303
      %v6305 = vrot.slane %v6301, %v6304
      %v6322 = vunpack.c.l.b16 %v6269
      %v6323 = vunpack.c.l.b16 %v6270
      %v6324 = vunpack.c.l.b16 %v6271
      %v6325 = vunpack.c.l.b16 %v6272
      %v6326 = vunpack.c.l.b16 %v6273
      %v6327 = vunpack.c.l.b16 %v6274
      %v6328 = vunpack.c.l.b16 %v6275
      %v6329 = vunpack.c.l.b16 %v6276
      %v6330 = vunpack.c.l.b16 %v6277
      %v6331 = vunpack.c.l.b16 %v6278
      %v6332 = vunpack.c.l.b16 %v6279
      %v6333 = vunpack.c.l.b16 %v6280
      %v6334 = vunpack.c.l.b16 %v6281
      %v6335 = vunpack.c.l.b16 %v6282
      %v6336 = vunpack.c.l.b16 %v6283
      %v6337 = vunpack.c.l.b16 %v6284
      %v6338 = vpack.c.b16 %v6323, %v6322
      %v6339 = vpack.c.b16 %v6325, %v6324
      %v6340 = vpack.c.b16 %v6327, %v6326
      %v6341 = vpack.c.b16 %v6329, %v6328
      %v6342 = vpack.c.b16 %v6331, %v6330
      %v6343 = vpack.c.b16 %v6333, %v6332
      %v6344 = vpack.c.b16 %v6335, %v6334
      %v6345 = vpack.c.b16 %v6337, %v6336
      %6354 = vmatprep.subr.bf16.mxu0 0
      %6355 = vmatpush1.bf16.msra.mxu0 %v6338
      %6356 = vmatprep.subr.bf16.mxu0 0
      %6357 = vmatpush1.bf16.msra.mxu0 %v6339
      %6358 = vmatprep.subr.bf16.mxu0 0
      %6359 = vmatpush1.bf16.msra.mxu0 %v6340
      %6360 = vmatprep.subr.bf16.mxu0 0
      %6361 = vmatpush1.bf16.msra.mxu0 %v6341
      %6362 = vmatprep.subr.bf16.mxu0 0
      %6363 = vmatpush1.bf16.msra.mxu0 %v6342
      %6364 = vmatprep.subr.bf16.mxu0 0
      %6365 = vmatpush1.bf16.msra.mxu0 %v6343
      %6366 = vmatprep.subr.bf16.mxu0 0
      %6367 = vmatpush1.bf16.msra.mxu0 %v6344
      %6368 = vmatprep.subr.bf16.mxu0 0
      %6369 = vmatpush1.bf16.msra.mxu0 %v6345
      %6370 = vmatprep.subr.bf16.mxu0 0
      %6371 = vmatpush1.bf16.msra.mxu0 0
      %6372 = vmatprep.subr.bf16.mxu0 0
      %6373 = vmatpush1.bf16.msra.mxu0 0
      %6374 = vmatprep.subr.bf16.mxu0 0
      %6375 = vmatpush1.bf16.msra.mxu0 0
      %6376 = vmatprep.subr.bf16.mxu0 0
      %6377 = vmatpush1.bf16.msra.mxu0 0
      %6378 = vmatprep.subr.bf16.mxu0 0
      %6379 = vmatpush1.bf16.msra.mxu0 0
      %6380 = vmatprep.subr.bf16.mxu0 0
      %6381 = vmatpush1.bf16.msra.mxu0 0
      %6382 = vmatprep.subr.bf16.mxu0 0
      %6383 = vmatpush1.bf16.msra.mxu0 0
      %6384 = vmatprep.subr.bf16.mxu0 0
      %6385 = vmatpush1.bf16.msra.mxu0 0
      %6386 = vmatprep.mubr.bf16.mxu0 0
      %6387 = vmatmul.mubr.bf16.gmra.mrb[0].mxu0 %v6285
      %v6388 = vpop.f32.mrb[0].mxu0
      %v6389 = vadd.f32 %v6305, %v6388
      %v6390 = vpop.f32.mrb[0].mxu0
      %v6391 = vpop.f32.mrb[0].mxu0
      %v6392 = vadd.f32 %v6305, %v6391
      %v6393 = vpop.f32.mrb[0].mxu0
      %6394 = vmatprep.mubr.bf16.mxu0 0
      %6395 = vmatmul.mubr.bf16.gmra.mrb[0].mxu0 %v6286
      %v6396 = vpop.f32.mrb[0].mxu0
      %v6397 = vadd.f32 %v6305, %v6396
      %v6398 = vpop.f32.mrb[0].mxu0
      %v6399 = vpop.f32.mrb[0].mxu0
      %v6400 = vadd.f32 %v6305, %v6399
      %v6401 = vpop.f32.mrb[0].mxu0
      %6402 = vmatprep.mubr.bf16.mxu0 0
      %6403 = vmatmul.mubr.bf16.gmra.mrb[0].mxu0 %v6287
      %v6404 = vpop.f32.mrb[0].mxu0
      %v6405 = vadd.f32 %v6305, %v6404
      %v6406 = vpop.f32.mrb[0].mxu0
      %v6407 = vpop.f32.mrb[0].mxu0
      %v6408 = vadd.f32 %v6305, %v6407
      %v6409 = vpop.f32.mrb[0].mxu0
      %6410 = vmatprep.mubr.bf16.mxu0 0
      %6411 = vmatmul.mubr.bf16.gmra.mrb[0].mxu0 %v6288
      %v6412 = vpop.f32.mrb[0].mxu0
      %v6413 = vadd.f32 %v6305, %v6412
      %v6414 = vpop.f32.mrb[0].mxu0
      %v6415 = vpop.f32.mrb[0].mxu0
      %v6416 = vadd.f32 %v6305, %v6415
      %v6417 = vpop.f32.mrb[0].mxu0
      %6418 = vmatprep.mubr.bf16.mxu0 0
      %6419 = vmatmul.mubr.bf16.gmra.mrb[0].mxu0 %v6289
      %v6420 = vpop.f32.mrb[0].mxu0
      %v6421 = vadd.f32 %v6305, %v6420
      %v6422 = vpop.f32.mrb[0].mxu0
      %v6423 = vpop.f32.mrb[0].mxu0
      %v6424 = vadd.f32 %v6305, %v6423
      %v6425 = vpop.f32.mrb[0].mxu0
      %6426 = vmatprep.mubr.bf16.mxu0 0
      %6427 = vmatmul.mubr.bf16.gmra.mrb[0].mxu0 %v6290
      %v6428 = vpop.f32.mrb[0].mxu0
      %v6429 = vadd.f32 %v6305, %v6428
      %v6430 = vpop.f32.mrb[0].mxu0
      %v6431 = vpop.f32.mrb[0].mxu0
      %v6432 = vadd.f32 %v6305, %v6431
      %v6433 = vpop.f32.mrb[0].mxu0
      %6434 = vmatprep.mubr.bf16.mxu0 0
      %6435 = vmatmul.mubr.bf16.gmra.mrb[0].mxu0 %v6291
      %v6436 = vpop.f32.mrb[0].mxu0
      %v6437 = vadd.f32 %v6305, %v6436
      %v6438 = vpop.f32.mrb[0].mxu0
      %v6439 = vpop.f32.mrb[0].mxu0
      %v6440 = vadd.f32 %v6305, %v6439
      %v6441 = vpop.f32.mrb[0].mxu0
      %6442 = vmatprep.mubr.bf16.mxu0 0
      %6443 = vmatmul.mubr.bf16.gmra.mrb[0].mxu0 %v6292
      %v6444 = vpop.f32.mrb[0].mxu0
      %v6445 = vadd.f32 %v6305, %v6444
      %v6446 = vpop.f32.mrb[0].mxu0
      %v6447 = vpop.f32.mrb[0].mxu0
      %v6448 = vadd.f32 %v6305, %v6447
      %v6449 = vpop.f32.mrb[0].mxu0
      %6450 = vmatprep.mubr.bf16.mxu0 0
      %6451 = vmatmul.mubr.bf16.gmra.mrb[0].mxu0 %v6293
      %v6452 = vpop.f32.mrb[0].mxu0
      %v6453 = vadd.f32 %v6305, %v6452
      %v6454 = vpop.f32.mrb[0].mxu0
      %v6455 = vpop.f32.mrb[0].mxu0
      %v6456 = vadd.f32 %v6305, %v6455
      %v6457 = vpop.f32.mrb[0].mxu0
      %6458 = vmatprep.mubr.bf16.mxu0 0
      %6459 = vmatmul.mubr.bf16.gmra.mrb[0].mxu0 %v6294
      %v6460 = vpop.f32.mrb[0].mxu0
      %v6461 = vadd.f32 %v6305, %v6460
      %v6462 = vpop.f32.mrb[0].mxu0
      %v6463 = vpop.f32.mrb[0].mxu0
      %v6464 = vadd.f32 %v6305, %v6463
      %v6465 = vpop.f32.mrb[0].mxu0
      %6466 = vmatprep.mubr.bf16.mxu0 0
      %6467 = vmatmul.mubr.bf16.gmra.mrb[0].mxu0 %v6295
      %v6468 = vpop.f32.mrb[0].mxu0
      %v6469 = vadd.f32 %v6305, %v6468
      %v6470 = vpop.f32.mrb[0].mxu0
      %v6471 = vpop.f32.mrb[0].mxu0
      %v6472 = vadd.f32 %v6305, %v6471
      %v6473 = vpop.f32.mrb[0].mxu0
      %6474 = vmatprep.mubr.bf16.mxu0 0
      %6475 = vmatmul.mubr.bf16.gmra.mrb[0].mxu0 %v6296
      %v6476 = vpop.f32.mrb[0].mxu0
      %v6477 = vadd.f32 %v6305, %v6476
      %v6478 = vpop.f32.mrb[0].mxu0
      %v6479 = vpop.f32.mrb[0].mxu0
      %v6480 = vadd.f32 %v6305, %v6479
      %v6481 = vpop.f32.mrb[0].mxu0
      %6482 = vmatprep.mubr.bf16.mxu0 0
      %6483 = vmatmul.mubr.bf16.gmra.mrb[0].mxu0 %v6297
      %v6484 = vpop.f32.mrb[0].mxu0
      %v6485 = vadd.f32 %v6305, %v6484
      %v6486 = vpop.f32.mrb[0].mxu0
      %v6487 = vpop.f32.mrb[0].mxu0
      %v6488 = vadd.f32 %v6305, %v6487
      %v6489 = vpop.f32.mrb[0].mxu0
      %6490 = vmatprep.mubr.bf16.mxu0 0
      %6491 = vmatmul.mubr.bf16.gmra.mrb[0].mxu0 %v6298
      %v6492 = vpop.f32.mrb[0].mxu0
      %v6493 = vadd.f32 %v6305, %v6492
      %v6494 = vpop.f32.mrb[0].mxu0
      %v6495 = vpop.f32.mrb[0].mxu0
      %v6496 = vadd.f32 %v6305, %v6495
      %v6497 = vpop.f32.mrb[0].mxu0
      %6498 = vmatprep.mubr.bf16.mxu0 0
      %6499 = vmatmul.mubr.bf16.gmra.mrb[0].mxu0 %v6299
      %v6500 = vpop.f32.mrb[0].mxu0
      %v6501 = vadd.f32 %v6305, %v6500
      %v6502 = vpop.f32.mrb[0].mxu0
      %v6503 = vpop.f32.mrb[0].mxu0
      %v6504 = vadd.f32 %v6305, %v6503
      %v6505 = vpop.f32.mrb[0].mxu0
      %6506 = vmatprep.mubr.bf16.mxu0 0
      %6507 = vmatmul.mubr.bf16.gmra.mrb[0].mxu0 %v6300
      %v6508 = vpop.f32.mrb[0].mxu0
      %v6509 = vadd.f32 %v6305, %v6508
      %v6510 = vpop.f32.mrb[0].mxu0
      %v6511 = vpop.f32.mrb[0].mxu0
      %v6512 = vadd.f32 %v6305, %v6511
      %v6513 = vpop.f32.mrb[0].mxu0
      %6514 = vdwg.mxu0
      %v6515 = vmax.f32 %v6389, 0.0
      %v6516 = vmax.f32 %v6392, 0.0
      %v6517 = vmax.f32 %v6397, 0.0
      %v6518 = vmax.f32 %v6400, 0.0
      %v6519 = vmax.f32 %v6405, 0.0
      %v6520 = vmax.f32 %v6408, 0.0
      %v6521 = vmax.f32 %v6413, 0.0
      %v6522 = vmax.f32 %v6416, 0.0
      %v6523 = vmax.f32 %v6421, 0.0
      %v6524 = vmax.f32 %v6424, 0.0
      %v6525 = vmax.f32 %v6429, 0.0
      %v6526 = vmax.f32 %v6432, 0.0
      %v6527 = vmax.f32 %v6437, 0.0
      %v6528 = vmax.f32 %v6440, 0.0
      %v6529 = vmax.f32 %v6445, 0.0
      %v6530 = vmax.f32 %v6448, 0.0
      %v6531 = vmax.f32 %v6453, 0.0
      %v6532 = vmax.f32 %v6456, 0.0
      %v6533 = vmax.f32 %v6461, 0.0
      %v6534 = vmax.f32 %v6464, 0.0
      %v6535 = vmax.f32 %v6469, 0.0
      %v6536 = vmax.f32 %v6472, 0.0
      %v6537 = vmax.f32 %v6477, 0.0
      %v6538 = vmax.f32 %v6480, 0.0
      %v6539 = vmax.f32 %v6485, 0.0
      %v6540 = vmax.f32 %v6488, 0.0
      %v6541 = vmax.f32 %v6493, 0.0
      %v6542 = vmax.f32 %v6496, 0.0
      %v6543 = vmax.f32 %v6501, 0.0
      %v6544 = vmax.f32 %v6504, 0.0
      %v6545 = vmax.f32 %v6509, 0.0
      %v6546 = vmax.f32 %v6512, 0.0
      %s6547 = scalar_lea.vmem %s9, 64
      %v6548 = vld [vmem:[%s6547] sm:$0xf]
      %v6549 = vld [vmem:[%s6547 + $0x4] sm:$0xf]
      %v6550 = vld [vmem:[%s6547 + $0x8] sm:$0xf]
      %v6551 = vld [vmem:[%s6547 + $0xc] sm:$0xf]
      %v6552 = vld [vmem:[%s6547 + $0x10] sm:$0xf]
      %v6553 = vld [vmem:[%s6547 + $0x14] sm:$0xf]
      %v6554 = vld [vmem:[%s6547 + $0x18] sm:$0xf]
      %v6555 = vld [vmem:[%s6547 + $0x1c] sm:$0xf]
      %v6556 = vld [vmem:[%s6547 + $0x20] sm:$0xf]
      %v6557 = vld [vmem:[%s6547 + $0x24] sm:$0xf]
      %v6558 = vld [vmem:[%s6547 + $0x28] sm:$0xf]
      %v6559 = vld [vmem:[%s6547 + $0x2c] sm:$0xf]
      %v6560 = vld [vmem:[%s6547 + $0x30] sm:$0xf]
      %v6561 = vld [vmem:[%s6547 + $0x34] sm:$0xf]
      %v6562 = vld [vmem:[%s6547 + $0x38] sm:$0xf]
      %v6563 = vld [vmem:[%s6547 + $0x3c] sm:$0xf]
      %v6564 = vpack.c.bf16 %v6516, %v6515
      %v6565 = vpack.c.bf16 %v6518, %v6517
      %v6566 = vpack.c.bf16 %v6520, %v6519
      %v6567 = vpack.c.bf16 %v6522, %v6521
      %v6568 = vpack.c.bf16 %v6524, %v6523
      %v6569 = vpack.c.bf16 %v6526, %v6525
      %v6570 = vpack.c.bf16 %v6528, %v6527
      %v6571 = vpack.c.bf16 %v6530, %v6529
      %v6572 = vpack.c.bf16 %v6532, %v6531
      %v6573 = vpack.c.bf16 %v6534, %v6533
      %v6574 = vpack.c.bf16 %v6536, %v6535
      %v6575 = vpack.c.bf16 %v6538, %v6537
      %v6576 = vpack.c.bf16 %v6540, %v6539
      %v6577 = vpack.c.bf16 %v6542, %v6541
      %v6578 = vpack.c.bf16 %v6544, %v6543
      %v6579 = vpack.c.bf16 %v6546, %v6545
      %v6580 = vld [vmem:[%s10 + $0x2] sm:$0x1]
      %v6581 = vlaneseq
      %v6582 = vshrl.u32 %v6581, 7
      %v6583 = vsub.s32 0, %v6582
      %v6584 = vrot.slane %v6580, %v6583
      %v6601 = vunpack.c.l.b16 %v6548
      %v6602 = vunpack.c.l.b16 %v6549
      %v6603 = vunpack.c.l.b16 %v6550
      %v6604 = vunpack.c.l.b16 %v6551
      %v6605 = vunpack.c.l.b16 %v6552
      %v6606 = vunpack.c.l.b16 %v6553
      %v6607 = vunpack.c.l.b16 %v6554
      %v6608 = vunpack.c.l.b16 %v6555
      %v6609 = vunpack.c.l.b16 %v6556
      %v6610 = vunpack.c.l.b16 %v6557
      %v6611 = vunpack.c.l.b16 %v6558
      %v6612 = vunpack.c.l.b16 %v6559
      %v6613 = vunpack.c.l.b16 %v6560
      %v6614 = vunpack.c.l.b16 %v6561
      %v6615 = vunpack.c.l.b16 %v6562
      %v6616 = vunpack.c.l.b16 %v6563
      %v6617 = vpack.c.b16 %v6602, %v6601
      %v6618 = vpack.c.b16 %v6604, %v6603
      %v6619 = vpack.c.b16 %v6606, %v6605
      %v6620 = vpack.c.b16 %v6608, %v6607
      %v6621 = vpack.c.b16 %v6610, %v6609
      %v6622 = vpack.c.b16 %v6612, %v6611
      %v6623 = vpack.c.b16 %v6614, %v6613
      %v6624 = vpack.c.b16 %v6616, %v6615
      %6633 = vmatprep.subr.bf16.mxu0 0
      %6634 = vmatpush1.bf16.msra.mxu0 %v6617
      %6635 = vmatprep.subr.bf16.mxu0 0
      %6636 = vmatpush1.bf16.msra.mxu0 %v6618
      %6637 = vmatprep.subr.bf16.mxu0 0
      %6638 = vmatpush1.bf16.msra.mxu0 %v6619
      %6639 = vmatprep.subr.bf16.mxu0 0
      %6640 = vmatpush1.bf16.msra.mxu0 %v6620
      %6641 = vmatprep.subr.bf16.mxu0 0
      %6642 = vmatpush1.bf16.msra.mxu0 %v6621
      %6643 = vmatprep.subr.bf16.mxu0 0
      %6644 = vmatpush1.bf16.msra.mxu0 %v6622
      %6645 = vmatprep.subr.bf16.mxu0 0
      %6646 = vmatpush1.bf16.msra.mxu0 %v6623
      %6647 = vmatprep.subr.bf16.mxu0 0
      %6648 = vmatpush1.bf16.msra.mxu0 %v6624
      %6649 = vmatprep.subr.bf16.mxu0 0
      %6650 = vmatpush1.bf16.msra.mxu0 0
      %6651 = vmatprep.subr.bf16.mxu0 0
      %6652 = vmatpush1.bf16.msra.mxu0 0
      %6653 = vmatprep.subr.bf16.mxu0 0
      %6654 = vmatpush1.bf16.msra.mxu0 0
      %6655 = vmatprep.subr.bf16.mxu0 0
      %6656 = vmatpush1.bf16.msra.mxu0 0
      %6657 = vmatprep.subr.bf16.mxu0 0
      %6658 = vmatpush1.bf16.msra.mxu0 0
      %6659 = vmatprep.subr.bf16.mxu0 0
      %6660 = vmatpush1.bf16.msra.mxu0 0
      %6661 = vmatprep.subr.bf16.mxu0 0
      %6662 = vmatpush1.bf16.msra.mxu0 0
      %6663 = vmatprep.subr.bf16.mxu0 0
      %6664 = vmatpush1.bf16.msra.mxu0 0
      %6665 = vmatprep.mubr.bf16.mxu0 0
      %6666 = vmatmul.mubr.bf16.gmra.mrb[0].mxu0 %v6564
      %v6667 = vpop.f32.mrb[0].mxu0
      %v6668 = vadd.f32 %v6584, %v6667
      %v6669 = vpop.f32.mrb[0].mxu0
      %v6670 = vpop.f32.mrb[0].mxu0
      %v6671 = vadd.f32 %v6584, %v6670
      %v6672 = vpop.f32.mrb[0].mxu0
      %6673 = vmatprep.mubr.bf16.mxu0 0
      %6674 = vmatmul.mubr.bf16.gmra.mrb[0].mxu0 %v6565
      %v6675 = vpop.f32.mrb[0].mxu0
      %v6676 = vadd.f32 %v6584, %v6675
      %v6677 = vpop.f32.mrb[0].mxu0
      %v6678 = vpop.f32.mrb[0].mxu0
      %v6679 = vadd.f32 %v6584, %v6678
      %v6680 = vpop.f32.mrb[0].mxu0
      %6681 = vmatprep.mubr.bf16.mxu0 0
      %6682 = vmatmul.mubr.bf16.gmra.mrb[0].mxu0 %v6566
      %v6683 = vpop.f32.mrb[0].mxu0
      %v6684 = vadd.f32 %v6584, %v6683
      %v6685 = vpop.f32.mrb[0].mxu0
      %v6686 = vpop.f32.mrb[0].mxu0
      %v6687 = vadd.f32 %v6584, %v6686
      %v6688 = vpop.f32.mrb[0].mxu0
      %6689 = vmatprep.mubr.bf16.mxu0 0
      %6690 = vmatmul.mubr.bf16.gmra.mrb[0].mxu0 %v6567
      %v6691 = vpop.f32.mrb[0].mxu0
      %v6692 = vadd.f32 %v6584, %v6691
      %v6693 = vpop.f32.mrb[0].mxu0
      %v6694 = vpop.f32.mrb[0].mxu0
      %v6695 = vadd.f32 %v6584, %v6694
      %v6696 = vpop.f32.mrb[0].mxu0
      %6697 = vmatprep.mubr.bf16.mxu0 0
      %6698 = vmatmul.mubr.bf16.gmra.mrb[0].mxu0 %v6568
      %v6699 = vpop.f32.mrb[0].mxu0
      %v6700 = vadd.f32 %v6584, %v6699
      %v6701 = vpop.f32.mrb[0].mxu0
      %v6702 = vpop.f32.mrb[0].mxu0
      %v6703 = vadd.f32 %v6584, %v6702
      %v6704 = vpop.f32.mrb[0].mxu0
      %6705 = vmatprep.mubr.bf16.mxu0 0
      %6706 = vmatmul.mubr.bf16.gmra.mrb[0].mxu0 %v6569
      %v6707 = vpop.f32.mrb[0].mxu0
      %v6708 = vadd.f32 %v6584, %v6707
      %v6709 = vpop.f32.mrb[0].mxu0
      %v6710 = vpop.f32.mrb[0].mxu0
      %v6711 = vadd.f32 %v6584, %v6710
      %v6712 = vpop.f32.mrb[0].mxu0
      %6713 = vmatprep.mubr.bf16.mxu0 0
      %6714 = vmatmul.mubr.bf16.gmra.mrb[0].mxu0 %v6570
      %v6715 = vpop.f32.mrb[0].mxu0
      %v6716 = vadd.f32 %v6584, %v6715
      %v6717 = vpop.f32.mrb[0].mxu0
      %v6718 = vpop.f32.mrb[0].mxu0
      %v6719 = vadd.f32 %v6584, %v6718
      %v6720 = vpop.f32.mrb[0].mxu0
      %6721 = vmatprep.mubr.bf16.mxu0 0
      %6722 = vmatmul.mubr.bf16.gmra.mrb[0].mxu0 %v6571
      %v6723 = vpop.f32.mrb[0].mxu0
      %v6724 = vadd.f32 %v6584, %v6723
      %v6725 = vpop.f32.mrb[0].mxu0
      %v6726 = vpop.f32.mrb[0].mxu0
      %v6727 = vadd.f32 %v6584, %v6726
      %v6728 = vpop.f32.mrb[0].mxu0
      %6729 = vmatprep.mubr.bf16.mxu0 0
      %6730 = vmatmul.mubr.bf16.gmra.mrb[0].mxu0 %v6572
      %v6731 = vpop.f32.mrb[0].mxu0
      %v6732 = vadd.f32 %v6584, %v6731
      %v6733 = vpop.f32.mrb[0].mxu0
      %v6734 = vpop.f32.mrb[0].mxu0
      %v6735 = vadd.f32 %v6584, %v6734
      %v6736 = vpop.f32.mrb[0].mxu0
      %6737 = vmatprep.mubr.bf16.mxu0 0
      %6738 = vmatmul.mubr.bf16.gmra.mrb[0].mxu0 %v6573
      %v6739 = vpop.f32.mrb[0].mxu0
      %v6740 = vadd.f32 %v6584, %v6739
      %v6741 = vpop.f32.mrb[0].mxu0
      %v6742 = vpop.f32.mrb[0].mxu0
      %v6743 = vadd.f32 %v6584, %v6742
      %v6744 = vpop.f32.mrb[0].mxu0
      %6745 = vmatprep.mubr.bf16.mxu0 0
      %6746 = vmatmul.mubr.bf16.gmra.mrb[0].mxu0 %v6574
      %v6747 = vpop.f32.mrb[0].mxu0
      %v6748 = vadd.f32 %v6584, %v6747
      %v6749 = vpop.f32.mrb[0].mxu0
      %v6750 = vpop.f32.mrb[0].mxu0
      %v6751 = vadd.f32 %v6584, %v6750
      %v6752 = vpop.f32.mrb[0].mxu0
      %6753 = vmatprep.mubr.bf16.mxu0 0
      %6754 = vmatmul.mubr.bf16.gmra.mrb[0].mxu0 %v6575
      %v6755 = vpop.f32.mrb[0].mxu0
      %v6756 = vadd.f32 %v6584, %v6755
      %v6757 = vpop.f32.mrb[0].mxu0
      %v6758 = vpop.f32.mrb[0].mxu0
      %v6759 = vadd.f32 %v6584, %v6758
      %v6760 = vpop.f32.mrb[0].mxu0
      %6761 = vmatprep.mubr.bf16.mxu0 0
      %6762 = vmatmul.mubr.bf16.gmra.mrb[0].mxu0 %v6576
      %v6763 = vpop.f32.mrb[0].mxu0
      %v6764 = vadd.f32 %v6584, %v6763
      %v6765 = vpop.f32.mrb[0].mxu0
      %v6766 = vpop.f32.mrb[0].mxu0
      %v6767 = vadd.f32 %v6584, %v6766
      %v6768 = vpop.f32.mrb[0].mxu0
      %6769 = vmatprep.mubr.bf16.mxu0 0
      %6770 = vmatmul.mubr.bf16.gmra.mrb[0].mxu0 %v6577
      %v6771 = vpop.f32.mrb[0].mxu0
      %v6772 = vadd.f32 %v6584, %v6771
      %v6773 = vpop.f32.mrb[0].mxu0
      %v6774 = vpop.f32.mrb[0].mxu0
      %v6775 = vadd.f32 %v6584, %v6774
      %v6776 = vpop.f32.mrb[0].mxu0
      %6777 = vmatprep.mubr.bf16.mxu0 0
      %6778 = vmatmul.mubr.bf16.gmra.mrb[0].mxu0 %v6578
      %v6779 = vpop.f32.mrb[0].mxu0
      %v6780 = vadd.f32 %v6584, %v6779
      %v6781 = vpop.f32.mrb[0].mxu0
      %v6782 = vpop.f32.mrb[0].mxu0
      %v6783 = vadd.f32 %v6584, %v6782
      %v6784 = vpop.f32.mrb[0].mxu0
      %6785 = vmatprep.mubr.bf16.mxu0 0
      %6786 = vmatmul.mubr.bf16.gmra.mrb[0].mxu0 %v6579
      %v6787 = vpop.f32.mrb[0].mxu0
      %v6788 = vadd.f32 %v6584, %v6787
      %v6789 = vpop.f32.mrb[0].mxu0
      %v6790 = vpop.f32.mrb[0].mxu0
      %v6791 = vadd.f32 %v6584, %v6790
      %v6792 = vpop.f32.mrb[0].mxu0
      %6793 = vdwg.mxu0
      %v6794 = vmax.f32 %v6668, 0.0
      %v6795 = vmax.f32 %v6671, 0.0
      %v6796 = vmax.f32 %v6676, 0.0
      %v6797 = vmax.f32 %v6679, 0.0
      %v6798 = vmax.f32 %v6684, 0.0
      %v6799 = vmax.f32 %v6687, 0.0
      %v6800 = vmax.f32 %v6692, 0.0
      %v6801 = vmax.f32 %v6695, 0.0
      %v6802 = vmax.f32 %v6700, 0.0
      %v6803 = vmax.f32 %v6703, 0.0
      %v6804 = vmax.f32 %v6708, 0.0
      %v6805 = vmax.f32 %v6711, 0.0
      %v6806 = vmax.f32 %v6716, 0.0
      %v6807 = vmax.f32 %v6719, 0.0
      %v6808 = vmax.f32 %v6724, 0.0
      %v6809 = vmax.f32 %v6727, 0.0
      %v6810 = vmax.f32 %v6732, 0.0
      %v6811 = vmax.f32 %v6735, 0.0
      %v6812 = vmax.f32 %v6740, 0.0
      %v6813 = vmax.f32 %v6743, 0.0
      %v6814 = vmax.f32 %v6748, 0.0
      %v6815 = vmax.f32 %v6751, 0.0
      %v6816 = vmax.f32 %v6756, 0.0
      %v6817 = vmax.f32 %v6759, 0.0
      %v6818 = vmax.f32 %v6764, 0.0
      %v6819 = vmax.f32 %v6767, 0.0
      %v6820 = vmax.f32 %v6772, 0.0
      %v6821 = vmax.f32 %v6775, 0.0
      %v6822 = vmax.f32 %v6780, 0.0
      %v6823 = vmax.f32 %v6783, 0.0
      %v6824 = vmax.f32 %v6788, 0.0
      %v6825 = vmax.f32 %v6791, 0.0
      %v6826 = vld [vmem:[%s11] sm:$0xf]
      %v6827 = vld [vmem:[%s11 + $0x4] sm:$0xf]
      %v6828 = vld [vmem:[%s11 + $0x8] sm:$0xf]
      %v6829 = vld [vmem:[%s11 + $0xc] sm:$0xf]
      %v6830 = vld [vmem:[%s11 + $0x10] sm:$0xf]
      %v6831 = vld [vmem:[%s11 + $0x14] sm:$0xf]
      %v6832 = vld [vmem:[%s11 + $0x18] sm:$0xf]
      %v6833 = vld [vmem:[%s11 + $0x1c] sm:$0xf]
      %v6834 = vld [vmem:[%s11 + $0x20] sm:$0xf]
      %v6835 = vld [vmem:[%s11 + $0x24] sm:$0xf]
      %v6836 = vld [vmem:[%s11 + $0x28] sm:$0xf]
      %v6837 = vld [vmem:[%s11 + $0x2c] sm:$0xf]
      %v6838 = vld [vmem:[%s11 + $0x30] sm:$0xf]
      %v6839 = vld [vmem:[%s11 + $0x34] sm:$0xf]
      %v6840 = vld [vmem:[%s11 + $0x38] sm:$0xf]
      %v6841 = vld [vmem:[%s11 + $0x3c] sm:$0xf]
      %v6842 = vpack.c.bf16 %v6795, %v6794
      %v6843 = vpack.c.bf16 %v6797, %v6796
      %v6844 = vpack.c.bf16 %v6799, %v6798
      %v6845 = vpack.c.bf16 %v6801, %v6800
      %v6846 = vpack.c.bf16 %v6803, %v6802
      %v6847 = vpack.c.bf16 %v6805, %v6804
      %v6848 = vpack.c.bf16 %v6807, %v6806
      %v6849 = vpack.c.bf16 %v6809, %v6808
      %v6850 = vpack.c.bf16 %v6811, %v6810
      %v6851 = vpack.c.bf16 %v6813, %v6812
      %v6852 = vpack.c.bf16 %v6815, %v6814
      %v6853 = vpack.c.bf16 %v6817, %v6816
      %v6854 = vpack.c.bf16 %v6819, %v6818
      %v6855 = vpack.c.bf16 %v6821, %v6820
      %v6856 = vpack.c.bf16 %v6823, %v6822
      %v6857 = vpack.c.bf16 %v6825, %v6824
      %v6874 = vunpack.c.l.b16 %v6826
      %v6875 = vunpack.c.l.b16 %v6827
      %v6876 = vunpack.c.l.b16 %v6828
      %v6877 = vunpack.c.l.b16 %v6829
      %v6878 = vunpack.c.l.b16 %v6830
      %v6879 = vunpack.c.l.b16 %v6831
      %v6880 = vunpack.c.l.b16 %v6832
      %v6881 = vunpack.c.l.b16 %v6833
      %v6882 = vunpack.c.l.b16 %v6834
      %v6883 = vunpack.c.l.b16 %v6835
      %v6884 = vunpack.c.l.b16 %v6836
      %v6885 = vunpack.c.l.b16 %v6837
      %v6886 = vunpack.c.l.b16 %v6838
      %v6887 = vunpack.c.l.b16 %v6839
      %v6888 = vunpack.c.l.b16 %v6840
      %v6889 = vunpack.c.l.b16 %v6841
      %v6890 = vpack.c.b16 %v6875, %v6874
      %v6891 = vpack.c.b16 %v6877, %v6876
      %v6892 = vpack.c.b16 %v6879, %v6878
      %v6893 = vpack.c.b16 %v6881, %v6880
      %v6894 = vpack.c.b16 %v6883, %v6882
      %v6895 = vpack.c.b16 %v6885, %v6884
      %v6896 = vpack.c.b16 %v6887, %v6886
      %v6897 = vpack.c.b16 %v6889, %v6888
      %6906 = vmatprep.subr.bf16.mxu0 0
      %6907 = vmatpush1.bf16.msra.mxu0 %v6890
      %6908 = vmatprep.subr.bf16.mxu0 0
      %6909 = vmatpush1.bf16.msra.mxu0 %v6891
      %6910 = vmatprep.subr.bf16.mxu0 0
      %6911 = vmatpush1.bf16.msra.mxu0 %v6892
      %6912 = vmatprep.subr.bf16.mxu0 0
      %6913 = vmatpush1.bf16.msra.mxu0 %v6893
      %6914 = vmatprep.subr.bf16.mxu0 0
      %6915 = vmatpush1.bf16.msra.mxu0 %v6894
      %6916 = vmatprep.subr.bf16.mxu0 0
      %6917 = vmatpush1.bf16.msra.mxu0 %v6895
      %6918 = vmatprep.subr.bf16.mxu0 0
      %6919 = vmatpush1.bf16.msra.mxu0 %v6896
      %6920 = vmatprep.subr.bf16.mxu0 0
      %6921 = vmatpush1.bf16.msra.mxu0 %v6897
      %6922 = vmatprep.subr.bf16.mxu0 0
      %6923 = vmatpush1.bf16.msra.mxu0 0
      %6924 = vmatprep.subr.bf16.mxu0 0
      %6925 = vmatpush1.bf16.msra.mxu0 0
      %6926 = vmatprep.subr.bf16.mxu0 0
      %6927 = vmatpush1.bf16.msra.mxu0 0
      %6928 = vmatprep.subr.bf16.mxu0 0
      %6929 = vmatpush1.bf16.msra.mxu0 0
      %6930 = vmatprep.subr.bf16.mxu0 0
      %6931 = vmatpush1.bf16.msra.mxu0 0
      %6932 = vmatprep.subr.bf16.mxu0 0
      %6933 = vmatpush1.bf16.msra.mxu0 0
      %6934 = vmatprep.subr.bf16.mxu0 0
      %6935 = vmatpush1.bf16.msra.mxu0 0
      %6936 = vmatprep.subr.bf16.mxu0 0
      %6937 = vmatpush1.bf16.msra.mxu0 0
      %6938 = vmatprep.mubr.bf16.mxu0 0
      %6939 = vmatmul.mubr.bf16.gmra.mrb[0].mxu0 %v6842
      %v6940 = vpop.f32.mrb[0].mxu0
      %v6941 = vadd.f32 %v4884, %v6940
      %v6942 = vpop.f32.mrb[0].mxu0
      %v6943 = vpop.f32.mrb[0].mxu0
      %v6944 = vadd.f32 %v4884, %v6943
      %v6945 = vpop.f32.mrb[0].mxu0
      %6946 = vmatprep.mubr.bf16.mxu0 0
      %6947 = vmatmul.mubr.bf16.gmra.mrb[0].mxu0 %v6843
      %v6948 = vpop.f32.mrb[0].mxu0
      %v6949 = vadd.f32 %v4884, %v6948
      %v6950 = vpop.f32.mrb[0].mxu0
      %v6951 = vpop.f32.mrb[0].mxu0
      %v6952 = vadd.f32 %v4884, %v6951
      %v6953 = vpop.f32.mrb[0].mxu0
      %6954 = vmatprep.mubr.bf16.mxu0 0
      %6955 = vmatmul.mubr.bf16.gmra.mrb[0].mxu0 %v6844
      %v6956 = vpop.f32.mrb[0].mxu0
      %v6957 = vadd.f32 %v4884, %v6956
      %v6958 = vpop.f32.mrb[0].mxu0
      %v6959 = vpop.f32.mrb[0].mxu0
      %v6960 = vadd.f32 %v4884, %v6959
      %v6961 = vpop.f32.mrb[0].mxu0
      %6962 = vmatprep.mubr.bf16.mxu0 0
      %6963 = vmatmul.mubr.bf16.gmra.mrb[0].mxu0 %v6845
      %v6964 = vpop.f32.mrb[0].mxu0
      %v6965 = vadd.f32 %v4884, %v6964
      %v6966 = vpop.f32.mrb[0].mxu0
      %v6967 = vpop.f32.mrb[0].mxu0
      %v6968 = vadd.f32 %v4884, %v6967
      %v6969 = vpop.f32.mrb[0].mxu0
      %6970 = vmatprep.mubr.bf16.mxu0 0
      %6971 = vmatmul.mubr.bf16.gmra.mrb[0].mxu0 %v6846
      %v6972 = vpop.f32.mrb[0].mxu0
      %v6973 = vadd.f32 %v4884, %v6972
      %v6974 = vpop.f32.mrb[0].mxu0
      %v6975 = vpop.f32.mrb[0].mxu0
      %v6976 = vadd.f32 %v4884, %v6975
      %v6977 = vpop.f32.mrb[0].mxu0
      %6978 = vmatprep.mubr.bf16.mxu0 0
      %6979 = vmatmul.mubr.bf16.gmra.mrb[0].mxu0 %v6847
      %v6980 = vpop.f32.mrb[0].mxu0
      %v6981 = vadd.f32 %v4884, %v6980
      %v6982 = vpop.f32.mrb[0].mxu0
      %v6983 = vpop.f32.mrb[0].mxu0
      %v6984 = vadd.f32 %v4884, %v6983
      %v6985 = vpop.f32.mrb[0].mxu0
      %6986 = vmatprep.mubr.bf16.mxu0 0
      %6987 = vmatmul.mubr.bf16.gmra.mrb[0].mxu0 %v6848
      %v6988 = vpop.f32.mrb[0].mxu0
      %v6989 = vadd.f32 %v4884, %v6988
      %v6990 = vpop.f32.mrb[0].mxu0
      %v6991 = vpop.f32.mrb[0].mxu0
      %v6992 = vadd.f32 %v4884, %v6991
      %v6993 = vpop.f32.mrb[0].mxu0
      %6994 = vmatprep.mubr.bf16.mxu0 0
      %6995 = vmatmul.mubr.bf16.gmra.mrb[0].mxu0 %v6849
      %v6996 = vpop.f32.mrb[0].mxu0
      %v6997 = vadd.f32 %v4884, %v6996
      %v6998 = vpop.f32.mrb[0].mxu0
      %v6999 = vpop.f32.mrb[0].mxu0
      %v7000 = vadd.f32 %v4884, %v6999
      %v7001 = vpop.f32.mrb[0].mxu0
      %7002 = vmatprep.mubr.bf16.mxu0 0
      %7003 = vmatmul.mubr.bf16.gmra.mrb[0].mxu0 %v6850
      %v7004 = vpop.f32.mrb[0].mxu0
      %v7005 = vadd.f32 %v4884, %v7004
      %v7006 = vpop.f32.mrb[0].mxu0
      %v7007 = vpop.f32.mrb[0].mxu0
      %v7008 = vadd.f32 %v4884, %v7007
      %v7009 = vpop.f32.mrb[0].mxu0
      %7010 = vmatprep.mubr.bf16.mxu0 0
      %7011 = vmatmul.mubr.bf16.gmra.mrb[0].mxu0 %v6851
      %v7012 = vpop.f32.mrb[0].mxu0
      %v7013 = vadd.f32 %v4884, %v7012
      %v7014 = vpop.f32.mrb[0].mxu0
      %v7015 = vpop.f32.mrb[0].mxu0
      %v7016 = vadd.f32 %v4884, %v7015
      %v7017 = vpop.f32.mrb[0].mxu0
      %7018 = vmatprep.mubr.bf16.mxu0 0
      %7019 = vmatmul.mubr.bf16.gmra.mrb[0].mxu0 %v6852
      %v7020 = vpop.f32.mrb[0].mxu0
      %v7021 = vadd.f32 %v4884, %v7020
      %v7022 = vpop.f32.mrb[0].mxu0
      %v7023 = vpop.f32.mrb[0].mxu0
      %v7024 = vadd.f32 %v4884, %v7023
      %v7025 = vpop.f32.mrb[0].mxu0
      %7026 = vmatprep.mubr.bf16.mxu0 0
      %7027 = vmatmul.mubr.bf16.gmra.mrb[0].mxu0 %v6853
      %v7028 = vpop.f32.mrb[0].mxu0
      %v7029 = vadd.f32 %v4884, %v7028
      %v7030 = vpop.f32.mrb[0].mxu0
      %v7031 = vpop.f32.mrb[0].mxu0
      %v7032 = vadd.f32 %v4884, %v7031
      %v7033 = vpop.f32.mrb[0].mxu0
      %7034 = vmatprep.mubr.bf16.mxu0 0
      %7035 = vmatmul.mubr.bf16.gmra.mrb[0].mxu0 %v6854
      %v7036 = vpop.f32.mrb[0].mxu0
      %v7037 = vadd.f32 %v4884, %v7036
      %v7038 = vpop.f32.mrb[0].mxu0
      %v7039 = vpop.f32.mrb[0].mxu0
      %v7040 = vadd.f32 %v4884, %v7039
      %v7041 = vpop.f32.mrb[0].mxu0
      %7042 = vmatprep.mubr.bf16.mxu0 0
      %7043 = vmatmul.mubr.bf16.gmra.mrb[0].mxu0 %v6855
      %v7044 = vpop.f32.mrb[0].mxu0
      %v7045 = vadd.f32 %v4884, %v7044
      %v7046 = vpop.f32.mrb[0].mxu0
      %v7047 = vpop.f32.mrb[0].mxu0
      %v7048 = vadd.f32 %v4884, %v7047
      %v7049 = vpop.f32.mrb[0].mxu0
      %7050 = vmatprep.mubr.bf16.mxu0 0
      %7051 = vmatmul.mubr.bf16.gmra.mrb[0].mxu0 %v6856
      %v7052 = vpop.f32.mrb[0].mxu0
      %v7053 = vadd.f32 %v4884, %v7052
      %v7054 = vpop.f32.mrb[0].mxu0
      %v7055 = vpop.f32.mrb[0].mxu0
      %v7056 = vadd.f32 %v4884, %v7055
      %v7057 = vpop.f32.mrb[0].mxu0
      %7058 = vmatprep.mubr.bf16.mxu0 0
      %7059 = vmatmul.mubr.bf16.gmra.mrb[0].mxu0 %v6857
      %v7060 = vpop.f32.mrb[0].mxu0
      %v7061 = vadd.f32 %v4884, %v7060
      %v7062 = vpop.f32.mrb[0].mxu0
      %v7063 = vpop.f32.mrb[0].mxu0
      %v7064 = vadd.f32 %v4884, %v7063
      %v7065 = vpop.f32.mrb[0].mxu0
      %7066 = vdwg.mxu0
      %v7067 = vsub.f32 0.0, %v6941
      %v7068 = vsub.f32 0.0, %v6944
      %v7069 = vsub.f32 0.0, %v6949
      %v7070 = vsub.f32 0.0, %v6952
      %v7071 = vsub.f32 0.0, %v6957
      %v7072 = vsub.f32 0.0, %v6960
      %v7073 = vsub.f32 0.0, %v6965
      %v7074 = vsub.f32 0.0, %v6968
      %v7075 = vsub.f32 0.0, %v6973
      %v7076 = vsub.f32 0.0, %v6976
      %v7077 = vsub.f32 0.0, %v6981
      %v7078 = vsub.f32 0.0, %v6984
      %v7079 = vsub.f32 0.0, %v6989
      %v7080 = vsub.f32 0.0, %v6992
      %v7081 = vsub.f32 0.0, %v6997
      %v7082 = vsub.f32 0.0, %v7000
      %v7083 = vsub.f32 0.0, %v7005
      %v7084 = vsub.f32 0.0, %v7008
      %v7085 = vsub.f32 0.0, %v7013
      %v7086 = vsub.f32 0.0, %v7016
      %v7087 = vsub.f32 0.0, %v7021
      %v7088 = vsub.f32 0.0, %v7024
      %v7089 = vsub.f32 0.0, %v7029
      %v7090 = vsub.f32 0.0, %v7032
      %v7091 = vsub.f32 0.0, %v7037
      %v7092 = vsub.f32 0.0, %v7040
      %v7093 = vsub.f32 0.0, %v7045
      %v7094 = vsub.f32 0.0, %v7048
      %v7095 = vsub.f32 0.0, %v7053
      %v7096 = vsub.f32 0.0, %v7056
      %v7097 = vsub.f32 0.0, %v7061
      %v7098 = vsub.f32 0.0, %v7064
      %v7099 = vmul.f32 %v7067, 1.442695
      %v7100 = vpow.pop %v7099
      %v7101 = vmul.f32 %v7068, 1.442695
      %v7102 = vpow.pop %v7101
      %v7103 = vmul.f32 %v7069, 1.442695
      %v7104 = vpow.pop %v7103
      %v7105 = vmul.f32 %v7070, 1.442695
      %v7106 = vpow.pop %v7105
      %v7107 = vmul.f32 %v7071, 1.442695
      %v7108 = vpow.pop %v7107
      %v7109 = vmul.f32 %v7072, 1.442695
      %v7110 = vpow.pop %v7109
      %v7111 = vmul.f32 %v7073, 1.442695
      %v7112 = vpow.pop %v7111
      %v7113 = vmul.f32 %v7074, 1.442695
      %v7114 = vpow.pop %v7113
      %v7115 = vmul.f32 %v7075, 1.442695
      %v7116 = vpow.pop %v7115
      %v7117 = vmul.f32 %v7076, 1.442695
      %v7118 = vpow.pop %v7117
      %v7119 = vmul.f32 %v7077, 1.442695
      %v7120 = vpow.pop %v7119
      %v7121 = vmul.f32 %v7078, 1.442695
      %v7122 = vpow.pop %v7121
      %v7123 = vmul.f32 %v7079, 1.442695
      %v7124 = vpow.pop %v7123
      %v7125 = vmul.f32 %v7080, 1.442695
      %v7126 = vpow.pop %v7125
      %v7127 = vmul.f32 %v7081, 1.442695
      %v7128 = vpow.pop %v7127
      %v7129 = vmul.f32 %v7082, 1.442695
      %v7130 = vpow.pop %v7129
      %v7131 = vmul.f32 %v7083, 1.442695
      %v7132 = vpow.pop %v7131
      %v7133 = vmul.f32 %v7084, 1.442695
      %v7134 = vpow.pop %v7133
      %v7135 = vmul.f32 %v7085, 1.442695
      %v7136 = vpow.pop %v7135
      %v7137 = vmul.f32 %v7086, 1.442695
      %v7138 = vpow.pop %v7137
      %v7139 = vmul.f32 %v7087, 1.442695
      %v7140 = vpow.pop %v7139
      %v7141 = vmul.f32 %v7088, 1.442695
      %v7142 = vpow.pop %v7141
      %v7143 = vmul.f32 %v7089, 1.442695
      %v7144 = vpow.pop %v7143
      %v7145 = vmul.f32 %v7090, 1.442695
      %v7146 = vpow.pop %v7145
      %v7147 = vmul.f32 %v7091, 1.442695
      %v7148 = vpow.pop %v7147
      %v7149 = vmul.f32 %v7092, 1.442695
      %v7150 = vpow.pop %v7149
      %v7151 = vmul.f32 %v7093, 1.442695
      %v7152 = vpow.pop %v7151
      %v7153 = vmul.f32 %v7094, 1.442695
      %v7154 = vpow.pop %v7153
      %v7155 = vmul.f32 %v7095, 1.442695
      %v7156 = vpow.pop %v7155
      %v7157 = vmul.f32 %v7096, 1.442695
      %v7158 = vpow.pop %v7157
      %v7159 = vmul.f32 %v7097, 1.442695
      %v7160 = vpow.pop %v7159
      %v7161 = vmul.f32 %v7098, 1.442695
      %v7162 = vpow.pop %v7161
      %v7163 = vadd.f32 %v7100, 1.0
      %v7164 = vadd.f32 %v7102, 1.0
      %v7165 = vadd.f32 %v7104, 1.0
      %v7166 = vadd.f32 %v7106, 1.0
      %v7167 = vadd.f32 %v7108, 1.0
      %v7168 = vadd.f32 %v7110, 1.0
      %v7169 = vadd.f32 %v7112, 1.0
      %v7170 = vadd.f32 %v7114, 1.0
      %v7171 = vadd.f32 %v7116, 1.0
      %v7172 = vadd.f32 %v7118, 1.0
      %v7173 = vadd.f32 %v7120, 1.0
      %v7174 = vadd.f32 %v7122, 1.0
      %v7175 = vadd.f32 %v7124, 1.0
      %v7176 = vadd.f32 %v7126, 1.0
      %v7177 = vadd.f32 %v7128, 1.0
      %v7178 = vadd.f32 %v7130, 1.0
      %v7179 = vadd.f32 %v7132, 1.0
      %v7180 = vadd.f32 %v7134, 1.0
      %v7181 = vadd.f32 %v7136, 1.0
      %v7182 = vadd.f32 %v7138, 1.0
      %v7183 = vadd.f32 %v7140, 1.0
      %v7184 = vadd.f32 %v7142, 1.0
      %v7185 = vadd.f32 %v7144, 1.0
      %v7186 = vadd.f32 %v7146, 1.0
      %v7187 = vadd.f32 %v7148, 1.0
      %v7188 = vadd.f32 %v7150, 1.0
      %v7189 = vadd.f32 %v7152, 1.0
      %v7190 = vadd.f32 %v7154, 1.0
      %v7191 = vadd.f32 %v7156, 1.0
      %v7192 = vadd.f32 %v7158, 1.0
      %v7193 = vadd.f32 %v7160, 1.0
      %v7194 = vadd.f32 %v7162, 1.0
      %v7195 = vrcp.pop %v7163
      %v7196 = vmul.f32 1.0, %v7195
      %v7197 = vrcp.pop %v7164
      %v7198 = vmul.f32 1.0, %v7197
      %v7199 = vrcp.pop %v7165
      %v7200 = vmul.f32 1.0, %v7199
      %v7201 = vrcp.pop %v7166
      %v7202 = vmul.f32 1.0, %v7201
      %v7203 = vrcp.pop %v7167
      %v7204 = vmul.f32 1.0, %v7203
      %v7205 = vrcp.pop %v7168
      %v7206 = vmul.f32 1.0, %v7205
      %v7207 = vrcp.pop %v7169
      %v7208 = vmul.f32 1.0, %v7207
      %v7209 = vrcp.pop %v7170
      %v7210 = vmul.f32 1.0, %v7209
      %v7211 = vrcp.pop %v7171
      %v7212 = vmul.f32 1.0, %v7211
      %v7213 = vrcp.pop %v7172
      %v7214 = vmul.f32 1.0, %v7213
      %v7215 = vrcp.pop %v7173
      %v7216 = vmul.f32 1.0, %v7215
      %v7217 = vrcp.pop %v7174
      %v7218 = vmul.f32 1.0, %v7217
      %v7219 = vrcp.pop %v7175
      %v7220 = vmul.f32 1.0, %v7219
      %v7221 = vrcp.pop %v7176
      %v7222 = vmul.f32 1.0, %v7221
      %v7223 = vrcp.pop %v7177
      %v7224 = vmul.f32 1.0, %v7223
      %v7225 = vrcp.pop %v7178
      %v7226 = vmul.f32 1.0, %v7225
      %v7227 = vrcp.pop %v7179
      %v7228 = vmul.f32 1.0, %v7227
      %v7229 = vrcp.pop %v7180
      %v7230 = vmul.f32 1.0, %v7229
      %v7231 = vrcp.pop %v7181
      %v7232 = vmul.f32 1.0, %v7231
      %v7233 = vrcp.pop %v7182
      %v7234 = vmul.f32 1.0, %v7233
      %v7235 = vrcp.pop %v7183
      %v7236 = vmul.f32 1.0, %v7235
      %v7237 = vrcp.pop %v7184
      %v7238 = vmul.f32 1.0, %v7237
      %v7239 = vrcp.pop %v7185
      %v7240 = vmul.f32 1.0, %v7239
      %v7241 = vrcp.pop %v7186
      %v7242 = vmul.f32 1.0, %v7241
      %v7243 = vrcp.pop %v7187
      %v7244 = vmul.f32 1.0, %v7243
      %v7245 = vrcp.pop %v7188
      %v7246 = vmul.f32 1.0, %v7245
      %v7247 = vrcp.pop %v7189
      %v7248 = vmul.f32 1.0, %v7247
      %v7249 = vrcp.pop %v7190
      %v7250 = vmul.f32 1.0, %v7249
      %v7251 = vrcp.pop %v7191
      %v7252 = vmul.f32 1.0, %v7251
      %v7253 = vrcp.pop %v7192
      %v7254 = vmul.f32 1.0, %v7253
      %v7255 = vrcp.pop %v7193
      %v7256 = vmul.f32 1.0, %v7255
      %v7257 = vrcp.pop %v7194
      %v7258 = vmul.f32 1.0, %v7257
      %vm7259 = vcmask 23552
      %7260 = vst.msk [vmem:[%s464] sm:$0xff] %vm7259, %v7196
      %7261 = vst.msk [vmem:[%s464 + $0x8] sm:$0xff] %vm7259, %v7198
      %7262 = vst.msk [vmem:[%s464 + $0x10] sm:$0xff] %vm7259, %v7200
      %7263 = vst.msk [vmem:[%s464 + $0x18] sm:$0xff] %vm7259, %v7202
      %7264 = vst.msk [vmem:[%s464 + $0x20] sm:$0xff] %vm7259, %v7204
      %7265 = vst.msk [vmem:[%s464 + $0x28] sm:$0xff] %vm7259, %v7206
      %7266 = vst.msk [vmem:[%s464 + $0x30] sm:$0xff] %vm7259, %v7208
      %7267 = vst.msk [vmem:[%s464 + $0x38] sm:$0xff] %vm7259, %v7210
      %7268 = vst.msk [vmem:[%s464 + $0x40] sm:$0xff] %vm7259, %v7212
      %7269 = vst.msk [vmem:[%s464 + $0x48] sm:$0xff] %vm7259, %v7214
      %7270 = vst.msk [vmem:[%s464 + $0x50] sm:$0xff] %vm7259, %v7216
      %7271 = vst.msk [vmem:[%s464 + $0x58] sm:$0xff] %vm7259, %v7218
      %7272 = vst.msk [vmem:[%s464 + $0x60] sm:$0xff] %vm7259, %v7220
      %7273 = vst.msk [vmem:[%s464 + $0x68] sm:$0xff] %vm7259, %v7222
      %7274 = vst.msk [vmem:[%s464 + $0x70] sm:$0xff] %vm7259, %v7224
      %7275 = vst.msk [vmem:[%s464 + $0x78] sm:$0xff] %vm7259, %v7226
      %7276 = vst.msk [vmem:[%s464 + $0x80] sm:$0xff] %vm7259, %v7228
      %7277 = vst.msk [vmem:[%s464 + $0x88] sm:$0xff] %vm7259, %v7230
      %7278 = vst.msk [vmem:[%s464 + $0x90] sm:$0xff] %vm7259, %v7232
      %7279 = vst.msk [vmem:[%s464 + $0x98] sm:$0xff] %vm7259, %v7234
      %7280 = vst.msk [vmem:[%s464 + $0xa0] sm:$0xff] %vm7259, %v7236
      %7281 = vst.msk [vmem:[%s464 + $0xa8] sm:$0xff] %vm7259, %v7238
      %7282 = vst.msk [vmem:[%s464 + $0xb0] sm:$0xff] %vm7259, %v7240
      %7283 = vst.msk [vmem:[%s464 + $0xb8] sm:$0xff] %vm7259, %v7242
      %7284 = vst.msk [vmem:[%s464 + $0xc0] sm:$0xff] %vm7259, %v7244
      %7285 = vst.msk [vmem:[%s464 + $0xc8] sm:$0xff] %vm7259, %v7246
      %7286 = vst.msk [vmem:[%s464 + $0xd0] sm:$0xff] %vm7259, %v7248
      %7287 = vst.msk [vmem:[%s464 + $0xd8] sm:$0xff] %vm7259, %v7250
      %7288 = vst.msk [vmem:[%s464 + $0xe0] sm:$0xff] %vm7259, %v7252
      %7289 = vst.msk [vmem:[%s464 + $0xe8] sm:$0xff] %vm7259, %v7254
      %7290 = vst.msk [vmem:[%s464 + $0xf0] sm:$0xff] %vm7259, %v7256
      %7291 = vst.msk [vmem:[%s464 + $0xf8] sm:$0xff] %vm7259, %v7258
      %vm7292 = vcmask 31768
      %7293 = vst.msk [vmem:[%s464] sm:$0xff] %vm7292, %v5174
      %7294 = vst.msk [vmem:[%s464 + $0x8] sm:$0xff] %vm7292, %v5175
      %7295 = vst.msk [vmem:[%s464 + $0x10] sm:$0xff] %vm7292, %v5176
      %7296 = vst.msk [vmem:[%s464 + $0x18] sm:$0xff] %vm7292, %v5177
      %7297 = vst.msk [vmem:[%s464 + $0x20] sm:$0xff] %vm7292, %v5178
      %7298 = vst.msk [vmem:[%s464 + $0x28] sm:$0xff] %vm7292, %v5179
      %7299 = vst.msk [vmem:[%s464 + $0x30] sm:$0xff] %vm7292, %v5180
      %7300 = vst.msk [vmem:[%s464 + $0x38] sm:$0xff] %vm7292, %v5181
      %7301 = vst.msk [vmem:[%s464 + $0x40] sm:$0xff] %vm7292, %v5182
      %7302 = vst.msk [vmem:[%s464 + $0x48] sm:$0xff] %vm7292, %v5183
      %7303 = vst.msk [vmem:[%s464 + $0x50] sm:$0xff] %vm7292, %v5184
      %7304 = vst.msk [vmem:[%s464 + $0x58] sm:$0xff] %vm7292, %v5185
      %7305 = vst.msk [vmem:[%s464 + $0x60] sm:$0xff] %vm7292, %v5186
      %7306 = vst.msk [vmem:[%s464 + $0x68] sm:$0xff] %vm7292, %v5187
      %7307 = vst.msk [vmem:[%s464 + $0x70] sm:$0xff] %vm7292, %v5188
      %7308 = vst.msk [vmem:[%s464 + $0x78] sm:$0xff] %vm7292, %v5189
      %7309 = vst.msk [vmem:[%s464 + $0x80] sm:$0xff] %vm7292, %v5190
      %7310 = vst.msk [vmem:[%s464 + $0x88] sm:$0xff] %vm7292, %v5191
      %7311 = vst.msk [vmem:[%s464 + $0x90] sm:$0xff] %vm7292, %v5192
      %7312 = vst.msk [vmem:[%s464 + $0x98] sm:$0xff] %vm7292, %v5193
      %7313 = vst.msk [vmem:[%s464 + $0xa0] sm:$0xff] %vm7292, %v5194
      %7314 = vst.msk [vmem:[%s464 + $0xa8] sm:$0xff] %vm7292, %v5195
      %7315 = vst.msk [vmem:[%s464 + $0xb0] sm:$0xff] %vm7292, %v5196
      %7316 = vst.msk [vmem:[%s464 + $0xb8] sm:$0xff] %vm7292, %v5197
      %7317 = vst.msk [vmem:[%s464 + $0xc0] sm:$0xff] %vm7292, %v5198
      %7318 = vst.msk [vmem:[%s464 + $0xc8] sm:$0xff] %vm7292, %v5199
      %7319 = vst.msk [vmem:[%s464 + $0xd0] sm:$0xff] %vm7292, %v5200
      %7320 = vst.msk [vmem:[%s464 + $0xd8] sm:$0xff] %vm7292, %v5201
      %7321 = vst.msk [vmem:[%s464 + $0xe0] sm:$0xff] %vm7292, %v5202
      %7322 = vst.msk [vmem:[%s464 + $0xe8] sm:$0xff] %vm7292, %v5203
      %7323 = vst.msk [vmem:[%s464 + $0xf0] sm:$0xff] %vm7292, %v5204
      %7324 = vst.msk [vmem:[%s464 + $0xf8] sm:$0xff] %vm7292, %v5205
      %s7325 = smul.u32 32, %s24
      %p7326 = scmp.lt.s32.totalorder %s7325, 63
      %s7327 = scalar_select %p7326, %s7325, 63
      %s7328 = smul.addr %s7327, 8
      %s7329 = scalar_lea.vmem %s13, %s7328
      // Predicated region
      $region73: #{block_nerf_forward.1} parent=71 // pred_check
        %p7330 = pneg %p325
      $region74: #{block_nerf_forward.1} parent=71 // pred_check_branch
        %7332 = sbr.rel (%p7330) target = $region76
      $region75: #{block_nerf_forward.1} parent=71 // pred_region
        %s7333 = smul.u32 32, %s24
      $region76: #{block_nerf_forward.1} parent=71 // pred_fallthru
        _
    $region72: #{block_nerf_forward.1} parent=5 // pred_fallthru
      _
    %p7334 = scmp.le.s32.totalorder 2, %s19
    // Predicated region
    $region77: #{block_nerf_forward.1} parent=5 // pred_check
      %p7335 = pneg %p7334
    $region78: #{block_nerf_forward.1} parent=5 // pred_check_branch
      %7337 = sbr.rel (%p7335) target = $region80
    $region79: #{block_nerf_forward.1} parent=5 // pred_region
      %s7338 = ssub.s32 %s19, 2
      // Predicated region
      $region81: #{block_nerf_forward.1} parent=79 // pred_check
        %p7339 = pneg %p331
      $region82: #{block_nerf_forward.1} parent=79 // pred_check_branch
        %7341 = sbr.rel (%p7339) target = $region84
      $region83: #{block_nerf_forward.1} parent=79 // pred_region
        %s7342 = smul.u32 32, %s25
        %p7343 = scmp.lt.s32.totalorder %s7342, 63
        %s7344 = scalar_select %p7343, %s7342, 63
        %s7345 = smul.addr %s7344, 8
        %s7346 = scalar_lea.vmem %s13, %s7345
      $region84: #{block_nerf_forward.1} parent=79 // pred_fallthru
        _
    $region80: #{block_nerf_forward.1} parent=5 // pred_fallthru
      _
  $region6: #{block_nerf_forward.1} parent=0 // loop_footer
    %s23 = sadd.s32 1, %s19
  $region7: #{block_nerf_forward.1} parent=0 // loop_footer_branch
    %18 = sbr.rel target = $region3
  $region8: #{block_nerf_forward.1} parent=0 // loop_exit
    _

</llo_original>
